<compile_context>
chip_gen: v6e
topology: v6e:2x2x1
jax: 0.10.0
libtpu: 0.0.40
codegen_flags: <defaults>
</compile_context>

<pallas_src>
import functools
import math

import jax
import jax.numpy as jnp
from jax.experimental import pallas as pl
from jax.experimental.pallas import tpu as pltpu

cfg = {
    'vgg11': [64, 'M', 128, 'M', 256, 256, 'M', 512, 512, 'M', 512, 512, 'M'],
    'vgg13': [64, 64, 'M', 128, 128, 'M', 256, 256, 'M', 512, 512, 'M', 512, 512, 'M'],
    'vgg16': [64, 64, 'M', 128, 128, 'M', 256, 256, 256, 'M', 512, 512, 512, 'M',
              512, 512, 512, 'M'],
    'vgg19': [64, 64, 'M', 128, 128, 'M', 256, 256, 256, 256, 'M', 512, 512, 512, 512,
              'M', 512, 512, 512, 512, 'M'],
}


# ----------------------------------------------------------------------------- kernels

def _conv3x3_kernel(x0_ref, x1_ref, w_ref, b_ref, o_ref, *, act, W):
    """3x3 SAME conv on one row block; taps folded into in-kernel MXU matmuls.

    x0_ref / x1_ref: (1, tho, W+2, Cin) bf16 — two *adjacent* row blocks of the
        zero-padded NHWC input; together they provide the tho+2 rows needed for
        tho output rows (halo handled statically, no manual DMA).
    w_ref: (9*Cin, Cout) bf16 resident weight, rows ordered (kh, kw, ci).
    b_ref: (1, Cout) f32.   o_ref: (1, tho, W, Cout) bf16.
    """
    _, tho, _, Cin = x0_ref.shape
    Cout = w_ref.shape[1]
    # Hoisted: JAX does not CSE broadcasts; weight tap views loaded once per block.
    bias = jnp.broadcast_to(b_ref[...], (W, Cout))
    w_taps = [w_ref[t * Cin:(t + 1) * Cin, :] for t in range(9)]

    for r in range(tho):                                  # static unroll (tho <= 8)
        acc = bias                                        # f32 (W, Cout), bias folded in
        for kh in range(3):
            rr = r + kh
            src, ri = (x0_ref, rr) if rr < tho else (x1_ref, rr - tho)
            for kw in range(3):
                patch = src[0, ri, kw:kw + W, :]          # (W, Cin) bf16
                acc = acc + jnp.dot(patch, w_taps[kh * 3 + kw],
                                    preferred_element_type=jnp.float32)
        if act == 'relu':
            acc = jnp.maximum(acc, 0.0)
        elif act == 'tanh':
            acc = jnp.tanh(acc)
        o_ref[0, r] = acc.astype(o_ref.dtype)


def _gemm_kernel(x_ref, w_ref, b_ref, o_ref, acc_ref, *, act):
    """o = act(X @ W + b); bf16 operands, f32 accumulation over the K grid axis.
    Bias is folded into the accumulator init (shorter epilogue)."""
    k = pl.program_id(2)

    @pl.when(k == 0)
    def _():
        acc_ref[...] = jnp.broadcast_to(b_ref[...], acc_ref.shape)

    acc_ref[...] += jnp.dot(x_ref[...], w_ref[...],
                            preferred_element_type=jnp.float32)

    @pl.when(k == pl.num_programs(2) - 1)
    def _():
        y = acc_ref[...]
        if act == 'relu':
            y = jnp.maximum(y, 0.0)
        elif act == 'tanh':
            y = jnp.tanh(y)
        o_ref[...] = y.astype(o_ref.dtype)


def _maxpool_kernel(x_ref, o_ref):
    """x_ref block: (1, tho, 2, Wo, 2*C) view of raw NHWC rows; o_ref: (1, tho, Wo, C)."""
    # TODO(synk): for C < 128 (first pool) the output stores are masked partial-lane
    #             stores; repacking to a 128-multiple last dim is a minor possible win.
    C = o_ref.shape[-1]
    x = x_ref[0]                              # (tho, 2, Wo, 2C)
    h = jnp.maximum(x[:, 0], x[:, 1])         # max over the H pair
    o_ref[0] = jnp.maximum(h[:, :, :C], h[:, :, C:])   # max over the W pair (lane halves)


# ----------------------------------------------------------------------------- helpers

@functools.lru_cache(maxsize=None)
def _vmem_limit_bytes():
    """~3/4 of physical VMEM (96 MiB on v5e/v6e, 48 MiB on v7x); safe fallback."""
    try:
        cap = int(pltpu.get_tpu_info().vmem_capacity_bytes)
    except Exception:
        cap = 64 * 1024 * 1024
    return min((cap * 3) // 4, 96 * 1024 * 1024)


def _tile_and_pad(dim, max_tile, align):
    """Pick a block size <= max_tile for `dim`; return (tile, padded_dim)."""
    if dim <= max_tile:
        return dim, dim                      # single full-extent block (always legal)
    if dim % align == 0:
        t0 = max_tile - (max_tile % align)
        for t in range(t0, 0, -align):
            if dim % t == 0:
                return t, dim
    t = max(align, max_tile - (max_tile % align))
    return t, ((dim + t - 1) // t) * t


# ----------------------------------------------------------------------------- wrappers

def conv3x3(x, w_mat, b, act, max_rows=8):
    """x: (N,H,W,Cin) NHWC; w_mat: (9*Cin, Cout) rows ordered (kh,kw,ci); b: (Cout,)."""
    N, H, W, Cin = x.shape
    Cout = w_mat.shape[1]
    if H == 1:
        # Pad one zero row so the 2-row halo scheme applies; row 0 result is unchanged
        # because the SAME padding below row 0 is zero either way.
        y = conv3x3(jnp.pad(x, ((0, 0), (0, 1), (0, 0), (0, 0))), w_mat, b, act, max_rows)
        return y[:, :1]

    x = x.astype(jnp.bfloat16)
    w_mat = w_mat.astype(jnp.bfloat16)
    b2 = b.astype(jnp.float32).reshape(1, Cout)

    tho = min(H, max_rows)                  # >= 2 here
    nhb = -(-H // tho)
    Hop = nhb * tho                         # padded output rows
    Hin = (nhb + 1) * tho                   # padded input rows (block h+1 must exist)
    Wp2 = W + 2
    xp = jnp.pad(x, ((0, 0), (1, Hin - (H + 1)), (1, 1), (0, 0)))   # SAME pad + block pad

    flops = 2 * N * Hop * W * 9 * Cin * Cout
    trans = N * Hop * W * Cout if act == 'tanh' else 0
    bytes_accessed = (2 * N * Hin * Wp2 * Cin * 2 + 9 * Cin * Cout * 2
                      + Cout * 4 + N * Hop * W * Cout * 2)

    out = pl.pallas_call(
        functools.partial(_conv3x3_kernel, act=act, W=W),
        out_shape=jax.ShapeDtypeStruct((N, Hop, W, Cout), jnp.bfloat16),
        grid_spec=pltpu.PrefetchScalarGridSpec(
            num_scalar_prefetch=0,
            grid=(N, nhb),
            in_specs=[
                pl.BlockSpec((1, tho, Wp2, Cin), lambda n, h: (n, h, 0, 0)),
                pl.BlockSpec((1, tho, Wp2, Cin), lambda n, h: (n, h + 1, 0, 0)),
                # Constant-index full weight / bias blocks -> stay resident in VMEM.
                pl.BlockSpec((9 * Cin, Cout), lambda n, h: (0, 0)),
                pl.BlockSpec((1, Cout), lambda n, h: (0, 0)),
            ],
            out_specs=pl.BlockSpec((1, tho, W, Cout), lambda n, h: (n, h, 0, 0)),
        ),
        compiler_params=pltpu.CompilerParams(
            dimension_semantics=("parallel", "parallel"),
            vmem_limit_bytes=_vmem_limit_bytes(),
        ),
        cost_estimate=pl.CostEstimate(flops=flops, transcendentals=trans,
                                      bytes_accessed=bytes_accessed),
    )(xp, xp, w_mat, b2)
    return out if Hop == H else out[:, :H]


def gemm_bias_act(x, w, b, act, out_dtype=jnp.float32,
                  max_tm=128, max_tk=2048, max_tn=2048):
    """x: (M, K), w: (K, Nout), b: (Nout,) -> act(x @ w + b) : (M, Nout)."""
    M, K = x.shape
    K2, Nout = w.shape
    assert K == K2
    x = x.astype(jnp.bfloat16)
    w = w.astype(jnp.bfloat16)
    b = b.astype(jnp.float32)

    # Lane-pad wide non-128-aligned output dims (e.g. the 1000-way logits -> 1024).
    Np = Nout
    if Nout > 128 and Nout % 128 != 0:
        Np = ((Nout + 127) // 128) * 128
        w = jnp.pad(w, ((0, 0), (0, Np - Nout)))
        b = jnp.pad(b, ((0, Np - Nout),))

    tm, Mp = _tile_and_pad(M, max_tm, 16)      # 16-row alignment for bf16 sublane packing
    tk, Kp = _tile_and_pad(K, max_tk, 128)
    tn, Npp = _tile_and_pad(Np, max_tn, 128)
    if Mp != M or Kp != K:
        x = jnp.pad(x, ((0, Mp - M), (0, Kp - K)))
    if Kp != K or Npp != Np:
        w = jnp.pad(w, ((0, Kp - K), (0, Npp - Np)))
    if Npp != Np:
        b = jnp.pad(b, ((0, Npp - Np),))
    Np = Npp

    grid = (Mp // tm, Np // tn, Kp // tk)
    out_itemsize = jnp.dtype(out_dtype).itemsize
    flops = 2 * Mp * Kp * Np
    trans = Mp * Np if act == 'tanh' else 0
    bytes_accessed = Mp * Kp * 2 + Kp * Np * 2 + Np * 4 + Mp * Np * out_itemsize

    out = pl.pallas_call(
        functools.partial(_gemm_kernel, act=act),
        out_shape=jax.ShapeDtypeStruct((Mp, Np), out_dtype),
        grid_spec=pltpu.PrefetchScalarGridSpec(
            num_scalar_prefetch=0,
            grid=grid,
            in_specs=[
                pl.BlockSpec((tm, tk), lambda i, j, k: (i, k)),
                pl.BlockSpec((tk, tn), lambda i, j, k: (k, j)),
                pl.BlockSpec((1, tn), lambda i, j, k: (0, j)),
            ],
            out_specs=pl.BlockSpec((tm, tn), lambda i, j, k: (i, j)),
            # Small (tm, tn) f32 accumulator so K accumulation stays f32 while the
            # output can be written directly in bf16 (halves output HBM traffic).
            scratch_shapes=[pltpu.VMEM((tm, tn), jnp.float32)],
        ),
        compiler_params=pltpu.CompilerParams(
            dimension_semantics=("parallel", "parallel", "arbitrary"),
            vmem_limit_bytes=_vmem_limit_bytes(),
        ),
        cost_estimate=pl.CostEstimate(flops=flops, transcendentals=trans,
                                      bytes_accessed=bytes_accessed),
    )(x, w, b.reshape(1, Np))
    if Mp != M or Np != Nout:
        out = out[:M, :Nout]
    return out


def maxpool2x2(x):
    """x: (N, H, W, C) -> (N, H//2, W//2, C)  (floor semantics like MaxPool2d(2,2))."""
    N, H, W, C = x.shape
    Ho, Wo = H // 2, W // 2
    if H != 2 * Ho or W != 2 * Wo:
        x = x[:, :2 * Ho, :2 * Wo, :]
    # Pure row-major regroup (no transpose): (N,H,W,C) -> (N,Ho,2,Wo,2C)
    xr = x.reshape(N, Ho, 2, Wo, 2 * C)

    itemsize = x.dtype.itemsize
    row_bytes = 2 * Wo * 2 * C * itemsize                  # input bytes per output row
    budget = max(row_bytes, min(16 * 1024 * 1024, _vmem_limit_bytes() // 6))
    tho = max(1, min(Ho, budget // row_bytes))             # VMEM-budget driven, no
    nhb = -(-Ho // tho)                                    # divisor-only collapse
    Hop = nhb * tho
    if Hop != Ho:                                          # ragged (e.g. prime Ho=149)
        xr = jnp.pad(xr, ((0, 0), (0, Hop - Ho), (0, 0), (0, 0), (0, 0)))

    flops = 3 * N * Hop * Wo * C
    bytes_accessed = N * Hop * 2 * Wo * 2 * C * itemsize + N * Hop * Wo * C * itemsize

    out = pl.pallas_call(
        _maxpool_kernel,
        out_shape=jax.ShapeDtypeStruct((N, Hop, Wo, C), x.dtype),
        grid_spec=pltpu.PrefetchScalarGridSpec(
            num_scalar_prefetch=0,
            grid=(N, nhb),
            in_specs=[pl.BlockSpec((1, tho, 2, Wo, 2 * C),
                                   lambda n, h: (n, h, 0, 0, 0))],
            out_specs=pl.BlockSpec((1, tho, Wo, C), lambda n, h: (n, h, 0, 0)),
        ),
        compiler_params=pltpu.CompilerParams(
            dimension_semantics=("parallel", "parallel"),
            vmem_limit_bytes=_vmem_limit_bytes(),
        ),
        cost_estimate=pl.CostEstimate(flops=flops, transcendentals=0,
                                      bytes_accessed=bytes_accessed),
    )(xr)
    return out if Hop == Ho else out[:, :Ho]


# ----------------------------------------------------------------------------- model

def init_params(key, vgg_name='vgg11', input_size=32, init_std=1.0 / 299.0,
                use_tanh=True):
    """Kaiming-normal weights (fan_in, gain sqrt(2)), zero biases — mirrors __init__.
    Conv weights stored as (9*Cin, Cout) with (kh, kw, ci) row ordering, bf16."""
    conv_cfg = cfg[vgg_name]
    last_conv_idx = max(i for i, v in enumerate(conv_cfg) if v != 'M')
    keys = jax.random.split(key, 2 * len(conv_cfg) + 8)
    ki = 0

    feats = []
    in_c = 3
    for i, v in enumerate(conv_cfg):
        if v == 'M':
            feats.append(('pool', None))
            continue
        fan_in = in_c * 9
        std = math.sqrt(2.0 / fan_in)
        w = (jax.random.normal(keys[ki], (9 * in_c, v), jnp.float32) * std
             ).astype(jnp.bfloat16)
        ki += 1
        b = jnp.zeros((v,), jnp.float32)
        act = 'tanh' if (use_tanh and i == last_conv_idx) else 'relu'
        feats.append(('conv', (w, b, act)))
        in_c = v

    s = input_size
    for v in conv_cfg:
        if v == 'M':
            s //= 2
    # Classifier: Linear(512*s*s,4096) -> ReLU -> Linear(4096,4096) -> ReLU -> Linear(4096,1000)
    cls_dims = [(512 * s * s, 4096), (4096, 4096), (4096, 1000)]
    cls = []
    for din, dout in cls_dims:
        std = math.sqrt(2.0 / din)
        w = (jax.random.normal(keys[ki], (din, dout), jnp.float32) * std
             ).astype(jnp.bfloat16)
        ki += 1
        cls.append((w, jnp.zeros((dout,), jnp.float32)))

    extras = dict(
        normal_mean=jnp.zeros((3, input_size, input_size), jnp.float32),
        normal_logstd=jnp.full((1,), math.log(init_std), jnp.float32),
        empty_coeff=jnp.full((1,), 0.5, jnp.float32),
        empty_normal_mean=jnp.zeros((3, input_size, input_size), jnp.float32),
    )
    return feats, cls, extras


def get_logit(feats, cls, x_nchw):
    # TODO(synk): whiten_func is `lambda t: 1/0` in the source (set externally); identity here.
    x = jnp.transpose(x_nchw, (0, 2, 3, 1)).astype(jnp.bfloat16)   # NCHW -> NHWC
    for kind, p in feats:
        if kind == 'pool':
            x = maxpool2x2(x)
        else:
            w, b, act = p
            x = conv3x3(x, w, b, act)
    N = x.shape[0]
    # match PyTorch `out.view(N, -1)` on NCHW ordering (glue)
    x = jnp.transpose(x, (0, 3, 1, 2)).reshape(N, -1)
    (w1, b1), (w2, b2), (w3, b3) = cls
    x = gemm_bias_act(x, w1, b1, 'relu', out_dtype=jnp.bfloat16,
                      max_tm=128, max_tk=2048, max_tn=2048)
    x = gemm_bias_act(x, w2, b2, 'relu', out_dtype=jnp.bfloat16,
                      max_tm=128, max_tk=2048, max_tn=2048)
    return gemm_bias_act(x, w3, b3, 'none', out_dtype=jnp.float32,
                         max_tm=128, max_tk=2048, max_tn=2048)


def vgg_inv_forward(feats, cls, extras, adv_image, image, label, target,
                    output_fields):
    # TODO(synk): `inv_forward` is not defined in the given module source; exposing the
    #             classifier hot path on adv_image plus 'std' = exp(normal_logstd).
    del image, label, target
    output = {'logit': get_logit(feats, cls, adv_image)}
    if 'std' in output_fields:
        output['std'] = jnp.exp(extras['normal_logstd'])
    return output


# ----------------------------------------------------------------------------- main

if __name__ == "__main__":
    key = jax.random.PRNGKey(0)
    k_adv, k_img, k_par = jax.random.split(key, 3)

    S = 32  # small input_size (module default is 299); 5 pools -> 1x1x512 feature map
    feats, cls, extras = init_params(k_par, 'vgg11', input_size=S)

    adv_image = jax.random.uniform(k_adv, (2, 3, S, S), jnp.float32)
    image = jax.random.uniform(k_img, (2, 3, S, S), jnp.float32)
    label = jnp.array([1, 2], jnp.int32)
    target = jnp.array([3, 4], jnp.int32)

    out = vgg_inv_forward(feats, cls, extras, adv_image, image, label, target,
                          output_fields=('mean', 'std'))
    jax.block_until_ready(out['logit'])
    jax.block_until_ready(out['std'])
    assert out['logit'].shape == (2, 1000)
    assert out['std'].shape == (1,)
    print("KERNEL_OK")
</pallas_src>

<mosaic_0001>
module attributes {stable_mosaic.version = 11 : i64} {
  func.func @_conv3x3_kernel(%arg0: i32, %arg1: i32, %arg2: memref<1x8x34x3xbf16, #tpu.memory_space<vmem>>, %arg3: memref<1x8x34x3xbf16, #tpu.memory_space<vmem>>, %arg4: memref<27x64xbf16, #tpu.memory_space<vmem>>, %arg5: memref<1x64xf32, #tpu.memory_space<vmem>>, %arg6: memref<1x8x32x64xbf16, #tpu.memory_space<vmem>>) attributes {dimension_semantics = [#tpu.dimension_semantics<parallel>, #tpu.dimension_semantics<parallel>], iteration_bounds = array<i64: 2, 4>, scalar_prefetch = 0 : i64, scratch_operands = 0 : i64, tpu.core_type = #tpu.core_type<tc>, window_params = [{transform_indices = @transform_0, window_bounds = array<i64: 1, 8, 34, 3>}, {transform_indices = @transform_1, window_bounds = array<i64: 1, 8, 34, 3>}, {pipeline_mode = #tpu.pipeline_mode<synchronous>, transform_indices = @transform_2, window_bounds = array<i64: 27, 64>}, {pipeline_mode = #tpu.pipeline_mode<synchronous>, transform_indices = @transform_3, window_bounds = array<i64: 1, 64>}, {transform_indices = @transform_4, window_bounds = array<i64: 1, 8, 32, 64>}]} {
    %c0 = arith.constant 0 : index
    %c0_0 = arith.constant 0 : index
    %0 = vector.load %arg5[%c0, %c0_0] : memref<1x64xf32, #tpu.memory_space<vmem>>, vector<1x64xf32>
    %1 = vector.shape_cast %0 : vector<1x64xf32> to vector<1x64xf32>
    %2 = vector.broadcast %1 : vector<1x64xf32> to vector<32x64xf32>
    %c0_1 = arith.constant 0 : index
    %c0_2 = arith.constant 0 : index
    %3 = vector.load %arg4[%c0_1, %c0_2] : memref<27x64xbf16, #tpu.memory_space<vmem>>, vector<3x64xbf16>
    %c3 = arith.constant 3 : index
    %c0_3 = arith.constant 0 : index
    %4 = vector.load %arg4[%c3, %c0_3] : memref<27x64xbf16, #tpu.memory_space<vmem>>, vector<3x64xbf16>
    %c6 = arith.constant 6 : index
    %c0_4 = arith.constant 0 : index
    %5 = vector.load %arg4[%c6, %c0_4] : memref<27x64xbf16, #tpu.memory_space<vmem>>, vector<3x64xbf16>
    %c9 = arith.constant 9 : index
    %c0_5 = arith.constant 0 : index
    %6 = vector.load %arg4[%c9, %c0_5] : memref<27x64xbf16, #tpu.memory_space<vmem>>, vector<3x64xbf16>
    %c12 = arith.constant 12 : index
    %c0_6 = arith.constant 0 : index
    %7 = vector.load %arg4[%c12, %c0_6] : memref<27x64xbf16, #tpu.memory_space<vmem>>, vector<3x64xbf16>
    %c15 = arith.constant 15 : index
    %c0_7 = arith.constant 0 : index
    %8 = vector.load %arg4[%c15, %c0_7] : memref<27x64xbf16, #tpu.memory_space<vmem>>, vector<3x64xbf16>
    %c18 = arith.constant 18 : index
    %c0_8 = arith.constant 0 : index
    %9 = vector.load %arg4[%c18, %c0_8] : memref<27x64xbf16, #tpu.memory_space<vmem>>, vector<3x64xbf16>
    %c21 = arith.constant 21 : index
    %c0_9 = arith.constant 0 : index
    %10 = vector.load %arg4[%c21, %c0_9] : memref<27x64xbf16, #tpu.memory_space<vmem>>, vector<3x64xbf16>
    %c24 = arith.constant 24 : index
    %c0_10 = arith.constant 0 : index
    %11 = vector.load %arg4[%c24, %c0_10] : memref<27x64xbf16, #tpu.memory_space<vmem>>, vector<3x64xbf16>
    %c0_11 = arith.constant 0 : index
    %c0_12 = arith.constant 0 : index
    %c0_13 = arith.constant 0 : index
    %c0_14 = arith.constant 0 : index
    %12 = vector.load %arg2[%c0_11, %c0_12, %c0_13, %c0_14] : memref<1x8x34x3xbf16, #tpu.memory_space<vmem>>, vector<1x1x32x3xbf16>
    %13 = vector.shape_cast %12 : vector<1x1x32x3xbf16> to vector<32x3xbf16>
    %cst = arith.constant dense<0.000000e+00> : vector<32x64xf32>
    %14 = tpu.matmul %13, %3, %cst {dimension_numbers = #tpu.dot_dimension_numbers<[1], [0], [0], [1], [0, 0, 1, 1], [], []>} : vector<32x3xbf16>, vector<3x64xbf16>, vector<32x64xf32> -> vector<32x64xf32>
    %15 = arith.addf %2, %14 : vector<32x64xf32>
    %c0_15 = arith.constant 0 : index
    %c0_16 = arith.constant 0 : index
    %c1 = arith.constant 1 : index
    %c0_17 = arith.constant 0 : index
    %16 = vector.load %arg2[%c0_15, %c0_16, %c1, %c0_17] : memref<1x8x34x3xbf16, #tpu.memory_space<vmem>>, vector<1x1x32x3xbf16>
    %17 = vector.shape_cast %16 : vector<1x1x32x3xbf16> to vector<32x3xbf16>
    %cst_18 = arith.constant dense<0.000000e+00> : vector<32x64xf32>
    %18 = tpu.matmul %17, %4, %cst_18 {dimension_numbers = #tpu.dot_dimension_numbers<[1], [0], [0], [1], [0, 0, 1, 1], [], []>} : vector<32x3xbf16>, vector<3x64xbf16>, vector<32x64xf32> -> vector<32x64xf32>
    %19 = arith.addf %15, %18 : vector<32x64xf32>
    %c0_19 = arith.constant 0 : index
    %c0_20 = arith.constant 0 : index
    %c2 = arith.constant 2 : index
    %c0_21 = arith.constant 0 : index
    %20 = vector.load %arg2[%c0_19, %c0_20, %c2, %c0_21] : memref<1x8x34x3xbf16, #tpu.memory_space<vmem>>, vector<1x1x32x3xbf16>
    %21 = vector.shape_cast %20 : vector<1x1x32x3xbf16> to vector<32x3xbf16>
    %cst_22 = arith.constant dense<0.000000e+00> : vector<32x64xf32>
    %22 = tpu.matmul %21, %5, %cst_22 {dimension_numbers = #tpu.dot_dimension_numbers<[1], [0], [0], [1], [0, 0, 1, 1], [], []>} : vector<32x3xbf16>, vector<3x64xbf16>, vector<32x64xf32> -> vector<32x64xf32>
    %23 = arith.addf %19, %22 : vector<32x64xf32>
    %c0_23 = arith.constant 0 : index
    %c1_24 = arith.constant 1 : index
    %c0_25 = arith.constant 0 : index
    %c0_26 = arith.constant 0 : index
    %24 = vector.load %arg2[%c0_23, %c1_24, %c0_25, %c0_26] : memref<1x8x34x3xbf16, #tpu.memory_space<vmem>>, vector<1x1x32x3xbf16>
    %25 = vector.shape_cast %24 : vector<1x1x32x3xbf16> to vector<32x3xbf16>
    %cst_27 = arith.constant dense<0.000000e+00> : vector<32x64xf32>
    %26 = tpu.matmul %25, %6, %cst_27 {dimension_numbers = #tpu.dot_dimension_numbers<[1], [0], [0], [1], [0, 0, 1, 1], [], []>} : vector<32x3xbf16>, vector<3x64xbf16>, vector<32x64xf32> -> vector<32x64xf32>
    %27 = arith.addf %23, %26 : vector<32x64xf32>
    %c0_28 = arith.constant 0 : index
    %c1_29 = arith.constant 1 : index
    %c1_30 = arith.constant 1 : index
    %c0_31 = arith.constant 0 : index
    %28 = vector.load %arg2[%c0_28, %c1_29, %c1_30, %c0_31] : memref<1x8x34x3xbf16, #tpu.memory_space<vmem>>, vector<1x1x32x3xbf16>
    %29 = vector.shape_cast %28 : vector<1x1x32x3xbf16> to vector<32x3xbf16>
    %cst_32 = arith.constant dense<0.000000e+00> : vector<32x64xf32>
    %30 = tpu.matmul %29, %7, %cst_32 {dimension_numbers = #tpu.dot_dimension_numbers<[1], [0], [0], [1], [0, 0, 1, 1], [], []>} : vector<32x3xbf16>, vector<3x64xbf16>, vector<32x64xf32> -> vector<32x64xf32>
    %31 = arith.addf %27, %30 : vector<32x64xf32>
    %c0_33 = arith.constant 0 : index
    %c1_34 = arith.constant 1 : index
    %c2_35 = arith.constant 2 : index
    %c0_36 = arith.constant 0 : index
    %32 = vector.load %arg2[%c0_33, %c1_34, %c2_35, %c0_36] : memref<1x8x34x3xbf16, #tpu.memory_space<vmem>>, vector<1x1x32x3xbf16>
    %33 = vector.shape_cast %32 : vector<1x1x32x3xbf16> to vector<32x3xbf16>
    %cst_37 = arith.constant dense<0.000000e+00> : vector<32x64xf32>
    %34 = tpu.matmul %33, %8, %cst_37 {dimension_numbers = #tpu.dot_dimension_numbers<[1], [0], [0], [1], [0, 0, 1, 1], [], []>} : vector<32x3xbf16>, vector<3x64xbf16>, vector<32x64xf32> -> vector<32x64xf32>
    %35 = arith.addf %31, %34 : vector<32x64xf32>
    %c0_38 = arith.constant 0 : index
    %c2_39 = arith.constant 2 : index
    %c0_40 = arith.constant 0 : index
    %c0_41 = arith.constant 0 : index
    %36 = vector.load %arg2[%c0_38, %c2_39, %c0_40, %c0_41] : memref<1x8x34x3xbf16, #tpu.memory_space<vmem>>, vector<1x1x32x3xbf16>
    %37 = vector.shape_cast %36 : vector<1x1x32x3xbf16> to vector<32x3xbf16>
    %cst_42 = arith.constant dense<0.000000e+00> : vector<32x64xf32>
    %38 = tpu.matmul %37, %9, %cst_42 {dimension_numbers = #tpu.dot_dimension_numbers<[1], [0], [0], [1], [0, 0, 1, 1], [], []>} : vector<32x3xbf16>, vector<3x64xbf16>, vector<32x64xf32> -> vector<32x64xf32>
    %39 = arith.addf %35, %38 : vector<32x64xf32>
    %c0_43 = arith.constant 0 : index
    %c2_44 = arith.constant 2 : index
    %c1_45 = arith.constant 1 : index
    %c0_46 = arith.constant 0 : index
    %40 = vector.load %arg2[%c0_43, %c2_44, %c1_45, %c0_46] : memref<1x8x34x3xbf16, #tpu.memory_space<vmem>>, vector<1x1x32x3xbf16>
    %41 = vector.shape_cast %40 : vector<1x1x32x3xbf16> to vector<32x3xbf16>
    %cst_47 = arith.constant dense<0.000000e+00> : vector<32x64xf32>
    %42 = tpu.matmul %41, %10, %cst_47 {dimension_numbers = #tpu.dot_dimension_numbers<[1], [0], [0], [1], [0, 0, 1, 1], [], []>} : vector<32x3xbf16>, vector<3x64xbf16>, vector<32x64xf32> -> vector<32x64xf32>
    %43 = arith.addf %39, %42 : vector<32x64xf32>
    %c0_48 = arith.constant 0 : index
    %c2_49 = arith.constant 2 : index
    %c2_50 = arith.constant 2 : index
    %c0_51 = arith.constant 0 : index
    %44 = vector.load %arg2[%c0_48, %c2_49, %c2_50, %c0_51] : memref<1x8x34x3xbf16, #tpu.memory_space<vmem>>, vector<1x1x32x3xbf16>
    %45 = vector.shape_cast %44 : vector<1x1x32x3xbf16> to vector<32x3xbf16>
    %cst_52 = arith.constant dense<0.000000e+00> : vector<32x64xf32>
    %46 = tpu.matmul %45, %11, %cst_52 {dimension_numbers = #tpu.dot_dimension_numbers<[1], [0], [0], [1], [0, 0, 1, 1], [], []>} : vector<32x3xbf16>, vector<3x64xbf16>, vector<32x64xf32> -> vector<32x64xf32>
    %47 = arith.addf %43, %46 : vector<32x64xf32>
    %cst_53 = arith.constant 0.000000e+00 : f32
    %48 = vector.broadcast %cst_53 : f32 to vector<32x64xf32>
    %49 = arith.maximumf %47, %48 : vector<32x64xf32>
    %50 = arith.truncf %49 : vector<32x64xf32> to vector<32x64xbf16>
    %c0_54 = arith.constant 0 : index
    %c0_55 = arith.constant 0 : index
    %c0_56 = arith.constant 0 : index
    %c0_57 = arith.constant 0 : index
    %51 = vector.load %arg6[%c0_54, %c0_55, %c0_56, %c0_57] : memref<1x8x32x64xbf16, #tpu.memory_space<vmem>>, vector<1x1x32x64xbf16>
    %52 = vector.shape_cast %51 : vector<1x1x32x64xbf16> to vector<32x64xbf16>
    %53 = vector.shape_cast %50 : vector<32x64xbf16> to vector<1x1x32x64xbf16>
    tpu.vector_store %arg6[%c0_54, %c0_55, %c0_56, %c0_57], %53 {strides = array<i32>} : memref<1x8x32x64xbf16, #tpu.memory_space<vmem>>, vector<1x1x32x64xbf16>,
    %c0_58 = arith.constant 0 : index
    %c1_59 = arith.constant 1 : index
    %c0_60 = arith.constant 0 : index
    %c0_61 = arith.constant 0 : index
    %54 = vector.load %arg2[%c0_58, %c1_59, %c0_60, %c0_61] : memref<1x8x34x3xbf16, #tpu.memory_space<vmem>>, vector<1x1x32x3xbf16>
    %55 = vector.shape_cast %54 : vector<1x1x32x3xbf16> to vector<32x3xbf16>
    %cst_62 = arith.constant dense<0.000000e+00> : vector<32x64xf32>
    %56 = tpu.matmul %55, %3, %cst_62 {dimension_numbers = #tpu.dot_dimension_numbers<[1], [0], [0], [1], [0, 0, 1, 1], [], []>} : vector<32x3xbf16>, vector<3x64xbf16>, vector<32x64xf32> -> vector<32x64xf32>
    %57 = arith.addf %2, %56 : vector<32x64xf32>
    %c0_63 = arith.constant 0 : index
    %c1_64 = arith.constant 1 : index
    %c1_65 = arith.constant 1 : index
    %c0_66 = arith.constant 0 : index
    %58 = vector.load %arg2[%c0_63, %c1_64, %c1_65, %c0_66] : memref<1x8x34x3xbf16, #tpu.memory_space<vmem>>, vector<1x1x32x3xbf16>
    %59 = vector.shape_cast %58 : vector<1x1x32x3xbf16> to vector<32x3xbf16>
    %cst_67 = arith.constant dense<0.000000e+00> : vector<32x64xf32>
    %60 = tpu.matmul %59, %4, %cst_67 {dimension_numbers = #tpu.dot_dimension_numbers<[1], [0], [0], [1], [0, 0, 1, 1], [], []>} : vector<32x3xbf16>, vector<3x64xbf16>, vector<32x64xf32> -> vector<32x64xf32>
    %61 = arith.addf %57, %60 : vector<32x64xf32>
    %c0_68 = arith.constant 0 : index
    %c1_69 = arith.constant 1 : index
    %c2_70 = arith.constant 2 : index
    %c0_71 = arith.constant 0 : index
    %62 = vector.load %arg2[%c0_68, %c1_69, %c2_70, %c0_71] : memref<1x8x34x3xbf16, #tpu.memory_space<vmem>>, vector<1x1x32x3xbf16>
    %63 = vector.shape_cast %62 : vector<1x1x32x3xbf16> to vector<32x3xbf16>
    %cst_72 = arith.constant dense<0.000000e+00> : vector<32x64xf32>
    %64 = tpu.matmul %63, %5, %cst_72 {dimension_numbers = #tpu.dot_dimension_numbers<[1], [0], [0], [1], [0, 0, 1, 1], [], []>} : vector<32x3xbf16>, vector<3x64xbf16>, vector<32x64xf32> -> vector<32x64xf32>
    %65 = arith.addf %61, %64 : vector<32x64xf32>
    %c0_73 = arith.constant 0 : index
    %c2_74 = arith.constant 2 : index
    %c0_75 = arith.constant 0 : index
    %c0_76 = arith.constant 0 : index
    %66 = vector.load %arg2[%c0_73, %c2_74, %c0_75, %c0_76] : memref<1x8x34x3xbf16, #tpu.memory_space<vmem>>, vector<1x1x32x3xbf16>
    %67 = vector.shape_cast %66 : vector<1x1x32x3xbf16> to vector<32x3xbf16>
    %cst_77 = arith.constant dense<0.000000e+00> : vector<32x64xf32>
    %68 = tpu.matmul %67, %6, %cst_77 {dimension_numbers = #tpu.dot_dimension_numbers<[1], [0], [0], [1], [0, 0, 1, 1], [], []>} : vector<32x3xbf16>, vector<3x64xbf16>, vector<32x64xf32> -> vector<32x64xf32>
    %69 = arith.addf %65, %68 : vector<32x64xf32>
    %c0_78 = arith.constant 0 : index
    %c2_79 = arith.constant 2 : index
    %c1_80 = arith.constant 1 : index
    %c0_81 = arith.constant 0 : index
    %70 = vector.load %arg2[%c0_78, %c2_79, %c1_80, %c0_81] : memref<1x8x34x3xbf16, #tpu.memory_space<vmem>>, vector<1x1x32x3xbf16>
    %71 = vector.shape_cast %70 : vector<1x1x32x3xbf16> to vector<32x3xbf16>
    %cst_82 = arith.constant dense<0.000000e+00> : vector<32x64xf32>
    %72 = tpu.matmul %71, %7, %cst_82 {dimension_numbers = #tpu.dot_dimension_numbers<[1], [0], [0], [1], [0, 0, 1, 1], [], []>} : vector<32x3xbf16>, vector<3x64xbf16>, vector<32x64xf32> -> vector<32x64xf32>
    %73 = arith.addf %69, %72 : vector<32x64xf32>
    %c0_83 = arith.constant 0 : index
    %c2_84 = arith.constant 2 : index
    %c2_85 = arith.constant 2 : index
    %c0_86 = arith.constant 0 : index
    %74 = vector.load %arg2[%c0_83, %c2_84, %c2_85, %c0_86] : memref<1x8x34x3xbf16, #tpu.memory_space<vmem>>, vector<1x1x32x3xbf16>
    %75 = vector.shape_cast %74 : vector<1x1x32x3xbf16> to vector<32x3xbf16>
    %cst_87 = arith.constant dense<0.000000e+00> : vector<32x64xf32>
    %76 = tpu.matmul %75, %8, %cst_87 {dimension_numbers = #tpu.dot_dimension_numbers<[1], [0], [0], [1], [0, 0, 1, 1], [], []>} : vector<32x3xbf16>, vector<3x64xbf16>, vector<32x64xf32> -> vector<32x64xf32>
    %77 = arith.addf %73, %76 : vector<32x64xf32>
    %c0_88 = arith.constant 0 : index
    %c3_89 = arith.constant 3 : index
    %c0_90 = arith.constant 0 : index
    %c0_91 = arith.constant 0 : index
    %78 = vector.load %arg2[%c0_88, %c3_89, %c0_90, %c0_91] : memref<1x8x34x3xbf16, #tpu.memory_space<vmem>>, vector<1x1x32x3xbf16>
    %79 = vector.shape_cast %78 : vector<1x1x32x3xbf16> to vector<32x3xbf16>
    %cst_92 = arith.constant dense<0.000000e+00> : vector<32x64xf32>
    %80 = tpu.matmul %79, %9, %cst_92 {dimension_numbers = #tpu.dot_dimension_numbers<[1], [0], [0], [1], [0, 0, 1, 1], [], []>} : vector<32x3xbf16>, vector<3x64xbf16>, vector<32x64xf32> -> vector<32x64xf32>
    %81 = arith.addf %77, %80 : vector<32x64xf32>
    %c0_93 = arith.constant 0 : index
    %c3_94 = arith.constant 3 : index
    %c1_95 = arith.constant 1 : index
    %c0_96 = arith.constant 0 : index
    %82 = vector.load %arg2[%c0_93, %c3_94, %c1_95, %c0_96] : memref<1x8x34x3xbf16, #tpu.memory_space<vmem>>, vector<1x1x32x3xbf16>
    %83 = vector.shape_cast %82 : vector<1x1x32x3xbf16> to vector<32x3xbf16>
    %cst_97 = arith.constant dense<0.000000e+00> : vector<32x64xf32>
    %84 = tpu.matmul %83, %10, %cst_97 {dimension_numbers = #tpu.dot_dimension_numbers<[1], [0], [0], [1], [0, 0, 1, 1], [], []>} : vector<32x3xbf16>, vector<3x64xbf16>, vector<32x64xf32> -> vector<32x64xf32>
    %85 = arith.addf %81, %84 : vector<32x64xf32>
    %c0_98 = arith.constant 0 : index
    %c3_99 = arith.constant 3 : index
    %c2_100 = arith.constant 2 : index
    %c0_101 = arith.constant 0 : index
    %86 = vector.load %arg2[%c0_98, %c3_99, %c2_100, %c0_101] : memref<1x8x34x3xbf16, #tpu.memory_space<vmem>>, vector<1x1x32x3xbf16>
    %87 = vector.shape_cast %86 : vector<1x1x32x3xbf16> to vector<32x3xbf16>
    %cst_102 = arith.constant dense<0.000000e+00> : vector<32x64xf32>
    %88 = tpu.matmul %87, %11, %cst_102 {dimension_numbers = #tpu.dot_dimension_numbers<[1], [0], [0], [1], [0, 0, 1, 1], [], []>} : vector<32x3xbf16>, vector<3x64xbf16>, vector<32x64xf32> -> vector<32x64xf32>
    %89 = arith.addf %85, %88 : vector<32x64xf32>
    %cst_103 = arith.constant 0.000000e+00 : f32
    %90 = vector.broadcast %cst_103 : f32 to vector<32x64xf32>
    %91 = arith.maximumf %89, %90 : vector<32x64xf32>
    %92 = arith.truncf %91 : vector<32x64xf32> to vector<32x64xbf16>
    %c0_104 = arith.constant 0 : index
    %c1_105 = arith.constant 1 : index
    %c0_106 = arith.constant 0 : index
    %c0_107 = arith.constant 0 : index
    %93 = vector.load %arg6[%c0_104, %c1_105, %c0_106, %c0_107] : memref<1x8x32x64xbf16, #tpu.memory_space<vmem>>, vector<1x1x32x64xbf16>
    %94 = vector.shape_cast %93 : vector<1x1x32x64xbf16> to vector<32x64xbf16>
    %95 = vector.shape_cast %92 : vector<32x64xbf16> to vector<1x1x32x64xbf16>
    tpu.vector_store %arg6[%c0_104, %c1_105, %c0_106, %c0_107], %95 {strides = array<i32>} : memref<1x8x32x64xbf16, #tpu.memory_space<vmem>>, vector<1x1x32x64xbf16>,
    %c0_108 = arith.constant 0 : index
    %c2_109 = arith.constant 2 : index
    %c0_110 = arith.constant 0 : index
    %c0_111 = arith.constant 0 : index
    %96 = vector.load %arg2[%c0_108, %c2_109, %c0_110, %c0_111] : memref<1x8x34x3xbf16, #tpu.memory_space<vmem>>, vector<1x1x32x3xbf16>
    %97 = vector.shape_cast %96 : vector<1x1x32x3xbf16> to vector<32x3xbf16>
    %cst_112 = arith.constant dense<0.000000e+00> : vector<32x64xf32>
    %98 = tpu.matmul %97, %3, %cst_112 {dimension_numbers = #tpu.dot_dimension_numbers<[1], [0], [0], [1], [0, 0, 1, 1], [], []>} : vector<32x3xbf16>, vector<3x64xbf16>, vector<32x64xf32> -> vector<32x64xf32>
    %99 = arith.addf %2, %98 : vector<32x64xf32>
    %c0_113 = arith.constant 0 : index
    %c2_114 = arith.constant 2 : index
    %c1_115 = arith.constant 1 : index
    %c0_116 = arith.constant 0 : index
    %100 = vector.load %arg2[%c0_113, %c2_114, %c1_115, %c0_116] : memref<1x8x34x3xbf16, #tpu.memory_space<vmem>>, vector<1x1x32x3xbf16>
    %101 = vector.shape_cast %100 : vector<1x1x32x3xbf16> to vector<32x3xbf16>
    %cst_117 = arith.constant dense<0.000000e+00> : vector<32x64xf32>
    %102 = tpu.matmul %101, %4, %cst_117 {dimension_numbers = #tpu.dot_dimension_numbers<[1], [0], [0], [1], [0, 0, 1, 1], [], []>} : vector<32x3xbf16>, vector<3x64xbf16>, vector<32x64xf32> -> vector<32x64xf32>
    %103 = arith.addf %99, %102 : vector<32x64xf32>
    %c0_118 = arith.constant 0 : index
    %c2_119 = arith.constant 2 : index
    %c2_120 = arith.constant 2 : index
    %c0_121 = arith.constant 0 : index
    %104 = vector.load %arg2[%c0_118, %c2_119, %c2_120, %c0_121] : memref<1x8x34x3xbf16, #tpu.memory_space<vmem>>, vector<1x1x32x3xbf16>
    %105 = vector.shape_cast %104 : vector<1x1x32x3xbf16> to vector<32x3xbf16>
    %cst_122 = arith.constant dense<0.000000e+00> : vector<32x64xf32>
    %106 = tpu.matmul %105, %5, %cst_122 {dimension_numbers = #tpu.dot_dimension_numbers<[1], [0], [0], [1], [0, 0, 1, 1], [], []>} : vector<32x3xbf16>, vector<3x64xbf16>, vector<32x64xf32> -> vector<32x64xf32>
    %107 = arith.addf %103, %106 : vector<32x64xf32>
    %c0_123 = arith.constant 0 : index
    %c3_124 = arith.constant 3 : index
    %c0_125 = arith.constant 0 : index
    %c0_126 = arith.constant 0 : index
    %108 = vector.load %arg2[%c0_123, %c3_124, %c0_125, %c0_126] : memref<1x8x34x3xbf16, #tpu.memory_space<vmem>>, vector<1x1x32x3xbf16>
    %109 = vector.shape_cast %108 : vector<1x1x32x3xbf16> to vector<32x3xbf16>
    %cst_127 = arith.constant dense<0.000000e+00> : vector<32x64xf32>
    %110 = tpu.matmul %109, %6, %cst_127 {dimension_numbers = #tpu.dot_dimension_numbers<[1], [0], [0], [1], [0, 0, 1, 1], [], []>} : vector<32x3xbf16>, vector<3x64xbf16>, vector<32x64xf32> -> vector<32x64xf32>
    %111 = arith.addf %107, %110 : vector<32x64xf32>
    %c0_128 = arith.constant 0 : index
    %c3_129 = arith.constant 3 : index
    %c1_130 = arith.constant 1 : index
    %c0_131 = arith.constant 0 : index
    %112 = vector.load %arg2[%c0_128, %c3_129, %c1_130, %c0_131] : memref<1x8x34x3xbf16, #tpu.memory_space<vmem>>, vector<1x1x32x3xbf16>
    %113 = vector.shape_cast %112 : vector<1x1x32x3xbf16> to vector<32x3xbf16>
    %cst_132 = arith.constant dense<0.000000e+00> : vector<32x64xf32>
    %114 = tpu.matmul %113, %7, %cst_132 {dimension_numbers = #tpu.dot_dimension_numbers<[1], [0], [0], [1], [0, 0, 1, 1], [], []>} : vector<32x3xbf16>, vector<3x64xbf16>, vector<32x64xf32> -> vector<32x64xf32>
    %115 = arith.addf %111, %114 : vector<32x64xf32>
    %c0_133 = arith.constant 0 : index
    %c3_134 = arith.constant 3 : index
    %c2_135 = arith.constant 2 : index
    %c0_136 = arith.constant 0 : index
    %116 = vector.load %arg2[%c0_133, %c3_134, %c2_135, %c0_136] : memref<1x8x34x3xbf16, #tpu.memory_space<vmem>>, vector<1x1x32x3xbf16>
    %117 = vector.shape_cast %116 : vector<1x1x32x3xbf16> to vector<32x3xbf16>
    %cst_137 = arith.constant dense<0.000000e+00> : vector<32x64xf32>
    %118 = tpu.matmul %117, %8, %cst_137 {dimension_numbers = #tpu.dot_dimension_numbers<[1], [0], [0], [1], [0, 0, 1, 1], [], []>} : vector<32x3xbf16>, vector<3x64xbf16>, vector<32x64xf32> -> vector<32x64xf32>
    %119 = arith.addf %115, %118 : vector<32x64xf32>
    %c0_138 = arith.constant 0 : index
    %c4 = arith.constant 4 : index
    %c0_139 = arith.constant 0 : index
    %c0_140 = arith.constant 0 : index
    %120 = vector.load %arg2[%c0_138, %c4, %c0_139, %c0_140] : memref<1x8x34x3xbf16, #tpu.memory_space<vmem>>, vector<1x1x32x3xbf16>
    %121 = vector.shape_cast %120 : vector<1x1x32x3xbf16> to vector<32x3xbf16>
    %cst_141 = arith.constant dense<0.000000e+00> : vector<32x64xf32>
    %122 = tpu.matmul %121, %9, %cst_141 {dimension_numbers = #tpu.dot_dimension_numbers<[1], [0], [0], [1], [0, 0, 1, 1], [], []>} : vector<32x3xbf16>, vector<3x64xbf16>, vector<32x64xf32> -> vector<32x64xf32>
    %123 = arith.addf %119, %122 : vector<32x64xf32>
    %c0_142 = arith.constant 0 : index
    %c4_143 = arith.constant 4 : index
    %c1_144 = arith.constant 1 : index
    %c0_145 = arith.constant 0 : index
    %124 = vector.load %arg2[%c0_142, %c4_143, %c1_144, %c0_145] : memref<1x8x34x3xbf16, #tpu.memory_space<vmem>>, vector<1x1x32x3xbf16>
    %125 = vector.shape_cast %124 : vector<1x1x32x3xbf16> to vector<32x3xbf16>
    %cst_146 = arith.constant dense<0.000000e+00> : vector<32x64xf32>
    %126 = tpu.matmul %125, %10, %cst_146 {dimension_numbers = #tpu.dot_dimension_numbers<[1], [0], [0], [1], [0, 0, 1, 1], [], []>} : vector<32x3xbf16>, vector<3x64xbf16>, vector<32x64xf32> -> vector<32x64xf32>
    %127 = arith.addf %123, %126 : vector<32x64xf32>
    %c0_147 = arith.constant 0 : index
    %c4_148 = arith.constant 4 : index
    %c2_149 = arith.constant 2 : index
    %c0_150 = arith.constant 0 : index
    %128 = vector.load %arg2[%c0_147, %c4_148, %c2_149, %c0_150] : memref<1x8x34x3xbf16, #tpu.memory_space<vmem>>, vector<1x1x32x3xbf16>
    %129 = vector.shape_cast %128 : vector<1x1x32x3xbf16> to vector<32x3xbf16>
    %cst_151 = arith.constant dense<0.000000e+00> : vector<32x64xf32>
    %130 = tpu.matmul %129, %11, %cst_151 {dimension_numbers = #tpu.dot_dimension_numbers<[1], [0], [0], [1], [0, 0, 1, 1], [], []>} : vector<32x3xbf16>, vector<3x64xbf16>, vector<32x64xf32> -> vector<32x64xf32>
    %131 = arith.addf %127, %130 : vector<32x64xf32>
    %cst_152 = arith.constant 0.000000e+00 : f32
    %132 = vector.broadcast %cst_152 : f32 to vector<32x64xf32>
    %133 = arith.maximumf %131, %132 : vector<32x64xf32>
    %134 = arith.truncf %133 : vector<32x64xf32> to vector<32x64xbf16>
    %c0_153 = arith.constant 0 : index
    %c2_154 = arith.constant 2 : index
    %c0_155 = arith.constant 0 : index
    %c0_156 = arith.constant 0 : index
    %135 = vector.load %arg6[%c0_153, %c2_154, %c0_155, %c0_156] : memref<1x8x32x64xbf16, #tpu.memory_space<vmem>>, vector<1x1x32x64xbf16>
    %136 = vector.shape_cast %135 : vector<1x1x32x64xbf16> to vector<32x64xbf16>
    %137 = vector.shape_cast %134 : vector<32x64xbf16> to vector<1x1x32x64xbf16>
    tpu.vector_store %arg6[%c0_153, %c2_154, %c0_155, %c0_156], %137 {strides = array<i32>} : memref<1x8x32x64xbf16, #tpu.memory_space<vmem>>, vector<1x1x32x64xbf16>,
    %c0_157 = arith.constant 0 : index
    %c3_158 = arith.constant 3 : index
    %c0_159 = arith.constant 0 : index
    %c0_160 = arith.constant 0 : index
    %138 = vector.load %arg2[%c0_157, %c3_158, %c0_159, %c0_160] : memref<1x8x34x3xbf16, #tpu.memory_space<vmem>>, vector<1x1x32x3xbf16>
    %139 = vector.shape_cast %138 : vector<1x1x32x3xbf16> to vector<32x3xbf16>
    %cst_161 = arith.constant dense<0.000000e+00> : vector<32x64xf32>
    %140 = tpu.matmul %139, %3, %cst_161 {dimension_numbers = #tpu.dot_dimension_numbers<[1], [0], [0], [1], [0, 0, 1, 1], [], []>} : vector<32x3xbf16>, vector<3x64xbf16>, vector<32x64xf32> -> vector<32x64xf32>
    %141 = arith.addf %2, %140 : vector<32x64xf32>
    %c0_162 = arith.constant 0 : index
    %c3_163 = arith.constant 3 : index
    %c1_164 = arith.constant 1 : index
    %c0_165 = arith.constant 0 : index
    %142 = vector.load %arg2[%c0_162, %c3_163, %c1_164, %c0_165] : memref<1x8x34x3xbf16, #tpu.memory_space<vmem>>, vector<1x1x32x3xbf16>
    %143 = vector.shape_cast %142 : vector<1x1x32x3xbf16> to vector<32x3xbf16>
    %cst_166 = arith.constant dense<0.000000e+00> : vector<32x64xf32>
    %144 = tpu.matmul %143, %4, %cst_166 {dimension_numbers = #tpu.dot_dimension_numbers<[1], [0], [0], [1], [0, 0, 1, 1], [], []>} : vector<32x3xbf16>, vector<3x64xbf16>, vector<32x64xf32> -> vector<32x64xf32>
    %145 = arith.addf %141, %144 : vector<32x64xf32>
    %c0_167 = arith.constant 0 : index
    %c3_168 = arith.constant 3 : index
    %c2_169 = arith.constant 2 : index
    %c0_170 = arith.constant 0 : index
    %146 = vector.load %arg2[%c0_167, %c3_168, %c2_169, %c0_170] : memref<1x8x34x3xbf16, #tpu.memory_space<vmem>>, vector<1x1x32x3xbf16>
    %147 = vector.shape_cast %146 : vector<1x1x32x3xbf16> to vector<32x3xbf16>
    %cst_171 = arith.constant dense<0.000000e+00> : vector<32x64xf32>
    %148 = tpu.matmul %147, %5, %cst_171 {dimension_numbers = #tpu.dot_dimension_numbers<[1], [0], [0], [1], [0, 0, 1, 1], [], []>} : vector<32x3xbf16>, vector<3x64xbf16>, vector<32x64xf32> -> vector<32x64xf32>
    %149 = arith.addf %145, %148 : vector<32x64xf32>
    %c0_172 = arith.constant 0 : index
    %c4_173 = arith.constant 4 : index
    %c0_174 = arith.constant 0 : index
    %c0_175 = arith.constant 0 : index
    %150 = vector.load %arg2[%c0_172, %c4_173, %c0_174, %c0_175] : memref<1x8x34x3xbf16, #tpu.memory_space<vmem>>, vector<1x1x32x3xbf16>
    %151 = vector.shape_cast %150 : vector<1x1x32x3xbf16> to vector<32x3xbf16>
    %cst_176 = arith.constant dense<0.000000e+00> : vector<32x64xf32>
    %152 = tpu.matmul %151, %6, %cst_176 {dimension_numbers = #tpu.dot_dimension_numbers<[1], [0], [0], [1], [0, 0, 1, 1], [], []>} : vector<32x3xbf16>, vector<3x64xbf16>, vector<32x64xf32> -> vector<32x64xf32>
    %153 = arith.addf %149, %152 : vector<32x64xf32>
    %c0_177 = arith.constant 0 : index
    %c4_178 = arith.constant 4 : index
    %c1_179 = arith.constant 1 : index
    %c0_180 = arith.constant 0 : index
    %154 = vector.load %arg2[%c0_177, %c4_178, %c1_179, %c0_180] : memref<1x8x34x3xbf16, #tpu.memory_space<vmem>>, vector<1x1x32x3xbf16>
    %155 = vector.shape_cast %154 : vector<1x1x32x3xbf16> to vector<32x3xbf16>
    %cst_181 = arith.constant dense<0.000000e+00> : vector<32x64xf32>
    %156 = tpu.matmul %155, %7, %cst_181 {dimension_numbers = #tpu.dot_dimension_numbers<[1], [0], [0], [1], [0, 0, 1, 1], [], []>} : vector<32x3xbf16>, vector<3x64xbf16>, vector<32x64xf32> -> vector<32x64xf32>
    %157 = arith.addf %153, %156 : vector<32x64xf32>
    %c0_182 = arith.constant 0 : index
    %c4_183 = arith.constant 4 : index
    %c2_184 = arith.constant 2 : index
    %c0_185 = arith.constant 0 : index
    %158 = vector.load %arg2[%c0_182, %c4_183, %c2_184, %c0_185] : memref<1x8x34x3xbf16, #tpu.memory_space<vmem>>, vector<1x1x32x3xbf16>
    %159 = vector.shape_cast %158 : vector<1x1x32x3xbf16> to vector<32x3xbf16>
    %cst_186 = arith.constant dense<0.000000e+00> : vector<32x64xf32>
    %160 = tpu.matmul %159, %8, %cst_186 {dimension_numbers = #tpu.dot_dimension_numbers<[1], [0], [0], [1], [0, 0, 1, 1], [], []>} : vector<32x3xbf16>, vector<3x64xbf16>, vector<32x64xf32> -> vector<32x64xf32>
    %161 = arith.addf %157, %160 : vector<32x64xf32>
    %c0_187 = arith.constant 0 : index
    %c5 = arith.constant 5 : index
    %c0_188 = arith.constant 0 : index
    %c0_189 = arith.constant 0 : index
    %162 = vector.load %arg2[%c0_187, %c5, %c0_188, %c0_189] : memref<1x8x34x3xbf16, #tpu.memory_space<vmem>>, vector<1x1x32x3xbf16>
    %163 = vector.shape_cast %162 : vector<1x1x32x3xbf16> to vector<32x3xbf16>
    %cst_190 = arith.constant dense<0.000000e+00> : vector<32x64xf32>
    %164 = tpu.matmul %163, %9, %cst_190 {dimension_numbers = #tpu.dot_dimension_numbers<[1], [0], [0], [1], [0, 0, 1, 1], [], []>} : vector<32x3xbf16>, vector<3x64xbf16>, vector<32x64xf32> -> vector<32x64xf32>
    %165 = arith.addf %161, %164 : vector<32x64xf32>
    %c0_191 = arith.constant 0 : index
    %c5_192 = arith.constant 5 : index
    %c1_193 = arith.constant 1 : index
    %c0_194 = arith.constant 0 : index
    %166 = vector.load %arg2[%c0_191, %c5_192, %c1_193, %c0_194] : memref<1x8x34x3xbf16, #tpu.memory_space<vmem>>, vector<1x1x32x3xbf16>
    %167 = vector.shape_cast %166 : vector<1x1x32x3xbf16> to vector<32x3xbf16>
    %cst_195 = arith.constant dense<0.000000e+00> : vector<32x64xf32>
    %168 = tpu.matmul %167, %10, %cst_195 {dimension_numbers = #tpu.dot_dimension_numbers<[1], [0], [0], [1], [0, 0, 1, 1], [], []>} : vector<32x3xbf16>, vector<3x64xbf16>, vector<32x64xf32> -> vector<32x64xf32>
    %169 = arith.addf %165, %168 : vector<32x64xf32>
    %c0_196 = arith.constant 0 : index
    %c5_197 = arith.constant 5 : index
    %c2_198 = arith.constant 2 : index
    %c0_199 = arith.constant 0 : index
    %170 = vector.load %arg2[%c0_196, %c5_197, %c2_198, %c0_199] : memref<1x8x34x3xbf16, #tpu.memory_space<vmem>>, vector<1x1x32x3xbf16>
    %171 = vector.shape_cast %170 : vector<1x1x32x3xbf16> to vector<32x3xbf16>
    %cst_200 = arith.constant dense<0.000000e+00> : vector<32x64xf32>
    %172 = tpu.matmul %171, %11, %cst_200 {dimension_numbers = #tpu.dot_dimension_numbers<[1], [0], [0], [1], [0, 0, 1, 1], [], []>} : vector<32x3xbf16>, vector<3x64xbf16>, vector<32x64xf32> -> vector<32x64xf32>
    %173 = arith.addf %169, %172 : vector<32x64xf32>
    %cst_201 = arith.constant 0.000000e+00 : f32
    %174 = vector.broadcast %cst_201 : f32 to vector<32x64xf32>
    %175 = arith.maximumf %173, %174 : vector<32x64xf32>
    %176 = arith.truncf %175 : vector<32x64xf32> to vector<32x64xbf16>
    %c0_202 = arith.constant 0 : index
    %c3_203 = arith.constant 3 : index
    %c0_204 = arith.constant 0 : index
    %c0_205 = arith.constant 0 : index
    %177 = vector.load %arg6[%c0_202, %c3_203, %c0_204, %c0_205] : memref<1x8x32x64xbf16, #tpu.memory_space<vmem>>, vector<1x1x32x64xbf16>
    %178 = vector.shape_cast %177 : vector<1x1x32x64xbf16> to vector<32x64xbf16>
    %179 = vector.shape_cast %176 : vector<32x64xbf16> to vector<1x1x32x64xbf16>
    tpu.vector_store %arg6[%c0_202, %c3_203, %c0_204, %c0_205], %179 {strides = array<i32>} : memref<1x8x32x64xbf16, #tpu.memory_space<vmem>>, vector<1x1x32x64xbf16>,
    %c0_206 = arith.constant 0 : index
    %c4_207 = arith.constant 4 : index
    %c0_208 = arith.constant 0 : index
    %c0_209 = arith.constant 0 : index
    %180 = vector.load %arg2[%c0_206, %c4_207, %c0_208, %c0_209] : memref<1x8x34x3xbf16, #tpu.memory_space<vmem>>, vector<1x1x32x3xbf16>
    %181 = vector.shape_cast %180 : vector<1x1x32x3xbf16> to vector<32x3xbf16>
    %cst_210 = arith.constant dense<0.000000e+00> : vector<32x64xf32>
    %182 = tpu.matmul %181, %3, %cst_210 {dimension_numbers = #tpu.dot_dimension_numbers<[1], [0], [0], [1], [0, 0, 1, 1], [], []>} : vector<32x3xbf16>, vector<3x64xbf16>, vector<32x64xf32> -> vector<32x64xf32>
    %183 = arith.addf %2, %182 : vector<32x64xf32>
    %c0_211 = arith.constant 0 : index
    %c4_212 = arith.constant 4 : index
    %c1_213 = arith.constant 1 : index
    %c0_214 = arith.constant 0 : index
    %184 = vector.load %arg2[%c0_211, %c4_212, %c1_213, %c0_214] : memref<1x8x34x3xbf16, #tpu.memory_space<vmem>>, vector<1x1x32x3xbf16>
    %185 = vector.shape_cast %184 : vector<1x1x32x3xbf16> to vector<32x3xbf16>
    %cst_215 = arith.constant dense<0.000000e+00> : vector<32x64xf32>
    %186 = tpu.matmul %185, %4, %cst_215 {dimension_numbers = #tpu.dot_dimension_numbers<[1], [0], [0], [1], [0, 0, 1, 1], [], []>} : vector<32x3xbf16>, vector<3x64xbf16>, vector<32x64xf32> -> vector<32x64xf32>
    %187 = arith.addf %183, %186 : vector<32x64xf32>
    %c0_216 = arith.constant 0 : index
    %c4_217 = arith.constant 4 : index
    %c2_218 = arith.constant 2 : index
    %c0_219 = arith.constant 0 : index
    %188 = vector.load %arg2[%c0_216, %c4_217, %c2_218, %c0_219] : memref<1x8x34x3xbf16, #tpu.memory_space<vmem>>, vector<1x1x32x3xbf16>
    %189 = vector.shape_cast %188 : vector<1x1x32x3xbf16> to vector<32x3xbf16>
    %cst_220 = arith.constant dense<0.000000e+00> : vector<32x64xf32>
    %190 = tpu.matmul %189, %5, %cst_220 {dimension_numbers = #tpu.dot_dimension_numbers<[1], [0], [0], [1], [0, 0, 1, 1], [], []>} : vector<32x3xbf16>, vector<3x64xbf16>, vector<32x64xf32> -> vector<32x64xf32>
    %191 = arith.addf %187, %190 : vector<32x64xf32>
    %c0_221 = arith.constant 0 : index
    %c5_222 = arith.constant 5 : index
    %c0_223 = arith.constant 0 : index
    %c0_224 = arith.constant 0 : index
    %192 = vector.load %arg2[%c0_221, %c5_222, %c0_223, %c0_224] : memref<1x8x34x3xbf16, #tpu.memory_space<vmem>>, vector<1x1x32x3xbf16>
    %193 = vector.shape_cast %192 : vector<1x1x32x3xbf16> to vector<32x3xbf16>
    %cst_225 = arith.constant dense<0.000000e+00> : vector<32x64xf32>
    %194 = tpu.matmul %193, %6, %cst_225 {dimension_numbers = #tpu.dot_dimension_numbers<[1], [0], [0], [1], [0, 0, 1, 1], [], []>} : vector<32x3xbf16>, vector<3x64xbf16>, vector<32x64xf32> -> vector<32x64xf32>
    %195 = arith.addf %191, %194 : vector<32x64xf32>
    %c0_226 = arith.constant 0 : index
    %c5_227 = arith.constant 5 : index
    %c1_228 = arith.constant 1 : index
    %c0_229 = arith.constant 0 : index
    %196 = vector.load %arg2[%c0_226, %c5_227, %c1_228, %c0_229] : memref<1x8x34x3xbf16, #tpu.memory_space<vmem>>, vector<1x1x32x3xbf16>
    %197 = vector.shape_cast %196 : vector<1x1x32x3xbf16> to vector<32x3xbf16>
    %cst_230 = arith.constant dense<0.000000e+00> : vector<32x64xf32>
    %198 = tpu.matmul %197, %7, %cst_230 {dimension_numbers = #tpu.dot_dimension_numbers<[1], [0], [0], [1], [0, 0, 1, 1], [], []>} : vector<32x3xbf16>, vector<3x64xbf16>, vector<32x64xf32> -> vector<32x64xf32>
    %199 = arith.addf %195, %198 : vector<32x64xf32>
    %c0_231 = arith.constant 0 : index
    %c5_232 = arith.constant 5 : index
    %c2_233 = arith.constant 2 : index
    %c0_234 = arith.constant 0 : index
    %200 = vector.load %arg2[%c0_231, %c5_232, %c2_233, %c0_234] : memref<1x8x34x3xbf16, #tpu.memory_space<vmem>>, vector<1x1x32x3xbf16>
    %201 = vector.shape_cast %200 : vector<1x1x32x3xbf16> to vector<32x3xbf16>
    %cst_235 = arith.constant dense<0.000000e+00> : vector<32x64xf32>
    %202 = tpu.matmul %201, %8, %cst_235 {dimension_numbers = #tpu.dot_dimension_numbers<[1], [0], [0], [1], [0, 0, 1, 1], [], []>} : vector<32x3xbf16>, vector<3x64xbf16>, vector<32x64xf32> -> vector<32x64xf32>
    %203 = arith.addf %199, %202 : vector<32x64xf32>
    %c0_236 = arith.constant 0 : index
    %c6_237 = arith.constant 6 : index
    %c0_238 = arith.constant 0 : index
    %c0_239 = arith.constant 0 : index
    %204 = vector.load %arg2[%c0_236, %c6_237, %c0_238, %c0_239] : memref<1x8x34x3xbf16, #tpu.memory_space<vmem>>, vector<1x1x32x3xbf16>
    %205 = vector.shape_cast %204 : vector<1x1x32x3xbf16> to vector<32x3xbf16>
    %cst_240 = arith.constant dense<0.000000e+00> : vector<32x64xf32>
    %206 = tpu.matmul %205, %9, %cst_240 {dimension_numbers = #tpu.dot_dimension_numbers<[1], [0], [0], [1], [0, 0, 1, 1], [], []>} : vector<32x3xbf16>, vector<3x64xbf16>, vector<32x64xf32> -> vector<32x64xf32>
    %207 = arith.addf %203, %206 : vector<32x64xf32>
    %c0_241 = arith.constant 0 : index
    %c6_242 = arith.constant 6 : index
    %c1_243 = arith.constant 1 : index
    %c0_244 = arith.constant 0 : index
    %208 = vector.load %arg2[%c0_241, %c6_242, %c1_243, %c0_244] : memref<1x8x34x3xbf16, #tpu.memory_space<vmem>>, vector<1x1x32x3xbf16>
    %209 = vector.shape_cast %208 : vector<1x1x32x3xbf16> to vector<32x3xbf16>
    %cst_245 = arith.constant dense<0.000000e+00> : vector<32x64xf32>
    %210 = tpu.matmul %209, %10, %cst_245 {dimension_numbers = #tpu.dot_dimension_numbers<[1], [0], [0], [1], [0, 0, 1, 1], [], []>} : vector<32x3xbf16>, vector<3x64xbf16>, vector<32x64xf32> -> vector<32x64xf32>
    %211 = arith.addf %207, %210 : vector<32x64xf32>
    %c0_246 = arith.constant 0 : index
    %c6_247 = arith.constant 6 : index
    %c2_248 = arith.constant 2 : index
    %c0_249 = arith.constant 0 : index
    %212 = vector.load %arg2[%c0_246, %c6_247, %c2_248, %c0_249] : memref<1x8x34x3xbf16, #tpu.memory_space<vmem>>, vector<1x1x32x3xbf16>
    %213 = vector.shape_cast %212 : vector<1x1x32x3xbf16> to vector<32x3xbf16>
    %cst_250 = arith.constant dense<0.000000e+00> : vector<32x64xf32>
    %214 = tpu.matmul %213, %11, %cst_250 {dimension_numbers = #tpu.dot_dimension_numbers<[1], [0], [0], [1], [0, 0, 1, 1], [], []>} : vector<32x3xbf16>, vector<3x64xbf16>, vector<32x64xf32> -> vector<32x64xf32>
    %215 = arith.addf %211, %214 : vector<32x64xf32>
    %cst_251 = arith.constant 0.000000e+00 : f32
    %216 = vector.broadcast %cst_251 : f32 to vector<32x64xf32>
    %217 = arith.maximumf %215, %216 : vector<32x64xf32>
    %218 = arith.truncf %217 : vector<32x64xf32> to vector<32x64xbf16>
    %c0_252 = arith.constant 0 : index
    %c4_253 = arith.constant 4 : index
    %c0_254 = arith.constant 0 : index
    %c0_255 = arith.constant 0 : index
    %219 = vector.load %arg6[%c0_252, %c4_253, %c0_254, %c0_255] : memref<1x8x32x64xbf16, #tpu.memory_space<vmem>>, vector<1x1x32x64xbf16>
    %220 = vector.shape_cast %219 : vector<1x1x32x64xbf16> to vector<32x64xbf16>
    %221 = vector.shape_cast %218 : vector<32x64xbf16> to vector<1x1x32x64xbf16>
    tpu.vector_store %arg6[%c0_252, %c4_253, %c0_254, %c0_255], %221 {strides = array<i32>} : memref<1x8x32x64xbf16, #tpu.memory_space<vmem>>, vector<1x1x32x64xbf16>,
    %c0_256 = arith.constant 0 : index
    %c5_257 = arith.constant 5 : index
    %c0_258 = arith.constant 0 : index
    %c0_259 = arith.constant 0 : index
    %222 = vector.load %arg2[%c0_256, %c5_257, %c0_258, %c0_259] : memref<1x8x34x3xbf16, #tpu.memory_space<vmem>>, vector<1x1x32x3xbf16>
    %223 = vector.shape_cast %222 : vector<1x1x32x3xbf16> to vector<32x3xbf16>
    %cst_260 = arith.constant dense<0.000000e+00> : vector<32x64xf32>
    %224 = tpu.matmul %223, %3, %cst_260 {dimension_numbers = #tpu.dot_dimension_numbers<[1], [0], [0], [1], [0, 0, 1, 1], [], []>} : vector<32x3xbf16>, vector<3x64xbf16>, vector<32x64xf32> -> vector<32x64xf32>
    %225 = arith.addf %2, %224 : vector<32x64xf32>
    %c0_261 = arith.constant 0 : index
    %c5_262 = arith.constant 5 : index
    %c1_263 = arith.constant 1 : index
    %c0_264 = arith.constant 0 : index
    %226 = vector.load %arg2[%c0_261, %c5_262, %c1_263, %c0_264] : memref<1x8x34x3xbf16, #tpu.memory_space<vmem>>, vector<1x1x32x3xbf16>
    %227 = vector.shape_cast %226 : vector<1x1x32x3xbf16> to vector<32x3xbf16>
    %cst_265 = arith.constant dense<0.000000e+00> : vector<32x64xf32>
    %228 = tpu.matmul %227, %4, %cst_265 {dimension_numbers = #tpu.dot_dimension_numbers<[1], [0], [0], [1], [0, 0, 1, 1], [], []>} : vector<32x3xbf16>, vector<3x64xbf16>, vector<32x64xf32> -> vector<32x64xf32>
    %229 = arith.addf %225, %228 : vector<32x64xf32>
    %c0_266 = arith.constant 0 : index
    %c5_267 = arith.constant 5 : index
    %c2_268 = arith.constant 2 : index
    %c0_269 = arith.constant 0 : index
    %230 = vector.load %arg2[%c0_266, %c5_267, %c2_268, %c0_269] : memref<1x8x34x3xbf16, #tpu.memory_space<vmem>>, vector<1x1x32x3xbf16>
    %231 = vector.shape_cast %230 : vector<1x1x32x3xbf16> to vector<32x3xbf16>
    %cst_270 = arith.constant dense<0.000000e+00> : vector<32x64xf32>
    %232 = tpu.matmul %231, %5, %cst_270 {dimension_numbers = #tpu.dot_dimension_numbers<[1], [0], [0], [1], [0, 0, 1, 1], [], []>} : vector<32x3xbf16>, vector<3x64xbf16>, vector<32x64xf32> -> vector<32x64xf32>
    %233 = arith.addf %229, %232 : vector<32x64xf32>
    %c0_271 = arith.constant 0 : index
    %c6_272 = arith.constant 6 : index
    %c0_273 = arith.constant 0 : index
    %c0_274 = arith.constant 0 : index
    %234 = vector.load %arg2[%c0_271, %c6_272, %c0_273, %c0_274] : memref<1x8x34x3xbf16, #tpu.memory_space<vmem>>, vector<1x1x32x3xbf16>
    %235 = vector.shape_cast %234 : vector<1x1x32x3xbf16> to vector<32x3xbf16>
    %cst_275 = arith.constant dense<0.000000e+00> : vector<32x64xf32>
    %236 = tpu.matmul %235, %6, %cst_275 {dimension_numbers = #tpu.dot_dimension_numbers<[1], [0], [0], [1], [0, 0, 1, 1], [], []>} : vector<32x3xbf16>, vector<3x64xbf16>, vector<32x64xf32> -> vector<32x64xf32>
    %237 = arith.addf %233, %236 : vector<32x64xf32>
    %c0_276 = arith.constant 0 : index
    %c6_277 = arith.constant 6 : index
    %c1_278 = arith.constant 1 : index
    %c0_279 = arith.constant 0 : index
    %238 = vector.load %arg2[%c0_276, %c6_277, %c1_278, %c0_279] : memref<1x8x34x3xbf16, #tpu.memory_space<vmem>>, vector<1x1x32x3xbf16>
    %239 = vector.shape_cast %238 : vector<1x1x32x3xbf16> to vector<32x3xbf16>
    %cst_280 = arith.constant dense<0.000000e+00> : vector<32x64xf32>
    %240 = tpu.matmul %239, %7, %cst_280 {dimension_numbers = #tpu.dot_dimension_numbers<[1], [0], [0], [1], [0, 0, 1, 1], [], []>} : vector<32x3xbf16>, vector<3x64xbf16>, vector<32x64xf32> -> vector<32x64xf32>
    %241 = arith.addf %237, %240 : vector<32x64xf32>
    %c0_281 = arith.constant 0 : index
    %c6_282 = arith.constant 6 : index
    %c2_283 = arith.constant 2 : index
    %c0_284 = arith.constant 0 : index
    %242 = vector.load %arg2[%c0_281, %c6_282, %c2_283, %c0_284] : memref<1x8x34x3xbf16, #tpu.memory_space<vmem>>, vector<1x1x32x3xbf16>
    %243 = vector.shape_cast %242 : vector<1x1x32x3xbf16> to vector<32x3xbf16>
    %cst_285 = arith.constant dense<0.000000e+00> : vector<32x64xf32>
    %244 = tpu.matmul %243, %8, %cst_285 {dimension_numbers = #tpu.dot_dimension_numbers<[1], [0], [0], [1], [0, 0, 1, 1], [], []>} : vector<32x3xbf16>, vector<3x64xbf16>, vector<32x64xf32> -> vector<32x64xf32>
    %245 = arith.addf %241, %244 : vector<32x64xf32>
    %c0_286 = arith.constant 0 : index
    %c7 = arith.constant 7 : index
    %c0_287 = arith.constant 0 : index
    %c0_288 = arith.constant 0 : index
    %246 = vector.load %arg2[%c0_286, %c7, %c0_287, %c0_288] : memref<1x8x34x3xbf16, #tpu.memory_space<vmem>>, vector<1x1x32x3xbf16>
    %247 = vector.shape_cast %246 : vector<1x1x32x3xbf16> to vector<32x3xbf16>
    %cst_289 = arith.constant dense<0.000000e+00> : vector<32x64xf32>
    %248 = tpu.matmul %247, %9, %cst_289 {dimension_numbers = #tpu.dot_dimension_numbers<[1], [0], [0], [1], [0, 0, 1, 1], [], []>} : vector<32x3xbf16>, vector<3x64xbf16>, vector<32x64xf32> -> vector<32x64xf32>
    %249 = arith.addf %245, %248 : vector<32x64xf32>
    %c0_290 = arith.constant 0 : index
    %c7_291 = arith.constant 7 : index
    %c1_292 = arith.constant 1 : index
    %c0_293 = arith.constant 0 : index
    %250 = vector.load %arg2[%c0_290, %c7_291, %c1_292, %c0_293] : memref<1x8x34x3xbf16, #tpu.memory_space<vmem>>, vector<1x1x32x3xbf16>
    %251 = vector.shape_cast %250 : vector<1x1x32x3xbf16> to vector<32x3xbf16>
    %cst_294 = arith.constant dense<0.000000e+00> : vector<32x64xf32>
    %252 = tpu.matmul %251, %10, %cst_294 {dimension_numbers = #tpu.dot_dimension_numbers<[1], [0], [0], [1], [0, 0, 1, 1], [], []>} : vector<32x3xbf16>, vector<3x64xbf16>, vector<32x64xf32> -> vector<32x64xf32>
    %253 = arith.addf %249, %252 : vector<32x64xf32>
    %c0_295 = arith.constant 0 : index
    %c7_296 = arith.constant 7 : index
    %c2_297 = arith.constant 2 : index
    %c0_298 = arith.constant 0 : index
    %254 = vector.load %arg2[%c0_295, %c7_296, %c2_297, %c0_298] : memref<1x8x34x3xbf16, #tpu.memory_space<vmem>>, vector<1x1x32x3xbf16>
    %255 = vector.shape_cast %254 : vector<1x1x32x3xbf16> to vector<32x3xbf16>
    %cst_299 = arith.constant dense<0.000000e+00> : vector<32x64xf32>
    %256 = tpu.matmul %255, %11, %cst_299 {dimension_numbers = #tpu.dot_dimension_numbers<[1], [0], [0], [1], [0, 0, 1, 1], [], []>} : vector<32x3xbf16>, vector<3x64xbf16>, vector<32x64xf32> -> vector<32x64xf32>
    %257 = arith.addf %253, %256 : vector<32x64xf32>
    %cst_300 = arith.constant 0.000000e+00 : f32
    %258 = vector.broadcast %cst_300 : f32 to vector<32x64xf32>
    %259 = arith.maximumf %257, %258 : vector<32x64xf32>
    %260 = arith.truncf %259 : vector<32x64xf32> to vector<32x64xbf16>
    %c0_301 = arith.constant 0 : index
    %c5_302 = arith.constant 5 : index
    %c0_303 = arith.constant 0 : index
    %c0_304 = arith.constant 0 : index
    %261 = vector.load %arg6[%c0_301, %c5_302, %c0_303, %c0_304] : memref<1x8x32x64xbf16, #tpu.memory_space<vmem>>, vector<1x1x32x64xbf16>
    %262 = vector.shape_cast %261 : vector<1x1x32x64xbf16> to vector<32x64xbf16>
    %263 = vector.shape_cast %260 : vector<32x64xbf16> to vector<1x1x32x64xbf16>
    tpu.vector_store %arg6[%c0_301, %c5_302, %c0_303, %c0_304], %263 {strides = array<i32>} : memref<1x8x32x64xbf16, #tpu.memory_space<vmem>>, vector<1x1x32x64xbf16>,
    %c0_305 = arith.constant 0 : index
    %c6_306 = arith.constant 6 : index
    %c0_307 = arith.constant 0 : index
    %c0_308 = arith.constant 0 : index
    %264 = vector.load %arg2[%c0_305, %c6_306, %c0_307, %c0_308] : memref<1x8x34x3xbf16, #tpu.memory_space<vmem>>, vector<1x1x32x3xbf16>
    %265 = vector.shape_cast %264 : vector<1x1x32x3xbf16> to vector<32x3xbf16>
    %cst_309 = arith.constant dense<0.000000e+00> : vector<32x64xf32>
    %266 = tpu.matmul %265, %3, %cst_309 {dimension_numbers = #tpu.dot_dimension_numbers<[1], [0], [0], [1], [0, 0, 1, 1], [], []>} : vector<32x3xbf16>, vector<3x64xbf16>, vector<32x64xf32> -> vector<32x64xf32>
    %267 = arith.addf %2, %266 : vector<32x64xf32>
    %c0_310 = arith.constant 0 : index
    %c6_311 = arith.constant 6 : index
    %c1_312 = arith.constant 1 : index
    %c0_313 = arith.constant 0 : index
    %268 = vector.load %arg2[%c0_310, %c6_311, %c1_312, %c0_313] : memref<1x8x34x3xbf16, #tpu.memory_space<vmem>>, vector<1x1x32x3xbf16>
    %269 = vector.shape_cast %268 : vector<1x1x32x3xbf16> to vector<32x3xbf16>
    %cst_314 = arith.constant dense<0.000000e+00> : vector<32x64xf32>
    %270 = tpu.matmul %269, %4, %cst_314 {dimension_numbers = #tpu.dot_dimension_numbers<[1], [0], [0], [1], [0, 0, 1, 1], [], []>} : vector<32x3xbf16>, vector<3x64xbf16>, vector<32x64xf32> -> vector<32x64xf32>
    %271 = arith.addf %267, %270 : vector<32x64xf32>
    %c0_315 = arith.constant 0 : index
    %c6_316 = arith.constant 6 : index
    %c2_317 = arith.constant 2 : index
    %c0_318 = arith.constant 0 : index
    %272 = vector.load %arg2[%c0_315, %c6_316, %c2_317, %c0_318] : memref<1x8x34x3xbf16, #tpu.memory_space<vmem>>, vector<1x1x32x3xbf16>
    %273 = vector.shape_cast %272 : vector<1x1x32x3xbf16> to vector<32x3xbf16>
    %cst_319 = arith.constant dense<0.000000e+00> : vector<32x64xf32>
    %274 = tpu.matmul %273, %5, %cst_319 {dimension_numbers = #tpu.dot_dimension_numbers<[1], [0], [0], [1], [0, 0, 1, 1], [], []>} : vector<32x3xbf16>, vector<3x64xbf16>, vector<32x64xf32> -> vector<32x64xf32>
    %275 = arith.addf %271, %274 : vector<32x64xf32>
    %c0_320 = arith.constant 0 : index
    %c7_321 = arith.constant 7 : index
    %c0_322 = arith.constant 0 : index
    %c0_323 = arith.constant 0 : index
    %276 = vector.load %arg2[%c0_320, %c7_321, %c0_322, %c0_323] : memref<1x8x34x3xbf16, #tpu.memory_space<vmem>>, vector<1x1x32x3xbf16>
    %277 = vector.shape_cast %276 : vector<1x1x32x3xbf16> to vector<32x3xbf16>
    %cst_324 = arith.constant dense<0.000000e+00> : vector<32x64xf32>
    %278 = tpu.matmul %277, %6, %cst_324 {dimension_numbers = #tpu.dot_dimension_numbers<[1], [0], [0], [1], [0, 0, 1, 1], [], []>} : vector<32x3xbf16>, vector<3x64xbf16>, vector<32x64xf32> -> vector<32x64xf32>
    %279 = arith.addf %275, %278 : vector<32x64xf32>
    %c0_325 = arith.constant 0 : index
    %c7_326 = arith.constant 7 : index
    %c1_327 = arith.constant 1 : index
    %c0_328 = arith.constant 0 : index
    %280 = vector.load %arg2[%c0_325, %c7_326, %c1_327, %c0_328] : memref<1x8x34x3xbf16, #tpu.memory_space<vmem>>, vector<1x1x32x3xbf16>
    %281 = vector.shape_cast %280 : vector<1x1x32x3xbf16> to vector<32x3xbf16>
    %cst_329 = arith.constant dense<0.000000e+00> : vector<32x64xf32>
    %282 = tpu.matmul %281, %7, %cst_329 {dimension_numbers = #tpu.dot_dimension_numbers<[1], [0], [0], [1], [0, 0, 1, 1], [], []>} : vector<32x3xbf16>, vector<3x64xbf16>, vector<32x64xf32> -> vector<32x64xf32>
    %283 = arith.addf %279, %282 : vector<32x64xf32>
    %c0_330 = arith.constant 0 : index
    %c7_331 = arith.constant 7 : index
    %c2_332 = arith.constant 2 : index
    %c0_333 = arith.constant 0 : index
    %284 = vector.load %arg2[%c0_330, %c7_331, %c2_332, %c0_333] : memref<1x8x34x3xbf16, #tpu.memory_space<vmem>>, vector<1x1x32x3xbf16>
    %285 = vector.shape_cast %284 : vector<1x1x32x3xbf16> to vector<32x3xbf16>
    %cst_334 = arith.constant dense<0.000000e+00> : vector<32x64xf32>
    %286 = tpu.matmul %285, %8, %cst_334 {dimension_numbers = #tpu.dot_dimension_numbers<[1], [0], [0], [1], [0, 0, 1, 1], [], []>} : vector<32x3xbf16>, vector<3x64xbf16>, vector<32x64xf32> -> vector<32x64xf32>
    %287 = arith.addf %283, %286 : vector<32x64xf32>
    %c0_335 = arith.constant 0 : index
    %c0_336 = arith.constant 0 : index
    %c0_337 = arith.constant 0 : index
    %c0_338 = arith.constant 0 : index
    %288 = vector.load %arg3[%c0_335, %c0_336, %c0_337, %c0_338] : memref<1x8x34x3xbf16, #tpu.memory_space<vmem>>, vector<1x1x32x3xbf16>
    %289 = vector.shape_cast %288 : vector<1x1x32x3xbf16> to vector<32x3xbf16>
    %cst_339 = arith.constant dense<0.000000e+00> : vector<32x64xf32>
    %290 = tpu.matmul %289, %9, %cst_339 {dimension_numbers = #tpu.dot_dimension_numbers<[1], [0], [0], [1], [0, 0, 1, 1], [], []>} : vector<32x3xbf16>, vector<3x64xbf16>, vector<32x64xf32> -> vector<32x64xf32>
    %291 = arith.addf %287, %290 : vector<32x64xf32>
    %c0_340 = arith.constant 0 : index
    %c0_341 = arith.constant 0 : index
    %c1_342 = arith.constant 1 : index
    %c0_343 = arith.constant 0 : index
    %292 = vector.load %arg3[%c0_340, %c0_341, %c1_342, %c0_343] : memref<1x8x34x3xbf16, #tpu.memory_space<vmem>>, vector<1x1x32x3xbf16>
    %293 = vector.shape_cast %292 : vector<1x1x32x3xbf16> to vector<32x3xbf16>
    %cst_344 = arith.constant dense<0.000000e+00> : vector<32x64xf32>
    %294 = tpu.matmul %293, %10, %cst_344 {dimension_numbers = #tpu.dot_dimension_numbers<[1], [0], [0], [1], [0, 0, 1, 1], [], []>} : vector<32x3xbf16>, vector<3x64xbf16>, vector<32x64xf32> -> vector<32x64xf32>
    %295 = arith.addf %291, %294 : vector<32x64xf32>
    %c0_345 = arith.constant 0 : index
    %c0_346 = arith.constant 0 : index
    %c2_347 = arith.constant 2 : index
    %c0_348 = arith.constant 0 : index
    %296 = vector.load %arg3[%c0_345, %c0_346, %c2_347, %c0_348] : memref<1x8x34x3xbf16, #tpu.memory_space<vmem>>, vector<1x1x32x3xbf16>
    %297 = vector.shape_cast %296 : vector<1x1x32x3xbf16> to vector<32x3xbf16>
    %cst_349 = arith.constant dense<0.000000e+00> : vector<32x64xf32>
    %298 = tpu.matmul %297, %11, %cst_349 {dimension_numbers = #tpu.dot_dimension_numbers<[1], [0], [0], [1], [0, 0, 1, 1], [], []>} : vector<32x3xbf16>, vector<3x64xbf16>, vector<32x64xf32> -> vector<32x64xf32>
    %299 = arith.addf %295, %298 : vector<32x64xf32>
    %cst_350 = arith.constant 0.000000e+00 : f32
    %300 = vector.broadcast %cst_350 : f32 to vector<32x64xf32>
    %301 = arith.maximumf %299, %300 : vector<32x64xf32>
    %302 = arith.truncf %301 : vector<32x64xf32> to vector<32x64xbf16>
    %c0_351 = arith.constant 0 : index
    %c6_352 = arith.constant 6 : index
    %c0_353 = arith.constant 0 : index
    %c0_354 = arith.constant 0 : index
    %303 = vector.load %arg6[%c0_351, %c6_352, %c0_353, %c0_354] : memref<1x8x32x64xbf16, #tpu.memory_space<vmem>>, vector<1x1x32x64xbf16>
    %304 = vector.shape_cast %303 : vector<1x1x32x64xbf16> to vector<32x64xbf16>
    %305 = vector.shape_cast %302 : vector<32x64xbf16> to vector<1x1x32x64xbf16>
    tpu.vector_store %arg6[%c0_351, %c6_352, %c0_353, %c0_354], %305 {strides = array<i32>} : memref<1x8x32x64xbf16, #tpu.memory_space<vmem>>, vector<1x1x32x64xbf16>,
    %c0_355 = arith.constant 0 : index
    %c7_356 = arith.constant 7 : index
    %c0_357 = arith.constant 0 : index
    %c0_358 = arith.constant 0 : index
    %306 = vector.load %arg2[%c0_355, %c7_356, %c0_357, %c0_358] : memref<1x8x34x3xbf16, #tpu.memory_space<vmem>>, vector<1x1x32x3xbf16>
    %307 = vector.shape_cast %306 : vector<1x1x32x3xbf16> to vector<32x3xbf16>
    %cst_359 = arith.constant dense<0.000000e+00> : vector<32x64xf32>
    %308 = tpu.matmul %307, %3, %cst_359 {dimension_numbers = #tpu.dot_dimension_numbers<[1], [0], [0], [1], [0, 0, 1, 1], [], []>} : vector<32x3xbf16>, vector<3x64xbf16>, vector<32x64xf32> -> vector<32x64xf32>
    %309 = arith.addf %2, %308 : vector<32x64xf32>
    %c0_360 = arith.constant 0 : index
    %c7_361 = arith.constant 7 : index
    %c1_362 = arith.constant 1 : index
    %c0_363 = arith.constant 0 : index
    %310 = vector.load %arg2[%c0_360, %c7_361, %c1_362, %c0_363] : memref<1x8x34x3xbf16, #tpu.memory_space<vmem>>, vector<1x1x32x3xbf16>
    %311 = vector.shape_cast %310 : vector<1x1x32x3xbf16> to vector<32x3xbf16>
    %cst_364 = arith.constant dense<0.000000e+00> : vector<32x64xf32>
    %312 = tpu.matmul %311, %4, %cst_364 {dimension_numbers = #tpu.dot_dimension_numbers<[1], [0], [0], [1], [0, 0, 1, 1], [], []>} : vector<32x3xbf16>, vector<3x64xbf16>, vector<32x64xf32> -> vector<32x64xf32>
    %313 = arith.addf %309, %312 : vector<32x64xf32>
    %c0_365 = arith.constant 0 : index
    %c7_366 = arith.constant 7 : index
    %c2_367 = arith.constant 2 : index
    %c0_368 = arith.constant 0 : index
    %314 = vector.load %arg2[%c0_365, %c7_366, %c2_367, %c0_368] : memref<1x8x34x3xbf16, #tpu.memory_space<vmem>>, vector<1x1x32x3xbf16>
    %315 = vector.shape_cast %314 : vector<1x1x32x3xbf16> to vector<32x3xbf16>
    %cst_369 = arith.constant dense<0.000000e+00> : vector<32x64xf32>
    %316 = tpu.matmul %315, %5, %cst_369 {dimension_numbers = #tpu.dot_dimension_numbers<[1], [0], [0], [1], [0, 0, 1, 1], [], []>} : vector<32x3xbf16>, vector<3x64xbf16>, vector<32x64xf32> -> vector<32x64xf32>
    %317 = arith.addf %313, %316 : vector<32x64xf32>
    %c0_370 = arith.constant 0 : index
    %c0_371 = arith.constant 0 : index
    %c0_372 = arith.constant 0 : index
    %c0_373 = arith.constant 0 : index
    %318 = vector.load %arg3[%c0_370, %c0_371, %c0_372, %c0_373] : memref<1x8x34x3xbf16, #tpu.memory_space<vmem>>, vector<1x1x32x3xbf16>
    %319 = vector.shape_cast %318 : vector<1x1x32x3xbf16> to vector<32x3xbf16>
    %cst_374 = arith.constant dense<0.000000e+00> : vector<32x64xf32>
    %320 = tpu.matmul %319, %6, %cst_374 {dimension_numbers = #tpu.dot_dimension_numbers<[1], [0], [0], [1], [0, 0, 1, 1], [], []>} : vector<32x3xbf16>, vector<3x64xbf16>, vector<32x64xf32> -> vector<32x64xf32>
    %321 = arith.addf %317, %320 : vector<32x64xf32>
    %c0_375 = arith.constant 0 : index
    %c0_376 = arith.constant 0 : index
    %c1_377 = arith.constant 1 : index
    %c0_378 = arith.constant 0 : index
    %322 = vector.load %arg3[%c0_375, %c0_376, %c1_377, %c0_378] : memref<1x8x34x3xbf16, #tpu.memory_space<vmem>>, vector<1x1x32x3xbf16>
    %323 = vector.shape_cast %322 : vector<1x1x32x3xbf16> to vector<32x3xbf16>
    %cst_379 = arith.constant dense<0.000000e+00> : vector<32x64xf32>
    %324 = tpu.matmul %323, %7, %cst_379 {dimension_numbers = #tpu.dot_dimension_numbers<[1], [0], [0], [1], [0, 0, 1, 1], [], []>} : vector<32x3xbf16>, vector<3x64xbf16>, vector<32x64xf32> -> vector<32x64xf32>
    %325 = arith.addf %321, %324 : vector<32x64xf32>
    %c0_380 = arith.constant 0 : index
    %c0_381 = arith.constant 0 : index
    %c2_382 = arith.constant 2 : index
    %c0_383 = arith.constant 0 : index
    %326 = vector.load %arg3[%c0_380, %c0_381, %c2_382, %c0_383] : memref<1x8x34x3xbf16, #tpu.memory_space<vmem>>, vector<1x1x32x3xbf16>
    %327 = vector.shape_cast %326 : vector<1x1x32x3xbf16> to vector<32x3xbf16>
    %cst_384 = arith.constant dense<0.000000e+00> : vector<32x64xf32>
    %328 = tpu.matmul %327, %8, %cst_384 {dimension_numbers = #tpu.dot_dimension_numbers<[1], [0], [0], [1], [0, 0, 1, 1], [], []>} : vector<32x3xbf16>, vector<3x64xbf16>, vector<32x64xf32> -> vector<32x64xf32>
    %329 = arith.addf %325, %328 : vector<32x64xf32>
    %c0_385 = arith.constant 0 : index
    %c1_386 = arith.constant 1 : index
    %c0_387 = arith.constant 0 : index
    %c0_388 = arith.constant 0 : index
    %330 = vector.load %arg3[%c0_385, %c1_386, %c0_387, %c0_388] : memref<1x8x34x3xbf16, #tpu.memory_space<vmem>>, vector<1x1x32x3xbf16>
    %331 = vector.shape_cast %330 : vector<1x1x32x3xbf16> to vector<32x3xbf16>
    %cst_389 = arith.constant dense<0.000000e+00> : vector<32x64xf32>
    %332 = tpu.matmul %331, %9, %cst_389 {dimension_numbers = #tpu.dot_dimension_numbers<[1], [0], [0], [1], [0, 0, 1, 1], [], []>} : vector<32x3xbf16>, vector<3x64xbf16>, vector<32x64xf32> -> vector<32x64xf32>
    %333 = arith.addf %329, %332 : vector<32x64xf32>
    %c0_390 = arith.constant 0 : index
    %c1_391 = arith.constant 1 : index
    %c1_392 = arith.constant 1 : index
    %c0_393 = arith.constant 0 : index
    %334 = vector.load %arg3[%c0_390, %c1_391, %c1_392, %c0_393] : memref<1x8x34x3xbf16, #tpu.memory_space<vmem>>, vector<1x1x32x3xbf16>
    %335 = vector.shape_cast %334 : vector<1x1x32x3xbf16> to vector<32x3xbf16>
    %cst_394 = arith.constant dense<0.000000e+00> : vector<32x64xf32>
    %336 = tpu.matmul %335, %10, %cst_394 {dimension_numbers = #tpu.dot_dimension_numbers<[1], [0], [0], [1], [0, 0, 1, 1], [], []>} : vector<32x3xbf16>, vector<3x64xbf16>, vector<32x64xf32> -> vector<32x64xf32>
    %337 = arith.addf %333, %336 : vector<32x64xf32>
    %c0_395 = arith.constant 0 : index
    %c1_396 = arith.constant 1 : index
    %c2_397 = arith.constant 2 : index
    %c0_398 = arith.constant 0 : index
    %338 = vector.load %arg3[%c0_395, %c1_396, %c2_397, %c0_398] : memref<1x8x34x3xbf16, #tpu.memory_space<vmem>>, vector<1x1x32x3xbf16>
    %339 = vector.shape_cast %338 : vector<1x1x32x3xbf16> to vector<32x3xbf16>
    %cst_399 = arith.constant dense<0.000000e+00> : vector<32x64xf32>
    %340 = tpu.matmul %339, %11, %cst_399 {dimension_numbers = #tpu.dot_dimension_numbers<[1], [0], [0], [1], [0, 0, 1, 1], [], []>} : vector<32x3xbf16>, vector<3x64xbf16>, vector<32x64xf32> -> vector<32x64xf32>
    %341 = arith.addf %337, %340 : vector<32x64xf32>
    %cst_400 = arith.constant 0.000000e+00 : f32
    %342 = vector.broadcast %cst_400 : f32 to vector<32x64xf32>
    %343 = arith.maximumf %341, %342 : vector<32x64xf32>
    %344 = arith.truncf %343 : vector<32x64xf32> to vector<32x64xbf16>
    %c0_401 = arith.constant 0 : index
    %c7_402 = arith.constant 7 : index
    %c0_403 = arith.constant 0 : index
    %c0_404 = arith.constant 0 : index
    %345 = vector.load %arg6[%c0_401, %c7_402, %c0_403, %c0_404] : memref<1x8x32x64xbf16, #tpu.memory_space<vmem>>, vector<1x1x32x64xbf16>
    %346 = vector.shape_cast %345 : vector<1x1x32x64xbf16> to vector<32x64xbf16>
    %347 = vector.shape_cast %344 : vector<32x64xbf16> to vector<1x1x32x64xbf16>
    tpu.vector_store %arg6[%c0_401, %c7_402, %c0_403, %c0_404], %347 {strides = array<i32>} : memref<1x8x32x64xbf16, #tpu.memory_space<vmem>>, vector<1x1x32x64xbf16>,
    return
  }
  func.func @transform_0(%arg0: i32, %arg1: i32) -> (i32, i32, i32, i32) {
    %c0_i32 = arith.constant 0 : i32
    %c0_i32_0 = arith.constant 0 : i32
    %c0_i32_1 = arith.constant 0 : i32
    return %arg0, %arg1, %c0_i32, %c0_i32_0 : i32, i32, i32, i32
  }
  func.func @transform_1(%arg0: i32, %arg1: i32) -> (i32, i32, i32, i32) {
    %c1_i32 = arith.constant 1 : i32
    %0 = arith.addi %arg1, %c1_i32 : i32
    %c0_i32 = arith.constant 0 : i32
    %c0_i32_0 = arith.constant 0 : i32
    %c0_i32_1 = arith.constant 0 : i32
    return %arg0, %0, %c0_i32, %c0_i32_0 : i32, i32, i32, i32
  }
  func.func @transform_2(%arg0: i32, %arg1: i32) -> (i32, i32) {
    %c0_i32 = arith.constant 0 : i32
    %c0_i32_0 = arith.constant 0 : i32
    %c0_i32_1 = arith.constant 0 : i32
    return %c0_i32, %c0_i32_0 : i32, i32
  }
  func.func @transform_3(%arg0: i32, %arg1: i32) -> (i32, i32) {
    %c0_i32 = arith.constant 0 : i32
    %c0_i32_0 = arith.constant 0 : i32
    %c0_i32_1 = arith.constant 0 : i32
    return %c0_i32, %c0_i32_0 : i32, i32
  }
  func.func @transform_4(%arg0: i32, %arg1: i32) -> (i32, i32, i32, i32) {
    %c0_i32 = arith.constant 0 : i32
    %c0_i32_0 = arith.constant 0 : i32
    %c0_i32_1 = arith.constant 0 : i32
    return %arg0, %arg1, %c0_i32, %c0_i32_0 : i32, i32, i32, i32
  }
}

</mosaic_0001>

<llo_original>
// kernel: tpu_custom_call.1
$region0: #{tpu_custom_call.1}
  #allocation0 [shape = 'u32[]', space=smem, size = 0x4, offset = 0x4, fixed_abs, tag = 'smem constant byte address 0x4 - core index']
  #allocation1 [shape = 'u32[144,128]{1,0:T(1,128)}', space=vmem, size = 0x12000, scoped, tag = 'internal scratch']
  %s0 = inlined_call_operand.vmem [shape: bf16[2,40,34,3], index: 0, kind: input, shape index: {}]
  %s1 = inlined_call_operand.vmem [shape: bf16[2,40,34,3], index: 1, kind: input, shape index: {}]
  %s2 = inlined_call_operand.vmem [shape: bf16[27,64], index: 2, kind: input, shape index: {}]
  %s3 = inlined_call_operand.vmem [shape: f32[1,64], index: 3, kind: input, shape index: {}]
  %s4 = inlined_call_operand.hbm [shape: bf16[2,32,32,64], index: 4, kind: output, shape index: {}]
  %s5 = sld [smem:[#allocation0]]
  $region49: #{tpu_custom_call.1} parent=0
    _
  %s7 = ssub.s32 1, %s5
  %s8 = scalar_select 0, %s7, %s5
  $region1: #{tpu_custom_call.1} parent=0
    #allocation2 [shape = 'u8[131072]{0}', space=vmem, size = 0x20000, scoped, tag = 'output window, operand 0']
    #allocation3 [shape = 's32[2]{0}', space=sflag, size = 0x8, scoped, tag = 'scoped memory for tpu_custom_call.1']
    %9 = vsyncpa [#allocation3], 0
    %s10 = scalar_lea.sflag [#allocation3], 1
    %11 = vsyncpa %s10, 0
    loop: start=0, step=1, limit=10
    $region2: #{tpu_custom_call.1} parent=1 // loop_pre_header
      _
    $region3: #{tpu_custom_call.1} parent=1 // loop_header
      %s13 = sphi 0, %s17
      %p14 = scmp.ge.s32.totalorder %s13, 10
      %s20 = sphi 0, %s32
      %s21 = sphi 0, %s28
      %s22 = sphi 0, %s20
      %s23 = sphi 0, %s21
      %s24 = sphi 0, %s22
      %s25 = sphi 0, %s23
      %s37 = sphi 0, %s39
      %s40 = sphi 0, %s37
      %s41 = sphi 0, %s40
      %s57 = sphi 0, %s41
      %s67 = sphi 0, %s69
      %s70 = sphi 0, %s67
      %s71 = sphi 0, %s70
      %s87 = sphi 0, %s71
      %s91 = sphi 0, %s91
      %s93 = sphi 0, %s91
      %s94 = sphi 0, %s93
      %s108 = sphi 0, %s94
      %s112 = sphi 0, %s112
      %s114 = sphi 0, %s112
      %s115 = sphi 0, %s114
      %s129 = sphi 0, %s115
      %s137 = sphi 0, %s139
      %s140 = sphi 0, %s137
      %s141 = sphi 0, %s140
      %s157 = sphi 0, %s141
    $region4: #{tpu_custom_call.1} parent=1 // loop_header_branch
      %16 = sbr.rel (%p14) target = $region8
    $region5: #{tpu_custom_call.1} parent=1 // loop_body
      %s18 = ssub.s32 %s13, 1
      %s19 = ssub.s32 %s13, 2
      %s26 = sadd.s32 1, %s21
      %p27 = scmp.ge.s32.totalorder %s26, 4
      %s28 = scalar_select %p27, 0, %s26
      %s29 = sadd.s32 1, %s20
      %s30 = scalar_select %p27, %s29, %s20
      %p31 = scmp.ge.s32.totalorder %s30, 2
      %s32 = scalar_select %p31, 0, %s30
      %s33 = ssub.s32 %s20, %s32
      %s34 = ssub.s32 %s21, %s28
      %s35 = sor.u32 %s33, %s34
      %p36 = scmp.eq.s32.totalorder %s35, 0
      %s38 = sadd.s32 %s37, 1
      %s39 = scalar_select %p36, %s37, %s38
      %p42 = pneg %p36
      %p43 = scmp.eq.s32.totalorder %s13, 7
      %p44 = por %p42, %p43
      %p45 = scmp.ne.s32.totalorder %s37, %s40
      %p46 = scmp.eq.s32.totalorder %s13, 0
      %p47 = por %p45, %p46
      %p48 = scmp.ne.s32.totalorder %s37, %s40
      %p49 = scmp.eq.s32.totalorder %s18, 7
      %p50 = por %p48, %p49
      %p51 = scmp.ne.s32.totalorder %s40, %s41
      %p52 = scmp.eq.s32.totalorder %s18, 0
      %p53 = por %p51, %p52
      %p54 = scmp.ne.s32.totalorder %s40, %s41
      %p55 = scmp.eq.s32.totalorder %s19, 7
      %p56 = por %p54, %p55
      %p58 = scmp.ne.s32.totalorder %s41, %s57
      %p59 = scmp.eq.s32.totalorder %s19, 0
      %p60 = por %p58, %p59
      %s61 = sadd.s32 %s21, 1
      %s62 = sadd.s32 %s28, 1
      %s63 = ssub.s32 %s20, %s32
      %s64 = ssub.s32 %s61, %s62
      %s65 = sor.u32 %s63, %s64
      %p66 = scmp.eq.s32.totalorder %s65, 0
      %s68 = sadd.s32 %s67, 1
      %s69 = scalar_select %p66, %s67, %s68
      %p72 = pneg %p66
      %p73 = scmp.eq.s32.totalorder %s13, 7
      %p74 = por %p72, %p73
      %p75 = scmp.ne.s32.totalorder %s67, %s70
      %p76 = scmp.eq.s32.totalorder %s13, 0
      %p77 = por %p75, %p76
      %p78 = scmp.ne.s32.totalorder %s67, %s70
      %p79 = scmp.eq.s32.totalorder %s18, 7
      %p80 = por %p78, %p79
      %p81 = scmp.ne.s32.totalorder %s70, %s71
      %p82 = scmp.eq.s32.totalorder %s18, 0
      %p83 = por %p81, %p82
      %p84 = scmp.ne.s32.totalorder %s70, %s71
      %p85 = scmp.eq.s32.totalorder %s19, 7
      %p86 = por %p84, %p85
      %p88 = scmp.ne.s32.totalorder %s71, %s87
      %p89 = scmp.eq.s32.totalorder %s19, 0
      %p90 = por %p88, %p89
      %s92 = sadd.s32 %s91, 1
      %p95 = scmp.eq.s32.totalorder %s13, 7
      %p96 = scmp.ne.s32.totalorder %s91, %s93
      %p97 = scmp.eq.s32.totalorder %s13, 0
      %p98 = por %p96, %p97
      %p99 = scmp.ne.s32.totalorder %s91, %s93
      %p100 = scmp.eq.s32.totalorder %s18, 7
      %p101 = por %p99, %p100
      %p102 = scmp.ne.s32.totalorder %s93, %s94
      %p103 = scmp.eq.s32.totalorder %s18, 0
      %p104 = por %p102, %p103
      %p105 = scmp.ne.s32.totalorder %s93, %s94
      %p106 = scmp.eq.s32.totalorder %s19, 7
      %p107 = por %p105, %p106
      %p109 = scmp.ne.s32.totalorder %s94, %s108
      %p110 = scmp.eq.s32.totalorder %s19, 0
      %p111 = por %p109, %p110
      %s113 = sadd.s32 %s112, 1
      %p116 = scmp.eq.s32.totalorder %s13, 7
      %p117 = scmp.ne.s32.totalorder %s112, %s114
      %p118 = scmp.eq.s32.totalorder %s13, 0
      %p119 = por %p117, %p118
      %p120 = scmp.ne.s32.totalorder %s112, %s114
      %p121 = scmp.eq.s32.totalorder %s18, 7
      %p122 = por %p120, %p121
      %p123 = scmp.ne.s32.totalorder %s114, %s115
      %p124 = scmp.eq.s32.totalorder %s18, 0
      %p125 = por %p123, %p124
      %p126 = scmp.ne.s32.totalorder %s114, %s115
      %p127 = scmp.eq.s32.totalorder %s19, 7
      %p128 = por %p126, %p127
      %p130 = scmp.ne.s32.totalorder %s115, %s129
      %p131 = scmp.eq.s32.totalorder %s19, 0
      %p132 = por %p130, %p131
      %s133 = ssub.s32 %s20, %s32
      %s134 = ssub.s32 %s21, %s28
      %s135 = sor.u32 %s133, %s134
      %p136 = scmp.eq.s32.totalorder %s135, 0
      %s138 = sadd.s32 %s137, 1
      %s139 = scalar_select %p136, %s137, %s138
      %p142 = pneg %p136
      %p143 = scmp.eq.s32.totalorder %s13, 7
      %p144 = por %p142, %p143
      %p145 = scmp.ne.s32.totalorder %s137, %s140
      %p146 = scmp.eq.s32.totalorder %s13, 0
      %p147 = por %p145, %p146
      %p148 = scmp.ne.s32.totalorder %s137, %s140
      %p149 = scmp.eq.s32.totalorder %s18, 7
      %p150 = por %p148, %p149
      %p151 = scmp.ne.s32.totalorder %s140, %s141
      %p152 = scmp.eq.s32.totalorder %s18, 0
      %p153 = por %p151, %p152
      %p154 = scmp.ne.s32.totalorder %s140, %s141
      %p155 = scmp.eq.s32.totalorder %s19, 7
      %p156 = por %p154, %p155
      %p158 = scmp.ne.s32.totalorder %s141, %s157
      %p159 = scmp.eq.s32.totalorder %s19, 0
      %p160 = por %p158, %p159
      %p161 = scmp.le.s32.totalorder 1, %s13
      %p162 = scmp.lt.s32.totalorder %s13, 9
      %p163 = pnand %p161, %p162
      %p164 = pneg %p163
      // Predicated region
      $region9: #{tpu_custom_call.1} parent=5 // pred_check
        _
      $region10: #{tpu_custom_call.1} parent=5 // pred_check_branch
        %166 = sbr.rel (%p163) target = $region12
      $region11: #{tpu_custom_call.1} parent=5 // pred_region
        %s167 = ssub.s32 %s13, 1
        // Predicated region
        $region13: #{tpu_custom_call.1} parent=11 // pred_check
          %p168 = pneg %p104
        $region14: #{tpu_custom_call.1} parent=11 // pred_check_branch
          %170 = sbr.rel (%p168) target = $region16
        $region15: #{tpu_custom_call.1} parent=11 // pred_region
          _
        $region16: #{tpu_custom_call.1} parent=11 // pred_fallthru
          _
        // Predicated region
        $region17: #{tpu_custom_call.1} parent=11 // pred_check
          %p171 = pneg %p125
        $region18: #{tpu_custom_call.1} parent=11 // pred_check_branch
          %173 = sbr.rel (%p171) target = $region20
        $region19: #{tpu_custom_call.1} parent=11 // pred_region
          _
        $region20: #{tpu_custom_call.1} parent=11 // pred_fallthru
          _
      $region12: #{tpu_custom_call.1} parent=5 // pred_fallthru
        _
      %p174 = scmp.lt.s32.totalorder %s13, 8
      // Predicated region
      $region21: #{tpu_custom_call.1} parent=5 // pred_check
        %p175 = pneg %p174
      $region22: #{tpu_custom_call.1} parent=5 // pred_check_branch
        %177 = sbr.rel (%p175) target = $region24
      $region23: #{tpu_custom_call.1} parent=5 // pred_region
        // Predicated region
        $region25: #{tpu_custom_call.1} parent=23 // pred_check
          %p178 = pneg %p47
        $region26: #{tpu_custom_call.1} parent=23 // pred_check_branch
          %180 = sbr.rel (%p178) target = $region28
        $region27: #{tpu_custom_call.1} parent=23 // pred_region
          %s181 = smul.u32 8, %s21
          %p182 = scmp.lt.s32.totalorder %s20, 1
          %s183 = scalar_select %p182, %s20, 1
          %p184 = scmp.lt.s32.totalorder %s181, 39
          %s185 = scalar_select %p184, %s181, 39
          %s186 = smul.addr %s185, 5
          %s187 = smul.addr %s183, 200
          %s188 = sadd.s32 %s186, %s187
          %s189 = smul.addr %s188, 4
          %s190 = scalar_lea.vmem %s0, %s189
          %s191 = smul.u32 8, %s21
        $region28: #{tpu_custom_call.1} parent=23 // pred_fallthru
          _
        // Predicated region
        $region29: #{tpu_custom_call.1} parent=23 // pred_check
          %p192 = pneg %p77
        $region30: #{tpu_custom_call.1} parent=23 // pred_check_branch
          %194 = sbr.rel (%p192) target = $region32
        $region31: #{tpu_custom_call.1} parent=23 // pred_region
          %s195 = sadd.s32 %s21, 1
          %s196 = smul.u32 8, %s195
          %p197 = scmp.lt.s32.totalorder %s20, 1
          %s198 = scalar_select %p197, %s20, 1
          %p199 = scmp.lt.s32.totalorder %s196, 39
          %s200 = scalar_select %p199, %s196, 39
          %s201 = smul.addr %s200, 5
          %s202 = smul.addr %s198, 200
          %s203 = sadd.s32 %s201, %s202
          %s204 = smul.addr %s203, 4
          %s205 = scalar_lea.vmem %s1, %s204
          %s206 = sadd.s32 %s21, 1
          %s207 = smul.u32 8, %s206
        $region32: #{tpu_custom_call.1} parent=23 // pred_fallthru
          _
      $region24: #{tpu_custom_call.1} parent=5 // pred_fallthru
        _
      %p208 = scmp.le.s32.totalorder 1, %s13
      %p209 = scmp.lt.s32.totalorder %s13, 9
      %p210 = pnand %p208, %p209
      %p211 = pneg %p210
      // Predicated region
      $region33: #{tpu_custom_call.1} parent=5 // pred_check
        _
      $region34: #{tpu_custom_call.1} parent=5 // pred_check_branch
        %213 = sbr.rel (%p210) target = $region36
      $region35: #{tpu_custom_call.1} parent=5 // pred_region
        %s214 = ssub.s32 %s13, 1
        %s215 = smul.u32 8, %s23
        %p216 = scmp.lt.s32.totalorder %s22, 1
        %s217 = scalar_select %p216, %s22, 1
        %p218 = scmp.lt.s32.totalorder %s215, 39
        %s219 = scalar_select %p218, %s215, 39
        %s220 = smul.addr %s219, 5
        %s221 = smul.addr %s217, 200
        %s222 = sadd.s32 %s220, %s221
        %s223 = smul.addr %s222, 4
        %s224 = scalar_lea.vmem %s0, %s223
        %p225 = pneg %p53
        %p226 = pneg %p50
        %s227 = sadd.s32 %s23, 1
        %s228 = smul.u32 8, %s227
        %p229 = scmp.lt.s32.totalorder %s22, 1
        %s230 = scalar_select %p229, %s22, 1
        %p231 = scmp.lt.s32.totalorder %s228, 39
        %s232 = scalar_select %p231, %s228, 39
        %s233 = smul.addr %s232, 5
        %s234 = smul.addr %s230, 200
        %s235 = sadd.s32 %s233, %s234
        %s236 = smul.addr %s235, 4
        %s237 = scalar_lea.vmem %s1, %s236
        %p238 = pneg %p83
        %p239 = pneg %p80
        %p240 = pneg %p104
        %p241 = pneg %p101
        %p242 = pneg %p125
        %p243 = pneg %p122
        %p244 = pneg %p153
        %p245 = pneg %p150
        %s246 = sand.u32 %s140, 1
        %s247 = scalar_lea.sflag [#allocation3], %s246
        %s248 = sand.u32 %s140, 1
        %s249 = smul.addr %s248, 128
        %s250 = scalar_lea.vmem [#allocation2], %s249
        %s251 = smul.u32 8, %s23
        %p252 = scmp.lt.s32.totalorder %s22, 1
        %s253 = scalar_select %p252, %s22, 1
        %p254 = scmp.lt.s32.totalorder %s251, 39
        %s255 = scalar_select %p254, %s251, 39
        %s256 = smul.addr %s255, 5
        %s257 = smul.addr %s253, 200
        %s258 = sadd.s32 %s256, %s257
        %s259 = smul.addr %s258, 4
        %s260 = scalar_lea.vmem %s0, %s259
        %s261 = smul.u32 8, %s23
        %s262 = sadd.s32 %s23, 1
        %s263 = smul.u32 8, %s262
        %p264 = scmp.lt.s32.totalorder %s22, 1
        %s265 = scalar_select %p264, %s22, 1
        %p266 = scmp.lt.s32.totalorder %s263, 39
        %s267 = scalar_select %p266, %s263, 39
        %s268 = smul.addr %s267, 5
        %s269 = smul.addr %s265, 200
        %s270 = sadd.s32 %s268, %s269
        %s271 = smul.addr %s270, 4
        %s272 = scalar_lea.vmem %s1, %s271
        %s273 = sadd.s32 %s23, 1
        %s274 = smul.u32 8, %s273
        %s275 = smul.u32 8, %s23
        %v277 = vld [vmem:[%s3] sm:$0x1]
        %v279 = vlaneseq
        %v280 = vshrl.u32 %v279, 7
        %v281 = vsub.s32 0, %v280
        %v282 = vrot.slane %v277, %v281
        %v284 = vld [vmem:[%s2] sm:$0x3]
        %v285 = vld [vmem:[%s2] sm:$0x6]
        %v286 = vld [vmem:[%s2] sm:$0x8]
        %v287 = vld [vmem:[%s2 + $0x4] sm:$0x1]
        %v288 = vld [vmem:[%s2 + $0x4] sm:$0x3]
        %v289 = vld [vmem:[%s2 + $0x4] sm:$0xc]
        %v290 = vld [vmem:[%s2 + $0x4] sm:$0x8]
        %v291 = vld [vmem:[%s2 + $0x8] sm:$0x1]
        %v292 = vld [vmem:[%s2 + $0x8] sm:$0x6]
        %v293 = vld [vmem:[%s2 + $0x8] sm:$0xc]
        %v294 = vld [vmem:[%s2 + $0xc] sm:$0x3]
        %v295 = vld [vmem:[%s260] sm:$0xf]
        %v296 = vld [vmem:[%s260 + $0x4] sm:$0xf]
        %v297 = vld [vmem:[%s260 + $0x8] sm:$0xf]
        %v298 = vld [vmem:[%s260 + $0xc] sm:$0xf]
        %v303 = vunpack.c.l.b16 %v295
        %v304 = vunpack.c.l.b16 %v296
        %v305 = vunpack.c.l.b16 %v297
        %v306 = vunpack.c.l.b16 %v298
        %v307 = vpack.c.b16 %v304, %v303
        %v308 = vpack.c.b16 %v306, %v305
        %vm309 = vcmask 23552
        %v311 = vsel %vm309, %v307, 0
        %v314 = vsel %vm309, %v308, 0
        %vm316 = vcmask 1040384
        %vm317 = vcmask 1041408
        %v318 = vsel %vm316, 4294967295, 65535
        %v319 = vsel %vm317, %v318, 0
        %v321 = vand.u32 %v284, %v319
        %323 = vmatprep.subr.bf16.mxu0 0
        %324 = vmatpush1.bf16.msra.mxu0 0
        %325 = vmatprep.subr.bf16.mxu0 0
        %326 = vmatpush1.bf16.msra.mxu0 0
        %327 = vmatprep.subr.bf16.mxu0 0
        %328 = vmatpush1.bf16.msra.mxu0 0
        %329 = vmatprep.subr.bf16.mxu0 0
        %330 = vmatpush1.bf16.msra.mxu0 0
        %331 = vmatprep.subr.bf16.mxu0 0
        %332 = vmatpush1.bf16.msra.mxu0 0
        %333 = vmatprep.subr.bf16.mxu0 0
        %334 = vmatpush1.bf16.msra.mxu0 0
        %335 = vmatprep.subr.bf16.mxu0 0
        %336 = vmatpush1.bf16.msra.mxu0 0
        %337 = vmatprep.subr.bf16.mxu0 0
        %338 = vmatpush1.bf16.msra.mxu0 %v321
        %339 = vmatprep.subr.bf16.mxu0 0
        %340 = vmatpush2.bf16.msra.mxu0 0
        %341 = vmatprep.subr.bf16.mxu0 0
        %342 = vmatpush2.bf16.msra.mxu0 0
        %343 = vmatprep.subr.bf16.mxu0 0
        %344 = vmatpush2.bf16.msra.mxu0 0
        %345 = vmatprep.subr.bf16.mxu0 0
        %346 = vmatpush2.bf16.msra.mxu0 0
        %347 = vmatprep.subr.bf16.mxu0 0
        %348 = vmatpush2.bf16.msra.mxu0 0
        %349 = vmatprep.subr.bf16.mxu0 0
        %350 = vmatpush2.bf16.msra.mxu0 0
        %351 = vmatprep.subr.bf16.mxu0 0
        %352 = vmatpush2.bf16.msra.mxu0 0
        %353 = vmatprep.subr.bf16.mxu0 0
        %354 = vmatpush2.bf16.msra.mxu0 0
        %355 = vmatprep.mubr.bf16.mxu0 0
        %356 = vmatmul.mubr.bf16.gmra.mxu0 %v311
        %v357 = vpop.f32.mrf.mxu0
        %v358 = vadd.f32 0.0, %v357
        %v359 = vpop.f32.mrf.mxu0
        %v360 = vpop.f32.mrf.mxu0
        %v361 = vadd.f32 0.0, %v360
        %v362 = vpop.f32.mrf.mxu0
        %363 = vmatprep.mubr.bf16.mxu0 0
        %364 = vmatmul.mubr.bf16.gmra.mxu0 %v314
        %v365 = vpop.f32.mrf.mxu0
        %v366 = vadd.f32 0.0, %v365
        %v367 = vpop.f32.mrf.mxu0
        %v368 = vpop.f32.mrf.mxu0
        %v369 = vadd.f32 0.0, %v368
        %v370 = vpop.f32.mrf.mxu0
        %371 = vdwg.mxu0
        %v372 = vadd.f32 %v282, %v358
        %v373 = vadd.f32 %v282, %v361
        %v374 = vadd.f32 %v282, %v366
        %v375 = vadd.f32 %v282, %v369
        %v376 = vld [vmem:[%s260] sm:$0xf]
        %v377 = vld [vmem:[%s260 + $0x4] sm:$0xf]
        %v378 = vld [vmem:[%s260 + $0x8] sm:$0xf]
        %v379 = vld [vmem:[%s260 + $0xc] sm:$0xf]
        %v380 = vld [vmem:[%s260 + $0x10] sm:$0x1]
        %v386 = vunpack.c.l.b16 %v376
        %v387 = vunpack.c.l.b16 %v377
        %v388 = vunpack.c.l.b16 %v378
        %v389 = vunpack.c.l.b16 %v379
        %v390 = vunpack.c.l.b16 %v380
        %v391 = vpack.c.b16 %v387, %v386
        %v392 = vpack.c.b16 %v389, %v388
        %v393 = vpack.c.b16 %v390, %v390
        %vm394 = vsmask.f32 7424
        %v396 = vshrl.u32 %v391, 16
        %v398 = vshll.u32 %v391, 16
        %v400 = vrot.slane %v398, 1
        %v401 = vor.u32 %v396, %v400
        %v403 = vshll.u32 %v392, 16
        %v405 = vrot.slane %v403, 1
        %v406 = vsel %vm394, %v401, %v405
        %v407 = vshrl.u32 %v392, 16
        %v409 = vor.u32 %v407, %v405
        %v411 = vshll.u32 %v393, 16
        %v413 = vrot.slane %v411, 1
        %v414 = vsel %vm394, %v409, %v413
        %v416 = vunpack.c.l.b16 %v285
        %v417 = vpack.c.b16 %v416, %v416
        %v419 = vshrl.u32 %v417, 16
        %v421 = vrot.slane %v419, 1
        %v422 = vshll.u32 %v417, 16
        %v424 = vrot.slane %v422, 2
        %v425 = vor.u32 %v421, %v424
        %v427 = vsel %vm309, %v406, 0
        %v430 = vsel %vm309, %v414, 0
        %v433 = vand.u32 %v425, %v319
        %435 = vmatprep.subr.bf16.mxu0 0
        %436 = vmatpush1.bf16.msra.mxu0 0
        %437 = vmatprep.subr.bf16.mxu0 0
        %438 = vmatpush1.bf16.msra.mxu0 0
        %439 = vmatprep.subr.bf16.mxu0 0
        %440 = vmatpush1.bf16.msra.mxu0 0
        %441 = vmatprep.subr.bf16.mxu0 0
        %442 = vmatpush1.bf16.msra.mxu0 0
        %443 = vmatprep.subr.bf16.mxu0 0
        %444 = vmatpush1.bf16.msra.mxu0 0
        %445 = vmatprep.subr.bf16.mxu0 0
        %446 = vmatpush1.bf16.msra.mxu0 0
        %447 = vmatprep.subr.bf16.mxu0 0
        %448 = vmatpush1.bf16.msra.mxu0 0
        %449 = vmatprep.subr.bf16.mxu0 0
        %450 = vmatpush1.bf16.msra.mxu0 %v433
        %451 = vmatprep.subr.bf16.mxu0 0
        %452 = vmatpush2.bf16.msra.mxu0 0
        %453 = vmatprep.subr.bf16.mxu0 0
        %454 = vmatpush2.bf16.msra.mxu0 0
        %455 = vmatprep.subr.bf16.mxu0 0
        %456 = vmatpush2.bf16.msra.mxu0 0
        %457 = vmatprep.subr.bf16.mxu0 0
        %458 = vmatpush2.bf16.msra.mxu0 0
        %459 = vmatprep.subr.bf16.mxu0 0
        %460 = vmatpush2.bf16.msra.mxu0 0
        %461 = vmatprep.subr.bf16.mxu0 0
        %462 = vmatpush2.bf16.msra.mxu0 0
        %463 = vmatprep.subr.bf16.mxu0 0
        %464 = vmatpush2.bf16.msra.mxu0 0
        %465 = vmatprep.subr.bf16.mxu0 0
        %466 = vmatpush2.bf16.msra.mxu0 0
        %467 = vmatprep.mubr.bf16.mxu0 0
        %468 = vmatmul.mubr.bf16.gmra.mxu0 %v427
        %v469 = vpop.f32.mrf.mxu0
        %v470 = vadd.f32 0.0, %v469
        %v471 = vpop.f32.mrf.mxu0
        %v472 = vpop.f32.mrf.mxu0
        %v473 = vadd.f32 0.0, %v472
        %v474 = vpop.f32.mrf.mxu0
        %475 = vmatprep.mubr.bf16.mxu0 0
        %476 = vmatmul.mubr.bf16.gmra.mxu0 %v430
        %v477 = vpop.f32.mrf.mxu0
        %v478 = vadd.f32 0.0, %v477
        %v479 = vpop.f32.mrf.mxu0
        %v480 = vpop.f32.mrf.mxu0
        %v481 = vadd.f32 0.0, %v480
        %v482 = vpop.f32.mrf.mxu0
        %483 = vdwg.mxu0
        %v484 = vadd.f32 %v372, %v470
        %v485 = vadd.f32 %v373, %v473
        %v486 = vadd.f32 %v374, %v478
        %v487 = vadd.f32 %v375, %v481
        %v488 = vld [vmem:[%s260] sm:$0xe]
        %v490 = vunpack.c.l.b16 %v488
        %v491 = vpack.c.b16 %v387, %v490
        %vm492 = vcmask 1046528
        %v493 = vrot.slane %v491, 1
        %v494 = vrot.slane %v392, 1
        %v495 = vsel %vm492, %v493, %v494
        %v496 = vrot.slane %v393, 1
        %v497 = vsel %vm492, %v494, %v496
        %v500 = vunpack.c.l.b16 %v286
        %v501 = vunpack.c.l.b16 %v287
        %v502 = vpack.c.b16 %v501, %v500
        %v503 = vrot.slane %v502, 3
        %v505 = vsel %vm309, %v495, 0
        %v508 = vsel %vm309, %v497, 0
        %v511 = vand.u32 %v503, %v319
        %513 = vmatprep.subr.bf16.mxu0 0
        %514 = vmatpush1.bf16.msra.mxu0 0
        %515 = vmatprep.subr.bf16.mxu0 0
        %516 = vmatpush1.bf16.msra.mxu0 0
        %517 = vmatprep.subr.bf16.mxu0 0
        %518 = vmatpush1.bf16.msra.mxu0 0
        %519 = vmatprep.subr.bf16.mxu0 0
        %520 = vmatpush1.bf16.msra.mxu0 0
        %521 = vmatprep.subr.bf16.mxu0 0
        %522 = vmatpush1.bf16.msra.mxu0 0
        %523 = vmatprep.subr.bf16.mxu0 0
        %524 = vmatpush1.bf16.msra.mxu0 0
        %525 = vmatprep.subr.bf16.mxu0 0
        %526 = vmatpush1.bf16.msra.mxu0 0
        %527 = vmatprep.subr.bf16.mxu0 0
        %528 = vmatpush1.bf16.msra.mxu0 %v511
        %529 = vmatprep.subr.bf16.mxu0 0
        %530 = vmatpush2.bf16.msra.mxu0 0
        %531 = vmatprep.subr.bf16.mxu0 0
        %532 = vmatpush2.bf16.msra.mxu0 0
        %533 = vmatprep.subr.bf16.mxu0 0
        %534 = vmatpush2.bf16.msra.mxu0 0
        %535 = vmatprep.subr.bf16.mxu0 0
        %536 = vmatpush2.bf16.msra.mxu0 0
        %537 = vmatprep.subr.bf16.mxu0 0
        %538 = vmatpush2.bf16.msra.mxu0 0
        %539 = vmatprep.subr.bf16.mxu0 0
        %540 = vmatpush2.bf16.msra.mxu0 0
        %541 = vmatprep.subr.bf16.mxu0 0
        %542 = vmatpush2.bf16.msra.mxu0 0
        %543 = vmatprep.subr.bf16.mxu0 0
        %544 = vmatpush2.bf16.msra.mxu0 0
        %545 = vmatprep.mubr.bf16.mxu0 0
        %546 = vmatmul.mubr.bf16.gmra.mxu0 %v505
        %v547 = vpop.f32.mrf.mxu0
        %v548 = vadd.f32 0.0, %v547
        %v549 = vpop.f32.mrf.mxu0
        %v550 = vpop.f32.mrf.mxu0
        %v551 = vadd.f32 0.0, %v550
        %v552 = vpop.f32.mrf.mxu0
        %553 = vmatprep.mubr.bf16.mxu0 0
        %554 = vmatmul.mubr.bf16.gmra.mxu0 %v508
        %v555 = vpop.f32.mrf.mxu0
        %v556 = vadd.f32 0.0, %v555
        %v557 = vpop.f32.mrf.mxu0
        %v558 = vpop.f32.mrf.mxu0
        %v559 = vadd.f32 0.0, %v558
        %v560 = vpop.f32.mrf.mxu0
        %561 = vdwg.mxu0
        %v562 = vadd.f32 %v484, %v548
        %v563 = vadd.f32 %v485, %v551
        %v564 = vadd.f32 %v486, %v556
        %v565 = vadd.f32 %v487, %v559
        %s566 = scalar_lea.vmem %s260, 20
        %v567 = vld [vmem:[%s566] sm:$0xf]
        %v568 = vld [vmem:[%s566 + $0x4] sm:$0xf]
        %v569 = vld [vmem:[%s566 + $0x8] sm:$0xf]
        %v570 = vld [vmem:[%s566 + $0xc] sm:$0xf]
        %v575 = vunpack.c.l.b16 %v567
        %v576 = vunpack.c.l.b16 %v568
        %v577 = vunpack.c.l.b16 %v569
        %v578 = vunpack.c.l.b16 %v570
        %v579 = vpack.c.b16 %v576, %v575
        %v580 = vpack.c.b16 %v578, %v577
        %v582 = vunpack.c.l.b16 %v288
        %v583 = vpack.c.b16 %v582, %v582
        %v585 = vshrl.u32 %v583, 16
        %v587 = vshll.u32 %v583, 16
        %v589 = vrot.slane %v587, 1
        %v590 = vor.u32 %v585, %v589
        %v592 = vsel %vm309, %v579, 0
        %v595 = vsel %vm309, %v580, 0
        %v598 = vand.u32 %v590, %v319
        %600 = vmatprep.subr.bf16.mxu0 0
        %601 = vmatpush1.bf16.msra.mxu0 0
        %602 = vmatprep.subr.bf16.mxu0 0
        %603 = vmatpush1.bf16.msra.mxu0 0
        %604 = vmatprep.subr.bf16.mxu0 0
        %605 = vmatpush1.bf16.msra.mxu0 0
        %606 = vmatprep.subr.bf16.mxu0 0
        %607 = vmatpush1.bf16.msra.mxu0 0
        %608 = vmatprep.subr.bf16.mxu0 0
        %609 = vmatpush1.bf16.msra.mxu0 0
        %610 = vmatprep.subr.bf16.mxu0 0
        %611 = vmatpush1.bf16.msra.mxu0 0
        %612 = vmatprep.subr.bf16.mxu0 0
        %613 = vmatpush1.bf16.msra.mxu0 0
        %614 = vmatprep.subr.bf16.mxu0 0
        %615 = vmatpush1.bf16.msra.mxu0 %v598
        %616 = vmatprep.subr.bf16.mxu0 0
        %617 = vmatpush2.bf16.msra.mxu0 0
        %618 = vmatprep.subr.bf16.mxu0 0
        %619 = vmatpush2.bf16.msra.mxu0 0
        %620 = vmatprep.subr.bf16.mxu0 0
        %621 = vmatpush2.bf16.msra.mxu0 0
        %622 = vmatprep.subr.bf16.mxu0 0
        %623 = vmatpush2.bf16.msra.mxu0 0
        %624 = vmatprep.subr.bf16.mxu0 0
        %625 = vmatpush2.bf16.msra.mxu0 0
        %626 = vmatprep.subr.bf16.mxu0 0
        %627 = vmatpush2.bf16.msra.mxu0 0
        %628 = vmatprep.subr.bf16.mxu0 0
        %629 = vmatpush2.bf16.msra.mxu0 0
        %630 = vmatprep.subr.bf16.mxu0 0
        %631 = vmatpush2.bf16.msra.mxu0 0
        %632 = vmatprep.mubr.bf16.mxu0 0
        %633 = vmatmul.mubr.bf16.gmra.mxu0 %v592
        %v634 = vpop.f32.mrf.mxu0
        %v635 = vadd.f32 0.0, %v634
        %v636 = vpop.f32.mrf.mxu0
        %v637 = vpop.f32.mrf.mxu0
        %v638 = vadd.f32 0.0, %v637
        %v639 = vpop.f32.mrf.mxu0
        %640 = vmatprep.mubr.bf16.mxu0 0
        %641 = vmatmul.mubr.bf16.gmra.mxu0 %v595
        %v642 = vpop.f32.mrf.mxu0
        %v643 = vadd.f32 0.0, %v642
        %v644 = vpop.f32.mrf.mxu0
        %v645 = vpop.f32.mrf.mxu0
        %v646 = vadd.f32 0.0, %v645
        %v647 = vpop.f32.mrf.mxu0
        %648 = vdwg.mxu0
        %v649 = vadd.f32 %v562, %v635
        %v650 = vadd.f32 %v563, %v638
        %v651 = vadd.f32 %v564, %v643
        %v652 = vadd.f32 %v565, %v646
        %v653 = vld [vmem:[%s566] sm:$0xf]
        %v654 = vld [vmem:[%s566 + $0x4] sm:$0xf]
        %v655 = vld [vmem:[%s566 + $0x8] sm:$0xf]
        %v656 = vld [vmem:[%s566 + $0xc] sm:$0xf]
        %v657 = vld [vmem:[%s566 + $0x10] sm:$0x1]
        %v663 = vunpack.c.l.b16 %v653
        %v664 = vunpack.c.l.b16 %v654
        %v665 = vunpack.c.l.b16 %v655
        %v666 = vunpack.c.l.b16 %v656
        %v667 = vunpack.c.l.b16 %v657
        %v668 = vpack.c.b16 %v664, %v663
        %v669 = vpack.c.b16 %v666, %v665
        %v670 = vpack.c.b16 %v667, %v667
        %v672 = vshrl.u32 %v668, 16
        %v674 = vshll.u32 %v668, 16
        %v676 = vrot.slane %v674, 1
        %v677 = vor.u32 %v672, %v676
        %v679 = vshll.u32 %v669, 16
        %v681 = vrot.slane %v679, 1
        %v682 = vsel %vm394, %v677, %v681
        %v683 = vshrl.u32 %v669, 16
        %v685 = vor.u32 %v683, %v681
        %v687 = vshll.u32 %v670, 16
        %v689 = vrot.slane %v687, 1
        %v690 = vsel %vm394, %v685, %v689
        %v692 = vunpack.c.l.b16 %v289
        %v693 = vpack.c.b16 %v692, %v692
        %v694 = vrot.slane %v693, 2
        %v696 = vsel %vm309, %v682, 0
        %v699 = vsel %vm309, %v690, 0
        %v702 = vand.u32 %v694, %v319
        %704 = vmatprep.subr.bf16.mxu0 0
        %705 = vmatpush1.bf16.msra.mxu0 0
        %706 = vmatprep.subr.bf16.mxu0 0
        %707 = vmatpush1.bf16.msra.mxu0 0
        %708 = vmatprep.subr.bf16.mxu0 0
        %709 = vmatpush1.bf16.msra.mxu0 0
        %710 = vmatprep.subr.bf16.mxu0 0
        %711 = vmatpush1.bf16.msra.mxu0 0
        %712 = vmatprep.subr.bf16.mxu0 0
        %713 = vmatpush1.bf16.msra.mxu0 0
        %714 = vmatprep.subr.bf16.mxu0 0
        %715 = vmatpush1.bf16.msra.mxu0 0
        %716 = vmatprep.subr.bf16.mxu0 0
        %717 = vmatpush1.bf16.msra.mxu0 0
        %718 = vmatprep.subr.bf16.mxu0 0
        %719 = vmatpush1.bf16.msra.mxu0 %v702
        %720 = vmatprep.subr.bf16.mxu0 0
        %721 = vmatpush2.bf16.msra.mxu0 0
        %722 = vmatprep.subr.bf16.mxu0 0
        %723 = vmatpush2.bf16.msra.mxu0 0
        %724 = vmatprep.subr.bf16.mxu0 0
        %725 = vmatpush2.bf16.msra.mxu0 0
        %726 = vmatprep.subr.bf16.mxu0 0
        %727 = vmatpush2.bf16.msra.mxu0 0
        %728 = vmatprep.subr.bf16.mxu0 0
        %729 = vmatpush2.bf16.msra.mxu0 0
        %730 = vmatprep.subr.bf16.mxu0 0
        %731 = vmatpush2.bf16.msra.mxu0 0
        %732 = vmatprep.subr.bf16.mxu0 0
        %733 = vmatpush2.bf16.msra.mxu0 0
        %734 = vmatprep.subr.bf16.mxu0 0
        %735 = vmatpush2.bf16.msra.mxu0 0
        %736 = vmatprep.mubr.bf16.mxu0 0
        %737 = vmatmul.mubr.bf16.gmra.mxu0 %v696
        %v738 = vpop.f32.mrf.mxu0
        %v739 = vadd.f32 0.0, %v738
        %v740 = vpop.f32.mrf.mxu0
        %v741 = vpop.f32.mrf.mxu0
        %v742 = vadd.f32 0.0, %v741
        %v743 = vpop.f32.mrf.mxu0
        %744 = vmatprep.mubr.bf16.mxu0 0
        %745 = vmatmul.mubr.bf16.gmra.mxu0 %v699
        %v746 = vpop.f32.mrf.mxu0
        %v747 = vadd.f32 0.0, %v746
        %v748 = vpop.f32.mrf.mxu0
        %v749 = vpop.f32.mrf.mxu0
        %v750 = vadd.f32 0.0, %v749
        %v751 = vpop.f32.mrf.mxu0
        %752 = vdwg.mxu0
        %v753 = vadd.f32 %v649, %v739
        %v754 = vadd.f32 %v650, %v742
        %v755 = vadd.f32 %v651, %v747
        %v756 = vadd.f32 %v652, %v750
        %v757 = vld [vmem:[%s566] sm:$0xe]
        %v759 = vunpack.c.l.b16 %v757
        %v760 = vpack.c.b16 %v664, %v759
        %v761 = vrot.slane %v760, 1
        %v762 = vrot.slane %v669, 1
        %v763 = vsel %vm492, %v761, %v762
        %v764 = vrot.slane %v670, 1
        %v765 = vsel %vm492, %v762, %v764
        %v768 = vunpack.c.l.b16 %v290
        %v769 = vunpack.c.l.b16 %v291
        %v770 = vpack.c.b16 %v769, %v768
        %v772 = vshrl.u32 %v770, 16
        %v774 = vrot.slane %v772, 3
        %v775 = vshll.u32 %v770, 16
        %v777 = vrot.slane %v775, 4
        %v778 = vor.u32 %v774, %v777
        %v780 = vsel %vm309, %v763, 0
        %v783 = vsel %vm309, %v765, 0
        %v786 = vand.u32 %v778, %v319
        %788 = vmatprep.subr.bf16.mxu0 0
        %789 = vmatpush1.bf16.msra.mxu0 0
        %790 = vmatprep.subr.bf16.mxu0 0
        %791 = vmatpush1.bf16.msra.mxu0 0
        %792 = vmatprep.subr.bf16.mxu0 0
        %793 = vmatpush1.bf16.msra.mxu0 0
        %794 = vmatprep.subr.bf16.mxu0 0
        %795 = vmatpush1.bf16.msra.mxu0 0
        %796 = vmatprep.subr.bf16.mxu0 0
        %797 = vmatpush1.bf16.msra.mxu0 0
        %798 = vmatprep.subr.bf16.mxu0 0
        %799 = vmatpush1.bf16.msra.mxu0 0
        %800 = vmatprep.subr.bf16.mxu0 0
        %801 = vmatpush1.bf16.msra.mxu0 0
        %802 = vmatprep.subr.bf16.mxu0 0
        %803 = vmatpush1.bf16.msra.mxu0 %v786
        %804 = vmatprep.subr.bf16.mxu0 0
        %805 = vmatpush2.bf16.msra.mxu0 0
        %806 = vmatprep.subr.bf16.mxu0 0
        %807 = vmatpush2.bf16.msra.mxu0 0
        %808 = vmatprep.subr.bf16.mxu0 0
        %809 = vmatpush2.bf16.msra.mxu0 0
        %810 = vmatprep.subr.bf16.mxu0 0
        %811 = vmatpush2.bf16.msra.mxu0 0
        %812 = vmatprep.subr.bf16.mxu0 0
        %813 = vmatpush2.bf16.msra.mxu0 0
        %814 = vmatprep.subr.bf16.mxu0 0
        %815 = vmatpush2.bf16.msra.mxu0 0
        %816 = vmatprep.subr.bf16.mxu0 0
        %817 = vmatpush2.bf16.msra.mxu0 0
        %818 = vmatprep.subr.bf16.mxu0 0
        %819 = vmatpush2.bf16.msra.mxu0 0
        %820 = vmatprep.mubr.bf16.mxu0 0
        %821 = vmatmul.mubr.bf16.gmra.mxu0 %v780
        %v822 = vpop.f32.mrf.mxu0
        %v823 = vadd.f32 0.0, %v822
        %v824 = vpop.f32.mrf.mxu0
        %v825 = vpop.f32.mrf.mxu0
        %v826 = vadd.f32 0.0, %v825
        %v827 = vpop.f32.mrf.mxu0
        %828 = vmatprep.mubr.bf16.mxu0 0
        %829 = vmatmul.mubr.bf16.gmra.mxu0 %v783
        %v830 = vpop.f32.mrf.mxu0
        %v831 = vadd.f32 0.0, %v830
        %v832 = vpop.f32.mrf.mxu0
        %v833 = vpop.f32.mrf.mxu0
        %v834 = vadd.f32 0.0, %v833
        %v835 = vpop.f32.mrf.mxu0
        %836 = vdwg.mxu0
        %v837 = vadd.f32 %v753, %v823
        %v838 = vadd.f32 %v754, %v826
        %v839 = vadd.f32 %v755, %v831
        %v840 = vadd.f32 %v756, %v834
        %s841 = scalar_lea.vmem %s260, 40
        %v842 = vld [vmem:[%s841] sm:$0xf]
        %v843 = vld [vmem:[%s841 + $0x4] sm:$0xf]
        %v844 = vld [vmem:[%s841 + $0x8] sm:$0xf]
        %v845 = vld [vmem:[%s841 + $0xc] sm:$0xf]
        %v850 = vunpack.c.l.b16 %v842
        %v851 = vunpack.c.l.b16 %v843
        %v852 = vunpack.c.l.b16 %v844
        %v853 = vunpack.c.l.b16 %v845
        %v854 = vpack.c.b16 %v851, %v850
        %v855 = vpack.c.b16 %v853, %v852
        %v857 = vunpack.c.l.b16 %v292
        %v858 = vpack.c.b16 %v857, %v857
        %v859 = vrot.slane %v858, 1
        %v861 = vsel %vm309, %v854, 0
        %v864 = vsel %vm309, %v855, 0
        %v867 = vand.u32 %v859, %v319
        %869 = vmatprep.subr.bf16.mxu0 0
        %870 = vmatpush1.bf16.msra.mxu0 0
        %871 = vmatprep.subr.bf16.mxu0 0
        %872 = vmatpush1.bf16.msra.mxu0 0
        %873 = vmatprep.subr.bf16.mxu0 0
        %874 = vmatpush1.bf16.msra.mxu0 0
        %875 = vmatprep.subr.bf16.mxu0 0
        %876 = vmatpush1.bf16.msra.mxu0 0
        %877 = vmatprep.subr.bf16.mxu0 0
        %878 = vmatpush1.bf16.msra.mxu0 0
        %879 = vmatprep.subr.bf16.mxu0 0
        %880 = vmatpush1.bf16.msra.mxu0 0
        %881 = vmatprep.subr.bf16.mxu0 0
        %882 = vmatpush1.bf16.msra.mxu0 0
        %883 = vmatprep.subr.bf16.mxu0 0
        %884 = vmatpush1.bf16.msra.mxu0 %v867
        %885 = vmatprep.subr.bf16.mxu0 0
        %886 = vmatpush2.bf16.msra.mxu0 0
        %887 = vmatprep.subr.bf16.mxu0 0
        %888 = vmatpush2.bf16.msra.mxu0 0
        %889 = vmatprep.subr.bf16.mxu0 0
        %890 = vmatpush2.bf16.msra.mxu0 0
        %891 = vmatprep.subr.bf16.mxu0 0
        %892 = vmatpush2.bf16.msra.mxu0 0
        %893 = vmatprep.subr.bf16.mxu0 0
        %894 = vmatpush2.bf16.msra.mxu0 0
        %895 = vmatprep.subr.bf16.mxu0 0
        %896 = vmatpush2.bf16.msra.mxu0 0
        %897 = vmatprep.subr.bf16.mxu0 0
        %898 = vmatpush2.bf16.msra.mxu0 0
        %899 = vmatprep.subr.bf16.mxu0 0
        %900 = vmatpush2.bf16.msra.mxu0 0
        %901 = vmatprep.mubr.bf16.mxu0 0
        %902 = vmatmul.mubr.bf16.gmra.mxu0 %v861
        %v903 = vpop.f32.mrf.mxu0
        %v904 = vadd.f32 0.0, %v903
        %v905 = vpop.f32.mrf.mxu0
        %v906 = vpop.f32.mrf.mxu0
        %v907 = vadd.f32 0.0, %v906
        %v908 = vpop.f32.mrf.mxu0
        %909 = vmatprep.mubr.bf16.mxu0 0
        %910 = vmatmul.mubr.bf16.gmra.mxu0 %v864
        %v911 = vpop.f32.mrf.mxu0
        %v912 = vadd.f32 0.0, %v911
        %v913 = vpop.f32.mrf.mxu0
        %v914 = vpop.f32.mrf.mxu0
        %v915 = vadd.f32 0.0, %v914
        %v916 = vpop.f32.mrf.mxu0
        %917 = vdwg.mxu0
        %v918 = vadd.f32 %v837, %v904
        %v919 = vadd.f32 %v838, %v907
        %v920 = vadd.f32 %v839, %v912
        %v921 = vadd.f32 %v840, %v915
        %v922 = vld [vmem:[%s841] sm:$0xf]
        %v923 = vld [vmem:[%s841 + $0x4] sm:$0xf]
        %v924 = vld [vmem:[%s841 + $0x8] sm:$0xf]
        %v925 = vld [vmem:[%s841 + $0xc] sm:$0xf]
        %v926 = vld [vmem:[%s841 + $0x10] sm:$0x1]
        %v932 = vunpack.c.l.b16 %v922
        %v933 = vunpack.c.l.b16 %v923
        %v934 = vunpack.c.l.b16 %v924
        %v935 = vunpack.c.l.b16 %v925
        %v936 = vunpack.c.l.b16 %v926
        %v937 = vpack.c.b16 %v933, %v932
        %v938 = vpack.c.b16 %v935, %v934
        %v939 = vpack.c.b16 %v936, %v936
        %v941 = vshrl.u32 %v937, 16
        %v943 = vshll.u32 %v937, 16
        %v945 = vrot.slane %v943, 1
        %v946 = vor.u32 %v941, %v945
        %v948 = vshll.u32 %v938, 16
        %v950 = vrot.slane %v948, 1
        %v951 = vsel %vm394, %v946, %v950
        %v952 = vshrl.u32 %v938, 16
        %v954 = vor.u32 %v952, %v950
        %v956 = vshll.u32 %v939, 16
        %v958 = vrot.slane %v956, 1
        %v959 = vsel %vm394, %v954, %v958
        %v961 = vunpack.c.l.b16 %v293
        %v962 = vpack.c.b16 %v961, %v961
        %v964 = vshrl.u32 %v962, 16
        %v966 = vrot.slane %v964, 2
        %v967 = vshll.u32 %v962, 16
        %v969 = vrot.slane %v967, 3
        %v970 = vor.u32 %v966, %v969
        %v972 = vsel %vm309, %v951, 0
        %v975 = vsel %vm309, %v959, 0
        %v978 = vand.u32 %v970, %v319
        %980 = vmatprep.subr.bf16.mxu0 0
        %981 = vmatpush1.bf16.msra.mxu0 0
        %982 = vmatprep.subr.bf16.mxu0 0
        %983 = vmatpush1.bf16.msra.mxu0 0
        %984 = vmatprep.subr.bf16.mxu0 0
        %985 = vmatpush1.bf16.msra.mxu0 0
        %986 = vmatprep.subr.bf16.mxu0 0
        %987 = vmatpush1.bf16.msra.mxu0 0
        %988 = vmatprep.subr.bf16.mxu0 0
        %989 = vmatpush1.bf16.msra.mxu0 0
        %990 = vmatprep.subr.bf16.mxu0 0
        %991 = vmatpush1.bf16.msra.mxu0 0
        %992 = vmatprep.subr.bf16.mxu0 0
        %993 = vmatpush1.bf16.msra.mxu0 0
        %994 = vmatprep.subr.bf16.mxu0 0
        %995 = vmatpush1.bf16.msra.mxu0 %v978
        %996 = vmatprep.subr.bf16.mxu0 0
        %997 = vmatpush2.bf16.msra.mxu0 0
        %998 = vmatprep.subr.bf16.mxu0 0
        %999 = vmatpush2.bf16.msra.mxu0 0
        %1000 = vmatprep.subr.bf16.mxu0 0
        %1001 = vmatpush2.bf16.msra.mxu0 0
        %1002 = vmatprep.subr.bf16.mxu0 0
        %1003 = vmatpush2.bf16.msra.mxu0 0
        %1004 = vmatprep.subr.bf16.mxu0 0
        %1005 = vmatpush2.bf16.msra.mxu0 0
        %1006 = vmatprep.subr.bf16.mxu0 0
        %1007 = vmatpush2.bf16.msra.mxu0 0
        %1008 = vmatprep.subr.bf16.mxu0 0
        %1009 = vmatpush2.bf16.msra.mxu0 0
        %1010 = vmatprep.subr.bf16.mxu0 0
        %1011 = vmatpush2.bf16.msra.mxu0 0
        %1012 = vmatprep.mubr.bf16.mxu0 0
        %1013 = vmatmul.mubr.bf16.gmra.mxu0 %v972
        %v1014 = vpop.f32.mrf.mxu0
        %v1015 = vadd.f32 0.0, %v1014
        %v1016 = vpop.f32.mrf.mxu0
        %v1017 = vpop.f32.mrf.mxu0
        %v1018 = vadd.f32 0.0, %v1017
        %v1019 = vpop.f32.mrf.mxu0
        %1020 = vmatprep.mubr.bf16.mxu0 0
        %1021 = vmatmul.mubr.bf16.gmra.mxu0 %v975
        %v1022 = vpop.f32.mrf.mxu0
        %v1023 = vadd.f32 0.0, %v1022
        %v1024 = vpop.f32.mrf.mxu0
        %v1025 = vpop.f32.mrf.mxu0
        %v1026 = vadd.f32 0.0, %v1025
        %v1027 = vpop.f32.mrf.mxu0
        %1028 = vdwg.mxu0
        %v1029 = vadd.f32 %v918, %v1015
        %v1030 = vadd.f32 %v919, %v1018
        %v1031 = vadd.f32 %v920, %v1023
        %v1032 = vadd.f32 %v921, %v1026
        %v1033 = vld [vmem:[%s841] sm:$0xe]
        %v1035 = vunpack.c.l.b16 %v1033
        %v1036 = vpack.c.b16 %v933, %v1035
        %v1037 = vrot.slane %v1036, 1
        %v1038 = vrot.slane %v938, 1
        %v1039 = vsel %vm492, %v1037, %v1038
        %v1040 = vrot.slane %v939, 1
        %v1041 = vsel %vm492, %v1038, %v1040
        %v1043 = vsel %vm309, %v1039, 0
        %v1046 = vsel %vm309, %v1041, 0
        %v1049 = vand.u32 %v294, %v319
        %1051 = vmatprep.subr.bf16.mxu0 0
        %1052 = vmatpush1.bf16.msra.mxu0 0
        %1053 = vmatprep.subr.bf16.mxu0 0
        %1054 = vmatpush1.bf16.msra.mxu0 0
        %1055 = vmatprep.subr.bf16.mxu0 0
        %1056 = vmatpush1.bf16.msra.mxu0 0
        %1057 = vmatprep.subr.bf16.mxu0 0
        %1058 = vmatpush1.bf16.msra.mxu0 0
        %1059 = vmatprep.subr.bf16.mxu0 0
        %1060 = vmatpush1.bf16.msra.mxu0 0
        %1061 = vmatprep.subr.bf16.mxu0 0
        %1062 = vmatpush1.bf16.msra.mxu0 0
        %1063 = vmatprep.subr.bf16.mxu0 0
        %1064 = vmatpush1.bf16.msra.mxu0 0
        %1065 = vmatprep.subr.bf16.mxu0 0
        %1066 = vmatpush1.bf16.msra.mxu0 %v1049
        %1067 = vmatprep.subr.bf16.mxu0 0
        %1068 = vmatpush2.bf16.msra.mxu0 0
        %1069 = vmatprep.subr.bf16.mxu0 0
        %1070 = vmatpush2.bf16.msra.mxu0 0
        %1071 = vmatprep.subr.bf16.mxu0 0
        %1072 = vmatpush2.bf16.msra.mxu0 0
        %1073 = vmatprep.subr.bf16.mxu0 0
        %1074 = vmatpush2.bf16.msra.mxu0 0
        %1075 = vmatprep.subr.bf16.mxu0 0
        %1076 = vmatpush2.bf16.msra.mxu0 0
        %1077 = vmatprep.subr.bf16.mxu0 0
        %1078 = vmatpush2.bf16.msra.mxu0 0
        %1079 = vmatprep.subr.bf16.mxu0 0
        %1080 = vmatpush2.bf16.msra.mxu0 0
        %1081 = vmatprep.subr.bf16.mxu0 0
        %1082 = vmatpush2.bf16.msra.mxu0 0
        %1083 = vmatprep.mubr.bf16.mxu0 0
        %1084 = vmatmul.mubr.bf16.gmra.mxu0 %v1043
        %v1085 = vpop.f32.mrf.mxu0
        %v1086 = vadd.f32 0.0, %v1085
        %v1087 = vpop.f32.mrf.mxu0
        %v1088 = vpop.f32.mrf.mxu0
        %v1089 = vadd.f32 0.0, %v1088
        %v1090 = vpop.f32.mrf.mxu0
        %1091 = vmatprep.mubr.bf16.mxu0 0
        %1092 = vmatmul.mubr.bf16.gmra.mxu0 %v1046
        %v1093 = vpop.f32.mrf.mxu0
        %v1094 = vadd.f32 0.0, %v1093
        %v1095 = vpop.f32.mrf.mxu0
        %v1096 = vpop.f32.mrf.mxu0
        %v1097 = vadd.f32 0.0, %v1096
        %v1098 = vpop.f32.mrf.mxu0
        %1099 = vdwg.mxu0
        %v1100 = vadd.f32 %v1029, %v1086
        %v1101 = vadd.f32 %v1030, %v1089
        %v1102 = vadd.f32 %v1031, %v1094
        %v1103 = vadd.f32 %v1032, %v1097
        %v1104 = vmax.f32 %v1100, 0.0
        %v1105 = vmax.f32 %v1101, 0.0
        %v1106 = vmax.f32 %v1102, 0.0
        %v1107 = vmax.f32 %v1103, 0.0
        %v1108 = vpack.c.bf16 %v1105, %v1104
        %v1109 = vpack.c.bf16 %v1107, %v1106
        %v1112 = vunpack.c.l.b16 %v1108
        %v1113 = vunpack.c.h.b16 %v1108
        %v1114 = vunpack.c.l.b16 %v1109
        %v1115 = vunpack.c.h.b16 %v1109
        %v1116 = vpack.c.b16 %v1112, %v1112
        %v1117 = vpack.c.b16 %v1113, %v1113
        %v1118 = vpack.c.b16 %v1114, %v1114
        %v1119 = vpack.c.b16 %v1115, %v1115
        %vm1124 = vcmask 519168
        %1125 = vst.msk [vmem:[%s250] sm:$0xf] %vm1124, %v1116
        %1126 = vst.msk [vmem:[%s250 + $0x4] sm:$0xf] %vm1124, %v1117
        %1127 = vst.msk [vmem:[%s250 + $0x8] sm:$0xf] %vm1124, %v1118
        %1128 = vst.msk [vmem:[%s250 + $0xc] sm:$0xf] %vm1124, %v1119
        %v1129 = vld [vmem:[%s566] sm:$0xf]
        %v1130 = vld [vmem:[%s566 + $0x4] sm:$0xf]
        %v1131 = vld [vmem:[%s566 + $0x8] sm:$0xf]
        %v1132 = vld [vmem:[%s566 + $0xc] sm:$0xf]
        %v1137 = vunpack.c.l.b16 %v1129
        %v1138 = vunpack.c.l.b16 %v1130
        %v1139 = vunpack.c.l.b16 %v1131
        %v1140 = vunpack.c.l.b16 %v1132
        %v1141 = vpack.c.b16 %v1138, %v1137
        %v1142 = vpack.c.b16 %v1140, %v1139
        %v1144 = vsel %vm309, %v1141, 0
        %v1147 = vsel %vm309, %v1142, 0
        %1149 = vmatprep.subr.bf16.mxu0 0
        %1150 = vmatpush1.bf16.msra.mxu0 0
        %1151 = vmatprep.subr.bf16.mxu0 0
        %1152 = vmatpush1.bf16.msra.mxu0 0
        %1153 = vmatprep.subr.bf16.mxu0 0
        %1154 = vmatpush1.bf16.msra.mxu0 0
        %1155 = vmatprep.subr.bf16.mxu0 0
        %1156 = vmatpush1.bf16.msra.mxu0 0
        %1157 = vmatprep.subr.bf16.mxu0 0
        %1158 = vmatpush1.bf16.msra.mxu0 0
        %1159 = vmatprep.subr.bf16.mxu0 0
        %1160 = vmatpush1.bf16.msra.mxu0 0
        %1161 = vmatprep.subr.bf16.mxu0 0
        %1162 = vmatpush1.bf16.msra.mxu0 0
        %1163 = vmatprep.subr.bf16.mxu0 0
        %1164 = vmatpush1.bf16.msra.mxu0 %v321
        %1165 = vmatprep.subr.bf16.mxu0 0
        %1166 = vmatpush2.bf16.msra.mxu0 0
        %1167 = vmatprep.subr.bf16.mxu0 0
        %1168 = vmatpush2.bf16.msra.mxu0 0
        %1169 = vmatprep.subr.bf16.mxu0 0
        %1170 = vmatpush2.bf16.msra.mxu0 0
        %1171 = vmatprep.subr.bf16.mxu0 0
        %1172 = vmatpush2.bf16.msra.mxu0 0
        %1173 = vmatprep.subr.bf16.mxu0 0
        %1174 = vmatpush2.bf16.msra.mxu0 0
        %1175 = vmatprep.subr.bf16.mxu0 0
        %1176 = vmatpush2.bf16.msra.mxu0 0
        %1177 = vmatprep.subr.bf16.mxu0 0
        %1178 = vmatpush2.bf16.msra.mxu0 0
        %1179 = vmatprep.subr.bf16.mxu0 0
        %1180 = vmatpush2.bf16.msra.mxu0 0
        %1181 = vmatprep.mubr.bf16.mxu0 0
        %1182 = vmatmul.mubr.bf16.gmra.mxu0 %v1144
        %v1183 = vpop.f32.mrf.mxu0
        %v1184 = vadd.f32 0.0, %v1183
        %v1185 = vpop.f32.mrf.mxu0
        %v1186 = vpop.f32.mrf.mxu0
        %v1187 = vadd.f32 0.0, %v1186
        %v1188 = vpop.f32.mrf.mxu0
        %1189 = vmatprep.mubr.bf16.mxu0 0
        %1190 = vmatmul.mubr.bf16.gmra.mxu0 %v1147
        %v1191 = vpop.f32.mrf.mxu0
        %v1192 = vadd.f32 0.0, %v1191
        %v1193 = vpop.f32.mrf.mxu0
        %v1194 = vpop.f32.mrf.mxu0
        %v1195 = vadd.f32 0.0, %v1194
        %v1196 = vpop.f32.mrf.mxu0
        %1197 = vdwg.mxu0
        %v1198 = vadd.f32 %v282, %v1184
        %v1199 = vadd.f32 %v282, %v1187
        %v1200 = vadd.f32 %v282, %v1192
        %v1201 = vadd.f32 %v282, %v1195
        %v1202 = vld [vmem:[%s566] sm:$0xf]
        %v1203 = vld [vmem:[%s566 + $0x4] sm:$0xf]
        %v1204 = vld [vmem:[%s566 + $0x8] sm:$0xf]
        %v1205 = vld [vmem:[%s566 + $0xc] sm:$0xf]
        %v1206 = vld [vmem:[%s566 + $0x10] sm:$0x1]
        %v1212 = vunpack.c.l.b16 %v1202
        %v1213 = vunpack.c.l.b16 %v1203
        %v1214 = vunpack.c.l.b16 %v1204
        %v1215 = vunpack.c.l.b16 %v1205
        %v1216 = vunpack.c.l.b16 %v1206
        %v1217 = vpack.c.b16 %v1213, %v1212
        %v1218 = vpack.c.b16 %v1215, %v1214
        %v1219 = vpack.c.b16 %v1216, %v1216
        %v1221 = vshrl.u32 %v1217, 16
        %v1223 = vshll.u32 %v1217, 16
        %v1225 = vrot.slane %v1223, 1
        %v1226 = vor.u32 %v1221, %v1225
        %v1228 = vshll.u32 %v1218, 16
        %v1230 = vrot.slane %v1228, 1
        %v1231 = vsel %vm394, %v1226, %v1230
        %v1232 = vshrl.u32 %v1218, 16
        %v1234 = vor.u32 %v1232, %v1230
        %v1236 = vshll.u32 %v1219, 16
        %v1238 = vrot.slane %v1236, 1
        %v1239 = vsel %vm394, %v1234, %v1238
        %v1241 = vsel %vm309, %v1231, 0
        %v1244 = vsel %vm309, %v1239, 0
        %1246 = vmatprep.subr.bf16.mxu0 0
        %1247 = vmatpush1.bf16.msra.mxu0 0
        %1248 = vmatprep.subr.bf16.mxu0 0
        %1249 = vmatpush1.bf16.msra.mxu0 0
        %1250 = vmatprep.subr.bf16.mxu0 0
        %1251 = vmatpush1.bf16.msra.mxu0 0
        %1252 = vmatprep.subr.bf16.mxu0 0
        %1253 = vmatpush1.bf16.msra.mxu0 0
        %1254 = vmatprep.subr.bf16.mxu0 0
        %1255 = vmatpush1.bf16.msra.mxu0 0
        %1256 = vmatprep.subr.bf16.mxu0 0
        %1257 = vmatpush1.bf16.msra.mxu0 0
        %1258 = vmatprep.subr.bf16.mxu0 0
        %1259 = vmatpush1.bf16.msra.mxu0 0
        %1260 = vmatprep.subr.bf16.mxu0 0
        %1261 = vmatpush1.bf16.msra.mxu0 %v433
        %1262 = vmatprep.subr.bf16.mxu0 0
        %1263 = vmatpush2.bf16.msra.mxu0 0
        %1264 = vmatprep.subr.bf16.mxu0 0
        %1265 = vmatpush2.bf16.msra.mxu0 0
        %1266 = vmatprep.subr.bf16.mxu0 0
        %1267 = vmatpush2.bf16.msra.mxu0 0
        %1268 = vmatprep.subr.bf16.mxu0 0
        %1269 = vmatpush2.bf16.msra.mxu0 0
        %1270 = vmatprep.subr.bf16.mxu0 0
        %1271 = vmatpush2.bf16.msra.mxu0 0
        %1272 = vmatprep.subr.bf16.mxu0 0
        %1273 = vmatpush2.bf16.msra.mxu0 0
        %1274 = vmatprep.subr.bf16.mxu0 0
        %1275 = vmatpush2.bf16.msra.mxu0 0
        %1276 = vmatprep.subr.bf16.mxu0 0
        %1277 = vmatpush2.bf16.msra.mxu0 0
        %1278 = vmatprep.mubr.bf16.mxu0 0
        %1279 = vmatmul.mubr.bf16.gmra.mxu0 %v1241
        %v1280 = vpop.f32.mrf.mxu0
        %v1281 = vadd.f32 0.0, %v1280
        %v1282 = vpop.f32.mrf.mxu0
        %v1283 = vpop.f32.mrf.mxu0
        %v1284 = vadd.f32 0.0, %v1283
        %v1285 = vpop.f32.mrf.mxu0
        %1286 = vmatprep.mubr.bf16.mxu0 0
        %1287 = vmatmul.mubr.bf16.gmra.mxu0 %v1244
        %v1288 = vpop.f32.mrf.mxu0
        %v1289 = vadd.f32 0.0, %v1288
        %v1290 = vpop.f32.mrf.mxu0
        %v1291 = vpop.f32.mrf.mxu0
        %v1292 = vadd.f32 0.0, %v1291
        %v1293 = vpop.f32.mrf.mxu0
        %1294 = vdwg.mxu0
        %v1295 = vadd.f32 %v1198, %v1281
        %v1296 = vadd.f32 %v1199, %v1284
        %v1297 = vadd.f32 %v1200, %v1289
        %v1298 = vadd.f32 %v1201, %v1292
        %v1299 = vld [vmem:[%s566] sm:$0xe]
        %v1301 = vunpack.c.l.b16 %v1299
        %v1302 = vpack.c.b16 %v1213, %v1301
        %v1303 = vrot.slane %v1302, 1
        %v1304 = vrot.slane %v1218, 1
        %v1305 = vsel %vm492, %v1303, %v1304
        %v1306 = vrot.slane %v1219, 1
        %v1307 = vsel %vm492, %v1304, %v1306
        %v1309 = vsel %vm309, %v1305, 0
        %v1312 = vsel %vm309, %v1307, 0
        %1314 = vmatprep.subr.bf16.mxu0 0
        %1315 = vmatpush1.bf16.msra.mxu0 0
        %1316 = vmatprep.subr.bf16.mxu0 0
        %1317 = vmatpush1.bf16.msra.mxu0 0
        %1318 = vmatprep.subr.bf16.mxu0 0
        %1319 = vmatpush1.bf16.msra.mxu0 0
        %1320 = vmatprep.subr.bf16.mxu0 0
        %1321 = vmatpush1.bf16.msra.mxu0 0
        %1322 = vmatprep.subr.bf16.mxu0 0
        %1323 = vmatpush1.bf16.msra.mxu0 0
        %1324 = vmatprep.subr.bf16.mxu0 0
        %1325 = vmatpush1.bf16.msra.mxu0 0
        %1326 = vmatprep.subr.bf16.mxu0 0
        %1327 = vmatpush1.bf16.msra.mxu0 0
        %1328 = vmatprep.subr.bf16.mxu0 0
        %1329 = vmatpush1.bf16.msra.mxu0 %v511
        %1330 = vmatprep.subr.bf16.mxu0 0
        %1331 = vmatpush2.bf16.msra.mxu0 0
        %1332 = vmatprep.subr.bf16.mxu0 0
        %1333 = vmatpush2.bf16.msra.mxu0 0
        %1334 = vmatprep.subr.bf16.mxu0 0
        %1335 = vmatpush2.bf16.msra.mxu0 0
        %1336 = vmatprep.subr.bf16.mxu0 0
        %1337 = vmatpush2.bf16.msra.mxu0 0
        %1338 = vmatprep.subr.bf16.mxu0 0
        %1339 = vmatpush2.bf16.msra.mxu0 0
        %1340 = vmatprep.subr.bf16.mxu0 0
        %1341 = vmatpush2.bf16.msra.mxu0 0
        %1342 = vmatprep.subr.bf16.mxu0 0
        %1343 = vmatpush2.bf16.msra.mxu0 0
        %1344 = vmatprep.subr.bf16.mxu0 0
        %1345 = vmatpush2.bf16.msra.mxu0 0
        %1346 = vmatprep.mubr.bf16.mxu0 0
        %1347 = vmatmul.mubr.bf16.gmra.mxu0 %v1309
        %v1348 = vpop.f32.mrf.mxu0
        %v1349 = vadd.f32 0.0, %v1348
        %v1350 = vpop.f32.mrf.mxu0
        %v1351 = vpop.f32.mrf.mxu0
        %v1352 = vadd.f32 0.0, %v1351
        %v1353 = vpop.f32.mrf.mxu0
        %1354 = vmatprep.mubr.bf16.mxu0 0
        %1355 = vmatmul.mubr.bf16.gmra.mxu0 %v1312
        %v1356 = vpop.f32.mrf.mxu0
        %v1357 = vadd.f32 0.0, %v1356
        %v1358 = vpop.f32.mrf.mxu0
        %v1359 = vpop.f32.mrf.mxu0
        %v1360 = vadd.f32 0.0, %v1359
        %v1361 = vpop.f32.mrf.mxu0
        %1362 = vdwg.mxu0
        %v1363 = vadd.f32 %v1295, %v1349
        %v1364 = vadd.f32 %v1296, %v1352
        %v1365 = vadd.f32 %v1297, %v1357
        %v1366 = vadd.f32 %v1298, %v1360
        %v1367 = vld [vmem:[%s841] sm:$0xf]
        %v1368 = vld [vmem:[%s841 + $0x4] sm:$0xf]
        %v1369 = vld [vmem:[%s841 + $0x8] sm:$0xf]
        %v1370 = vld [vmem:[%s841 + $0xc] sm:$0xf]
        %v1375 = vunpack.c.l.b16 %v1367
        %v1376 = vunpack.c.l.b16 %v1368
        %v1377 = vunpack.c.l.b16 %v1369
        %v1378 = vunpack.c.l.b16 %v1370
        %v1379 = vpack.c.b16 %v1376, %v1375
        %v1380 = vpack.c.b16 %v1378, %v1377
        %v1382 = vsel %vm309, %v1379, 0
        %v1385 = vsel %vm309, %v1380, 0
        %1387 = vmatprep.subr.bf16.mxu0 0
        %1388 = vmatpush1.bf16.msra.mxu0 0
        %1389 = vmatprep.subr.bf16.mxu0 0
        %1390 = vmatpush1.bf16.msra.mxu0 0
        %1391 = vmatprep.subr.bf16.mxu0 0
        %1392 = vmatpush1.bf16.msra.mxu0 0
        %1393 = vmatprep.subr.bf16.mxu0 0
        %1394 = vmatpush1.bf16.msra.mxu0 0
        %1395 = vmatprep.subr.bf16.mxu0 0
        %1396 = vmatpush1.bf16.msra.mxu0 0
        %1397 = vmatprep.subr.bf16.mxu0 0
        %1398 = vmatpush1.bf16.msra.mxu0 0
        %1399 = vmatprep.subr.bf16.mxu0 0
        %1400 = vmatpush1.bf16.msra.mxu0 0
        %1401 = vmatprep.subr.bf16.mxu0 0
        %1402 = vmatpush1.bf16.msra.mxu0 %v598
        %1403 = vmatprep.subr.bf16.mxu0 0
        %1404 = vmatpush2.bf16.msra.mxu0 0
        %1405 = vmatprep.subr.bf16.mxu0 0
        %1406 = vmatpush2.bf16.msra.mxu0 0
        %1407 = vmatprep.subr.bf16.mxu0 0
        %1408 = vmatpush2.bf16.msra.mxu0 0
        %1409 = vmatprep.subr.bf16.mxu0 0
        %1410 = vmatpush2.bf16.msra.mxu0 0
        %1411 = vmatprep.subr.bf16.mxu0 0
        %1412 = vmatpush2.bf16.msra.mxu0 0
        %1413 = vmatprep.subr.bf16.mxu0 0
        %1414 = vmatpush2.bf16.msra.mxu0 0
        %1415 = vmatprep.subr.bf16.mxu0 0
        %1416 = vmatpush2.bf16.msra.mxu0 0
        %1417 = vmatprep.subr.bf16.mxu0 0
        %1418 = vmatpush2.bf16.msra.mxu0 0
        %1419 = vmatprep.mubr.bf16.mxu0 0
        %1420 = vmatmul.mubr.bf16.gmra.mxu0 %v1382
        %v1421 = vpop.f32.mrf.mxu0
        %v1422 = vadd.f32 0.0, %v1421
        %v1423 = vpop.f32.mrf.mxu0
        %v1424 = vpop.f32.mrf.mxu0
        %v1425 = vadd.f32 0.0, %v1424
        %v1426 = vpop.f32.mrf.mxu0
        %1427 = vmatprep.mubr.bf16.mxu0 0
        %1428 = vmatmul.mubr.bf16.gmra.mxu0 %v1385
        %v1429 = vpop.f32.mrf.mxu0
        %v1430 = vadd.f32 0.0, %v1429
        %v1431 = vpop.f32.mrf.mxu0
        %v1432 = vpop.f32.mrf.mxu0
        %v1433 = vadd.f32 0.0, %v1432
        %v1434 = vpop.f32.mrf.mxu0
        %1435 = vdwg.mxu0
        %v1436 = vadd.f32 %v1363, %v1422
        %v1437 = vadd.f32 %v1364, %v1425
        %v1438 = vadd.f32 %v1365, %v1430
        %v1439 = vadd.f32 %v1366, %v1433
        %v1440 = vld [vmem:[%s841] sm:$0xf]
        %v1441 = vld [vmem:[%s841 + $0x4] sm:$0xf]
        %v1442 = vld [vmem:[%s841 + $0x8] sm:$0xf]
        %v1443 = vld [vmem:[%s841 + $0xc] sm:$0xf]
        %v1444 = vld [vmem:[%s841 + $0x10] sm:$0x1]
        %v1450 = vunpack.c.l.b16 %v1440
        %v1451 = vunpack.c.l.b16 %v1441
        %v1452 = vunpack.c.l.b16 %v1442
        %v1453 = vunpack.c.l.b16 %v1443
        %v1454 = vunpack.c.l.b16 %v1444
        %v1455 = vpack.c.b16 %v1451, %v1450
        %v1456 = vpack.c.b16 %v1453, %v1452
        %v1457 = vpack.c.b16 %v1454, %v1454
        %v1459 = vshrl.u32 %v1455, 16
        %v1461 = vshll.u32 %v1455, 16
        %v1463 = vrot.slane %v1461, 1
        %v1464 = vor.u32 %v1459, %v1463
        %v1466 = vshll.u32 %v1456, 16
        %v1468 = vrot.slane %v1466, 1
        %v1469 = vsel %vm394, %v1464, %v1468
        %v1470 = vshrl.u32 %v1456, 16
        %v1472 = vor.u32 %v1470, %v1468
        %v1474 = vshll.u32 %v1457, 16
        %v1476 = vrot.slane %v1474, 1
        %v1477 = vsel %vm394, %v1472, %v1476
        %v1479 = vsel %vm309, %v1469, 0
        %v1482 = vsel %vm309, %v1477, 0
        %1484 = vmatprep.subr.bf16.mxu0 0
        %1485 = vmatpush1.bf16.msra.mxu0 0
        %1486 = vmatprep.subr.bf16.mxu0 0
        %1487 = vmatpush1.bf16.msra.mxu0 0
        %1488 = vmatprep.subr.bf16.mxu0 0
        %1489 = vmatpush1.bf16.msra.mxu0 0
        %1490 = vmatprep.subr.bf16.mxu0 0
        %1491 = vmatpush1.bf16.msra.mxu0 0
        %1492 = vmatprep.subr.bf16.mxu0 0
        %1493 = vmatpush1.bf16.msra.mxu0 0
        %1494 = vmatprep.subr.bf16.mxu0 0
        %1495 = vmatpush1.bf16.msra.mxu0 0
        %1496 = vmatprep.subr.bf16.mxu0 0
        %1497 = vmatpush1.bf16.msra.mxu0 0
        %1498 = vmatprep.subr.bf16.mxu0 0
        %1499 = vmatpush1.bf16.msra.mxu0 %v702
        %1500 = vmatprep.subr.bf16.mxu0 0
        %1501 = vmatpush2.bf16.msra.mxu0 0
        %1502 = vmatprep.subr.bf16.mxu0 0
        %1503 = vmatpush2.bf16.msra.mxu0 0
        %1504 = vmatprep.subr.bf16.mxu0 0
        %1505 = vmatpush2.bf16.msra.mxu0 0
        %1506 = vmatprep.subr.bf16.mxu0 0
        %1507 = vmatpush2.bf16.msra.mxu0 0
        %1508 = vmatprep.subr.bf16.mxu0 0
        %1509 = vmatpush2.bf16.msra.mxu0 0
        %1510 = vmatprep.subr.bf16.mxu0 0
        %1511 = vmatpush2.bf16.msra.mxu0 0
        %1512 = vmatprep.subr.bf16.mxu0 0
        %1513 = vmatpush2.bf16.msra.mxu0 0
        %1514 = vmatprep.subr.bf16.mxu0 0
        %1515 = vmatpush2.bf16.msra.mxu0 0
        %1516 = vmatprep.mubr.bf16.mxu0 0
        %1517 = vmatmul.mubr.bf16.gmra.mxu0 %v1479
        %v1518 = vpop.f32.mrf.mxu0
        %v1519 = vadd.f32 0.0, %v1518
        %v1520 = vpop.f32.mrf.mxu0
        %v1521 = vpop.f32.mrf.mxu0
        %v1522 = vadd.f32 0.0, %v1521
        %v1523 = vpop.f32.mrf.mxu0
        %1524 = vmatprep.mubr.bf16.mxu0 0
        %1525 = vmatmul.mubr.bf16.gmra.mxu0 %v1482
        %v1526 = vpop.f32.mrf.mxu0
        %v1527 = vadd.f32 0.0, %v1526
        %v1528 = vpop.f32.mrf.mxu0
        %v1529 = vpop.f32.mrf.mxu0
        %v1530 = vadd.f32 0.0, %v1529
        %v1531 = vpop.f32.mrf.mxu0
        %1532 = vdwg.mxu0
        %v1533 = vadd.f32 %v1436, %v1519
        %v1534 = vadd.f32 %v1437, %v1522
        %v1535 = vadd.f32 %v1438, %v1527
        %v1536 = vadd.f32 %v1439, %v1530
        %v1537 = vld [vmem:[%s841] sm:$0xe]
        %v1539 = vunpack.c.l.b16 %v1537
        %v1540 = vpack.c.b16 %v1451, %v1539
        %v1541 = vrot.slane %v1540, 1
        %v1542 = vrot.slane %v1456, 1
        %v1543 = vsel %vm492, %v1541, %v1542
        %v1544 = vrot.slane %v1457, 1
        %v1545 = vsel %vm492, %v1542, %v1544
        %v1547 = vsel %vm309, %v1543, 0
        %v1550 = vsel %vm309, %v1545, 0
        %1552 = vmatprep.subr.bf16.mxu0 0
        %1553 = vmatpush1.bf16.msra.mxu0 0
        %1554 = vmatprep.subr.bf16.mxu0 0
        %1555 = vmatpush1.bf16.msra.mxu0 0
        %1556 = vmatprep.subr.bf16.mxu0 0
        %1557 = vmatpush1.bf16.msra.mxu0 0
        %1558 = vmatprep.subr.bf16.mxu0 0
        %1559 = vmatpush1.bf16.msra.mxu0 0
        %1560 = vmatprep.subr.bf16.mxu0 0
        %1561 = vmatpush1.bf16.msra.mxu0 0
        %1562 = vmatprep.subr.bf16.mxu0 0
        %1563 = vmatpush1.bf16.msra.mxu0 0
        %1564 = vmatprep.subr.bf16.mxu0 0
        %1565 = vmatpush1.bf16.msra.mxu0 0
        %1566 = vmatprep.subr.bf16.mxu0 0
        %1567 = vmatpush1.bf16.msra.mxu0 %v786
        %1568 = vmatprep.subr.bf16.mxu0 0
        %1569 = vmatpush2.bf16.msra.mxu0 0
        %1570 = vmatprep.subr.bf16.mxu0 0
        %1571 = vmatpush2.bf16.msra.mxu0 0
        %1572 = vmatprep.subr.bf16.mxu0 0
        %1573 = vmatpush2.bf16.msra.mxu0 0
        %1574 = vmatprep.subr.bf16.mxu0 0
        %1575 = vmatpush2.bf16.msra.mxu0 0
        %1576 = vmatprep.subr.bf16.mxu0 0
        %1577 = vmatpush2.bf16.msra.mxu0 0
        %1578 = vmatprep.subr.bf16.mxu0 0
        %1579 = vmatpush2.bf16.msra.mxu0 0
        %1580 = vmatprep.subr.bf16.mxu0 0
        %1581 = vmatpush2.bf16.msra.mxu0 0
        %1582 = vmatprep.subr.bf16.mxu0 0
        %1583 = vmatpush2.bf16.msra.mxu0 0
        %1584 = vmatprep.mubr.bf16.mxu0 0
        %1585 = vmatmul.mubr.bf16.gmra.mxu0 %v1547
        %v1586 = vpop.f32.mrf.mxu0
        %v1587 = vadd.f32 0.0, %v1586
        %v1588 = vpop.f32.mrf.mxu0
        %v1589 = vpop.f32.mrf.mxu0
        %v1590 = vadd.f32 0.0, %v1589
        %v1591 = vpop.f32.mrf.mxu0
        %1592 = vmatprep.mubr.bf16.mxu0 0
        %1593 = vmatmul.mubr.bf16.gmra.mxu0 %v1550
        %v1594 = vpop.f32.mrf.mxu0
        %v1595 = vadd.f32 0.0, %v1594
        %v1596 = vpop.f32.mrf.mxu0
        %v1597 = vpop.f32.mrf.mxu0
        %v1598 = vadd.f32 0.0, %v1597
        %v1599 = vpop.f32.mrf.mxu0
        %1600 = vdwg.mxu0
        %v1601 = vadd.f32 %v1533, %v1587
        %v1602 = vadd.f32 %v1534, %v1590
        %v1603 = vadd.f32 %v1535, %v1595
        %v1604 = vadd.f32 %v1536, %v1598
        %s1605 = scalar_lea.vmem %s260, 60
        %v1606 = vld [vmem:[%s1605] sm:$0xf]
        %v1607 = vld [vmem:[%s1605 + $0x4] sm:$0xf]
        %v1608 = vld [vmem:[%s1605 + $0x8] sm:$0xf]
        %v1609 = vld [vmem:[%s1605 + $0xc] sm:$0xf]
        %v1614 = vunpack.c.l.b16 %v1606
        %v1615 = vunpack.c.l.b16 %v1607
        %v1616 = vunpack.c.l.b16 %v1608
        %v1617 = vunpack.c.l.b16 %v1609
        %v1618 = vpack.c.b16 %v1615, %v1614
        %v1619 = vpack.c.b16 %v1617, %v1616
        %v1621 = vsel %vm309, %v1618, 0
        %v1624 = vsel %vm309, %v1619, 0
        %1626 = vmatprep.subr.bf16.mxu0 0
        %1627 = vmatpush1.bf16.msra.mxu0 0
        %1628 = vmatprep.subr.bf16.mxu0 0
        %1629 = vmatpush1.bf16.msra.mxu0 0
        %1630 = vmatprep.subr.bf16.mxu0 0
        %1631 = vmatpush1.bf16.msra.mxu0 0
        %1632 = vmatprep.subr.bf16.mxu0 0
        %1633 = vmatpush1.bf16.msra.mxu0 0
        %1634 = vmatprep.subr.bf16.mxu0 0
        %1635 = vmatpush1.bf16.msra.mxu0 0
        %1636 = vmatprep.subr.bf16.mxu0 0
        %1637 = vmatpush1.bf16.msra.mxu0 0
        %1638 = vmatprep.subr.bf16.mxu0 0
        %1639 = vmatpush1.bf16.msra.mxu0 0
        %1640 = vmatprep.subr.bf16.mxu0 0
        %1641 = vmatpush1.bf16.msra.mxu0 %v867
        %1642 = vmatprep.subr.bf16.mxu0 0
        %1643 = vmatpush2.bf16.msra.mxu0 0
        %1644 = vmatprep.subr.bf16.mxu0 0
        %1645 = vmatpush2.bf16.msra.mxu0 0
        %1646 = vmatprep.subr.bf16.mxu0 0
        %1647 = vmatpush2.bf16.msra.mxu0 0
        %1648 = vmatprep.subr.bf16.mxu0 0
        %1649 = vmatpush2.bf16.msra.mxu0 0
        %1650 = vmatprep.subr.bf16.mxu0 0
        %1651 = vmatpush2.bf16.msra.mxu0 0
        %1652 = vmatprep.subr.bf16.mxu0 0
        %1653 = vmatpush2.bf16.msra.mxu0 0
        %1654 = vmatprep.subr.bf16.mxu0 0
        %1655 = vmatpush2.bf16.msra.mxu0 0
        %1656 = vmatprep.subr.bf16.mxu0 0
        %1657 = vmatpush2.bf16.msra.mxu0 0
        %1658 = vmatprep.mubr.bf16.mxu0 0
        %1659 = vmatmul.mubr.bf16.gmra.mxu0 %v1621
        %v1660 = vpop.f32.mrf.mxu0
        %v1661 = vadd.f32 0.0, %v1660
        %v1662 = vpop.f32.mrf.mxu0
        %v1663 = vpop.f32.mrf.mxu0
        %v1664 = vadd.f32 0.0, %v1663
        %v1665 = vpop.f32.mrf.mxu0
        %1666 = vmatprep.mubr.bf16.mxu0 0
        %1667 = vmatmul.mubr.bf16.gmra.mxu0 %v1624
        %v1668 = vpop.f32.mrf.mxu0
        %v1669 = vadd.f32 0.0, %v1668
        %v1670 = vpop.f32.mrf.mxu0
        %v1671 = vpop.f32.mrf.mxu0
        %v1672 = vadd.f32 0.0, %v1671
        %v1673 = vpop.f32.mrf.mxu0
        %1674 = vdwg.mxu0
        %v1675 = vadd.f32 %v1601, %v1661
        %v1676 = vadd.f32 %v1602, %v1664
        %v1677 = vadd.f32 %v1603, %v1669
        %v1678 = vadd.f32 %v1604, %v1672
        %v1679 = vld [vmem:[%s1605] sm:$0xf]
        %v1680 = vld [vmem:[%s1605 + $0x4] sm:$0xf]
        %v1681 = vld [vmem:[%s1605 + $0x8] sm:$0xf]
        %v1682 = vld [vmem:[%s1605 + $0xc] sm:$0xf]
        %v1683 = vld [vmem:[%s1605 + $0x10] sm:$0x1]
        %v1689 = vunpack.c.l.b16 %v1679
        %v1690 = vunpack.c.l.b16 %v1680
        %v1691 = vunpack.c.l.b16 %v1681
        %v1692 = vunpack.c.l.b16 %v1682
        %v1693 = vunpack.c.l.b16 %v1683
        %v1694 = vpack.c.b16 %v1690, %v1689
        %v1695 = vpack.c.b16 %v1692, %v1691
        %v1696 = vpack.c.b16 %v1693, %v1693
        %v1698 = vshrl.u32 %v1694, 16
        %v1700 = vshll.u32 %v1694, 16
        %v1702 = vrot.slane %v1700, 1
        %v1703 = vor.u32 %v1698, %v1702
        %v1705 = vshll.u32 %v1695, 16
        %v1707 = vrot.slane %v1705, 1
        %v1708 = vsel %vm394, %v1703, %v1707
        %v1709 = vshrl.u32 %v1695, 16
        %v1711 = vor.u32 %v1709, %v1707
        %v1713 = vshll.u32 %v1696, 16
        %v1715 = vrot.slane %v1713, 1
        %v1716 = vsel %vm394, %v1711, %v1715
        %v1718 = vsel %vm309, %v1708, 0
        %v1721 = vsel %vm309, %v1716, 0
        %1723 = vmatprep.subr.bf16.mxu0 0
        %1724 = vmatpush1.bf16.msra.mxu0 0
        %1725 = vmatprep.subr.bf16.mxu0 0
        %1726 = vmatpush1.bf16.msra.mxu0 0
        %1727 = vmatprep.subr.bf16.mxu0 0
        %1728 = vmatpush1.bf16.msra.mxu0 0
        %1729 = vmatprep.subr.bf16.mxu0 0
        %1730 = vmatpush1.bf16.msra.mxu0 0
        %1731 = vmatprep.subr.bf16.mxu0 0
        %1732 = vmatpush1.bf16.msra.mxu0 0
        %1733 = vmatprep.subr.bf16.mxu0 0
        %1734 = vmatpush1.bf16.msra.mxu0 0
        %1735 = vmatprep.subr.bf16.mxu0 0
        %1736 = vmatpush1.bf16.msra.mxu0 0
        %1737 = vmatprep.subr.bf16.mxu0 0
        %1738 = vmatpush1.bf16.msra.mxu0 %v978
        %1739 = vmatprep.subr.bf16.mxu0 0
        %1740 = vmatpush2.bf16.msra.mxu0 0
        %1741 = vmatprep.subr.bf16.mxu0 0
        %1742 = vmatpush2.bf16.msra.mxu0 0
        %1743 = vmatprep.subr.bf16.mxu0 0
        %1744 = vmatpush2.bf16.msra.mxu0 0
        %1745 = vmatprep.subr.bf16.mxu0 0
        %1746 = vmatpush2.bf16.msra.mxu0 0
        %1747 = vmatprep.subr.bf16.mxu0 0
        %1748 = vmatpush2.bf16.msra.mxu0 0
        %1749 = vmatprep.subr.bf16.mxu0 0
        %1750 = vmatpush2.bf16.msra.mxu0 0
        %1751 = vmatprep.subr.bf16.mxu0 0
        %1752 = vmatpush2.bf16.msra.mxu0 0
        %1753 = vmatprep.subr.bf16.mxu0 0
        %1754 = vmatpush2.bf16.msra.mxu0 0
        %1755 = vmatprep.mubr.bf16.mxu0 0
        %1756 = vmatmul.mubr.bf16.gmra.mxu0 %v1718
        %v1757 = vpop.f32.mrf.mxu0
        %v1758 = vadd.f32 0.0, %v1757
        %v1759 = vpop.f32.mrf.mxu0
        %v1760 = vpop.f32.mrf.mxu0
        %v1761 = vadd.f32 0.0, %v1760
        %v1762 = vpop.f32.mrf.mxu0
        %1763 = vmatprep.mubr.bf16.mxu0 0
        %1764 = vmatmul.mubr.bf16.gmra.mxu0 %v1721
        %v1765 = vpop.f32.mrf.mxu0
        %v1766 = vadd.f32 0.0, %v1765
        %v1767 = vpop.f32.mrf.mxu0
        %v1768 = vpop.f32.mrf.mxu0
        %v1769 = vadd.f32 0.0, %v1768
        %v1770 = vpop.f32.mrf.mxu0
        %1771 = vdwg.mxu0
        %v1772 = vadd.f32 %v1675, %v1758
        %v1773 = vadd.f32 %v1676, %v1761
        %v1774 = vadd.f32 %v1677, %v1766
        %v1775 = vadd.f32 %v1678, %v1769
        %v1776 = vld [vmem:[%s1605] sm:$0xe]
        %v1778 = vunpack.c.l.b16 %v1776
        %v1779 = vpack.c.b16 %v1690, %v1778
        %v1780 = vrot.slane %v1779, 1
        %v1781 = vrot.slane %v1695, 1
        %v1782 = vsel %vm492, %v1780, %v1781
        %v1783 = vrot.slane %v1696, 1
        %v1784 = vsel %vm492, %v1781, %v1783
        %v1786 = vsel %vm309, %v1782, 0
        %v1789 = vsel %vm309, %v1784, 0
        %1791 = vmatprep.subr.bf16.mxu0 0
        %1792 = vmatpush1.bf16.msra.mxu0 0
        %1793 = vmatprep.subr.bf16.mxu0 0
        %1794 = vmatpush1.bf16.msra.mxu0 0
        %1795 = vmatprep.subr.bf16.mxu0 0
        %1796 = vmatpush1.bf16.msra.mxu0 0
        %1797 = vmatprep.subr.bf16.mxu0 0
        %1798 = vmatpush1.bf16.msra.mxu0 0
        %1799 = vmatprep.subr.bf16.mxu0 0
        %1800 = vmatpush1.bf16.msra.mxu0 0
        %1801 = vmatprep.subr.bf16.mxu0 0
        %1802 = vmatpush1.bf16.msra.mxu0 0
        %1803 = vmatprep.subr.bf16.mxu0 0
        %1804 = vmatpush1.bf16.msra.mxu0 0
        %1805 = vmatprep.subr.bf16.mxu0 0
        %1806 = vmatpush1.bf16.msra.mxu0 %v1049
        %1807 = vmatprep.subr.bf16.mxu0 0
        %1808 = vmatpush2.bf16.msra.mxu0 0
        %1809 = vmatprep.subr.bf16.mxu0 0
        %1810 = vmatpush2.bf16.msra.mxu0 0
        %1811 = vmatprep.subr.bf16.mxu0 0
        %1812 = vmatpush2.bf16.msra.mxu0 0
        %1813 = vmatprep.subr.bf16.mxu0 0
        %1814 = vmatpush2.bf16.msra.mxu0 0
        %1815 = vmatprep.subr.bf16.mxu0 0
        %1816 = vmatpush2.bf16.msra.mxu0 0
        %1817 = vmatprep.subr.bf16.mxu0 0
        %1818 = vmatpush2.bf16.msra.mxu0 0
        %1819 = vmatprep.subr.bf16.mxu0 0
        %1820 = vmatpush2.bf16.msra.mxu0 0
        %1821 = vmatprep.subr.bf16.mxu0 0
        %1822 = vmatpush2.bf16.msra.mxu0 0
        %1823 = vmatprep.mubr.bf16.mxu0 0
        %1824 = vmatmul.mubr.bf16.gmra.mxu0 %v1786
        %v1825 = vpop.f32.mrf.mxu0
        %v1826 = vadd.f32 0.0, %v1825
        %v1827 = vpop.f32.mrf.mxu0
        %v1828 = vpop.f32.mrf.mxu0
        %v1829 = vadd.f32 0.0, %v1828
        %v1830 = vpop.f32.mrf.mxu0
        %1831 = vmatprep.mubr.bf16.mxu0 0
        %1832 = vmatmul.mubr.bf16.gmra.mxu0 %v1789
        %v1833 = vpop.f32.mrf.mxu0
        %v1834 = vadd.f32 0.0, %v1833
        %v1835 = vpop.f32.mrf.mxu0
        %v1836 = vpop.f32.mrf.mxu0
        %v1837 = vadd.f32 0.0, %v1836
        %v1838 = vpop.f32.mrf.mxu0
        %1839 = vdwg.mxu0
        %v1840 = vadd.f32 %v1772, %v1826
        %v1841 = vadd.f32 %v1773, %v1829
        %v1842 = vadd.f32 %v1774, %v1834
        %v1843 = vadd.f32 %v1775, %v1837
        %v1844 = vmax.f32 %v1840, 0.0
        %v1845 = vmax.f32 %v1841, 0.0
        %v1846 = vmax.f32 %v1842, 0.0
        %v1847 = vmax.f32 %v1843, 0.0
        %v1848 = vpack.c.bf16 %v1845, %v1844
        %v1849 = vpack.c.bf16 %v1847, %v1846
        %v1852 = vunpack.c.l.b16 %v1848
        %v1853 = vunpack.c.h.b16 %v1848
        %v1854 = vunpack.c.l.b16 %v1849
        %v1855 = vunpack.c.h.b16 %v1849
        %v1856 = vpack.c.b16 %v1852, %v1852
        %v1857 = vpack.c.b16 %v1853, %v1853
        %v1858 = vpack.c.b16 %v1854, %v1854
        %v1859 = vpack.c.b16 %v1855, %v1855
        %s1864 = scalar_lea.vmem %s250, 16 [#allocation2]
        %1865 = vst.msk [vmem:[%s1864] sm:$0xf] %vm1124, %v1856
        %1866 = vst.msk [vmem:[%s1864 + $0x4] sm:$0xf] %vm1124, %v1857
        %1867 = vst.msk [vmem:[%s1864 + $0x8] sm:$0xf] %vm1124, %v1858
        %1868 = vst.msk [vmem:[%s1864 + $0xc] sm:$0xf] %vm1124, %v1859
        %v1869 = vld [vmem:[%s841] sm:$0xf]
        %v1870 = vld [vmem:[%s841 + $0x4] sm:$0xf]
        %v1871 = vld [vmem:[%s841 + $0x8] sm:$0xf]
        %v1872 = vld [vmem:[%s841 + $0xc] sm:$0xf]
        %v1877 = vunpack.c.l.b16 %v1869
        %v1878 = vunpack.c.l.b16 %v1870
        %v1879 = vunpack.c.l.b16 %v1871
        %v1880 = vunpack.c.l.b16 %v1872
        %v1881 = vpack.c.b16 %v1878, %v1877
        %v1882 = vpack.c.b16 %v1880, %v1879
        %v1884 = vsel %vm309, %v1881, 0
        %v1887 = vsel %vm309, %v1882, 0
        %1889 = vmatprep.subr.bf16.mxu0 0
        %1890 = vmatpush1.bf16.msra.mxu0 0
        %1891 = vmatprep.subr.bf16.mxu0 0
        %1892 = vmatpush1.bf16.msra.mxu0 0
        %1893 = vmatprep.subr.bf16.mxu0 0
        %1894 = vmatpush1.bf16.msra.mxu0 0
        %1895 = vmatprep.subr.bf16.mxu0 0
        %1896 = vmatpush1.bf16.msra.mxu0 0
        %1897 = vmatprep.subr.bf16.mxu0 0
        %1898 = vmatpush1.bf16.msra.mxu0 0
        %1899 = vmatprep.subr.bf16.mxu0 0
        %1900 = vmatpush1.bf16.msra.mxu0 0
        %1901 = vmatprep.subr.bf16.mxu0 0
        %1902 = vmatpush1.bf16.msra.mxu0 0
        %1903 = vmatprep.subr.bf16.mxu0 0
        %1904 = vmatpush1.bf16.msra.mxu0 %v321
        %1905 = vmatprep.subr.bf16.mxu0 0
        %1906 = vmatpush2.bf16.msra.mxu0 0
        %1907 = vmatprep.subr.bf16.mxu0 0
        %1908 = vmatpush2.bf16.msra.mxu0 0
        %1909 = vmatprep.subr.bf16.mxu0 0
        %1910 = vmatpush2.bf16.msra.mxu0 0
        %1911 = vmatprep.subr.bf16.mxu0 0
        %1912 = vmatpush2.bf16.msra.mxu0 0
        %1913 = vmatprep.subr.bf16.mxu0 0
        %1914 = vmatpush2.bf16.msra.mxu0 0
        %1915 = vmatprep.subr.bf16.mxu0 0
        %1916 = vmatpush2.bf16.msra.mxu0 0
        %1917 = vmatprep.subr.bf16.mxu0 0
        %1918 = vmatpush2.bf16.msra.mxu0 0
        %1919 = vmatprep.subr.bf16.mxu0 0
        %1920 = vmatpush2.bf16.msra.mxu0 0
        %1921 = vmatprep.mubr.bf16.mxu0 0
        %1922 = vmatmul.mubr.bf16.gmra.mxu0 %v1884
        %v1923 = vpop.f32.mrf.mxu0
        %v1924 = vadd.f32 0.0, %v1923
        %v1925 = vpop.f32.mrf.mxu0
        %v1926 = vpop.f32.mrf.mxu0
        %v1927 = vadd.f32 0.0, %v1926
        %v1928 = vpop.f32.mrf.mxu0
        %1929 = vmatprep.mubr.bf16.mxu0 0
        %1930 = vmatmul.mubr.bf16.gmra.mxu0 %v1887
        %v1931 = vpop.f32.mrf.mxu0
        %v1932 = vadd.f32 0.0, %v1931
        %v1933 = vpop.f32.mrf.mxu0
        %v1934 = vpop.f32.mrf.mxu0
        %v1935 = vadd.f32 0.0, %v1934
        %v1936 = vpop.f32.mrf.mxu0
        %1937 = vdwg.mxu0
        %v1938 = vadd.f32 %v282, %v1924
        %v1939 = vadd.f32 %v282, %v1927
        %v1940 = vadd.f32 %v282, %v1932
        %v1941 = vadd.f32 %v282, %v1935
        %v1942 = vld [vmem:[%s841] sm:$0xf]
        %v1943 = vld [vmem:[%s841 + $0x4] sm:$0xf]
        %v1944 = vld [vmem:[%s841 + $0x8] sm:$0xf]
        %v1945 = vld [vmem:[%s841 + $0xc] sm:$0xf]
        %v1946 = vld [vmem:[%s841 + $0x10] sm:$0x1]
        %v1952 = vunpack.c.l.b16 %v1942
        %v1953 = vunpack.c.l.b16 %v1943
        %v1954 = vunpack.c.l.b16 %v1944
        %v1955 = vunpack.c.l.b16 %v1945
        %v1956 = vunpack.c.l.b16 %v1946
        %v1957 = vpack.c.b16 %v1953, %v1952
        %v1958 = vpack.c.b16 %v1955, %v1954
        %v1959 = vpack.c.b16 %v1956, %v1956
        %v1961 = vshrl.u32 %v1957, 16
        %v1963 = vshll.u32 %v1957, 16
        %v1965 = vrot.slane %v1963, 1
        %v1966 = vor.u32 %v1961, %v1965
        %v1968 = vshll.u32 %v1958, 16
        %v1970 = vrot.slane %v1968, 1
        %v1971 = vsel %vm394, %v1966, %v1970
        %v1972 = vshrl.u32 %v1958, 16
        %v1974 = vor.u32 %v1972, %v1970
        %v1976 = vshll.u32 %v1959, 16
        %v1978 = vrot.slane %v1976, 1
        %v1979 = vsel %vm394, %v1974, %v1978
        %v1981 = vsel %vm309, %v1971, 0
        %v1984 = vsel %vm309, %v1979, 0
        %1986 = vmatprep.subr.bf16.mxu0 0
        %1987 = vmatpush1.bf16.msra.mxu0 0
        %1988 = vmatprep.subr.bf16.mxu0 0
        %1989 = vmatpush1.bf16.msra.mxu0 0
        %1990 = vmatprep.subr.bf16.mxu0 0
        %1991 = vmatpush1.bf16.msra.mxu0 0
        %1992 = vmatprep.subr.bf16.mxu0 0
        %1993 = vmatpush1.bf16.msra.mxu0 0
        %1994 = vmatprep.subr.bf16.mxu0 0
        %1995 = vmatpush1.bf16.msra.mxu0 0
        %1996 = vmatprep.subr.bf16.mxu0 0
        %1997 = vmatpush1.bf16.msra.mxu0 0
        %1998 = vmatprep.subr.bf16.mxu0 0
        %1999 = vmatpush1.bf16.msra.mxu0 0
        %2000 = vmatprep.subr.bf16.mxu0 0
        %2001 = vmatpush1.bf16.msra.mxu0 %v433
        %2002 = vmatprep.subr.bf16.mxu0 0
        %2003 = vmatpush2.bf16.msra.mxu0 0
        %2004 = vmatprep.subr.bf16.mxu0 0
        %2005 = vmatpush2.bf16.msra.mxu0 0
        %2006 = vmatprep.subr.bf16.mxu0 0
        %2007 = vmatpush2.bf16.msra.mxu0 0
        %2008 = vmatprep.subr.bf16.mxu0 0
        %2009 = vmatpush2.bf16.msra.mxu0 0
        %2010 = vmatprep.subr.bf16.mxu0 0
        %2011 = vmatpush2.bf16.msra.mxu0 0
        %2012 = vmatprep.subr.bf16.mxu0 0
        %2013 = vmatpush2.bf16.msra.mxu0 0
        %2014 = vmatprep.subr.bf16.mxu0 0
        %2015 = vmatpush2.bf16.msra.mxu0 0
        %2016 = vmatprep.subr.bf16.mxu0 0
        %2017 = vmatpush2.bf16.msra.mxu0 0
        %2018 = vmatprep.mubr.bf16.mxu0 0
        %2019 = vmatmul.mubr.bf16.gmra.mxu0 %v1981
        %v2020 = vpop.f32.mrf.mxu0
        %v2021 = vadd.f32 0.0, %v2020
        %v2022 = vpop.f32.mrf.mxu0
        %v2023 = vpop.f32.mrf.mxu0
        %v2024 = vadd.f32 0.0, %v2023
        %v2025 = vpop.f32.mrf.mxu0
        %2026 = vmatprep.mubr.bf16.mxu0 0
        %2027 = vmatmul.mubr.bf16.gmra.mxu0 %v1984
        %v2028 = vpop.f32.mrf.mxu0
        %v2029 = vadd.f32 0.0, %v2028
        %v2030 = vpop.f32.mrf.mxu0
        %v2031 = vpop.f32.mrf.mxu0
        %v2032 = vadd.f32 0.0, %v2031
        %v2033 = vpop.f32.mrf.mxu0
        %2034 = vdwg.mxu0
        %v2035 = vadd.f32 %v1938, %v2021
        %v2036 = vadd.f32 %v1939, %v2024
        %v2037 = vadd.f32 %v1940, %v2029
        %v2038 = vadd.f32 %v1941, %v2032
        %v2039 = vld [vmem:[%s841] sm:$0xe]
        %v2041 = vunpack.c.l.b16 %v2039
        %v2042 = vpack.c.b16 %v1953, %v2041
        %v2043 = vrot.slane %v2042, 1
        %v2044 = vrot.slane %v1958, 1
        %v2045 = vsel %vm492, %v2043, %v2044
        %v2046 = vrot.slane %v1959, 1
        %v2047 = vsel %vm492, %v2044, %v2046
        %v2049 = vsel %vm309, %v2045, 0
        %v2052 = vsel %vm309, %v2047, 0
        %2054 = vmatprep.subr.bf16.mxu0 0
        %2055 = vmatpush1.bf16.msra.mxu0 0
        %2056 = vmatprep.subr.bf16.mxu0 0
        %2057 = vmatpush1.bf16.msra.mxu0 0
        %2058 = vmatprep.subr.bf16.mxu0 0
        %2059 = vmatpush1.bf16.msra.mxu0 0
        %2060 = vmatprep.subr.bf16.mxu0 0
        %2061 = vmatpush1.bf16.msra.mxu0 0
        %2062 = vmatprep.subr.bf16.mxu0 0
        %2063 = vmatpush1.bf16.msra.mxu0 0
        %2064 = vmatprep.subr.bf16.mxu0 0
        %2065 = vmatpush1.bf16.msra.mxu0 0
        %2066 = vmatprep.subr.bf16.mxu0 0
        %2067 = vmatpush1.bf16.msra.mxu0 0
        %2068 = vmatprep.subr.bf16.mxu0 0
        %2069 = vmatpush1.bf16.msra.mxu0 %v511
        %2070 = vmatprep.subr.bf16.mxu0 0
        %2071 = vmatpush2.bf16.msra.mxu0 0
        %2072 = vmatprep.subr.bf16.mxu0 0
        %2073 = vmatpush2.bf16.msra.mxu0 0
        %2074 = vmatprep.subr.bf16.mxu0 0
        %2075 = vmatpush2.bf16.msra.mxu0 0
        %2076 = vmatprep.subr.bf16.mxu0 0
        %2077 = vmatpush2.bf16.msra.mxu0 0
        %2078 = vmatprep.subr.bf16.mxu0 0
        %2079 = vmatpush2.bf16.msra.mxu0 0
        %2080 = vmatprep.subr.bf16.mxu0 0
        %2081 = vmatpush2.bf16.msra.mxu0 0
        %2082 = vmatprep.subr.bf16.mxu0 0
        %2083 = vmatpush2.bf16.msra.mxu0 0
        %2084 = vmatprep.subr.bf16.mxu0 0
        %2085 = vmatpush2.bf16.msra.mxu0 0
        %2086 = vmatprep.mubr.bf16.mxu0 0
        %2087 = vmatmul.mubr.bf16.gmra.mxu0 %v2049
        %v2088 = vpop.f32.mrf.mxu0
        %v2089 = vadd.f32 0.0, %v2088
        %v2090 = vpop.f32.mrf.mxu0
        %v2091 = vpop.f32.mrf.mxu0
        %v2092 = vadd.f32 0.0, %v2091
        %v2093 = vpop.f32.mrf.mxu0
        %2094 = vmatprep.mubr.bf16.mxu0 0
        %2095 = vmatmul.mubr.bf16.gmra.mxu0 %v2052
        %v2096 = vpop.f32.mrf.mxu0
        %v2097 = vadd.f32 0.0, %v2096
        %v2098 = vpop.f32.mrf.mxu0
        %v2099 = vpop.f32.mrf.mxu0
        %v2100 = vadd.f32 0.0, %v2099
        %v2101 = vpop.f32.mrf.mxu0
        %2102 = vdwg.mxu0
        %v2103 = vadd.f32 %v2035, %v2089
        %v2104 = vadd.f32 %v2036, %v2092
        %v2105 = vadd.f32 %v2037, %v2097
        %v2106 = vadd.f32 %v2038, %v2100
        %v2107 = vld [vmem:[%s1605] sm:$0xf]
        %v2108 = vld [vmem:[%s1605 + $0x4] sm:$0xf]
        %v2109 = vld [vmem:[%s1605 + $0x8] sm:$0xf]
        %v2110 = vld [vmem:[%s1605 + $0xc] sm:$0xf]
        %v2115 = vunpack.c.l.b16 %v2107
        %v2116 = vunpack.c.l.b16 %v2108
        %v2117 = vunpack.c.l.b16 %v2109
        %v2118 = vunpack.c.l.b16 %v2110
        %v2119 = vpack.c.b16 %v2116, %v2115
        %v2120 = vpack.c.b16 %v2118, %v2117
        %v2122 = vsel %vm309, %v2119, 0
        %v2125 = vsel %vm309, %v2120, 0
        %2127 = vmatprep.subr.bf16.mxu0 0
        %2128 = vmatpush1.bf16.msra.mxu0 0
        %2129 = vmatprep.subr.bf16.mxu0 0
        %2130 = vmatpush1.bf16.msra.mxu0 0
        %2131 = vmatprep.subr.bf16.mxu0 0
        %2132 = vmatpush1.bf16.msra.mxu0 0
        %2133 = vmatprep.subr.bf16.mxu0 0
        %2134 = vmatpush1.bf16.msra.mxu0 0
        %2135 = vmatprep.subr.bf16.mxu0 0
        %2136 = vmatpush1.bf16.msra.mxu0 0
        %2137 = vmatprep.subr.bf16.mxu0 0
        %2138 = vmatpush1.bf16.msra.mxu0 0
        %2139 = vmatprep.subr.bf16.mxu0 0
        %2140 = vmatpush1.bf16.msra.mxu0 0
        %2141 = vmatprep.subr.bf16.mxu0 0
        %2142 = vmatpush1.bf16.msra.mxu0 %v598
        %2143 = vmatprep.subr.bf16.mxu0 0
        %2144 = vmatpush2.bf16.msra.mxu0 0
        %2145 = vmatprep.subr.bf16.mxu0 0
        %2146 = vmatpush2.bf16.msra.mxu0 0
        %2147 = vmatprep.subr.bf16.mxu0 0
        %2148 = vmatpush2.bf16.msra.mxu0 0
        %2149 = vmatprep.subr.bf16.mxu0 0
        %2150 = vmatpush2.bf16.msra.mxu0 0
        %2151 = vmatprep.subr.bf16.mxu0 0
        %2152 = vmatpush2.bf16.msra.mxu0 0
        %2153 = vmatprep.subr.bf16.mxu0 0
        %2154 = vmatpush2.bf16.msra.mxu0 0
        %2155 = vmatprep.subr.bf16.mxu0 0
        %2156 = vmatpush2.bf16.msra.mxu0 0
        %2157 = vmatprep.subr.bf16.mxu0 0
        %2158 = vmatpush2.bf16.msra.mxu0 0
        %2159 = vmatprep.mubr.bf16.mxu0 0
        %2160 = vmatmul.mubr.bf16.gmra.mxu0 %v2122
        %v2161 = vpop.f32.mrf.mxu0
        %v2162 = vadd.f32 0.0, %v2161
        %v2163 = vpop.f32.mrf.mxu0
        %v2164 = vpop.f32.mrf.mxu0
        %v2165 = vadd.f32 0.0, %v2164
        %v2166 = vpop.f32.mrf.mxu0
        %2167 = vmatprep.mubr.bf16.mxu0 0
        %2168 = vmatmul.mubr.bf16.gmra.mxu0 %v2125
        %v2169 = vpop.f32.mrf.mxu0
        %v2170 = vadd.f32 0.0, %v2169
        %v2171 = vpop.f32.mrf.mxu0
        %v2172 = vpop.f32.mrf.mxu0
        %v2173 = vadd.f32 0.0, %v2172
        %v2174 = vpop.f32.mrf.mxu0
        %2175 = vdwg.mxu0
        %v2176 = vadd.f32 %v2103, %v2162
        %v2177 = vadd.f32 %v2104, %v2165
        %v2178 = vadd.f32 %v2105, %v2170
        %v2179 = vadd.f32 %v2106, %v2173
        %v2180 = vld [vmem:[%s1605] sm:$0xf]
        %v2181 = vld [vmem:[%s1605 + $0x4] sm:$0xf]
        %v2182 = vld [vmem:[%s1605 + $0x8] sm:$0xf]
        %v2183 = vld [vmem:[%s1605 + $0xc] sm:$0xf]
        %v2184 = vld [vmem:[%s1605 + $0x10] sm:$0x1]
        %v2190 = vunpack.c.l.b16 %v2180
        %v2191 = vunpack.c.l.b16 %v2181
        %v2192 = vunpack.c.l.b16 %v2182
        %v2193 = vunpack.c.l.b16 %v2183
        %v2194 = vunpack.c.l.b16 %v2184
        %v2195 = vpack.c.b16 %v2191, %v2190
        %v2196 = vpack.c.b16 %v2193, %v2192
        %v2197 = vpack.c.b16 %v2194, %v2194
        %v2199 = vshrl.u32 %v2195, 16
        %v2201 = vshll.u32 %v2195, 16
        %v2203 = vrot.slane %v2201, 1
        %v2204 = vor.u32 %v2199, %v2203
        %v2206 = vshll.u32 %v2196, 16
        %v2208 = vrot.slane %v2206, 1
        %v2209 = vsel %vm394, %v2204, %v2208
        %v2210 = vshrl.u32 %v2196, 16
        %v2212 = vor.u32 %v2210, %v2208
        %v2214 = vshll.u32 %v2197, 16
        %v2216 = vrot.slane %v2214, 1
        %v2217 = vsel %vm394, %v2212, %v2216
        %v2219 = vsel %vm309, %v2209, 0
        %v2222 = vsel %vm309, %v2217, 0
        %2224 = vmatprep.subr.bf16.mxu0 0
        %2225 = vmatpush1.bf16.msra.mxu0 0
        %2226 = vmatprep.subr.bf16.mxu0 0
        %2227 = vmatpush1.bf16.msra.mxu0 0
        %2228 = vmatprep.subr.bf16.mxu0 0
        %2229 = vmatpush1.bf16.msra.mxu0 0
        %2230 = vmatprep.subr.bf16.mxu0 0
        %2231 = vmatpush1.bf16.msra.mxu0 0
        %2232 = vmatprep.subr.bf16.mxu0 0
        %2233 = vmatpush1.bf16.msra.mxu0 0
        %2234 = vmatprep.subr.bf16.mxu0 0
        %2235 = vmatpush1.bf16.msra.mxu0 0
        %2236 = vmatprep.subr.bf16.mxu0 0
        %2237 = vmatpush1.bf16.msra.mxu0 0
        %2238 = vmatprep.subr.bf16.mxu0 0
        %2239 = vmatpush1.bf16.msra.mxu0 %v702
        %2240 = vmatprep.subr.bf16.mxu0 0
        %2241 = vmatpush2.bf16.msra.mxu0 0
        %2242 = vmatprep.subr.bf16.mxu0 0
        %2243 = vmatpush2.bf16.msra.mxu0 0
        %2244 = vmatprep.subr.bf16.mxu0 0
        %2245 = vmatpush2.bf16.msra.mxu0 0
        %2246 = vmatprep.subr.bf16.mxu0 0
        %2247 = vmatpush2.bf16.msra.mxu0 0
        %2248 = vmatprep.subr.bf16.mxu0 0
        %2249 = vmatpush2.bf16.msra.mxu0 0
        %2250 = vmatprep.subr.bf16.mxu0 0
        %2251 = vmatpush2.bf16.msra.mxu0 0
        %2252 = vmatprep.subr.bf16.mxu0 0
        %2253 = vmatpush2.bf16.msra.mxu0 0
        %2254 = vmatprep.subr.bf16.mxu0 0
        %2255 = vmatpush2.bf16.msra.mxu0 0
        %2256 = vmatprep.mubr.bf16.mxu0 0
        %2257 = vmatmul.mubr.bf16.gmra.mxu0 %v2219
        %v2258 = vpop.f32.mrf.mxu0
        %v2259 = vadd.f32 0.0, %v2258
        %v2260 = vpop.f32.mrf.mxu0
        %v2261 = vpop.f32.mrf.mxu0
        %v2262 = vadd.f32 0.0, %v2261
        %v2263 = vpop.f32.mrf.mxu0
        %2264 = vmatprep.mubr.bf16.mxu0 0
        %2265 = vmatmul.mubr.bf16.gmra.mxu0 %v2222
        %v2266 = vpop.f32.mrf.mxu0
        %v2267 = vadd.f32 0.0, %v2266
        %v2268 = vpop.f32.mrf.mxu0
        %v2269 = vpop.f32.mrf.mxu0
        %v2270 = vadd.f32 0.0, %v2269
        %v2271 = vpop.f32.mrf.mxu0
        %2272 = vdwg.mxu0
        %v2273 = vadd.f32 %v2176, %v2259
        %v2274 = vadd.f32 %v2177, %v2262
        %v2275 = vadd.f32 %v2178, %v2267
        %v2276 = vadd.f32 %v2179, %v2270
        %v2277 = vld [vmem:[%s1605] sm:$0xe]
        %v2279 = vunpack.c.l.b16 %v2277
        %v2280 = vpack.c.b16 %v2191, %v2279
        %v2281 = vrot.slane %v2280, 1
        %v2282 = vrot.slane %v2196, 1
        %v2283 = vsel %vm492, %v2281, %v2282
        %v2284 = vrot.slane %v2197, 1
        %v2285 = vsel %vm492, %v2282, %v2284
        %v2287 = vsel %vm309, %v2283, 0
        %v2290 = vsel %vm309, %v2285, 0
        %2292 = vmatprep.subr.bf16.mxu0 0
        %2293 = vmatpush1.bf16.msra.mxu0 0
        %2294 = vmatprep.subr.bf16.mxu0 0
        %2295 = vmatpush1.bf16.msra.mxu0 0
        %2296 = vmatprep.subr.bf16.mxu0 0
        %2297 = vmatpush1.bf16.msra.mxu0 0
        %2298 = vmatprep.subr.bf16.mxu0 0
        %2299 = vmatpush1.bf16.msra.mxu0 0
        %2300 = vmatprep.subr.bf16.mxu0 0
        %2301 = vmatpush1.bf16.msra.mxu0 0
        %2302 = vmatprep.subr.bf16.mxu0 0
        %2303 = vmatpush1.bf16.msra.mxu0 0
        %2304 = vmatprep.subr.bf16.mxu0 0
        %2305 = vmatpush1.bf16.msra.mxu0 0
        %2306 = vmatprep.subr.bf16.mxu0 0
        %2307 = vmatpush1.bf16.msra.mxu0 %v786
        %2308 = vmatprep.subr.bf16.mxu0 0
        %2309 = vmatpush2.bf16.msra.mxu0 0
        %2310 = vmatprep.subr.bf16.mxu0 0
        %2311 = vmatpush2.bf16.msra.mxu0 0
        %2312 = vmatprep.subr.bf16.mxu0 0
        %2313 = vmatpush2.bf16.msra.mxu0 0
        %2314 = vmatprep.subr.bf16.mxu0 0
        %2315 = vmatpush2.bf16.msra.mxu0 0
        %2316 = vmatprep.subr.bf16.mxu0 0
        %2317 = vmatpush2.bf16.msra.mxu0 0
        %2318 = vmatprep.subr.bf16.mxu0 0
        %2319 = vmatpush2.bf16.msra.mxu0 0
        %2320 = vmatprep.subr.bf16.mxu0 0
        %2321 = vmatpush2.bf16.msra.mxu0 0
        %2322 = vmatprep.subr.bf16.mxu0 0
        %2323 = vmatpush2.bf16.msra.mxu0 0
        %2324 = vmatprep.mubr.bf16.mxu0 0
        %2325 = vmatmul.mubr.bf16.gmra.mxu0 %v2287
        %v2326 = vpop.f32.mrf.mxu0
        %v2327 = vadd.f32 0.0, %v2326
        %v2328 = vpop.f32.mrf.mxu0
        %v2329 = vpop.f32.mrf.mxu0
        %v2330 = vadd.f32 0.0, %v2329
        %v2331 = vpop.f32.mrf.mxu0
        %2332 = vmatprep.mubr.bf16.mxu0 0
        %2333 = vmatmul.mubr.bf16.gmra.mxu0 %v2290
        %v2334 = vpop.f32.mrf.mxu0
        %v2335 = vadd.f32 0.0, %v2334
        %v2336 = vpop.f32.mrf.mxu0
        %v2337 = vpop.f32.mrf.mxu0
        %v2338 = vadd.f32 0.0, %v2337
        %v2339 = vpop.f32.mrf.mxu0
        %2340 = vdwg.mxu0
        %v2341 = vadd.f32 %v2273, %v2327
        %v2342 = vadd.f32 %v2274, %v2330
        %v2343 = vadd.f32 %v2275, %v2335
        %v2344 = vadd.f32 %v2276, %v2338
        %s2345 = scalar_lea.vmem %s260, 80
        %v2346 = vld [vmem:[%s2345] sm:$0xf]
        %v2347 = vld [vmem:[%s2345 + $0x4] sm:$0xf]
        %v2348 = vld [vmem:[%s2345 + $0x8] sm:$0xf]
        %v2349 = vld [vmem:[%s2345 + $0xc] sm:$0xf]
        %v2354 = vunpack.c.l.b16 %v2346
        %v2355 = vunpack.c.l.b16 %v2347
        %v2356 = vunpack.c.l.b16 %v2348
        %v2357 = vunpack.c.l.b16 %v2349
        %v2358 = vpack.c.b16 %v2355, %v2354
        %v2359 = vpack.c.b16 %v2357, %v2356
        %v2361 = vsel %vm309, %v2358, 0
        %v2364 = vsel %vm309, %v2359, 0
        %2366 = vmatprep.subr.bf16.mxu0 0
        %2367 = vmatpush1.bf16.msra.mxu0 0
        %2368 = vmatprep.subr.bf16.mxu0 0
        %2369 = vmatpush1.bf16.msra.mxu0 0
        %2370 = vmatprep.subr.bf16.mxu0 0
        %2371 = vmatpush1.bf16.msra.mxu0 0
        %2372 = vmatprep.subr.bf16.mxu0 0
        %2373 = vmatpush1.bf16.msra.mxu0 0
        %2374 = vmatprep.subr.bf16.mxu0 0
        %2375 = vmatpush1.bf16.msra.mxu0 0
        %2376 = vmatprep.subr.bf16.mxu0 0
        %2377 = vmatpush1.bf16.msra.mxu0 0
        %2378 = vmatprep.subr.bf16.mxu0 0
        %2379 = vmatpush1.bf16.msra.mxu0 0
        %2380 = vmatprep.subr.bf16.mxu0 0
        %2381 = vmatpush1.bf16.msra.mxu0 %v867
        %2382 = vmatprep.subr.bf16.mxu0 0
        %2383 = vmatpush2.bf16.msra.mxu0 0
        %2384 = vmatprep.subr.bf16.mxu0 0
        %2385 = vmatpush2.bf16.msra.mxu0 0
        %2386 = vmatprep.subr.bf16.mxu0 0
        %2387 = vmatpush2.bf16.msra.mxu0 0
        %2388 = vmatprep.subr.bf16.mxu0 0
        %2389 = vmatpush2.bf16.msra.mxu0 0
        %2390 = vmatprep.subr.bf16.mxu0 0
        %2391 = vmatpush2.bf16.msra.mxu0 0
        %2392 = vmatprep.subr.bf16.mxu0 0
        %2393 = vmatpush2.bf16.msra.mxu0 0
        %2394 = vmatprep.subr.bf16.mxu0 0
        %2395 = vmatpush2.bf16.msra.mxu0 0
        %2396 = vmatprep.subr.bf16.mxu0 0
        %2397 = vmatpush2.bf16.msra.mxu0 0
        %2398 = vmatprep.mubr.bf16.mxu0 0
        %2399 = vmatmul.mubr.bf16.gmra.mxu0 %v2361
        %v2400 = vpop.f32.mrf.mxu0
        %v2401 = vadd.f32 0.0, %v2400
        %v2402 = vpop.f32.mrf.mxu0
        %v2403 = vpop.f32.mrf.mxu0
        %v2404 = vadd.f32 0.0, %v2403
        %v2405 = vpop.f32.mrf.mxu0
        %2406 = vmatprep.mubr.bf16.mxu0 0
        %2407 = vmatmul.mubr.bf16.gmra.mxu0 %v2364
        %v2408 = vpop.f32.mrf.mxu0
        %v2409 = vadd.f32 0.0, %v2408
        %v2410 = vpop.f32.mrf.mxu0
        %v2411 = vpop.f32.mrf.mxu0
        %v2412 = vadd.f32 0.0, %v2411
        %v2413 = vpop.f32.mrf.mxu0
        %2414 = vdwg.mxu0
        %v2415 = vadd.f32 %v2341, %v2401
        %v2416 = vadd.f32 %v2342, %v2404
        %v2417 = vadd.f32 %v2343, %v2409
        %v2418 = vadd.f32 %v2344, %v2412
        %v2419 = vld [vmem:[%s2345] sm:$0xf]
        %v2420 = vld [vmem:[%s2345 + $0x4] sm:$0xf]
        %v2421 = vld [vmem:[%s2345 + $0x8] sm:$0xf]
        %v2422 = vld [vmem:[%s2345 + $0xc] sm:$0xf]
        %v2423 = vld [vmem:[%s2345 + $0x10] sm:$0x1]
        %v2429 = vunpack.c.l.b16 %v2419
        %v2430 = vunpack.c.l.b16 %v2420
        %v2431 = vunpack.c.l.b16 %v2421
        %v2432 = vunpack.c.l.b16 %v2422
        %v2433 = vunpack.c.l.b16 %v2423
        %v2434 = vpack.c.b16 %v2430, %v2429
        %v2435 = vpack.c.b16 %v2432, %v2431
        %v2436 = vpack.c.b16 %v2433, %v2433
        %v2438 = vshrl.u32 %v2434, 16
        %v2440 = vshll.u32 %v2434, 16
        %v2442 = vrot.slane %v2440, 1
        %v2443 = vor.u32 %v2438, %v2442
        %v2445 = vshll.u32 %v2435, 16
        %v2447 = vrot.slane %v2445, 1
        %v2448 = vsel %vm394, %v2443, %v2447
        %v2449 = vshrl.u32 %v2435, 16
        %v2451 = vor.u32 %v2449, %v2447
        %v2453 = vshll.u32 %v2436, 16
        %v2455 = vrot.slane %v2453, 1
        %v2456 = vsel %vm394, %v2451, %v2455
        %v2458 = vsel %vm309, %v2448, 0
        %v2461 = vsel %vm309, %v2456, 0
        %2463 = vmatprep.subr.bf16.mxu0 0
        %2464 = vmatpush1.bf16.msra.mxu0 0
        %2465 = vmatprep.subr.bf16.mxu0 0
        %2466 = vmatpush1.bf16.msra.mxu0 0
        %2467 = vmatprep.subr.bf16.mxu0 0
        %2468 = vmatpush1.bf16.msra.mxu0 0
        %2469 = vmatprep.subr.bf16.mxu0 0
        %2470 = vmatpush1.bf16.msra.mxu0 0
        %2471 = vmatprep.subr.bf16.mxu0 0
        %2472 = vmatpush1.bf16.msra.mxu0 0
        %2473 = vmatprep.subr.bf16.mxu0 0
        %2474 = vmatpush1.bf16.msra.mxu0 0
        %2475 = vmatprep.subr.bf16.mxu0 0
        %2476 = vmatpush1.bf16.msra.mxu0 0
        %2477 = vmatprep.subr.bf16.mxu0 0
        %2478 = vmatpush1.bf16.msra.mxu0 %v978
        %2479 = vmatprep.subr.bf16.mxu0 0
        %2480 = vmatpush2.bf16.msra.mxu0 0
        %2481 = vmatprep.subr.bf16.mxu0 0
        %2482 = vmatpush2.bf16.msra.mxu0 0
        %2483 = vmatprep.subr.bf16.mxu0 0
        %2484 = vmatpush2.bf16.msra.mxu0 0
        %2485 = vmatprep.subr.bf16.mxu0 0
        %2486 = vmatpush2.bf16.msra.mxu0 0
        %2487 = vmatprep.subr.bf16.mxu0 0
        %2488 = vmatpush2.bf16.msra.mxu0 0
        %2489 = vmatprep.subr.bf16.mxu0 0
        %2490 = vmatpush2.bf16.msra.mxu0 0
        %2491 = vmatprep.subr.bf16.mxu0 0
        %2492 = vmatpush2.bf16.msra.mxu0 0
        %2493 = vmatprep.subr.bf16.mxu0 0
        %2494 = vmatpush2.bf16.msra.mxu0 0
        %2495 = vmatprep.mubr.bf16.mxu0 0
        %2496 = vmatmul.mubr.bf16.gmra.mxu0 %v2458
        %v2497 = vpop.f32.mrf.mxu0
        %v2498 = vadd.f32 0.0, %v2497
        %v2499 = vpop.f32.mrf.mxu0
        %v2500 = vpop.f32.mrf.mxu0
        %v2501 = vadd.f32 0.0, %v2500
        %v2502 = vpop.f32.mrf.mxu0
        %2503 = vmatprep.mubr.bf16.mxu0 0
        %2504 = vmatmul.mubr.bf16.gmra.mxu0 %v2461
        %v2505 = vpop.f32.mrf.mxu0
        %v2506 = vadd.f32 0.0, %v2505
        %v2507 = vpop.f32.mrf.mxu0
        %v2508 = vpop.f32.mrf.mxu0
        %v2509 = vadd.f32 0.0, %v2508
        %v2510 = vpop.f32.mrf.mxu0
        %2511 = vdwg.mxu0
        %v2512 = vadd.f32 %v2415, %v2498
        %v2513 = vadd.f32 %v2416, %v2501
        %v2514 = vadd.f32 %v2417, %v2506
        %v2515 = vadd.f32 %v2418, %v2509
        %v2516 = vld [vmem:[%s2345] sm:$0xe]
        %v2518 = vunpack.c.l.b16 %v2516
        %v2519 = vpack.c.b16 %v2430, %v2518
        %v2520 = vrot.slane %v2519, 1
        %v2521 = vrot.slane %v2435, 1
        %v2522 = vsel %vm492, %v2520, %v2521
        %v2523 = vrot.slane %v2436, 1
        %v2524 = vsel %vm492, %v2521, %v2523
        %v2526 = vsel %vm309, %v2522, 0
        %v2529 = vsel %vm309, %v2524, 0
        %2531 = vmatprep.subr.bf16.mxu0 0
        %2532 = vmatpush1.bf16.msra.mxu0 0
        %2533 = vmatprep.subr.bf16.mxu0 0
        %2534 = vmatpush1.bf16.msra.mxu0 0
        %2535 = vmatprep.subr.bf16.mxu0 0
        %2536 = vmatpush1.bf16.msra.mxu0 0
        %2537 = vmatprep.subr.bf16.mxu0 0
        %2538 = vmatpush1.bf16.msra.mxu0 0
        %2539 = vmatprep.subr.bf16.mxu0 0
        %2540 = vmatpush1.bf16.msra.mxu0 0
        %2541 = vmatprep.subr.bf16.mxu0 0
        %2542 = vmatpush1.bf16.msra.mxu0 0
        %2543 = vmatprep.subr.bf16.mxu0 0
        %2544 = vmatpush1.bf16.msra.mxu0 0
        %2545 = vmatprep.subr.bf16.mxu0 0
        %2546 = vmatpush1.bf16.msra.mxu0 %v1049
        %2547 = vmatprep.subr.bf16.mxu0 0
        %2548 = vmatpush2.bf16.msra.mxu0 0
        %2549 = vmatprep.subr.bf16.mxu0 0
        %2550 = vmatpush2.bf16.msra.mxu0 0
        %2551 = vmatprep.subr.bf16.mxu0 0
        %2552 = vmatpush2.bf16.msra.mxu0 0
        %2553 = vmatprep.subr.bf16.mxu0 0
        %2554 = vmatpush2.bf16.msra.mxu0 0
        %2555 = vmatprep.subr.bf16.mxu0 0
        %2556 = vmatpush2.bf16.msra.mxu0 0
        %2557 = vmatprep.subr.bf16.mxu0 0
        %2558 = vmatpush2.bf16.msra.mxu0 0
        %2559 = vmatprep.subr.bf16.mxu0 0
        %2560 = vmatpush2.bf16.msra.mxu0 0
        %2561 = vmatprep.subr.bf16.mxu0 0
        %2562 = vmatpush2.bf16.msra.mxu0 0
        %2563 = vmatprep.mubr.bf16.mxu0 0
        %2564 = vmatmul.mubr.bf16.gmra.mxu0 %v2526
        %v2565 = vpop.f32.mrf.mxu0
        %v2566 = vadd.f32 0.0, %v2565
        %v2567 = vpop.f32.mrf.mxu0
        %v2568 = vpop.f32.mrf.mxu0
        %v2569 = vadd.f32 0.0, %v2568
        %v2570 = vpop.f32.mrf.mxu0
        %2571 = vmatprep.mubr.bf16.mxu0 0
        %2572 = vmatmul.mubr.bf16.gmra.mxu0 %v2529
        %v2573 = vpop.f32.mrf.mxu0
        %v2574 = vadd.f32 0.0, %v2573
        %v2575 = vpop.f32.mrf.mxu0
        %v2576 = vpop.f32.mrf.mxu0
        %v2577 = vadd.f32 0.0, %v2576
        %v2578 = vpop.f32.mrf.mxu0
        %2579 = vdwg.mxu0
        %v2580 = vadd.f32 %v2512, %v2566
        %v2581 = vadd.f32 %v2513, %v2569
        %v2582 = vadd.f32 %v2514, %v2574
        %v2583 = vadd.f32 %v2515, %v2577
        %v2584 = vmax.f32 %v2580, 0.0
        %v2585 = vmax.f32 %v2581, 0.0
        %v2586 = vmax.f32 %v2582, 0.0
        %v2587 = vmax.f32 %v2583, 0.0
        %v2588 = vpack.c.bf16 %v2585, %v2584
        %v2589 = vpack.c.bf16 %v2587, %v2586
        %v2592 = vunpack.c.l.b16 %v2588
        %v2593 = vunpack.c.h.b16 %v2588
        %v2594 = vunpack.c.l.b16 %v2589
        %v2595 = vunpack.c.h.b16 %v2589
        %v2596 = vpack.c.b16 %v2592, %v2592
        %v2597 = vpack.c.b16 %v2593, %v2593
        %v2598 = vpack.c.b16 %v2594, %v2594
        %v2599 = vpack.c.b16 %v2595, %v2595
        %s2604 = scalar_lea.vmem %s250, 32 [#allocation2]
        %2605 = vst.msk [vmem:[%s2604] sm:$0xf] %vm1124, %v2596
        %2606 = vst.msk [vmem:[%s2604 + $0x4] sm:$0xf] %vm1124, %v2597
        %2607 = vst.msk [vmem:[%s2604 + $0x8] sm:$0xf] %vm1124, %v2598
        %2608 = vst.msk [vmem:[%s2604 + $0xc] sm:$0xf] %vm1124, %v2599
        %v2609 = vld [vmem:[%s1605] sm:$0xf]
        %v2610 = vld [vmem:[%s1605 + $0x4] sm:$0xf]
        %v2611 = vld [vmem:[%s1605 + $0x8] sm:$0xf]
        %v2612 = vld [vmem:[%s1605 + $0xc] sm:$0xf]
        %v2617 = vunpack.c.l.b16 %v2609
        %v2618 = vunpack.c.l.b16 %v2610
        %v2619 = vunpack.c.l.b16 %v2611
        %v2620 = vunpack.c.l.b16 %v2612
        %v2621 = vpack.c.b16 %v2618, %v2617
        %v2622 = vpack.c.b16 %v2620, %v2619
        %v2624 = vsel %vm309, %v2621, 0
        %v2627 = vsel %vm309, %v2622, 0
        %2629 = vmatprep.subr.bf16.mxu0 0
        %2630 = vmatpush1.bf16.msra.mxu0 0
        %2631 = vmatprep.subr.bf16.mxu0 0
        %2632 = vmatpush1.bf16.msra.mxu0 0
        %2633 = vmatprep.subr.bf16.mxu0 0
        %2634 = vmatpush1.bf16.msra.mxu0 0
        %2635 = vmatprep.subr.bf16.mxu0 0
        %2636 = vmatpush1.bf16.msra.mxu0 0
        %2637 = vmatprep.subr.bf16.mxu0 0
        %2638 = vmatpush1.bf16.msra.mxu0 0
        %2639 = vmatprep.subr.bf16.mxu0 0
        %2640 = vmatpush1.bf16.msra.mxu0 0
        %2641 = vmatprep.subr.bf16.mxu0 0
        %2642 = vmatpush1.bf16.msra.mxu0 0
        %2643 = vmatprep.subr.bf16.mxu0 0
        %2644 = vmatpush1.bf16.msra.mxu0 %v321
        %2645 = vmatprep.subr.bf16.mxu0 0
        %2646 = vmatpush2.bf16.msra.mxu0 0
        %2647 = vmatprep.subr.bf16.mxu0 0
        %2648 = vmatpush2.bf16.msra.mxu0 0
        %2649 = vmatprep.subr.bf16.mxu0 0
        %2650 = vmatpush2.bf16.msra.mxu0 0
        %2651 = vmatprep.subr.bf16.mxu0 0
        %2652 = vmatpush2.bf16.msra.mxu0 0
        %2653 = vmatprep.subr.bf16.mxu0 0
        %2654 = vmatpush2.bf16.msra.mxu0 0
        %2655 = vmatprep.subr.bf16.mxu0 0
        %2656 = vmatpush2.bf16.msra.mxu0 0
        %2657 = vmatprep.subr.bf16.mxu0 0
        %2658 = vmatpush2.bf16.msra.mxu0 0
        %2659 = vmatprep.subr.bf16.mxu0 0
        %2660 = vmatpush2.bf16.msra.mxu0 0
        %2661 = vmatprep.mubr.bf16.mxu0 0
        %2662 = vmatmul.mubr.bf16.gmra.mxu0 %v2624
        %v2663 = vpop.f32.mrf.mxu0
        %v2664 = vadd.f32 0.0, %v2663
        %v2665 = vpop.f32.mrf.mxu0
        %v2666 = vpop.f32.mrf.mxu0
        %v2667 = vadd.f32 0.0, %v2666
        %v2668 = vpop.f32.mrf.mxu0
        %2669 = vmatprep.mubr.bf16.mxu0 0
        %2670 = vmatmul.mubr.bf16.gmra.mxu0 %v2627
        %v2671 = vpop.f32.mrf.mxu0
        %v2672 = vadd.f32 0.0, %v2671
        %v2673 = vpop.f32.mrf.mxu0
        %v2674 = vpop.f32.mrf.mxu0
        %v2675 = vadd.f32 0.0, %v2674
        %v2676 = vpop.f32.mrf.mxu0
        %2677 = vdwg.mxu0
        %v2678 = vadd.f32 %v282, %v2664
        %v2679 = vadd.f32 %v282, %v2667
        %v2680 = vadd.f32 %v282, %v2672
        %v2681 = vadd.f32 %v282, %v2675
        %v2682 = vld [vmem:[%s1605] sm:$0xf]
        %v2683 = vld [vmem:[%s1605 + $0x4] sm:$0xf]
        %v2684 = vld [vmem:[%s1605 + $0x8] sm:$0xf]
        %v2685 = vld [vmem:[%s1605 + $0xc] sm:$0xf]
        %v2686 = vld [vmem:[%s1605 + $0x10] sm:$0x1]
        %v2692 = vunpack.c.l.b16 %v2682
        %v2693 = vunpack.c.l.b16 %v2683
        %v2694 = vunpack.c.l.b16 %v2684
        %v2695 = vunpack.c.l.b16 %v2685
        %v2696 = vunpack.c.l.b16 %v2686
        %v2697 = vpack.c.b16 %v2693, %v2692
        %v2698 = vpack.c.b16 %v2695, %v2694
        %v2699 = vpack.c.b16 %v2696, %v2696
        %v2701 = vshrl.u32 %v2697, 16
        %v2703 = vshll.u32 %v2697, 16
        %v2705 = vrot.slane %v2703, 1
        %v2706 = vor.u32 %v2701, %v2705
        %v2708 = vshll.u32 %v2698, 16
        %v2710 = vrot.slane %v2708, 1
        %v2711 = vsel %vm394, %v2706, %v2710
        %v2712 = vshrl.u32 %v2698, 16
        %v2714 = vor.u32 %v2712, %v2710
        %v2716 = vshll.u32 %v2699, 16
        %v2718 = vrot.slane %v2716, 1
        %v2719 = vsel %vm394, %v2714, %v2718
        %v2721 = vsel %vm309, %v2711, 0
        %v2724 = vsel %vm309, %v2719, 0
        %2726 = vmatprep.subr.bf16.mxu0 0
        %2727 = vmatpush1.bf16.msra.mxu0 0
        %2728 = vmatprep.subr.bf16.mxu0 0
        %2729 = vmatpush1.bf16.msra.mxu0 0
        %2730 = vmatprep.subr.bf16.mxu0 0
        %2731 = vmatpush1.bf16.msra.mxu0 0
        %2732 = vmatprep.subr.bf16.mxu0 0
        %2733 = vmatpush1.bf16.msra.mxu0 0
        %2734 = vmatprep.subr.bf16.mxu0 0
        %2735 = vmatpush1.bf16.msra.mxu0 0
        %2736 = vmatprep.subr.bf16.mxu0 0
        %2737 = vmatpush1.bf16.msra.mxu0 0
        %2738 = vmatprep.subr.bf16.mxu0 0
        %2739 = vmatpush1.bf16.msra.mxu0 0
        %2740 = vmatprep.subr.bf16.mxu0 0
        %2741 = vmatpush1.bf16.msra.mxu0 %v433
        %2742 = vmatprep.subr.bf16.mxu0 0
        %2743 = vmatpush2.bf16.msra.mxu0 0
        %2744 = vmatprep.subr.bf16.mxu0 0
        %2745 = vmatpush2.bf16.msra.mxu0 0
        %2746 = vmatprep.subr.bf16.mxu0 0
        %2747 = vmatpush2.bf16.msra.mxu0 0
        %2748 = vmatprep.subr.bf16.mxu0 0
        %2749 = vmatpush2.bf16.msra.mxu0 0
        %2750 = vmatprep.subr.bf16.mxu0 0
        %2751 = vmatpush2.bf16.msra.mxu0 0
        %2752 = vmatprep.subr.bf16.mxu0 0
        %2753 = vmatpush2.bf16.msra.mxu0 0
        %2754 = vmatprep.subr.bf16.mxu0 0
        %2755 = vmatpush2.bf16.msra.mxu0 0
        %2756 = vmatprep.subr.bf16.mxu0 0
        %2757 = vmatpush2.bf16.msra.mxu0 0
        %2758 = vmatprep.mubr.bf16.mxu0 0
        %2759 = vmatmul.mubr.bf16.gmra.mxu0 %v2721
        %v2760 = vpop.f32.mrf.mxu0
        %v2761 = vadd.f32 0.0, %v2760
        %v2762 = vpop.f32.mrf.mxu0
        %v2763 = vpop.f32.mrf.mxu0
        %v2764 = vadd.f32 0.0, %v2763
        %v2765 = vpop.f32.mrf.mxu0
        %2766 = vmatprep.mubr.bf16.mxu0 0
        %2767 = vmatmul.mubr.bf16.gmra.mxu0 %v2724
        %v2768 = vpop.f32.mrf.mxu0
        %v2769 = vadd.f32 0.0, %v2768
        %v2770 = vpop.f32.mrf.mxu0
        %v2771 = vpop.f32.mrf.mxu0
        %v2772 = vadd.f32 0.0, %v2771
        %v2773 = vpop.f32.mrf.mxu0
        %2774 = vdwg.mxu0
        %v2775 = vadd.f32 %v2678, %v2761
        %v2776 = vadd.f32 %v2679, %v2764
        %v2777 = vadd.f32 %v2680, %v2769
        %v2778 = vadd.f32 %v2681, %v2772
        %v2779 = vld [vmem:[%s1605] sm:$0xe]
        %v2781 = vunpack.c.l.b16 %v2779
        %v2782 = vpack.c.b16 %v2693, %v2781
        %v2783 = vrot.slane %v2782, 1
        %v2784 = vrot.slane %v2698, 1
        %v2785 = vsel %vm492, %v2783, %v2784
        %v2786 = vrot.slane %v2699, 1
        %v2787 = vsel %vm492, %v2784, %v2786
        %v2789 = vsel %vm309, %v2785, 0
        %v2792 = vsel %vm309, %v2787, 0
        %2794 = vmatprep.subr.bf16.mxu0 0
        %2795 = vmatpush1.bf16.msra.mxu0 0
        %2796 = vmatprep.subr.bf16.mxu0 0
        %2797 = vmatpush1.bf16.msra.mxu0 0
        %2798 = vmatprep.subr.bf16.mxu0 0
        %2799 = vmatpush1.bf16.msra.mxu0 0
        %2800 = vmatprep.subr.bf16.mxu0 0
        %2801 = vmatpush1.bf16.msra.mxu0 0
        %2802 = vmatprep.subr.bf16.mxu0 0
        %2803 = vmatpush1.bf16.msra.mxu0 0
        %2804 = vmatprep.subr.bf16.mxu0 0
        %2805 = vmatpush1.bf16.msra.mxu0 0
        %2806 = vmatprep.subr.bf16.mxu0 0
        %2807 = vmatpush1.bf16.msra.mxu0 0
        %2808 = vmatprep.subr.bf16.mxu0 0
        %2809 = vmatpush1.bf16.msra.mxu0 %v511
        %2810 = vmatprep.subr.bf16.mxu0 0
        %2811 = vmatpush2.bf16.msra.mxu0 0
        %2812 = vmatprep.subr.bf16.mxu0 0
        %2813 = vmatpush2.bf16.msra.mxu0 0
        %2814 = vmatprep.subr.bf16.mxu0 0
        %2815 = vmatpush2.bf16.msra.mxu0 0
        %2816 = vmatprep.subr.bf16.mxu0 0
        %2817 = vmatpush2.bf16.msra.mxu0 0
        %2818 = vmatprep.subr.bf16.mxu0 0
        %2819 = vmatpush2.bf16.msra.mxu0 0
        %2820 = vmatprep.subr.bf16.mxu0 0
        %2821 = vmatpush2.bf16.msra.mxu0 0
        %2822 = vmatprep.subr.bf16.mxu0 0
        %2823 = vmatpush2.bf16.msra.mxu0 0
        %2824 = vmatprep.subr.bf16.mxu0 0
        %2825 = vmatpush2.bf16.msra.mxu0 0
        %2826 = vmatprep.mubr.bf16.mxu0 0
        %2827 = vmatmul.mubr.bf16.gmra.mxu0 %v2789
        %v2828 = vpop.f32.mrf.mxu0
        %v2829 = vadd.f32 0.0, %v2828
        %v2830 = vpop.f32.mrf.mxu0
        %v2831 = vpop.f32.mrf.mxu0
        %v2832 = vadd.f32 0.0, %v2831
        %v2833 = vpop.f32.mrf.mxu0
        %2834 = vmatprep.mubr.bf16.mxu0 0
        %2835 = vmatmul.mubr.bf16.gmra.mxu0 %v2792
        %v2836 = vpop.f32.mrf.mxu0
        %v2837 = vadd.f32 0.0, %v2836
        %v2838 = vpop.f32.mrf.mxu0
        %v2839 = vpop.f32.mrf.mxu0
        %v2840 = vadd.f32 0.0, %v2839
        %v2841 = vpop.f32.mrf.mxu0
        %2842 = vdwg.mxu0
        %v2843 = vadd.f32 %v2775, %v2829
        %v2844 = vadd.f32 %v2776, %v2832
        %v2845 = vadd.f32 %v2777, %v2837
        %v2846 = vadd.f32 %v2778, %v2840
        %v2847 = vld [vmem:[%s2345] sm:$0xf]
        %v2848 = vld [vmem:[%s2345 + $0x4] sm:$0xf]
        %v2849 = vld [vmem:[%s2345 + $0x8] sm:$0xf]
        %v2850 = vld [vmem:[%s2345 + $0xc] sm:$0xf]
        %v2855 = vunpack.c.l.b16 %v2847
        %v2856 = vunpack.c.l.b16 %v2848
        %v2857 = vunpack.c.l.b16 %v2849
        %v2858 = vunpack.c.l.b16 %v2850
        %v2859 = vpack.c.b16 %v2856, %v2855
        %v2860 = vpack.c.b16 %v2858, %v2857
        %v2862 = vsel %vm309, %v2859, 0
        %v2865 = vsel %vm309, %v2860, 0
        %2867 = vmatprep.subr.bf16.mxu0 0
        %2868 = vmatpush1.bf16.msra.mxu0 0
        %2869 = vmatprep.subr.bf16.mxu0 0
        %2870 = vmatpush1.bf16.msra.mxu0 0
        %2871 = vmatprep.subr.bf16.mxu0 0
        %2872 = vmatpush1.bf16.msra.mxu0 0
        %2873 = vmatprep.subr.bf16.mxu0 0
        %2874 = vmatpush1.bf16.msra.mxu0 0
        %2875 = vmatprep.subr.bf16.mxu0 0
        %2876 = vmatpush1.bf16.msra.mxu0 0
        %2877 = vmatprep.subr.bf16.mxu0 0
        %2878 = vmatpush1.bf16.msra.mxu0 0
        %2879 = vmatprep.subr.bf16.mxu0 0
        %2880 = vmatpush1.bf16.msra.mxu0 0
        %2881 = vmatprep.subr.bf16.mxu0 0
        %2882 = vmatpush1.bf16.msra.mxu0 %v598
        %2883 = vmatprep.subr.bf16.mxu0 0
        %2884 = vmatpush2.bf16.msra.mxu0 0
        %2885 = vmatprep.subr.bf16.mxu0 0
        %2886 = vmatpush2.bf16.msra.mxu0 0
        %2887 = vmatprep.subr.bf16.mxu0 0
        %2888 = vmatpush2.bf16.msra.mxu0 0
        %2889 = vmatprep.subr.bf16.mxu0 0
        %2890 = vmatpush2.bf16.msra.mxu0 0
        %2891 = vmatprep.subr.bf16.mxu0 0
        %2892 = vmatpush2.bf16.msra.mxu0 0
        %2893 = vmatprep.subr.bf16.mxu0 0
        %2894 = vmatpush2.bf16.msra.mxu0 0
        %2895 = vmatprep.subr.bf16.mxu0 0
        %2896 = vmatpush2.bf16.msra.mxu0 0
        %2897 = vmatprep.subr.bf16.mxu0 0
        %2898 = vmatpush2.bf16.msra.mxu0 0
        %2899 = vmatprep.mubr.bf16.mxu0 0
        %2900 = vmatmul.mubr.bf16.gmra.mxu0 %v2862
        %v2901 = vpop.f32.mrf.mxu0
        %v2902 = vadd.f32 0.0, %v2901
        %v2903 = vpop.f32.mrf.mxu0
        %v2904 = vpop.f32.mrf.mxu0
        %v2905 = vadd.f32 0.0, %v2904
        %v2906 = vpop.f32.mrf.mxu0
        %2907 = vmatprep.mubr.bf16.mxu0 0
        %2908 = vmatmul.mubr.bf16.gmra.mxu0 %v2865
        %v2909 = vpop.f32.mrf.mxu0
        %v2910 = vadd.f32 0.0, %v2909
        %v2911 = vpop.f32.mrf.mxu0
        %v2912 = vpop.f32.mrf.mxu0
        %v2913 = vadd.f32 0.0, %v2912
        %v2914 = vpop.f32.mrf.mxu0
        %2915 = vdwg.mxu0
        %v2916 = vadd.f32 %v2843, %v2902
        %v2917 = vadd.f32 %v2844, %v2905
        %v2918 = vadd.f32 %v2845, %v2910
        %v2919 = vadd.f32 %v2846, %v2913
        %v2920 = vld [vmem:[%s2345] sm:$0xf]
        %v2921 = vld [vmem:[%s2345 + $0x4] sm:$0xf]
        %v2922 = vld [vmem:[%s2345 + $0x8] sm:$0xf]
        %v2923 = vld [vmem:[%s2345 + $0xc] sm:$0xf]
        %v2924 = vld [vmem:[%s2345 + $0x10] sm:$0x1]
        %v2930 = vunpack.c.l.b16 %v2920
        %v2931 = vunpack.c.l.b16 %v2921
        %v2932 = vunpack.c.l.b16 %v2922
        %v2933 = vunpack.c.l.b16 %v2923
        %v2934 = vunpack.c.l.b16 %v2924
        %v2935 = vpack.c.b16 %v2931, %v2930
        %v2936 = vpack.c.b16 %v2933, %v2932
        %v2937 = vpack.c.b16 %v2934, %v2934
        %v2939 = vshrl.u32 %v2935, 16
        %v2941 = vshll.u32 %v2935, 16
        %v2943 = vrot.slane %v2941, 1
        %v2944 = vor.u32 %v2939, %v2943
        %v2946 = vshll.u32 %v2936, 16
        %v2948 = vrot.slane %v2946, 1
        %v2949 = vsel %vm394, %v2944, %v2948
        %v2950 = vshrl.u32 %v2936, 16
        %v2952 = vor.u32 %v2950, %v2948
        %v2954 = vshll.u32 %v2937, 16
        %v2956 = vrot.slane %v2954, 1
        %v2957 = vsel %vm394, %v2952, %v2956
        %v2959 = vsel %vm309, %v2949, 0
        %v2962 = vsel %vm309, %v2957, 0
        %2964 = vmatprep.subr.bf16.mxu0 0
        %2965 = vmatpush1.bf16.msra.mxu0 0
        %2966 = vmatprep.subr.bf16.mxu0 0
        %2967 = vmatpush1.bf16.msra.mxu0 0
        %2968 = vmatprep.subr.bf16.mxu0 0
        %2969 = vmatpush1.bf16.msra.mxu0 0
        %2970 = vmatprep.subr.bf16.mxu0 0
        %2971 = vmatpush1.bf16.msra.mxu0 0
        %2972 = vmatprep.subr.bf16.mxu0 0
        %2973 = vmatpush1.bf16.msra.mxu0 0
        %2974 = vmatprep.subr.bf16.mxu0 0
        %2975 = vmatpush1.bf16.msra.mxu0 0
        %2976 = vmatprep.subr.bf16.mxu0 0
        %2977 = vmatpush1.bf16.msra.mxu0 0
        %2978 = vmatprep.subr.bf16.mxu0 0
        %2979 = vmatpush1.bf16.msra.mxu0 %v702
        %2980 = vmatprep.subr.bf16.mxu0 0
        %2981 = vmatpush2.bf16.msra.mxu0 0
        %2982 = vmatprep.subr.bf16.mxu0 0
        %2983 = vmatpush2.bf16.msra.mxu0 0
        %2984 = vmatprep.subr.bf16.mxu0 0
        %2985 = vmatpush2.bf16.msra.mxu0 0
        %2986 = vmatprep.subr.bf16.mxu0 0
        %2987 = vmatpush2.bf16.msra.mxu0 0
        %2988 = vmatprep.subr.bf16.mxu0 0
        %2989 = vmatpush2.bf16.msra.mxu0 0
        %2990 = vmatprep.subr.bf16.mxu0 0
        %2991 = vmatpush2.bf16.msra.mxu0 0
        %2992 = vmatprep.subr.bf16.mxu0 0
        %2993 = vmatpush2.bf16.msra.mxu0 0
        %2994 = vmatprep.subr.bf16.mxu0 0
        %2995 = vmatpush2.bf16.msra.mxu0 0
        %2996 = vmatprep.mubr.bf16.mxu0 0
        %2997 = vmatmul.mubr.bf16.gmra.mxu0 %v2959
        %v2998 = vpop.f32.mrf.mxu0
        %v2999 = vadd.f32 0.0, %v2998
        %v3000 = vpop.f32.mrf.mxu0
        %v3001 = vpop.f32.mrf.mxu0
        %v3002 = vadd.f32 0.0, %v3001
        %v3003 = vpop.f32.mrf.mxu0
        %3004 = vmatprep.mubr.bf16.mxu0 0
        %3005 = vmatmul.mubr.bf16.gmra.mxu0 %v2962
        %v3006 = vpop.f32.mrf.mxu0
        %v3007 = vadd.f32 0.0, %v3006
        %v3008 = vpop.f32.mrf.mxu0
        %v3009 = vpop.f32.mrf.mxu0
        %v3010 = vadd.f32 0.0, %v3009
        %v3011 = vpop.f32.mrf.mxu0
        %3012 = vdwg.mxu0
        %v3013 = vadd.f32 %v2916, %v2999
        %v3014 = vadd.f32 %v2917, %v3002
        %v3015 = vadd.f32 %v2918, %v3007
        %v3016 = vadd.f32 %v2919, %v3010
        %v3017 = vld [vmem:[%s2345] sm:$0xe]
        %v3019 = vunpack.c.l.b16 %v3017
        %v3020 = vpack.c.b16 %v2931, %v3019
        %v3021 = vrot.slane %v3020, 1
        %v3022 = vrot.slane %v2936, 1
        %v3023 = vsel %vm492, %v3021, %v3022
        %v3024 = vrot.slane %v2937, 1
        %v3025 = vsel %vm492, %v3022, %v3024
        %v3027 = vsel %vm309, %v3023, 0
        %v3030 = vsel %vm309, %v3025, 0
        %3032 = vmatprep.subr.bf16.mxu0 0
        %3033 = vmatpush1.bf16.msra.mxu0 0
        %3034 = vmatprep.subr.bf16.mxu0 0
        %3035 = vmatpush1.bf16.msra.mxu0 0
        %3036 = vmatprep.subr.bf16.mxu0 0
        %3037 = vmatpush1.bf16.msra.mxu0 0
        %3038 = vmatprep.subr.bf16.mxu0 0
        %3039 = vmatpush1.bf16.msra.mxu0 0
        %3040 = vmatprep.subr.bf16.mxu0 0
        %3041 = vmatpush1.bf16.msra.mxu0 0
        %3042 = vmatprep.subr.bf16.mxu0 0
        %3043 = vmatpush1.bf16.msra.mxu0 0
        %3044 = vmatprep.subr.bf16.mxu0 0
        %3045 = vmatpush1.bf16.msra.mxu0 0
        %3046 = vmatprep.subr.bf16.mxu0 0
        %3047 = vmatpush1.bf16.msra.mxu0 %v786
        %3048 = vmatprep.subr.bf16.mxu0 0
        %3049 = vmatpush2.bf16.msra.mxu0 0
        %3050 = vmatprep.subr.bf16.mxu0 0
        %3051 = vmatpush2.bf16.msra.mxu0 0
        %3052 = vmatprep.subr.bf16.mxu0 0
        %3053 = vmatpush2.bf16.msra.mxu0 0
        %3054 = vmatprep.subr.bf16.mxu0 0
        %3055 = vmatpush2.bf16.msra.mxu0 0
        %3056 = vmatprep.subr.bf16.mxu0 0
        %3057 = vmatpush2.bf16.msra.mxu0 0
        %3058 = vmatprep.subr.bf16.mxu0 0
        %3059 = vmatpush2.bf16.msra.mxu0 0
        %3060 = vmatprep.subr.bf16.mxu0 0
        %3061 = vmatpush2.bf16.msra.mxu0 0
        %3062 = vmatprep.subr.bf16.mxu0 0
        %3063 = vmatpush2.bf16.msra.mxu0 0
        %3064 = vmatprep.mubr.bf16.mxu0 0
        %3065 = vmatmul.mubr.bf16.gmra.mxu0 %v3027
        %v3066 = vpop.f32.mrf.mxu0
        %v3067 = vadd.f32 0.0, %v3066
        %v3068 = vpop.f32.mrf.mxu0
        %v3069 = vpop.f32.mrf.mxu0
        %v3070 = vadd.f32 0.0, %v3069
        %v3071 = vpop.f32.mrf.mxu0
        %3072 = vmatprep.mubr.bf16.mxu0 0
        %3073 = vmatmul.mubr.bf16.gmra.mxu0 %v3030
        %v3074 = vpop.f32.mrf.mxu0
        %v3075 = vadd.f32 0.0, %v3074
        %v3076 = vpop.f32.mrf.mxu0
        %v3077 = vpop.f32.mrf.mxu0
        %v3078 = vadd.f32 0.0, %v3077
        %v3079 = vpop.f32.mrf.mxu0
        %3080 = vdwg.mxu0
        %v3081 = vadd.f32 %v3013, %v3067
        %v3082 = vadd.f32 %v3014, %v3070
        %v3083 = vadd.f32 %v3015, %v3075
        %v3084 = vadd.f32 %v3016, %v3078
        %s3085 = scalar_lea.vmem %s260, 100
        %v3086 = vld [vmem:[%s3085] sm:$0xf]
        %v3087 = vld [vmem:[%s3085 + $0x4] sm:$0xf]
        %v3088 = vld [vmem:[%s3085 + $0x8] sm:$0xf]
        %v3089 = vld [vmem:[%s3085 + $0xc] sm:$0xf]
        %v3094 = vunpack.c.l.b16 %v3086
        %v3095 = vunpack.c.l.b16 %v3087
        %v3096 = vunpack.c.l.b16 %v3088
        %v3097 = vunpack.c.l.b16 %v3089
        %v3098 = vpack.c.b16 %v3095, %v3094
        %v3099 = vpack.c.b16 %v3097, %v3096
        %v3101 = vsel %vm309, %v3098, 0
        %v3104 = vsel %vm309, %v3099, 0
        %3106 = vmatprep.subr.bf16.mxu0 0
        %3107 = vmatpush1.bf16.msra.mxu0 0
        %3108 = vmatprep.subr.bf16.mxu0 0
        %3109 = vmatpush1.bf16.msra.mxu0 0
        %3110 = vmatprep.subr.bf16.mxu0 0
        %3111 = vmatpush1.bf16.msra.mxu0 0
        %3112 = vmatprep.subr.bf16.mxu0 0
        %3113 = vmatpush1.bf16.msra.mxu0 0
        %3114 = vmatprep.subr.bf16.mxu0 0
        %3115 = vmatpush1.bf16.msra.mxu0 0
        %3116 = vmatprep.subr.bf16.mxu0 0
        %3117 = vmatpush1.bf16.msra.mxu0 0
        %3118 = vmatprep.subr.bf16.mxu0 0
        %3119 = vmatpush1.bf16.msra.mxu0 0
        %3120 = vmatprep.subr.bf16.mxu0 0
        %3121 = vmatpush1.bf16.msra.mxu0 %v867
        %3122 = vmatprep.subr.bf16.mxu0 0
        %3123 = vmatpush2.bf16.msra.mxu0 0
        %3124 = vmatprep.subr.bf16.mxu0 0
        %3125 = vmatpush2.bf16.msra.mxu0 0
        %3126 = vmatprep.subr.bf16.mxu0 0
        %3127 = vmatpush2.bf16.msra.mxu0 0
        %3128 = vmatprep.subr.bf16.mxu0 0
        %3129 = vmatpush2.bf16.msra.mxu0 0
        %3130 = vmatprep.subr.bf16.mxu0 0
        %3131 = vmatpush2.bf16.msra.mxu0 0
        %3132 = vmatprep.subr.bf16.mxu0 0
        %3133 = vmatpush2.bf16.msra.mxu0 0
        %3134 = vmatprep.subr.bf16.mxu0 0
        %3135 = vmatpush2.bf16.msra.mxu0 0
        %3136 = vmatprep.subr.bf16.mxu0 0
        %3137 = vmatpush2.bf16.msra.mxu0 0
        %3138 = vmatprep.mubr.bf16.mxu0 0
        %3139 = vmatmul.mubr.bf16.gmra.mxu0 %v3101
        %v3140 = vpop.f32.mrf.mxu0
        %v3141 = vadd.f32 0.0, %v3140
        %v3142 = vpop.f32.mrf.mxu0
        %v3143 = vpop.f32.mrf.mxu0
        %v3144 = vadd.f32 0.0, %v3143
        %v3145 = vpop.f32.mrf.mxu0
        %3146 = vmatprep.mubr.bf16.mxu0 0
        %3147 = vmatmul.mubr.bf16.gmra.mxu0 %v3104
        %v3148 = vpop.f32.mrf.mxu0
        %v3149 = vadd.f32 0.0, %v3148
        %v3150 = vpop.f32.mrf.mxu0
        %v3151 = vpop.f32.mrf.mxu0
        %v3152 = vadd.f32 0.0, %v3151
        %v3153 = vpop.f32.mrf.mxu0
        %3154 = vdwg.mxu0
        %v3155 = vadd.f32 %v3081, %v3141
        %v3156 = vadd.f32 %v3082, %v3144
        %v3157 = vadd.f32 %v3083, %v3149
        %v3158 = vadd.f32 %v3084, %v3152
        %v3159 = vld [vmem:[%s3085] sm:$0xf]
        %v3160 = vld [vmem:[%s3085 + $0x4] sm:$0xf]
        %v3161 = vld [vmem:[%s3085 + $0x8] sm:$0xf]
        %v3162 = vld [vmem:[%s3085 + $0xc] sm:$0xf]
        %v3163 = vld [vmem:[%s3085 + $0x10] sm:$0x1]
        %v3169 = vunpack.c.l.b16 %v3159
        %v3170 = vunpack.c.l.b16 %v3160
        %v3171 = vunpack.c.l.b16 %v3161
        %v3172 = vunpack.c.l.b16 %v3162
        %v3173 = vunpack.c.l.b16 %v3163
        %v3174 = vpack.c.b16 %v3170, %v3169
        %v3175 = vpack.c.b16 %v3172, %v3171
        %v3176 = vpack.c.b16 %v3173, %v3173
        %v3178 = vshrl.u32 %v3174, 16
        %v3180 = vshll.u32 %v3174, 16
        %v3182 = vrot.slane %v3180, 1
        %v3183 = vor.u32 %v3178, %v3182
        %v3185 = vshll.u32 %v3175, 16
        %v3187 = vrot.slane %v3185, 1
        %v3188 = vsel %vm394, %v3183, %v3187
        %v3189 = vshrl.u32 %v3175, 16
        %v3191 = vor.u32 %v3189, %v3187
        %v3193 = vshll.u32 %v3176, 16
        %v3195 = vrot.slane %v3193, 1
        %v3196 = vsel %vm394, %v3191, %v3195
        %v3198 = vsel %vm309, %v3188, 0
        %v3201 = vsel %vm309, %v3196, 0
        %3203 = vmatprep.subr.bf16.mxu0 0
        %3204 = vmatpush1.bf16.msra.mxu0 0
        %3205 = vmatprep.subr.bf16.mxu0 0
        %3206 = vmatpush1.bf16.msra.mxu0 0
        %3207 = vmatprep.subr.bf16.mxu0 0
        %3208 = vmatpush1.bf16.msra.mxu0 0
        %3209 = vmatprep.subr.bf16.mxu0 0
        %3210 = vmatpush1.bf16.msra.mxu0 0
        %3211 = vmatprep.subr.bf16.mxu0 0
        %3212 = vmatpush1.bf16.msra.mxu0 0
        %3213 = vmatprep.subr.bf16.mxu0 0
        %3214 = vmatpush1.bf16.msra.mxu0 0
        %3215 = vmatprep.subr.bf16.mxu0 0
        %3216 = vmatpush1.bf16.msra.mxu0 0
        %3217 = vmatprep.subr.bf16.mxu0 0
        %3218 = vmatpush1.bf16.msra.mxu0 %v978
        %3219 = vmatprep.subr.bf16.mxu0 0
        %3220 = vmatpush2.bf16.msra.mxu0 0
        %3221 = vmatprep.subr.bf16.mxu0 0
        %3222 = vmatpush2.bf16.msra.mxu0 0
        %3223 = vmatprep.subr.bf16.mxu0 0
        %3224 = vmatpush2.bf16.msra.mxu0 0
        %3225 = vmatprep.subr.bf16.mxu0 0
        %3226 = vmatpush2.bf16.msra.mxu0 0
        %3227 = vmatprep.subr.bf16.mxu0 0
        %3228 = vmatpush2.bf16.msra.mxu0 0
        %3229 = vmatprep.subr.bf16.mxu0 0
        %3230 = vmatpush2.bf16.msra.mxu0 0
        %3231 = vmatprep.subr.bf16.mxu0 0
        %3232 = vmatpush2.bf16.msra.mxu0 0
        %3233 = vmatprep.subr.bf16.mxu0 0
        %3234 = vmatpush2.bf16.msra.mxu0 0
        %3235 = vmatprep.mubr.bf16.mxu0 0
        %3236 = vmatmul.mubr.bf16.gmra.mxu0 %v3198
        %v3237 = vpop.f32.mrf.mxu0
        %v3238 = vadd.f32 0.0, %v3237
        %v3239 = vpop.f32.mrf.mxu0
        %v3240 = vpop.f32.mrf.mxu0
        %v3241 = vadd.f32 0.0, %v3240
        %v3242 = vpop.f32.mrf.mxu0
        %3243 = vmatprep.mubr.bf16.mxu0 0
        %3244 = vmatmul.mubr.bf16.gmra.mxu0 %v3201
        %v3245 = vpop.f32.mrf.mxu0
        %v3246 = vadd.f32 0.0, %v3245
        %v3247 = vpop.f32.mrf.mxu0
        %v3248 = vpop.f32.mrf.mxu0
        %v3249 = vadd.f32 0.0, %v3248
        %v3250 = vpop.f32.mrf.mxu0
        %3251 = vdwg.mxu0
        %v3252 = vadd.f32 %v3155, %v3238
        %v3253 = vadd.f32 %v3156, %v3241
        %v3254 = vadd.f32 %v3157, %v3246
        %v3255 = vadd.f32 %v3158, %v3249
        %v3256 = vld [vmem:[%s3085] sm:$0xe]
        %v3258 = vunpack.c.l.b16 %v3256
        %v3259 = vpack.c.b16 %v3170, %v3258
        %v3260 = vrot.slane %v3259, 1
        %v3261 = vrot.slane %v3175, 1
        %v3262 = vsel %vm492, %v3260, %v3261
        %v3263 = vrot.slane %v3176, 1
        %v3264 = vsel %vm492, %v3261, %v3263
        %v3266 = vsel %vm309, %v3262, 0
        %v3269 = vsel %vm309, %v3264, 0
        %3271 = vmatprep.subr.bf16.mxu0 0
        %3272 = vmatpush1.bf16.msra.mxu0 0
        %3273 = vmatprep.subr.bf16.mxu0 0
        %3274 = vmatpush1.bf16.msra.mxu0 0
        %3275 = vmatprep.subr.bf16.mxu0 0
        %3276 = vmatpush1.bf16.msra.mxu0 0
        %3277 = vmatprep.subr.bf16.mxu0 0
        %3278 = vmatpush1.bf16.msra.mxu0 0
        %3279 = vmatprep.subr.bf16.mxu0 0
        %3280 = vmatpush1.bf16.msra.mxu0 0
        %3281 = vmatprep.subr.bf16.mxu0 0
        %3282 = vmatpush1.bf16.msra.mxu0 0
        %3283 = vmatprep.subr.bf16.mxu0 0
        %3284 = vmatpush1.bf16.msra.mxu0 0
        %3285 = vmatprep.subr.bf16.mxu0 0
        %3286 = vmatpush1.bf16.msra.mxu0 %v1049
        %3287 = vmatprep.subr.bf16.mxu0 0
        %3288 = vmatpush2.bf16.msra.mxu0 0
        %3289 = vmatprep.subr.bf16.mxu0 0
        %3290 = vmatpush2.bf16.msra.mxu0 0
        %3291 = vmatprep.subr.bf16.mxu0 0
        %3292 = vmatpush2.bf16.msra.mxu0 0
        %3293 = vmatprep.subr.bf16.mxu0 0
        %3294 = vmatpush2.bf16.msra.mxu0 0
        %3295 = vmatprep.subr.bf16.mxu0 0
        %3296 = vmatpush2.bf16.msra.mxu0 0
        %3297 = vmatprep.subr.bf16.mxu0 0
        %3298 = vmatpush2.bf16.msra.mxu0 0
        %3299 = vmatprep.subr.bf16.mxu0 0
        %3300 = vmatpush2.bf16.msra.mxu0 0
        %3301 = vmatprep.subr.bf16.mxu0 0
        %3302 = vmatpush2.bf16.msra.mxu0 0
        %3303 = vmatprep.mubr.bf16.mxu0 0
        %3304 = vmatmul.mubr.bf16.gmra.mxu0 %v3266
        %v3305 = vpop.f32.mrf.mxu0
        %v3306 = vadd.f32 0.0, %v3305
        %v3307 = vpop.f32.mrf.mxu0
        %v3308 = vpop.f32.mrf.mxu0
        %v3309 = vadd.f32 0.0, %v3308
        %v3310 = vpop.f32.mrf.mxu0
        %3311 = vmatprep.mubr.bf16.mxu0 0
        %3312 = vmatmul.mubr.bf16.gmra.mxu0 %v3269
        %v3313 = vpop.f32.mrf.mxu0
        %v3314 = vadd.f32 0.0, %v3313
        %v3315 = vpop.f32.mrf.mxu0
        %v3316 = vpop.f32.mrf.mxu0
        %v3317 = vadd.f32 0.0, %v3316
        %v3318 = vpop.f32.mrf.mxu0
        %3319 = vdwg.mxu0
        %v3320 = vadd.f32 %v3252, %v3306
        %v3321 = vadd.f32 %v3253, %v3309
        %v3322 = vadd.f32 %v3254, %v3314
        %v3323 = vadd.f32 %v3255, %v3317
        %v3324 = vmax.f32 %v3320, 0.0
        %v3325 = vmax.f32 %v3321, 0.0
        %v3326 = vmax.f32 %v3322, 0.0
        %v3327 = vmax.f32 %v3323, 0.0
        %v3328 = vpack.c.bf16 %v3325, %v3324
        %v3329 = vpack.c.bf16 %v3327, %v3326
        %v3332 = vunpack.c.l.b16 %v3328
        %v3333 = vunpack.c.h.b16 %v3328
        %v3334 = vunpack.c.l.b16 %v3329
        %v3335 = vunpack.c.h.b16 %v3329
        %v3336 = vpack.c.b16 %v3332, %v3332
        %v3337 = vpack.c.b16 %v3333, %v3333
        %v3338 = vpack.c.b16 %v3334, %v3334
        %v3339 = vpack.c.b16 %v3335, %v3335
        %s3344 = scalar_lea.vmem %s250, 48 [#allocation2]
        %3345 = vst.msk [vmem:[%s3344] sm:$0xf] %vm1124, %v3336
        %3346 = vst.msk [vmem:[%s3344 + $0x4] sm:$0xf] %vm1124, %v3337
        %3347 = vst.msk [vmem:[%s3344 + $0x8] sm:$0xf] %vm1124, %v3338
        %3348 = vst.msk [vmem:[%s3344 + $0xc] sm:$0xf] %vm1124, %v3339
        %v3349 = vld [vmem:[%s2345] sm:$0xf]
        %v3350 = vld [vmem:[%s2345 + $0x4] sm:$0xf]
        %v3351 = vld [vmem:[%s2345 + $0x8] sm:$0xf]
        %v3352 = vld [vmem:[%s2345 + $0xc] sm:$0xf]
        %v3357 = vunpack.c.l.b16 %v3349
        %v3358 = vunpack.c.l.b16 %v3350
        %v3359 = vunpack.c.l.b16 %v3351
        %v3360 = vunpack.c.l.b16 %v3352
        %v3361 = vpack.c.b16 %v3358, %v3357
        %v3362 = vpack.c.b16 %v3360, %v3359
        %v3364 = vsel %vm309, %v3361, 0
        %v3367 = vsel %vm309, %v3362, 0
        %3369 = vmatprep.subr.bf16.mxu0 0
        %3370 = vmatpush1.bf16.msra.mxu0 0
        %3371 = vmatprep.subr.bf16.mxu0 0
        %3372 = vmatpush1.bf16.msra.mxu0 0
        %3373 = vmatprep.subr.bf16.mxu0 0
        %3374 = vmatpush1.bf16.msra.mxu0 0
        %3375 = vmatprep.subr.bf16.mxu0 0
        %3376 = vmatpush1.bf16.msra.mxu0 0
        %3377 = vmatprep.subr.bf16.mxu0 0
        %3378 = vmatpush1.bf16.msra.mxu0 0
        %3379 = vmatprep.subr.bf16.mxu0 0
        %3380 = vmatpush1.bf16.msra.mxu0 0
        %3381 = vmatprep.subr.bf16.mxu0 0
        %3382 = vmatpush1.bf16.msra.mxu0 0
        %3383 = vmatprep.subr.bf16.mxu0 0
        %3384 = vmatpush1.bf16.msra.mxu0 %v321
        %3385 = vmatprep.subr.bf16.mxu0 0
        %3386 = vmatpush2.bf16.msra.mxu0 0
        %3387 = vmatprep.subr.bf16.mxu0 0
        %3388 = vmatpush2.bf16.msra.mxu0 0
        %3389 = vmatprep.subr.bf16.mxu0 0
        %3390 = vmatpush2.bf16.msra.mxu0 0
        %3391 = vmatprep.subr.bf16.mxu0 0
        %3392 = vmatpush2.bf16.msra.mxu0 0
        %3393 = vmatprep.subr.bf16.mxu0 0
        %3394 = vmatpush2.bf16.msra.mxu0 0
        %3395 = vmatprep.subr.bf16.mxu0 0
        %3396 = vmatpush2.bf16.msra.mxu0 0
        %3397 = vmatprep.subr.bf16.mxu0 0
        %3398 = vmatpush2.bf16.msra.mxu0 0
        %3399 = vmatprep.subr.bf16.mxu0 0
        %3400 = vmatpush2.bf16.msra.mxu0 0
        %3401 = vmatprep.mubr.bf16.mxu0 0
        %3402 = vmatmul.mubr.bf16.gmra.mxu0 %v3364
        %v3403 = vpop.f32.mrf.mxu0
        %v3404 = vadd.f32 0.0, %v3403
        %v3405 = vpop.f32.mrf.mxu0
        %v3406 = vpop.f32.mrf.mxu0
        %v3407 = vadd.f32 0.0, %v3406
        %v3408 = vpop.f32.mrf.mxu0
        %3409 = vmatprep.mubr.bf16.mxu0 0
        %3410 = vmatmul.mubr.bf16.gmra.mxu0 %v3367
        %v3411 = vpop.f32.mrf.mxu0
        %v3412 = vadd.f32 0.0, %v3411
        %v3413 = vpop.f32.mrf.mxu0
        %v3414 = vpop.f32.mrf.mxu0
        %v3415 = vadd.f32 0.0, %v3414
        %v3416 = vpop.f32.mrf.mxu0
        %3417 = vdwg.mxu0
        %v3418 = vadd.f32 %v282, %v3404
        %v3419 = vadd.f32 %v282, %v3407
        %v3420 = vadd.f32 %v282, %v3412
        %v3421 = vadd.f32 %v282, %v3415
        %v3422 = vld [vmem:[%s2345] sm:$0xf]
        %v3423 = vld [vmem:[%s2345 + $0x4] sm:$0xf]
        %v3424 = vld [vmem:[%s2345 + $0x8] sm:$0xf]
        %v3425 = vld [vmem:[%s2345 + $0xc] sm:$0xf]
        %v3426 = vld [vmem:[%s2345 + $0x10] sm:$0x1]
        %v3432 = vunpack.c.l.b16 %v3422
        %v3433 = vunpack.c.l.b16 %v3423
        %v3434 = vunpack.c.l.b16 %v3424
        %v3435 = vunpack.c.l.b16 %v3425
        %v3436 = vunpack.c.l.b16 %v3426
        %v3437 = vpack.c.b16 %v3433, %v3432
        %v3438 = vpack.c.b16 %v3435, %v3434
        %v3439 = vpack.c.b16 %v3436, %v3436
        %v3441 = vshrl.u32 %v3437, 16
        %v3443 = vshll.u32 %v3437, 16
        %v3445 = vrot.slane %v3443, 1
        %v3446 = vor.u32 %v3441, %v3445
        %v3448 = vshll.u32 %v3438, 16
        %v3450 = vrot.slane %v3448, 1
        %v3451 = vsel %vm394, %v3446, %v3450
        %v3452 = vshrl.u32 %v3438, 16
        %v3454 = vor.u32 %v3452, %v3450
        %v3456 = vshll.u32 %v3439, 16
        %v3458 = vrot.slane %v3456, 1
        %v3459 = vsel %vm394, %v3454, %v3458
        %v3461 = vsel %vm309, %v3451, 0
        %v3464 = vsel %vm309, %v3459, 0
        %3466 = vmatprep.subr.bf16.mxu0 0
        %3467 = vmatpush1.bf16.msra.mxu0 0
        %3468 = vmatprep.subr.bf16.mxu0 0
        %3469 = vmatpush1.bf16.msra.mxu0 0
        %3470 = vmatprep.subr.bf16.mxu0 0
        %3471 = vmatpush1.bf16.msra.mxu0 0
        %3472 = vmatprep.subr.bf16.mxu0 0
        %3473 = vmatpush1.bf16.msra.mxu0 0
        %3474 = vmatprep.subr.bf16.mxu0 0
        %3475 = vmatpush1.bf16.msra.mxu0 0
        %3476 = vmatprep.subr.bf16.mxu0 0
        %3477 = vmatpush1.bf16.msra.mxu0 0
        %3478 = vmatprep.subr.bf16.mxu0 0
        %3479 = vmatpush1.bf16.msra.mxu0 0
        %3480 = vmatprep.subr.bf16.mxu0 0
        %3481 = vmatpush1.bf16.msra.mxu0 %v433
        %3482 = vmatprep.subr.bf16.mxu0 0
        %3483 = vmatpush2.bf16.msra.mxu0 0
        %3484 = vmatprep.subr.bf16.mxu0 0
        %3485 = vmatpush2.bf16.msra.mxu0 0
        %3486 = vmatprep.subr.bf16.mxu0 0
        %3487 = vmatpush2.bf16.msra.mxu0 0
        %3488 = vmatprep.subr.bf16.mxu0 0
        %3489 = vmatpush2.bf16.msra.mxu0 0
        %3490 = vmatprep.subr.bf16.mxu0 0
        %3491 = vmatpush2.bf16.msra.mxu0 0
        %3492 = vmatprep.subr.bf16.mxu0 0
        %3493 = vmatpush2.bf16.msra.mxu0 0
        %3494 = vmatprep.subr.bf16.mxu0 0
        %3495 = vmatpush2.bf16.msra.mxu0 0
        %3496 = vmatprep.subr.bf16.mxu0 0
        %3497 = vmatpush2.bf16.msra.mxu0 0
        %3498 = vmatprep.mubr.bf16.mxu0 0
        %3499 = vmatmul.mubr.bf16.gmra.mxu0 %v3461
        %v3500 = vpop.f32.mrf.mxu0
        %v3501 = vadd.f32 0.0, %v3500
        %v3502 = vpop.f32.mrf.mxu0
        %v3503 = vpop.f32.mrf.mxu0
        %v3504 = vadd.f32 0.0, %v3503
        %v3505 = vpop.f32.mrf.mxu0
        %3506 = vmatprep.mubr.bf16.mxu0 0
        %3507 = vmatmul.mubr.bf16.gmra.mxu0 %v3464
        %v3508 = vpop.f32.mrf.mxu0
        %v3509 = vadd.f32 0.0, %v3508
        %v3510 = vpop.f32.mrf.mxu0
        %v3511 = vpop.f32.mrf.mxu0
        %v3512 = vadd.f32 0.0, %v3511
        %v3513 = vpop.f32.mrf.mxu0
        %3514 = vdwg.mxu0
        %v3515 = vadd.f32 %v3418, %v3501
        %v3516 = vadd.f32 %v3419, %v3504
        %v3517 = vadd.f32 %v3420, %v3509
        %v3518 = vadd.f32 %v3421, %v3512
        %v3519 = vld [vmem:[%s2345] sm:$0xe]
        %v3521 = vunpack.c.l.b16 %v3519
        %v3522 = vpack.c.b16 %v3433, %v3521
        %v3523 = vrot.slane %v3522, 1
        %v3524 = vrot.slane %v3438, 1
        %v3525 = vsel %vm492, %v3523, %v3524
        %v3526 = vrot.slane %v3439, 1
        %v3527 = vsel %vm492, %v3524, %v3526
        %v3529 = vsel %vm309, %v3525, 0
        %v3532 = vsel %vm309, %v3527, 0
        %3534 = vmatprep.subr.bf16.mxu0 0
        %3535 = vmatpush1.bf16.msra.mxu0 0
        %3536 = vmatprep.subr.bf16.mxu0 0
        %3537 = vmatpush1.bf16.msra.mxu0 0
        %3538 = vmatprep.subr.bf16.mxu0 0
        %3539 = vmatpush1.bf16.msra.mxu0 0
        %3540 = vmatprep.subr.bf16.mxu0 0
        %3541 = vmatpush1.bf16.msra.mxu0 0
        %3542 = vmatprep.subr.bf16.mxu0 0
        %3543 = vmatpush1.bf16.msra.mxu0 0
        %3544 = vmatprep.subr.bf16.mxu0 0
        %3545 = vmatpush1.bf16.msra.mxu0 0
        %3546 = vmatprep.subr.bf16.mxu0 0
        %3547 = vmatpush1.bf16.msra.mxu0 0
        %3548 = vmatprep.subr.bf16.mxu0 0
        %3549 = vmatpush1.bf16.msra.mxu0 %v511
        %3550 = vmatprep.subr.bf16.mxu0 0
        %3551 = vmatpush2.bf16.msra.mxu0 0
        %3552 = vmatprep.subr.bf16.mxu0 0
        %3553 = vmatpush2.bf16.msra.mxu0 0
        %3554 = vmatprep.subr.bf16.mxu0 0
        %3555 = vmatpush2.bf16.msra.mxu0 0
        %3556 = vmatprep.subr.bf16.mxu0 0
        %3557 = vmatpush2.bf16.msra.mxu0 0
        %3558 = vmatprep.subr.bf16.mxu0 0
        %3559 = vmatpush2.bf16.msra.mxu0 0
        %3560 = vmatprep.subr.bf16.mxu0 0
        %3561 = vmatpush2.bf16.msra.mxu0 0
        %3562 = vmatprep.subr.bf16.mxu0 0
        %3563 = vmatpush2.bf16.msra.mxu0 0
        %3564 = vmatprep.subr.bf16.mxu0 0
        %3565 = vmatpush2.bf16.msra.mxu0 0
        %3566 = vmatprep.mubr.bf16.mxu0 0
        %3567 = vmatmul.mubr.bf16.gmra.mxu0 %v3529
        %v3568 = vpop.f32.mrf.mxu0
        %v3569 = vadd.f32 0.0, %v3568
        %v3570 = vpop.f32.mrf.mxu0
        %v3571 = vpop.f32.mrf.mxu0
        %v3572 = vadd.f32 0.0, %v3571
        %v3573 = vpop.f32.mrf.mxu0
        %3574 = vmatprep.mubr.bf16.mxu0 0
        %3575 = vmatmul.mubr.bf16.gmra.mxu0 %v3532
        %v3576 = vpop.f32.mrf.mxu0
        %v3577 = vadd.f32 0.0, %v3576
        %v3578 = vpop.f32.mrf.mxu0
        %v3579 = vpop.f32.mrf.mxu0
        %v3580 = vadd.f32 0.0, %v3579
        %v3581 = vpop.f32.mrf.mxu0
        %3582 = vdwg.mxu0
        %v3583 = vadd.f32 %v3515, %v3569
        %v3584 = vadd.f32 %v3516, %v3572
        %v3585 = vadd.f32 %v3517, %v3577
        %v3586 = vadd.f32 %v3518, %v3580
        %v3587 = vld [vmem:[%s3085] sm:$0xf]
        %v3588 = vld [vmem:[%s3085 + $0x4] sm:$0xf]
        %v3589 = vld [vmem:[%s3085 + $0x8] sm:$0xf]
        %v3590 = vld [vmem:[%s3085 + $0xc] sm:$0xf]
        %v3595 = vunpack.c.l.b16 %v3587
        %v3596 = vunpack.c.l.b16 %v3588
        %v3597 = vunpack.c.l.b16 %v3589
        %v3598 = vunpack.c.l.b16 %v3590
        %v3599 = vpack.c.b16 %v3596, %v3595
        %v3600 = vpack.c.b16 %v3598, %v3597
        %v3602 = vsel %vm309, %v3599, 0
        %v3605 = vsel %vm309, %v3600, 0
        %3607 = vmatprep.subr.bf16.mxu0 0
        %3608 = vmatpush1.bf16.msra.mxu0 0
        %3609 = vmatprep.subr.bf16.mxu0 0
        %3610 = vmatpush1.bf16.msra.mxu0 0
        %3611 = vmatprep.subr.bf16.mxu0 0
        %3612 = vmatpush1.bf16.msra.mxu0 0
        %3613 = vmatprep.subr.bf16.mxu0 0
        %3614 = vmatpush1.bf16.msra.mxu0 0
        %3615 = vmatprep.subr.bf16.mxu0 0
        %3616 = vmatpush1.bf16.msra.mxu0 0
        %3617 = vmatprep.subr.bf16.mxu0 0
        %3618 = vmatpush1.bf16.msra.mxu0 0
        %3619 = vmatprep.subr.bf16.mxu0 0
        %3620 = vmatpush1.bf16.msra.mxu0 0
        %3621 = vmatprep.subr.bf16.mxu0 0
        %3622 = vmatpush1.bf16.msra.mxu0 %v598
        %3623 = vmatprep.subr.bf16.mxu0 0
        %3624 = vmatpush2.bf16.msra.mxu0 0
        %3625 = vmatprep.subr.bf16.mxu0 0
        %3626 = vmatpush2.bf16.msra.mxu0 0
        %3627 = vmatprep.subr.bf16.mxu0 0
        %3628 = vmatpush2.bf16.msra.mxu0 0
        %3629 = vmatprep.subr.bf16.mxu0 0
        %3630 = vmatpush2.bf16.msra.mxu0 0
        %3631 = vmatprep.subr.bf16.mxu0 0
        %3632 = vmatpush2.bf16.msra.mxu0 0
        %3633 = vmatprep.subr.bf16.mxu0 0
        %3634 = vmatpush2.bf16.msra.mxu0 0
        %3635 = vmatprep.subr.bf16.mxu0 0
        %3636 = vmatpush2.bf16.msra.mxu0 0
        %3637 = vmatprep.subr.bf16.mxu0 0
        %3638 = vmatpush2.bf16.msra.mxu0 0
        %3639 = vmatprep.mubr.bf16.mxu0 0
        %3640 = vmatmul.mubr.bf16.gmra.mxu0 %v3602
        %v3641 = vpop.f32.mrf.mxu0
        %v3642 = vadd.f32 0.0, %v3641
        %v3643 = vpop.f32.mrf.mxu0
        %v3644 = vpop.f32.mrf.mxu0
        %v3645 = vadd.f32 0.0, %v3644
        %v3646 = vpop.f32.mrf.mxu0
        %3647 = vmatprep.mubr.bf16.mxu0 0
        %3648 = vmatmul.mubr.bf16.gmra.mxu0 %v3605
        %v3649 = vpop.f32.mrf.mxu0
        %v3650 = vadd.f32 0.0, %v3649
        %v3651 = vpop.f32.mrf.mxu0
        %v3652 = vpop.f32.mrf.mxu0
        %v3653 = vadd.f32 0.0, %v3652
        %v3654 = vpop.f32.mrf.mxu0
        %3655 = vdwg.mxu0
        %v3656 = vadd.f32 %v3583, %v3642
        %v3657 = vadd.f32 %v3584, %v3645
        %v3658 = vadd.f32 %v3585, %v3650
        %v3659 = vadd.f32 %v3586, %v3653
        %v3660 = vld [vmem:[%s3085] sm:$0xf]
        %v3661 = vld [vmem:[%s3085 + $0x4] sm:$0xf]
        %v3662 = vld [vmem:[%s3085 + $0x8] sm:$0xf]
        %v3663 = vld [vmem:[%s3085 + $0xc] sm:$0xf]
        %v3664 = vld [vmem:[%s3085 + $0x10] sm:$0x1]
        %v3670 = vunpack.c.l.b16 %v3660
        %v3671 = vunpack.c.l.b16 %v3661
        %v3672 = vunpack.c.l.b16 %v3662
        %v3673 = vunpack.c.l.b16 %v3663
        %v3674 = vunpack.c.l.b16 %v3664
        %v3675 = vpack.c.b16 %v3671, %v3670
        %v3676 = vpack.c.b16 %v3673, %v3672
        %v3677 = vpack.c.b16 %v3674, %v3674
        %v3679 = vshrl.u32 %v3675, 16
        %v3681 = vshll.u32 %v3675, 16
        %v3683 = vrot.slane %v3681, 1
        %v3684 = vor.u32 %v3679, %v3683
        %v3686 = vshll.u32 %v3676, 16
        %v3688 = vrot.slane %v3686, 1
        %v3689 = vsel %vm394, %v3684, %v3688
        %v3690 = vshrl.u32 %v3676, 16
        %v3692 = vor.u32 %v3690, %v3688
        %v3694 = vshll.u32 %v3677, 16
        %v3696 = vrot.slane %v3694, 1
        %v3697 = vsel %vm394, %v3692, %v3696
        %v3699 = vsel %vm309, %v3689, 0
        %v3702 = vsel %vm309, %v3697, 0
        %3704 = vmatprep.subr.bf16.mxu0 0
        %3705 = vmatpush1.bf16.msra.mxu0 0
        %3706 = vmatprep.subr.bf16.mxu0 0
        %3707 = vmatpush1.bf16.msra.mxu0 0
        %3708 = vmatprep.subr.bf16.mxu0 0
        %3709 = vmatpush1.bf16.msra.mxu0 0
        %3710 = vmatprep.subr.bf16.mxu0 0
        %3711 = vmatpush1.bf16.msra.mxu0 0
        %3712 = vmatprep.subr.bf16.mxu0 0
        %3713 = vmatpush1.bf16.msra.mxu0 0
        %3714 = vmatprep.subr.bf16.mxu0 0
        %3715 = vmatpush1.bf16.msra.mxu0 0
        %3716 = vmatprep.subr.bf16.mxu0 0
        %3717 = vmatpush1.bf16.msra.mxu0 0
        %3718 = vmatprep.subr.bf16.mxu0 0
        %3719 = vmatpush1.bf16.msra.mxu0 %v702
        %3720 = vmatprep.subr.bf16.mxu0 0
        %3721 = vmatpush2.bf16.msra.mxu0 0
        %3722 = vmatprep.subr.bf16.mxu0 0
        %3723 = vmatpush2.bf16.msra.mxu0 0
        %3724 = vmatprep.subr.bf16.mxu0 0
        %3725 = vmatpush2.bf16.msra.mxu0 0
        %3726 = vmatprep.subr.bf16.mxu0 0
        %3727 = vmatpush2.bf16.msra.mxu0 0
        %3728 = vmatprep.subr.bf16.mxu0 0
        %3729 = vmatpush2.bf16.msra.mxu0 0
        %3730 = vmatprep.subr.bf16.mxu0 0
        %3731 = vmatpush2.bf16.msra.mxu0 0
        %3732 = vmatprep.subr.bf16.mxu0 0
        %3733 = vmatpush2.bf16.msra.mxu0 0
        %3734 = vmatprep.subr.bf16.mxu0 0
        %3735 = vmatpush2.bf16.msra.mxu0 0
        %3736 = vmatprep.mubr.bf16.mxu0 0
        %3737 = vmatmul.mubr.bf16.gmra.mxu0 %v3699
        %v3738 = vpop.f32.mrf.mxu0
        %v3739 = vadd.f32 0.0, %v3738
        %v3740 = vpop.f32.mrf.mxu0
        %v3741 = vpop.f32.mrf.mxu0
        %v3742 = vadd.f32 0.0, %v3741
        %v3743 = vpop.f32.mrf.mxu0
        %3744 = vmatprep.mubr.bf16.mxu0 0
        %3745 = vmatmul.mubr.bf16.gmra.mxu0 %v3702
        %v3746 = vpop.f32.mrf.mxu0
        %v3747 = vadd.f32 0.0, %v3746
        %v3748 = vpop.f32.mrf.mxu0
        %v3749 = vpop.f32.mrf.mxu0
        %v3750 = vadd.f32 0.0, %v3749
        %v3751 = vpop.f32.mrf.mxu0
        %3752 = vdwg.mxu0
        %v3753 = vadd.f32 %v3656, %v3739
        %v3754 = vadd.f32 %v3657, %v3742
        %v3755 = vadd.f32 %v3658, %v3747
        %v3756 = vadd.f32 %v3659, %v3750
        %v3757 = vld [vmem:[%s3085] sm:$0xe]
        %v3759 = vunpack.c.l.b16 %v3757
        %v3760 = vpack.c.b16 %v3671, %v3759
        %v3761 = vrot.slane %v3760, 1
        %v3762 = vrot.slane %v3676, 1
        %v3763 = vsel %vm492, %v3761, %v3762
        %v3764 = vrot.slane %v3677, 1
        %v3765 = vsel %vm492, %v3762, %v3764
        %v3767 = vsel %vm309, %v3763, 0
        %v3770 = vsel %vm309, %v3765, 0
        %3772 = vmatprep.subr.bf16.mxu0 0
        %3773 = vmatpush1.bf16.msra.mxu0 0
        %3774 = vmatprep.subr.bf16.mxu0 0
        %3775 = vmatpush1.bf16.msra.mxu0 0
        %3776 = vmatprep.subr.bf16.mxu0 0
        %3777 = vmatpush1.bf16.msra.mxu0 0
        %3778 = vmatprep.subr.bf16.mxu0 0
        %3779 = vmatpush1.bf16.msra.mxu0 0
        %3780 = vmatprep.subr.bf16.mxu0 0
        %3781 = vmatpush1.bf16.msra.mxu0 0
        %3782 = vmatprep.subr.bf16.mxu0 0
        %3783 = vmatpush1.bf16.msra.mxu0 0
        %3784 = vmatprep.subr.bf16.mxu0 0
        %3785 = vmatpush1.bf16.msra.mxu0 0
        %3786 = vmatprep.subr.bf16.mxu0 0
        %3787 = vmatpush1.bf16.msra.mxu0 %v786
        %3788 = vmatprep.subr.bf16.mxu0 0
        %3789 = vmatpush2.bf16.msra.mxu0 0
        %3790 = vmatprep.subr.bf16.mxu0 0
        %3791 = vmatpush2.bf16.msra.mxu0 0
        %3792 = vmatprep.subr.bf16.mxu0 0
        %3793 = vmatpush2.bf16.msra.mxu0 0
        %3794 = vmatprep.subr.bf16.mxu0 0
        %3795 = vmatpush2.bf16.msra.mxu0 0
        %3796 = vmatprep.subr.bf16.mxu0 0
        %3797 = vmatpush2.bf16.msra.mxu0 0
        %3798 = vmatprep.subr.bf16.mxu0 0
        %3799 = vmatpush2.bf16.msra.mxu0 0
        %3800 = vmatprep.subr.bf16.mxu0 0
        %3801 = vmatpush2.bf16.msra.mxu0 0
        %3802 = vmatprep.subr.bf16.mxu0 0
        %3803 = vmatpush2.bf16.msra.mxu0 0
        %3804 = vmatprep.mubr.bf16.mxu0 0
        %3805 = vmatmul.mubr.bf16.gmra.mxu0 %v3767
        %v3806 = vpop.f32.mrf.mxu0
        %v3807 = vadd.f32 0.0, %v3806
        %v3808 = vpop.f32.mrf.mxu0
        %v3809 = vpop.f32.mrf.mxu0
        %v3810 = vadd.f32 0.0, %v3809
        %v3811 = vpop.f32.mrf.mxu0
        %3812 = vmatprep.mubr.bf16.mxu0 0
        %3813 = vmatmul.mubr.bf16.gmra.mxu0 %v3770
        %v3814 = vpop.f32.mrf.mxu0
        %v3815 = vadd.f32 0.0, %v3814
        %v3816 = vpop.f32.mrf.mxu0
        %v3817 = vpop.f32.mrf.mxu0
        %v3818 = vadd.f32 0.0, %v3817
        %v3819 = vpop.f32.mrf.mxu0
        %3820 = vdwg.mxu0
        %v3821 = vadd.f32 %v3753, %v3807
        %v3822 = vadd.f32 %v3754, %v3810
        %v3823 = vadd.f32 %v3755, %v3815
        %v3824 = vadd.f32 %v3756, %v3818
        %s3825 = scalar_lea.vmem %s260, 120
        %v3826 = vld [vmem:[%s3825] sm:$0xf]
        %v3827 = vld [vmem:[%s3825 + $0x4] sm:$0xf]
        %v3828 = vld [vmem:[%s3825 + $0x8] sm:$0xf]
        %v3829 = vld [vmem:[%s3825 + $0xc] sm:$0xf]
        %v3834 = vunpack.c.l.b16 %v3826
        %v3835 = vunpack.c.l.b16 %v3827
        %v3836 = vunpack.c.l.b16 %v3828
        %v3837 = vunpack.c.l.b16 %v3829
        %v3838 = vpack.c.b16 %v3835, %v3834
        %v3839 = vpack.c.b16 %v3837, %v3836
        %v3841 = vsel %vm309, %v3838, 0
        %v3844 = vsel %vm309, %v3839, 0
        %3846 = vmatprep.subr.bf16.mxu0 0
        %3847 = vmatpush1.bf16.msra.mxu0 0
        %3848 = vmatprep.subr.bf16.mxu0 0
        %3849 = vmatpush1.bf16.msra.mxu0 0
        %3850 = vmatprep.subr.bf16.mxu0 0
        %3851 = vmatpush1.bf16.msra.mxu0 0
        %3852 = vmatprep.subr.bf16.mxu0 0
        %3853 = vmatpush1.bf16.msra.mxu0 0
        %3854 = vmatprep.subr.bf16.mxu0 0
        %3855 = vmatpush1.bf16.msra.mxu0 0
        %3856 = vmatprep.subr.bf16.mxu0 0
        %3857 = vmatpush1.bf16.msra.mxu0 0
        %3858 = vmatprep.subr.bf16.mxu0 0
        %3859 = vmatpush1.bf16.msra.mxu0 0
        %3860 = vmatprep.subr.bf16.mxu0 0
        %3861 = vmatpush1.bf16.msra.mxu0 %v867
        %3862 = vmatprep.subr.bf16.mxu0 0
        %3863 = vmatpush2.bf16.msra.mxu0 0
        %3864 = vmatprep.subr.bf16.mxu0 0
        %3865 = vmatpush2.bf16.msra.mxu0 0
        %3866 = vmatprep.subr.bf16.mxu0 0
        %3867 = vmatpush2.bf16.msra.mxu0 0
        %3868 = vmatprep.subr.bf16.mxu0 0
        %3869 = vmatpush2.bf16.msra.mxu0 0
        %3870 = vmatprep.subr.bf16.mxu0 0
        %3871 = vmatpush2.bf16.msra.mxu0 0
        %3872 = vmatprep.subr.bf16.mxu0 0
        %3873 = vmatpush2.bf16.msra.mxu0 0
        %3874 = vmatprep.subr.bf16.mxu0 0
        %3875 = vmatpush2.bf16.msra.mxu0 0
        %3876 = vmatprep.subr.bf16.mxu0 0
        %3877 = vmatpush2.bf16.msra.mxu0 0
        %3878 = vmatprep.mubr.bf16.mxu0 0
        %3879 = vmatmul.mubr.bf16.gmra.mxu0 %v3841
        %v3880 = vpop.f32.mrf.mxu0
        %v3881 = vadd.f32 0.0, %v3880
        %v3882 = vpop.f32.mrf.mxu0
        %v3883 = vpop.f32.mrf.mxu0
        %v3884 = vadd.f32 0.0, %v3883
        %v3885 = vpop.f32.mrf.mxu0
        %3886 = vmatprep.mubr.bf16.mxu0 0
        %3887 = vmatmul.mubr.bf16.gmra.mxu0 %v3844
        %v3888 = vpop.f32.mrf.mxu0
        %v3889 = vadd.f32 0.0, %v3888
        %v3890 = vpop.f32.mrf.mxu0
        %v3891 = vpop.f32.mrf.mxu0
        %v3892 = vadd.f32 0.0, %v3891
        %v3893 = vpop.f32.mrf.mxu0
        %3894 = vdwg.mxu0
        %v3895 = vadd.f32 %v3821, %v3881
        %v3896 = vadd.f32 %v3822, %v3884
        %v3897 = vadd.f32 %v3823, %v3889
        %v3898 = vadd.f32 %v3824, %v3892
        %v3899 = vld [vmem:[%s3825] sm:$0xf]
        %v3900 = vld [vmem:[%s3825 + $0x4] sm:$0xf]
        %v3901 = vld [vmem:[%s3825 + $0x8] sm:$0xf]
        %v3902 = vld [vmem:[%s3825 + $0xc] sm:$0xf]
        %v3903 = vld [vmem:[%s3825 + $0x10] sm:$0x1]
        %v3909 = vunpack.c.l.b16 %v3899
        %v3910 = vunpack.c.l.b16 %v3900
        %v3911 = vunpack.c.l.b16 %v3901
        %v3912 = vunpack.c.l.b16 %v3902
        %v3913 = vunpack.c.l.b16 %v3903
        %v3914 = vpack.c.b16 %v3910, %v3909
        %v3915 = vpack.c.b16 %v3912, %v3911
        %v3916 = vpack.c.b16 %v3913, %v3913
        %v3918 = vshrl.u32 %v3914, 16
        %v3920 = vshll.u32 %v3914, 16
        %v3922 = vrot.slane %v3920, 1
        %v3923 = vor.u32 %v3918, %v3922
        %v3925 = vshll.u32 %v3915, 16
        %v3927 = vrot.slane %v3925, 1
        %v3928 = vsel %vm394, %v3923, %v3927
        %v3929 = vshrl.u32 %v3915, 16
        %v3931 = vor.u32 %v3929, %v3927
        %v3933 = vshll.u32 %v3916, 16
        %v3935 = vrot.slane %v3933, 1
        %v3936 = vsel %vm394, %v3931, %v3935
        %v3938 = vsel %vm309, %v3928, 0
        %v3941 = vsel %vm309, %v3936, 0
        %3943 = vmatprep.subr.bf16.mxu0 0
        %3944 = vmatpush1.bf16.msra.mxu0 0
        %3945 = vmatprep.subr.bf16.mxu0 0
        %3946 = vmatpush1.bf16.msra.mxu0 0
        %3947 = vmatprep.subr.bf16.mxu0 0
        %3948 = vmatpush1.bf16.msra.mxu0 0
        %3949 = vmatprep.subr.bf16.mxu0 0
        %3950 = vmatpush1.bf16.msra.mxu0 0
        %3951 = vmatprep.subr.bf16.mxu0 0
        %3952 = vmatpush1.bf16.msra.mxu0 0
        %3953 = vmatprep.subr.bf16.mxu0 0
        %3954 = vmatpush1.bf16.msra.mxu0 0
        %3955 = vmatprep.subr.bf16.mxu0 0
        %3956 = vmatpush1.bf16.msra.mxu0 0
        %3957 = vmatprep.subr.bf16.mxu0 0
        %3958 = vmatpush1.bf16.msra.mxu0 %v978
        %3959 = vmatprep.subr.bf16.mxu0 0
        %3960 = vmatpush2.bf16.msra.mxu0 0
        %3961 = vmatprep.subr.bf16.mxu0 0
        %3962 = vmatpush2.bf16.msra.mxu0 0
        %3963 = vmatprep.subr.bf16.mxu0 0
        %3964 = vmatpush2.bf16.msra.mxu0 0
        %3965 = vmatprep.subr.bf16.mxu0 0
        %3966 = vmatpush2.bf16.msra.mxu0 0
        %3967 = vmatprep.subr.bf16.mxu0 0
        %3968 = vmatpush2.bf16.msra.mxu0 0
        %3969 = vmatprep.subr.bf16.mxu0 0
        %3970 = vmatpush2.bf16.msra.mxu0 0
        %3971 = vmatprep.subr.bf16.mxu0 0
        %3972 = vmatpush2.bf16.msra.mxu0 0
        %3973 = vmatprep.subr.bf16.mxu0 0
        %3974 = vmatpush2.bf16.msra.mxu0 0
        %3975 = vmatprep.mubr.bf16.mxu0 0
        %3976 = vmatmul.mubr.bf16.gmra.mxu0 %v3938
        %v3977 = vpop.f32.mrf.mxu0
        %v3978 = vadd.f32 0.0, %v3977
        %v3979 = vpop.f32.mrf.mxu0
        %v3980 = vpop.f32.mrf.mxu0
        %v3981 = vadd.f32 0.0, %v3980
        %v3982 = vpop.f32.mrf.mxu0
        %3983 = vmatprep.mubr.bf16.mxu0 0
        %3984 = vmatmul.mubr.bf16.gmra.mxu0 %v3941
        %v3985 = vpop.f32.mrf.mxu0
        %v3986 = vadd.f32 0.0, %v3985
        %v3987 = vpop.f32.mrf.mxu0
        %v3988 = vpop.f32.mrf.mxu0
        %v3989 = vadd.f32 0.0, %v3988
        %v3990 = vpop.f32.mrf.mxu0
        %3991 = vdwg.mxu0
        %v3992 = vadd.f32 %v3895, %v3978
        %v3993 = vadd.f32 %v3896, %v3981
        %v3994 = vadd.f32 %v3897, %v3986
        %v3995 = vadd.f32 %v3898, %v3989
        %v3996 = vld [vmem:[%s3825] sm:$0xe]
        %v3998 = vunpack.c.l.b16 %v3996
        %v3999 = vpack.c.b16 %v3910, %v3998
        %v4000 = vrot.slane %v3999, 1
        %v4001 = vrot.slane %v3915, 1
        %v4002 = vsel %vm492, %v4000, %v4001
        %v4003 = vrot.slane %v3916, 1
        %v4004 = vsel %vm492, %v4001, %v4003
        %v4006 = vsel %vm309, %v4002, 0
        %v4009 = vsel %vm309, %v4004, 0
        %4011 = vmatprep.subr.bf16.mxu0 0
        %4012 = vmatpush1.bf16.msra.mxu0 0
        %4013 = vmatprep.subr.bf16.mxu0 0
        %4014 = vmatpush1.bf16.msra.mxu0 0
        %4015 = vmatprep.subr.bf16.mxu0 0
        %4016 = vmatpush1.bf16.msra.mxu0 0
        %4017 = vmatprep.subr.bf16.mxu0 0
        %4018 = vmatpush1.bf16.msra.mxu0 0
        %4019 = vmatprep.subr.bf16.mxu0 0
        %4020 = vmatpush1.bf16.msra.mxu0 0
        %4021 = vmatprep.subr.bf16.mxu0 0
        %4022 = vmatpush1.bf16.msra.mxu0 0
        %4023 = vmatprep.subr.bf16.mxu0 0
        %4024 = vmatpush1.bf16.msra.mxu0 0
        %4025 = vmatprep.subr.bf16.mxu0 0
        %4026 = vmatpush1.bf16.msra.mxu0 %v1049
        %4027 = vmatprep.subr.bf16.mxu0 0
        %4028 = vmatpush2.bf16.msra.mxu0 0
        %4029 = vmatprep.subr.bf16.mxu0 0
        %4030 = vmatpush2.bf16.msra.mxu0 0
        %4031 = vmatprep.subr.bf16.mxu0 0
        %4032 = vmatpush2.bf16.msra.mxu0 0
        %4033 = vmatprep.subr.bf16.mxu0 0
        %4034 = vmatpush2.bf16.msra.mxu0 0
        %4035 = vmatprep.subr.bf16.mxu0 0
        %4036 = vmatpush2.bf16.msra.mxu0 0
        %4037 = vmatprep.subr.bf16.mxu0 0
        %4038 = vmatpush2.bf16.msra.mxu0 0
        %4039 = vmatprep.subr.bf16.mxu0 0
        %4040 = vmatpush2.bf16.msra.mxu0 0
        %4041 = vmatprep.subr.bf16.mxu0 0
        %4042 = vmatpush2.bf16.msra.mxu0 0
        %4043 = vmatprep.mubr.bf16.mxu0 0
        %4044 = vmatmul.mubr.bf16.gmra.mxu0 %v4006
        %v4045 = vpop.f32.mrf.mxu0
        %v4046 = vadd.f32 0.0, %v4045
        %v4047 = vpop.f32.mrf.mxu0
        %v4048 = vpop.f32.mrf.mxu0
        %v4049 = vadd.f32 0.0, %v4048
        %v4050 = vpop.f32.mrf.mxu0
        %4051 = vmatprep.mubr.bf16.mxu0 0
        %4052 = vmatmul.mubr.bf16.gmra.mxu0 %v4009
        %v4053 = vpop.f32.mrf.mxu0
        %v4054 = vadd.f32 0.0, %v4053
        %v4055 = vpop.f32.mrf.mxu0
        %v4056 = vpop.f32.mrf.mxu0
        %v4057 = vadd.f32 0.0, %v4056
        %v4058 = vpop.f32.mrf.mxu0
        %4059 = vdwg.mxu0
        %v4060 = vadd.f32 %v3992, %v4046
        %v4061 = vadd.f32 %v3993, %v4049
        %v4062 = vadd.f32 %v3994, %v4054
        %v4063 = vadd.f32 %v3995, %v4057
        %v4064 = vmax.f32 %v4060, 0.0
        %v4065 = vmax.f32 %v4061, 0.0
        %v4066 = vmax.f32 %v4062, 0.0
        %v4067 = vmax.f32 %v4063, 0.0
        %v4068 = vpack.c.bf16 %v4065, %v4064
        %v4069 = vpack.c.bf16 %v4067, %v4066
        %v4072 = vunpack.c.l.b16 %v4068
        %v4073 = vunpack.c.h.b16 %v4068
        %v4074 = vunpack.c.l.b16 %v4069
        %v4075 = vunpack.c.h.b16 %v4069
        %v4076 = vpack.c.b16 %v4072, %v4072
        %v4077 = vpack.c.b16 %v4073, %v4073
        %v4078 = vpack.c.b16 %v4074, %v4074
        %v4079 = vpack.c.b16 %v4075, %v4075
        %s4084 = scalar_lea.vmem %s250, 64 [#allocation2]
        %4085 = vst.msk [vmem:[%s4084] sm:$0xf] %vm1124, %v4076
        %4086 = vst.msk [vmem:[%s4084 + $0x4] sm:$0xf] %vm1124, %v4077
        %4087 = vst.msk [vmem:[%s4084 + $0x8] sm:$0xf] %vm1124, %v4078
        %4088 = vst.msk [vmem:[%s4084 + $0xc] sm:$0xf] %vm1124, %v4079
        %v4089 = vld [vmem:[%s3085] sm:$0xf]
        %v4090 = vld [vmem:[%s3085 + $0x4] sm:$0xf]
        %v4091 = vld [vmem:[%s3085 + $0x8] sm:$0xf]
        %v4092 = vld [vmem:[%s3085 + $0xc] sm:$0xf]
        %v4097 = vunpack.c.l.b16 %v4089
        %v4098 = vunpack.c.l.b16 %v4090
        %v4099 = vunpack.c.l.b16 %v4091
        %v4100 = vunpack.c.l.b16 %v4092
        %v4101 = vpack.c.b16 %v4098, %v4097
        %v4102 = vpack.c.b16 %v4100, %v4099
        %v4104 = vsel %vm309, %v4101, 0
        %v4107 = vsel %vm309, %v4102, 0
        %4109 = vmatprep.subr.bf16.mxu0 0
        %4110 = vmatpush1.bf16.msra.mxu0 0
        %4111 = vmatprep.subr.bf16.mxu0 0
        %4112 = vmatpush1.bf16.msra.mxu0 0
        %4113 = vmatprep.subr.bf16.mxu0 0
        %4114 = vmatpush1.bf16.msra.mxu0 0
        %4115 = vmatprep.subr.bf16.mxu0 0
        %4116 = vmatpush1.bf16.msra.mxu0 0
        %4117 = vmatprep.subr.bf16.mxu0 0
        %4118 = vmatpush1.bf16.msra.mxu0 0
        %4119 = vmatprep.subr.bf16.mxu0 0
        %4120 = vmatpush1.bf16.msra.mxu0 0
        %4121 = vmatprep.subr.bf16.mxu0 0
        %4122 = vmatpush1.bf16.msra.mxu0 0
        %4123 = vmatprep.subr.bf16.mxu0 0
        %4124 = vmatpush1.bf16.msra.mxu0 %v321
        %4125 = vmatprep.subr.bf16.mxu0 0
        %4126 = vmatpush2.bf16.msra.mxu0 0
        %4127 = vmatprep.subr.bf16.mxu0 0
        %4128 = vmatpush2.bf16.msra.mxu0 0
        %4129 = vmatprep.subr.bf16.mxu0 0
        %4130 = vmatpush2.bf16.msra.mxu0 0
        %4131 = vmatprep.subr.bf16.mxu0 0
        %4132 = vmatpush2.bf16.msra.mxu0 0
        %4133 = vmatprep.subr.bf16.mxu0 0
        %4134 = vmatpush2.bf16.msra.mxu0 0
        %4135 = vmatprep.subr.bf16.mxu0 0
        %4136 = vmatpush2.bf16.msra.mxu0 0
        %4137 = vmatprep.subr.bf16.mxu0 0
        %4138 = vmatpush2.bf16.msra.mxu0 0
        %4139 = vmatprep.subr.bf16.mxu0 0
        %4140 = vmatpush2.bf16.msra.mxu0 0
        %4141 = vmatprep.mubr.bf16.mxu0 0
        %4142 = vmatmul.mubr.bf16.gmra.mxu0 %v4104
        %v4143 = vpop.f32.mrf.mxu0
        %v4144 = vadd.f32 0.0, %v4143
        %v4145 = vpop.f32.mrf.mxu0
        %v4146 = vpop.f32.mrf.mxu0
        %v4147 = vadd.f32 0.0, %v4146
        %v4148 = vpop.f32.mrf.mxu0
        %4149 = vmatprep.mubr.bf16.mxu0 0
        %4150 = vmatmul.mubr.bf16.gmra.mxu0 %v4107
        %v4151 = vpop.f32.mrf.mxu0
        %v4152 = vadd.f32 0.0, %v4151
        %v4153 = vpop.f32.mrf.mxu0
        %v4154 = vpop.f32.mrf.mxu0
        %v4155 = vadd.f32 0.0, %v4154
        %v4156 = vpop.f32.mrf.mxu0
        %4157 = vdwg.mxu0
        %v4158 = vadd.f32 %v282, %v4144
        %v4159 = vadd.f32 %v282, %v4147
        %v4160 = vadd.f32 %v282, %v4152
        %v4161 = vadd.f32 %v282, %v4155
        %v4162 = vld [vmem:[%s3085] sm:$0xf]
        %v4163 = vld [vmem:[%s3085 + $0x4] sm:$0xf]
        %v4164 = vld [vmem:[%s3085 + $0x8] sm:$0xf]
        %v4165 = vld [vmem:[%s3085 + $0xc] sm:$0xf]
        %v4166 = vld [vmem:[%s3085 + $0x10] sm:$0x1]
        %v4172 = vunpack.c.l.b16 %v4162
        %v4173 = vunpack.c.l.b16 %v4163
        %v4174 = vunpack.c.l.b16 %v4164
        %v4175 = vunpack.c.l.b16 %v4165
        %v4176 = vunpack.c.l.b16 %v4166
        %v4177 = vpack.c.b16 %v4173, %v4172
        %v4178 = vpack.c.b16 %v4175, %v4174
        %v4179 = vpack.c.b16 %v4176, %v4176
        %v4181 = vshrl.u32 %v4177, 16
        %v4183 = vshll.u32 %v4177, 16
        %v4185 = vrot.slane %v4183, 1
        %v4186 = vor.u32 %v4181, %v4185
        %v4188 = vshll.u32 %v4178, 16
        %v4190 = vrot.slane %v4188, 1
        %v4191 = vsel %vm394, %v4186, %v4190
        %v4192 = vshrl.u32 %v4178, 16
        %v4194 = vor.u32 %v4192, %v4190
        %v4196 = vshll.u32 %v4179, 16
        %v4198 = vrot.slane %v4196, 1
        %v4199 = vsel %vm394, %v4194, %v4198
        %v4201 = vsel %vm309, %v4191, 0
        %v4204 = vsel %vm309, %v4199, 0
        %4206 = vmatprep.subr.bf16.mxu0 0
        %4207 = vmatpush1.bf16.msra.mxu0 0
        %4208 = vmatprep.subr.bf16.mxu0 0
        %4209 = vmatpush1.bf16.msra.mxu0 0
        %4210 = vmatprep.subr.bf16.mxu0 0
        %4211 = vmatpush1.bf16.msra.mxu0 0
        %4212 = vmatprep.subr.bf16.mxu0 0
        %4213 = vmatpush1.bf16.msra.mxu0 0
        %4214 = vmatprep.subr.bf16.mxu0 0
        %4215 = vmatpush1.bf16.msra.mxu0 0
        %4216 = vmatprep.subr.bf16.mxu0 0
        %4217 = vmatpush1.bf16.msra.mxu0 0
        %4218 = vmatprep.subr.bf16.mxu0 0
        %4219 = vmatpush1.bf16.msra.mxu0 0
        %4220 = vmatprep.subr.bf16.mxu0 0
        %4221 = vmatpush1.bf16.msra.mxu0 %v433
        %4222 = vmatprep.subr.bf16.mxu0 0
        %4223 = vmatpush2.bf16.msra.mxu0 0
        %4224 = vmatprep.subr.bf16.mxu0 0
        %4225 = vmatpush2.bf16.msra.mxu0 0
        %4226 = vmatprep.subr.bf16.mxu0 0
        %4227 = vmatpush2.bf16.msra.mxu0 0
        %4228 = vmatprep.subr.bf16.mxu0 0
        %4229 = vmatpush2.bf16.msra.mxu0 0
        %4230 = vmatprep.subr.bf16.mxu0 0
        %4231 = vmatpush2.bf16.msra.mxu0 0
        %4232 = vmatprep.subr.bf16.mxu0 0
        %4233 = vmatpush2.bf16.msra.mxu0 0
        %4234 = vmatprep.subr.bf16.mxu0 0
        %4235 = vmatpush2.bf16.msra.mxu0 0
        %4236 = vmatprep.subr.bf16.mxu0 0
        %4237 = vmatpush2.bf16.msra.mxu0 0
        %4238 = vmatprep.mubr.bf16.mxu0 0
        %4239 = vmatmul.mubr.bf16.gmra.mxu0 %v4201
        %v4240 = vpop.f32.mrf.mxu0
        %v4241 = vadd.f32 0.0, %v4240
        %v4242 = vpop.f32.mrf.mxu0
        %v4243 = vpop.f32.mrf.mxu0
        %v4244 = vadd.f32 0.0, %v4243
        %v4245 = vpop.f32.mrf.mxu0
        %4246 = vmatprep.mubr.bf16.mxu0 0
        %4247 = vmatmul.mubr.bf16.gmra.mxu0 %v4204
        %v4248 = vpop.f32.mrf.mxu0
        %v4249 = vadd.f32 0.0, %v4248
        %v4250 = vpop.f32.mrf.mxu0
        %v4251 = vpop.f32.mrf.mxu0
        %v4252 = vadd.f32 0.0, %v4251
        %v4253 = vpop.f32.mrf.mxu0
        %4254 = vdwg.mxu0
        %v4255 = vadd.f32 %v4158, %v4241
        %v4256 = vadd.f32 %v4159, %v4244
        %v4257 = vadd.f32 %v4160, %v4249
        %v4258 = vadd.f32 %v4161, %v4252
        %v4259 = vld [vmem:[%s3085] sm:$0xe]
        %v4261 = vunpack.c.l.b16 %v4259
        %v4262 = vpack.c.b16 %v4173, %v4261
        %v4263 = vrot.slane %v4262, 1
        %v4264 = vrot.slane %v4178, 1
        %v4265 = vsel %vm492, %v4263, %v4264
        %v4266 = vrot.slane %v4179, 1
        %v4267 = vsel %vm492, %v4264, %v4266
        %v4269 = vsel %vm309, %v4265, 0
        %v4272 = vsel %vm309, %v4267, 0
        %4274 = vmatprep.subr.bf16.mxu0 0
        %4275 = vmatpush1.bf16.msra.mxu0 0
        %4276 = vmatprep.subr.bf16.mxu0 0
        %4277 = vmatpush1.bf16.msra.mxu0 0
        %4278 = vmatprep.subr.bf16.mxu0 0
        %4279 = vmatpush1.bf16.msra.mxu0 0
        %4280 = vmatprep.subr.bf16.mxu0 0
        %4281 = vmatpush1.bf16.msra.mxu0 0
        %4282 = vmatprep.subr.bf16.mxu0 0
        %4283 = vmatpush1.bf16.msra.mxu0 0
        %4284 = vmatprep.subr.bf16.mxu0 0
        %4285 = vmatpush1.bf16.msra.mxu0 0
        %4286 = vmatprep.subr.bf16.mxu0 0
        %4287 = vmatpush1.bf16.msra.mxu0 0
        %4288 = vmatprep.subr.bf16.mxu0 0
        %4289 = vmatpush1.bf16.msra.mxu0 %v511
        %4290 = vmatprep.subr.bf16.mxu0 0
        %4291 = vmatpush2.bf16.msra.mxu0 0
        %4292 = vmatprep.subr.bf16.mxu0 0
        %4293 = vmatpush2.bf16.msra.mxu0 0
        %4294 = vmatprep.subr.bf16.mxu0 0
        %4295 = vmatpush2.bf16.msra.mxu0 0
        %4296 = vmatprep.subr.bf16.mxu0 0
        %4297 = vmatpush2.bf16.msra.mxu0 0
        %4298 = vmatprep.subr.bf16.mxu0 0
        %4299 = vmatpush2.bf16.msra.mxu0 0
        %4300 = vmatprep.subr.bf16.mxu0 0
        %4301 = vmatpush2.bf16.msra.mxu0 0
        %4302 = vmatprep.subr.bf16.mxu0 0
        %4303 = vmatpush2.bf16.msra.mxu0 0
        %4304 = vmatprep.subr.bf16.mxu0 0
        %4305 = vmatpush2.bf16.msra.mxu0 0
        %4306 = vmatprep.mubr.bf16.mxu0 0
        %4307 = vmatmul.mubr.bf16.gmra.mxu0 %v4269
        %v4308 = vpop.f32.mrf.mxu0
        %v4309 = vadd.f32 0.0, %v4308
        %v4310 = vpop.f32.mrf.mxu0
        %v4311 = vpop.f32.mrf.mxu0
        %v4312 = vadd.f32 0.0, %v4311
        %v4313 = vpop.f32.mrf.mxu0
        %4314 = vmatprep.mubr.bf16.mxu0 0
        %4315 = vmatmul.mubr.bf16.gmra.mxu0 %v4272
        %v4316 = vpop.f32.mrf.mxu0
        %v4317 = vadd.f32 0.0, %v4316
        %v4318 = vpop.f32.mrf.mxu0
        %v4319 = vpop.f32.mrf.mxu0
        %v4320 = vadd.f32 0.0, %v4319
        %v4321 = vpop.f32.mrf.mxu0
        %4322 = vdwg.mxu0
        %v4323 = vadd.f32 %v4255, %v4309
        %v4324 = vadd.f32 %v4256, %v4312
        %v4325 = vadd.f32 %v4257, %v4317
        %v4326 = vadd.f32 %v4258, %v4320
        %v4327 = vld [vmem:[%s3825] sm:$0xf]
        %v4328 = vld [vmem:[%s3825 + $0x4] sm:$0xf]
        %v4329 = vld [vmem:[%s3825 + $0x8] sm:$0xf]
        %v4330 = vld [vmem:[%s3825 + $0xc] sm:$0xf]
        %v4335 = vunpack.c.l.b16 %v4327
        %v4336 = vunpack.c.l.b16 %v4328
        %v4337 = vunpack.c.l.b16 %v4329
        %v4338 = vunpack.c.l.b16 %v4330
        %v4339 = vpack.c.b16 %v4336, %v4335
        %v4340 = vpack.c.b16 %v4338, %v4337
        %v4342 = vsel %vm309, %v4339, 0
        %v4345 = vsel %vm309, %v4340, 0
        %4347 = vmatprep.subr.bf16.mxu0 0
        %4348 = vmatpush1.bf16.msra.mxu0 0
        %4349 = vmatprep.subr.bf16.mxu0 0
        %4350 = vmatpush1.bf16.msra.mxu0 0
        %4351 = vmatprep.subr.bf16.mxu0 0
        %4352 = vmatpush1.bf16.msra.mxu0 0
        %4353 = vmatprep.subr.bf16.mxu0 0
        %4354 = vmatpush1.bf16.msra.mxu0 0
        %4355 = vmatprep.subr.bf16.mxu0 0
        %4356 = vmatpush1.bf16.msra.mxu0 0
        %4357 = vmatprep.subr.bf16.mxu0 0
        %4358 = vmatpush1.bf16.msra.mxu0 0
        %4359 = vmatprep.subr.bf16.mxu0 0
        %4360 = vmatpush1.bf16.msra.mxu0 0
        %4361 = vmatprep.subr.bf16.mxu0 0
        %4362 = vmatpush1.bf16.msra.mxu0 %v598
        %4363 = vmatprep.subr.bf16.mxu0 0
        %4364 = vmatpush2.bf16.msra.mxu0 0
        %4365 = vmatprep.subr.bf16.mxu0 0
        %4366 = vmatpush2.bf16.msra.mxu0 0
        %4367 = vmatprep.subr.bf16.mxu0 0
        %4368 = vmatpush2.bf16.msra.mxu0 0
        %4369 = vmatprep.subr.bf16.mxu0 0
        %4370 = vmatpush2.bf16.msra.mxu0 0
        %4371 = vmatprep.subr.bf16.mxu0 0
        %4372 = vmatpush2.bf16.msra.mxu0 0
        %4373 = vmatprep.subr.bf16.mxu0 0
        %4374 = vmatpush2.bf16.msra.mxu0 0
        %4375 = vmatprep.subr.bf16.mxu0 0
        %4376 = vmatpush2.bf16.msra.mxu0 0
        %4377 = vmatprep.subr.bf16.mxu0 0
        %4378 = vmatpush2.bf16.msra.mxu0 0
        %4379 = vmatprep.mubr.bf16.mxu0 0
        %4380 = vmatmul.mubr.bf16.gmra.mxu0 %v4342
        %v4381 = vpop.f32.mrf.mxu0
        %v4382 = vadd.f32 0.0, %v4381
        %v4383 = vpop.f32.mrf.mxu0
        %v4384 = vpop.f32.mrf.mxu0
        %v4385 = vadd.f32 0.0, %v4384
        %v4386 = vpop.f32.mrf.mxu0
        %4387 = vmatprep.mubr.bf16.mxu0 0
        %4388 = vmatmul.mubr.bf16.gmra.mxu0 %v4345
        %v4389 = vpop.f32.mrf.mxu0
        %v4390 = vadd.f32 0.0, %v4389
        %v4391 = vpop.f32.mrf.mxu0
        %v4392 = vpop.f32.mrf.mxu0
        %v4393 = vadd.f32 0.0, %v4392
        %v4394 = vpop.f32.mrf.mxu0
        %4395 = vdwg.mxu0
        %v4396 = vadd.f32 %v4323, %v4382
        %v4397 = vadd.f32 %v4324, %v4385
        %v4398 = vadd.f32 %v4325, %v4390
        %v4399 = vadd.f32 %v4326, %v4393
        %v4400 = vld [vmem:[%s3825] sm:$0xf]
        %v4401 = vld [vmem:[%s3825 + $0x4] sm:$0xf]
        %v4402 = vld [vmem:[%s3825 + $0x8] sm:$0xf]
        %v4403 = vld [vmem:[%s3825 + $0xc] sm:$0xf]
        %v4404 = vld [vmem:[%s3825 + $0x10] sm:$0x1]
        %v4410 = vunpack.c.l.b16 %v4400
        %v4411 = vunpack.c.l.b16 %v4401
        %v4412 = vunpack.c.l.b16 %v4402
        %v4413 = vunpack.c.l.b16 %v4403
        %v4414 = vunpack.c.l.b16 %v4404
        %v4415 = vpack.c.b16 %v4411, %v4410
        %v4416 = vpack.c.b16 %v4413, %v4412
        %v4417 = vpack.c.b16 %v4414, %v4414
        %v4419 = vshrl.u32 %v4415, 16
        %v4421 = vshll.u32 %v4415, 16
        %v4423 = vrot.slane %v4421, 1
        %v4424 = vor.u32 %v4419, %v4423
        %v4426 = vshll.u32 %v4416, 16
        %v4428 = vrot.slane %v4426, 1
        %v4429 = vsel %vm394, %v4424, %v4428
        %v4430 = vshrl.u32 %v4416, 16
        %v4432 = vor.u32 %v4430, %v4428
        %v4434 = vshll.u32 %v4417, 16
        %v4436 = vrot.slane %v4434, 1
        %v4437 = vsel %vm394, %v4432, %v4436
        %v4439 = vsel %vm309, %v4429, 0
        %v4442 = vsel %vm309, %v4437, 0
        %4444 = vmatprep.subr.bf16.mxu0 0
        %4445 = vmatpush1.bf16.msra.mxu0 0
        %4446 = vmatprep.subr.bf16.mxu0 0
        %4447 = vmatpush1.bf16.msra.mxu0 0
        %4448 = vmatprep.subr.bf16.mxu0 0
        %4449 = vmatpush1.bf16.msra.mxu0 0
        %4450 = vmatprep.subr.bf16.mxu0 0
        %4451 = vmatpush1.bf16.msra.mxu0 0
        %4452 = vmatprep.subr.bf16.mxu0 0
        %4453 = vmatpush1.bf16.msra.mxu0 0
        %4454 = vmatprep.subr.bf16.mxu0 0
        %4455 = vmatpush1.bf16.msra.mxu0 0
        %4456 = vmatprep.subr.bf16.mxu0 0
        %4457 = vmatpush1.bf16.msra.mxu0 0
        %4458 = vmatprep.subr.bf16.mxu0 0
        %4459 = vmatpush1.bf16.msra.mxu0 %v702
        %4460 = vmatprep.subr.bf16.mxu0 0
        %4461 = vmatpush2.bf16.msra.mxu0 0
        %4462 = vmatprep.subr.bf16.mxu0 0
        %4463 = vmatpush2.bf16.msra.mxu0 0
        %4464 = vmatprep.subr.bf16.mxu0 0
        %4465 = vmatpush2.bf16.msra.mxu0 0
        %4466 = vmatprep.subr.bf16.mxu0 0
        %4467 = vmatpush2.bf16.msra.mxu0 0
        %4468 = vmatprep.subr.bf16.mxu0 0
        %4469 = vmatpush2.bf16.msra.mxu0 0
        %4470 = vmatprep.subr.bf16.mxu0 0
        %4471 = vmatpush2.bf16.msra.mxu0 0
        %4472 = vmatprep.subr.bf16.mxu0 0
        %4473 = vmatpush2.bf16.msra.mxu0 0
        %4474 = vmatprep.subr.bf16.mxu0 0
        %4475 = vmatpush2.bf16.msra.mxu0 0
        %4476 = vmatprep.mubr.bf16.mxu0 0
        %4477 = vmatmul.mubr.bf16.gmra.mxu0 %v4439
        %v4478 = vpop.f32.mrf.mxu0
        %v4479 = vadd.f32 0.0, %v4478
        %v4480 = vpop.f32.mrf.mxu0
        %v4481 = vpop.f32.mrf.mxu0
        %v4482 = vadd.f32 0.0, %v4481
        %v4483 = vpop.f32.mrf.mxu0
        %4484 = vmatprep.mubr.bf16.mxu0 0
        %4485 = vmatmul.mubr.bf16.gmra.mxu0 %v4442
        %v4486 = vpop.f32.mrf.mxu0
        %v4487 = vadd.f32 0.0, %v4486
        %v4488 = vpop.f32.mrf.mxu0
        %v4489 = vpop.f32.mrf.mxu0
        %v4490 = vadd.f32 0.0, %v4489
        %v4491 = vpop.f32.mrf.mxu0
        %4492 = vdwg.mxu0
        %v4493 = vadd.f32 %v4396, %v4479
        %v4494 = vadd.f32 %v4397, %v4482
        %v4495 = vadd.f32 %v4398, %v4487
        %v4496 = vadd.f32 %v4399, %v4490
        %v4497 = vld [vmem:[%s3825] sm:$0xe]
        %v4499 = vunpack.c.l.b16 %v4497
        %v4500 = vpack.c.b16 %v4411, %v4499
        %v4501 = vrot.slane %v4500, 1
        %v4502 = vrot.slane %v4416, 1
        %v4503 = vsel %vm492, %v4501, %v4502
        %v4504 = vrot.slane %v4417, 1
        %v4505 = vsel %vm492, %v4502, %v4504
        %v4507 = vsel %vm309, %v4503, 0
        %v4510 = vsel %vm309, %v4505, 0
        %4512 = vmatprep.subr.bf16.mxu0 0
        %4513 = vmatpush1.bf16.msra.mxu0 0
        %4514 = vmatprep.subr.bf16.mxu0 0
        %4515 = vmatpush1.bf16.msra.mxu0 0
        %4516 = vmatprep.subr.bf16.mxu0 0
        %4517 = vmatpush1.bf16.msra.mxu0 0
        %4518 = vmatprep.subr.bf16.mxu0 0
        %4519 = vmatpush1.bf16.msra.mxu0 0
        %4520 = vmatprep.subr.bf16.mxu0 0
        %4521 = vmatpush1.bf16.msra.mxu0 0
        %4522 = vmatprep.subr.bf16.mxu0 0
        %4523 = vmatpush1.bf16.msra.mxu0 0
        %4524 = vmatprep.subr.bf16.mxu0 0
        %4525 = vmatpush1.bf16.msra.mxu0 0
        %4526 = vmatprep.subr.bf16.mxu0 0
        %4527 = vmatpush1.bf16.msra.mxu0 %v786
        %4528 = vmatprep.subr.bf16.mxu0 0
        %4529 = vmatpush2.bf16.msra.mxu0 0
        %4530 = vmatprep.subr.bf16.mxu0 0
        %4531 = vmatpush2.bf16.msra.mxu0 0
        %4532 = vmatprep.subr.bf16.mxu0 0
        %4533 = vmatpush2.bf16.msra.mxu0 0
        %4534 = vmatprep.subr.bf16.mxu0 0
        %4535 = vmatpush2.bf16.msra.mxu0 0
        %4536 = vmatprep.subr.bf16.mxu0 0
        %4537 = vmatpush2.bf16.msra.mxu0 0
        %4538 = vmatprep.subr.bf16.mxu0 0
        %4539 = vmatpush2.bf16.msra.mxu0 0
        %4540 = vmatprep.subr.bf16.mxu0 0
        %4541 = vmatpush2.bf16.msra.mxu0 0
        %4542 = vmatprep.subr.bf16.mxu0 0
        %4543 = vmatpush2.bf16.msra.mxu0 0
        %4544 = vmatprep.mubr.bf16.mxu0 0
        %4545 = vmatmul.mubr.bf16.gmra.mxu0 %v4507
        %v4546 = vpop.f32.mrf.mxu0
        %v4547 = vadd.f32 0.0, %v4546
        %v4548 = vpop.f32.mrf.mxu0
        %v4549 = vpop.f32.mrf.mxu0
        %v4550 = vadd.f32 0.0, %v4549
        %v4551 = vpop.f32.mrf.mxu0
        %4552 = vmatprep.mubr.bf16.mxu0 0
        %4553 = vmatmul.mubr.bf16.gmra.mxu0 %v4510
        %v4554 = vpop.f32.mrf.mxu0
        %v4555 = vadd.f32 0.0, %v4554
        %v4556 = vpop.f32.mrf.mxu0
        %v4557 = vpop.f32.mrf.mxu0
        %v4558 = vadd.f32 0.0, %v4557
        %v4559 = vpop.f32.mrf.mxu0
        %4560 = vdwg.mxu0
        %v4561 = vadd.f32 %v4493, %v4547
        %v4562 = vadd.f32 %v4494, %v4550
        %v4563 = vadd.f32 %v4495, %v4555
        %v4564 = vadd.f32 %v4496, %v4558
        %s4565 = scalar_lea.vmem %s260, 140
        %v4566 = vld [vmem:[%s4565] sm:$0xf]
        %v4567 = vld [vmem:[%s4565 + $0x4] sm:$0xf]
        %v4568 = vld [vmem:[%s4565 + $0x8] sm:$0xf]
        %v4569 = vld [vmem:[%s4565 + $0xc] sm:$0xf]
        %v4574 = vunpack.c.l.b16 %v4566
        %v4575 = vunpack.c.l.b16 %v4567
        %v4576 = vunpack.c.l.b16 %v4568
        %v4577 = vunpack.c.l.b16 %v4569
        %v4578 = vpack.c.b16 %v4575, %v4574
        %v4579 = vpack.c.b16 %v4577, %v4576
        %v4581 = vsel %vm309, %v4578, 0
        %v4584 = vsel %vm309, %v4579, 0
        %4586 = vmatprep.subr.bf16.mxu0 0
        %4587 = vmatpush1.bf16.msra.mxu0 0
        %4588 = vmatprep.subr.bf16.mxu0 0
        %4589 = vmatpush1.bf16.msra.mxu0 0
        %4590 = vmatprep.subr.bf16.mxu0 0
        %4591 = vmatpush1.bf16.msra.mxu0 0
        %4592 = vmatprep.subr.bf16.mxu0 0
        %4593 = vmatpush1.bf16.msra.mxu0 0
        %4594 = vmatprep.subr.bf16.mxu0 0
        %4595 = vmatpush1.bf16.msra.mxu0 0
        %4596 = vmatprep.subr.bf16.mxu0 0
        %4597 = vmatpush1.bf16.msra.mxu0 0
        %4598 = vmatprep.subr.bf16.mxu0 0
        %4599 = vmatpush1.bf16.msra.mxu0 0
        %4600 = vmatprep.subr.bf16.mxu0 0
        %4601 = vmatpush1.bf16.msra.mxu0 %v867
        %4602 = vmatprep.subr.bf16.mxu0 0
        %4603 = vmatpush2.bf16.msra.mxu0 0
        %4604 = vmatprep.subr.bf16.mxu0 0
        %4605 = vmatpush2.bf16.msra.mxu0 0
        %4606 = vmatprep.subr.bf16.mxu0 0
        %4607 = vmatpush2.bf16.msra.mxu0 0
        %4608 = vmatprep.subr.bf16.mxu0 0
        %4609 = vmatpush2.bf16.msra.mxu0 0
        %4610 = vmatprep.subr.bf16.mxu0 0
        %4611 = vmatpush2.bf16.msra.mxu0 0
        %4612 = vmatprep.subr.bf16.mxu0 0
        %4613 = vmatpush2.bf16.msra.mxu0 0
        %4614 = vmatprep.subr.bf16.mxu0 0
        %4615 = vmatpush2.bf16.msra.mxu0 0
        %4616 = vmatprep.subr.bf16.mxu0 0
        %4617 = vmatpush2.bf16.msra.mxu0 0
        %4618 = vmatprep.mubr.bf16.mxu0 0
        %4619 = vmatmul.mubr.bf16.gmra.mxu0 %v4581
        %v4620 = vpop.f32.mrf.mxu0
        %v4621 = vadd.f32 0.0, %v4620
        %v4622 = vpop.f32.mrf.mxu0
        %v4623 = vpop.f32.mrf.mxu0
        %v4624 = vadd.f32 0.0, %v4623
        %v4625 = vpop.f32.mrf.mxu0
        %4626 = vmatprep.mubr.bf16.mxu0 0
        %4627 = vmatmul.mubr.bf16.gmra.mxu0 %v4584
        %v4628 = vpop.f32.mrf.mxu0
        %v4629 = vadd.f32 0.0, %v4628
        %v4630 = vpop.f32.mrf.mxu0
        %v4631 = vpop.f32.mrf.mxu0
        %v4632 = vadd.f32 0.0, %v4631
        %v4633 = vpop.f32.mrf.mxu0
        %4634 = vdwg.mxu0
        %v4635 = vadd.f32 %v4561, %v4621
        %v4636 = vadd.f32 %v4562, %v4624
        %v4637 = vadd.f32 %v4563, %v4629
        %v4638 = vadd.f32 %v4564, %v4632
        %v4639 = vld [vmem:[%s4565] sm:$0xf]
        %v4640 = vld [vmem:[%s4565 + $0x4] sm:$0xf]
        %v4641 = vld [vmem:[%s4565 + $0x8] sm:$0xf]
        %v4642 = vld [vmem:[%s4565 + $0xc] sm:$0xf]
        %v4643 = vld [vmem:[%s4565 + $0x10] sm:$0x1]
        %v4649 = vunpack.c.l.b16 %v4639
        %v4650 = vunpack.c.l.b16 %v4640
        %v4651 = vunpack.c.l.b16 %v4641
        %v4652 = vunpack.c.l.b16 %v4642
        %v4653 = vunpack.c.l.b16 %v4643
        %v4654 = vpack.c.b16 %v4650, %v4649
        %v4655 = vpack.c.b16 %v4652, %v4651
        %v4656 = vpack.c.b16 %v4653, %v4653
        %v4658 = vshrl.u32 %v4654, 16
        %v4660 = vshll.u32 %v4654, 16
        %v4662 = vrot.slane %v4660, 1
        %v4663 = vor.u32 %v4658, %v4662
        %v4665 = vshll.u32 %v4655, 16
        %v4667 = vrot.slane %v4665, 1
        %v4668 = vsel %vm394, %v4663, %v4667
        %v4669 = vshrl.u32 %v4655, 16
        %v4671 = vor.u32 %v4669, %v4667
        %v4673 = vshll.u32 %v4656, 16
        %v4675 = vrot.slane %v4673, 1
        %v4676 = vsel %vm394, %v4671, %v4675
        %v4678 = vsel %vm309, %v4668, 0
        %v4681 = vsel %vm309, %v4676, 0
        %4683 = vmatprep.subr.bf16.mxu0 0
        %4684 = vmatpush1.bf16.msra.mxu0 0
        %4685 = vmatprep.subr.bf16.mxu0 0
        %4686 = vmatpush1.bf16.msra.mxu0 0
        %4687 = vmatprep.subr.bf16.mxu0 0
        %4688 = vmatpush1.bf16.msra.mxu0 0
        %4689 = vmatprep.subr.bf16.mxu0 0
        %4690 = vmatpush1.bf16.msra.mxu0 0
        %4691 = vmatprep.subr.bf16.mxu0 0
        %4692 = vmatpush1.bf16.msra.mxu0 0
        %4693 = vmatprep.subr.bf16.mxu0 0
        %4694 = vmatpush1.bf16.msra.mxu0 0
        %4695 = vmatprep.subr.bf16.mxu0 0
        %4696 = vmatpush1.bf16.msra.mxu0 0
        %4697 = vmatprep.subr.bf16.mxu0 0
        %4698 = vmatpush1.bf16.msra.mxu0 %v978
        %4699 = vmatprep.subr.bf16.mxu0 0
        %4700 = vmatpush2.bf16.msra.mxu0 0
        %4701 = vmatprep.subr.bf16.mxu0 0
        %4702 = vmatpush2.bf16.msra.mxu0 0
        %4703 = vmatprep.subr.bf16.mxu0 0
        %4704 = vmatpush2.bf16.msra.mxu0 0
        %4705 = vmatprep.subr.bf16.mxu0 0
        %4706 = vmatpush2.bf16.msra.mxu0 0
        %4707 = vmatprep.subr.bf16.mxu0 0
        %4708 = vmatpush2.bf16.msra.mxu0 0
        %4709 = vmatprep.subr.bf16.mxu0 0
        %4710 = vmatpush2.bf16.msra.mxu0 0
        %4711 = vmatprep.subr.bf16.mxu0 0
        %4712 = vmatpush2.bf16.msra.mxu0 0
        %4713 = vmatprep.subr.bf16.mxu0 0
        %4714 = vmatpush2.bf16.msra.mxu0 0
        %4715 = vmatprep.mubr.bf16.mxu0 0
        %4716 = vmatmul.mubr.bf16.gmra.mxu0 %v4678
        %v4717 = vpop.f32.mrf.mxu0
        %v4718 = vadd.f32 0.0, %v4717
        %v4719 = vpop.f32.mrf.mxu0
        %v4720 = vpop.f32.mrf.mxu0
        %v4721 = vadd.f32 0.0, %v4720
        %v4722 = vpop.f32.mrf.mxu0
        %4723 = vmatprep.mubr.bf16.mxu0 0
        %4724 = vmatmul.mubr.bf16.gmra.mxu0 %v4681
        %v4725 = vpop.f32.mrf.mxu0
        %v4726 = vadd.f32 0.0, %v4725
        %v4727 = vpop.f32.mrf.mxu0
        %v4728 = vpop.f32.mrf.mxu0
        %v4729 = vadd.f32 0.0, %v4728
        %v4730 = vpop.f32.mrf.mxu0
        %4731 = vdwg.mxu0
        %v4732 = vadd.f32 %v4635, %v4718
        %v4733 = vadd.f32 %v4636, %v4721
        %v4734 = vadd.f32 %v4637, %v4726
        %v4735 = vadd.f32 %v4638, %v4729
        %v4736 = vld [vmem:[%s4565] sm:$0xe]
        %v4738 = vunpack.c.l.b16 %v4736
        %v4739 = vpack.c.b16 %v4650, %v4738
        %v4740 = vrot.slane %v4739, 1
        %v4741 = vrot.slane %v4655, 1
        %v4742 = vsel %vm492, %v4740, %v4741
        %v4743 = vrot.slane %v4656, 1
        %v4744 = vsel %vm492, %v4741, %v4743
        %v4746 = vsel %vm309, %v4742, 0
        %v4749 = vsel %vm309, %v4744, 0
        %4751 = vmatprep.subr.bf16.mxu0 0
        %4752 = vmatpush1.bf16.msra.mxu0 0
        %4753 = vmatprep.subr.bf16.mxu0 0
        %4754 = vmatpush1.bf16.msra.mxu0 0
        %4755 = vmatprep.subr.bf16.mxu0 0
        %4756 = vmatpush1.bf16.msra.mxu0 0
        %4757 = vmatprep.subr.bf16.mxu0 0
        %4758 = vmatpush1.bf16.msra.mxu0 0
        %4759 = vmatprep.subr.bf16.mxu0 0
        %4760 = vmatpush1.bf16.msra.mxu0 0
        %4761 = vmatprep.subr.bf16.mxu0 0
        %4762 = vmatpush1.bf16.msra.mxu0 0
        %4763 = vmatprep.subr.bf16.mxu0 0
        %4764 = vmatpush1.bf16.msra.mxu0 0
        %4765 = vmatprep.subr.bf16.mxu0 0
        %4766 = vmatpush1.bf16.msra.mxu0 %v1049
        %4767 = vmatprep.subr.bf16.mxu0 0
        %4768 = vmatpush2.bf16.msra.mxu0 0
        %4769 = vmatprep.subr.bf16.mxu0 0
        %4770 = vmatpush2.bf16.msra.mxu0 0
        %4771 = vmatprep.subr.bf16.mxu0 0
        %4772 = vmatpush2.bf16.msra.mxu0 0
        %4773 = vmatprep.subr.bf16.mxu0 0
        %4774 = vmatpush2.bf16.msra.mxu0 0
        %4775 = vmatprep.subr.bf16.mxu0 0
        %4776 = vmatpush2.bf16.msra.mxu0 0
        %4777 = vmatprep.subr.bf16.mxu0 0
        %4778 = vmatpush2.bf16.msra.mxu0 0
        %4779 = vmatprep.subr.bf16.mxu0 0
        %4780 = vmatpush2.bf16.msra.mxu0 0
        %4781 = vmatprep.subr.bf16.mxu0 0
        %4782 = vmatpush2.bf16.msra.mxu0 0
        %4783 = vmatprep.mubr.bf16.mxu0 0
        %4784 = vmatmul.mubr.bf16.gmra.mxu0 %v4746
        %v4785 = vpop.f32.mrf.mxu0
        %v4786 = vadd.f32 0.0, %v4785
        %v4787 = vpop.f32.mrf.mxu0
        %v4788 = vpop.f32.mrf.mxu0
        %v4789 = vadd.f32 0.0, %v4788
        %v4790 = vpop.f32.mrf.mxu0
        %4791 = vmatprep.mubr.bf16.mxu0 0
        %4792 = vmatmul.mubr.bf16.gmra.mxu0 %v4749
        %v4793 = vpop.f32.mrf.mxu0
        %v4794 = vadd.f32 0.0, %v4793
        %v4795 = vpop.f32.mrf.mxu0
        %v4796 = vpop.f32.mrf.mxu0
        %v4797 = vadd.f32 0.0, %v4796
        %v4798 = vpop.f32.mrf.mxu0
        %4799 = vdwg.mxu0
        %v4800 = vadd.f32 %v4732, %v4786
        %v4801 = vadd.f32 %v4733, %v4789
        %v4802 = vadd.f32 %v4734, %v4794
        %v4803 = vadd.f32 %v4735, %v4797
        %v4804 = vmax.f32 %v4800, 0.0
        %v4805 = vmax.f32 %v4801, 0.0
        %v4806 = vmax.f32 %v4802, 0.0
        %v4807 = vmax.f32 %v4803, 0.0
        %v4808 = vpack.c.bf16 %v4805, %v4804
        %v4809 = vpack.c.bf16 %v4807, %v4806
        %v4812 = vunpack.c.l.b16 %v4808
        %v4813 = vunpack.c.h.b16 %v4808
        %v4814 = vunpack.c.l.b16 %v4809
        %v4815 = vunpack.c.h.b16 %v4809
        %v4816 = vpack.c.b16 %v4812, %v4812
        %v4817 = vpack.c.b16 %v4813, %v4813
        %v4818 = vpack.c.b16 %v4814, %v4814
        %v4819 = vpack.c.b16 %v4815, %v4815
        %s4824 = scalar_lea.vmem %s250, 80 [#allocation2]
        %4825 = vst.msk [vmem:[%s4824] sm:$0xf] %vm1124, %v4816
        %4826 = vst.msk [vmem:[%s4824 + $0x4] sm:$0xf] %vm1124, %v4817
        %4827 = vst.msk [vmem:[%s4824 + $0x8] sm:$0xf] %vm1124, %v4818
        %4828 = vst.msk [vmem:[%s4824 + $0xc] sm:$0xf] %vm1124, %v4819
        %v4829 = vld [vmem:[%s3825] sm:$0xf]
        %v4830 = vld [vmem:[%s3825 + $0x4] sm:$0xf]
        %v4831 = vld [vmem:[%s3825 + $0x8] sm:$0xf]
        %v4832 = vld [vmem:[%s3825 + $0xc] sm:$0xf]
        %v4837 = vunpack.c.l.b16 %v4829
        %v4838 = vunpack.c.l.b16 %v4830
        %v4839 = vunpack.c.l.b16 %v4831
        %v4840 = vunpack.c.l.b16 %v4832
        %v4841 = vpack.c.b16 %v4838, %v4837
        %v4842 = vpack.c.b16 %v4840, %v4839
        %v4844 = vsel %vm309, %v4841, 0
        %v4847 = vsel %vm309, %v4842, 0
        %4849 = vmatprep.subr.bf16.mxu0 0
        %4850 = vmatpush1.bf16.msra.mxu0 0
        %4851 = vmatprep.subr.bf16.mxu0 0
        %4852 = vmatpush1.bf16.msra.mxu0 0
        %4853 = vmatprep.subr.bf16.mxu0 0
        %4854 = vmatpush1.bf16.msra.mxu0 0
        %4855 = vmatprep.subr.bf16.mxu0 0
        %4856 = vmatpush1.bf16.msra.mxu0 0
        %4857 = vmatprep.subr.bf16.mxu0 0
        %4858 = vmatpush1.bf16.msra.mxu0 0
        %4859 = vmatprep.subr.bf16.mxu0 0
        %4860 = vmatpush1.bf16.msra.mxu0 0
        %4861 = vmatprep.subr.bf16.mxu0 0
        %4862 = vmatpush1.bf16.msra.mxu0 0
        %4863 = vmatprep.subr.bf16.mxu0 0
        %4864 = vmatpush1.bf16.msra.mxu0 %v321
        %4865 = vmatprep.subr.bf16.mxu0 0
        %4866 = vmatpush2.bf16.msra.mxu0 0
        %4867 = vmatprep.subr.bf16.mxu0 0
        %4868 = vmatpush2.bf16.msra.mxu0 0
        %4869 = vmatprep.subr.bf16.mxu0 0
        %4870 = vmatpush2.bf16.msra.mxu0 0
        %4871 = vmatprep.subr.bf16.mxu0 0
        %4872 = vmatpush2.bf16.msra.mxu0 0
        %4873 = vmatprep.subr.bf16.mxu0 0
        %4874 = vmatpush2.bf16.msra.mxu0 0
        %4875 = vmatprep.subr.bf16.mxu0 0
        %4876 = vmatpush2.bf16.msra.mxu0 0
        %4877 = vmatprep.subr.bf16.mxu0 0
        %4878 = vmatpush2.bf16.msra.mxu0 0
        %4879 = vmatprep.subr.bf16.mxu0 0
        %4880 = vmatpush2.bf16.msra.mxu0 0
        %4881 = vmatprep.mubr.bf16.mxu0 0
        %4882 = vmatmul.mubr.bf16.gmra.mxu0 %v4844
        %v4883 = vpop.f32.mrf.mxu0
        %v4884 = vadd.f32 0.0, %v4883
        %v4885 = vpop.f32.mrf.mxu0
        %v4886 = vpop.f32.mrf.mxu0
        %v4887 = vadd.f32 0.0, %v4886
        %v4888 = vpop.f32.mrf.mxu0
        %4889 = vmatprep.mubr.bf16.mxu0 0
        %4890 = vmatmul.mubr.bf16.gmra.mxu0 %v4847
        %v4891 = vpop.f32.mrf.mxu0
        %v4892 = vadd.f32 0.0, %v4891
        %v4893 = vpop.f32.mrf.mxu0
        %v4894 = vpop.f32.mrf.mxu0
        %v4895 = vadd.f32 0.0, %v4894
        %v4896 = vpop.f32.mrf.mxu0
        %4897 = vdwg.mxu0
        %v4898 = vadd.f32 %v282, %v4884
        %v4899 = vadd.f32 %v282, %v4887
        %v4900 = vadd.f32 %v282, %v4892
        %v4901 = vadd.f32 %v282, %v4895
        %v4902 = vld [vmem:[%s3825] sm:$0xf]
        %v4903 = vld [vmem:[%s3825 + $0x4] sm:$0xf]
        %v4904 = vld [vmem:[%s3825 + $0x8] sm:$0xf]
        %v4905 = vld [vmem:[%s3825 + $0xc] sm:$0xf]
        %v4906 = vld [vmem:[%s3825 + $0x10] sm:$0x1]
        %v4912 = vunpack.c.l.b16 %v4902
        %v4913 = vunpack.c.l.b16 %v4903
        %v4914 = vunpack.c.l.b16 %v4904
        %v4915 = vunpack.c.l.b16 %v4905
        %v4916 = vunpack.c.l.b16 %v4906
        %v4917 = vpack.c.b16 %v4913, %v4912
        %v4918 = vpack.c.b16 %v4915, %v4914
        %v4919 = vpack.c.b16 %v4916, %v4916
        %v4921 = vshrl.u32 %v4917, 16
        %v4923 = vshll.u32 %v4917, 16
        %v4925 = vrot.slane %v4923, 1
        %v4926 = vor.u32 %v4921, %v4925
        %v4928 = vshll.u32 %v4918, 16
        %v4930 = vrot.slane %v4928, 1
        %v4931 = vsel %vm394, %v4926, %v4930
        %v4932 = vshrl.u32 %v4918, 16
        %v4934 = vor.u32 %v4932, %v4930
        %v4936 = vshll.u32 %v4919, 16
        %v4938 = vrot.slane %v4936, 1
        %v4939 = vsel %vm394, %v4934, %v4938
        %v4941 = vsel %vm309, %v4931, 0
        %v4944 = vsel %vm309, %v4939, 0
        %4946 = vmatprep.subr.bf16.mxu0 0
        %4947 = vmatpush1.bf16.msra.mxu0 0
        %4948 = vmatprep.subr.bf16.mxu0 0
        %4949 = vmatpush1.bf16.msra.mxu0 0
        %4950 = vmatprep.subr.bf16.mxu0 0
        %4951 = vmatpush1.bf16.msra.mxu0 0
        %4952 = vmatprep.subr.bf16.mxu0 0
        %4953 = vmatpush1.bf16.msra.mxu0 0
        %4954 = vmatprep.subr.bf16.mxu0 0
        %4955 = vmatpush1.bf16.msra.mxu0 0
        %4956 = vmatprep.subr.bf16.mxu0 0
        %4957 = vmatpush1.bf16.msra.mxu0 0
        %4958 = vmatprep.subr.bf16.mxu0 0
        %4959 = vmatpush1.bf16.msra.mxu0 0
        %4960 = vmatprep.subr.bf16.mxu0 0
        %4961 = vmatpush1.bf16.msra.mxu0 %v433
        %4962 = vmatprep.subr.bf16.mxu0 0
        %4963 = vmatpush2.bf16.msra.mxu0 0
        %4964 = vmatprep.subr.bf16.mxu0 0
        %4965 = vmatpush2.bf16.msra.mxu0 0
        %4966 = vmatprep.subr.bf16.mxu0 0
        %4967 = vmatpush2.bf16.msra.mxu0 0
        %4968 = vmatprep.subr.bf16.mxu0 0
        %4969 = vmatpush2.bf16.msra.mxu0 0
        %4970 = vmatprep.subr.bf16.mxu0 0
        %4971 = vmatpush2.bf16.msra.mxu0 0
        %4972 = vmatprep.subr.bf16.mxu0 0
        %4973 = vmatpush2.bf16.msra.mxu0 0
        %4974 = vmatprep.subr.bf16.mxu0 0
        %4975 = vmatpush2.bf16.msra.mxu0 0
        %4976 = vmatprep.subr.bf16.mxu0 0
        %4977 = vmatpush2.bf16.msra.mxu0 0
        %4978 = vmatprep.mubr.bf16.mxu0 0
        %4979 = vmatmul.mubr.bf16.gmra.mxu0 %v4941
        %v4980 = vpop.f32.mrf.mxu0
        %v4981 = vadd.f32 0.0, %v4980
        %v4982 = vpop.f32.mrf.mxu0
        %v4983 = vpop.f32.mrf.mxu0
        %v4984 = vadd.f32 0.0, %v4983
        %v4985 = vpop.f32.mrf.mxu0
        %4986 = vmatprep.mubr.bf16.mxu0 0
        %4987 = vmatmul.mubr.bf16.gmra.mxu0 %v4944
        %v4988 = vpop.f32.mrf.mxu0
        %v4989 = vadd.f32 0.0, %v4988
        %v4990 = vpop.f32.mrf.mxu0
        %v4991 = vpop.f32.mrf.mxu0
        %v4992 = vadd.f32 0.0, %v4991
        %v4993 = vpop.f32.mrf.mxu0
        %4994 = vdwg.mxu0
        %v4995 = vadd.f32 %v4898, %v4981
        %v4996 = vadd.f32 %v4899, %v4984
        %v4997 = vadd.f32 %v4900, %v4989
        %v4998 = vadd.f32 %v4901, %v4992
        %v4999 = vld [vmem:[%s3825] sm:$0xe]
        %v5001 = vunpack.c.l.b16 %v4999
        %v5002 = vpack.c.b16 %v4913, %v5001
        %v5003 = vrot.slane %v5002, 1
        %v5004 = vrot.slane %v4918, 1
        %v5005 = vsel %vm492, %v5003, %v5004
        %v5006 = vrot.slane %v4919, 1
        %v5007 = vsel %vm492, %v5004, %v5006
        %v5009 = vsel %vm309, %v5005, 0
        %v5012 = vsel %vm309, %v5007, 0
        %5014 = vmatprep.subr.bf16.mxu0 0
        %5015 = vmatpush1.bf16.msra.mxu0 0
        %5016 = vmatprep.subr.bf16.mxu0 0
        %5017 = vmatpush1.bf16.msra.mxu0 0
        %5018 = vmatprep.subr.bf16.mxu0 0
        %5019 = vmatpush1.bf16.msra.mxu0 0
        %5020 = vmatprep.subr.bf16.mxu0 0
        %5021 = vmatpush1.bf16.msra.mxu0 0
        %5022 = vmatprep.subr.bf16.mxu0 0
        %5023 = vmatpush1.bf16.msra.mxu0 0
        %5024 = vmatprep.subr.bf16.mxu0 0
        %5025 = vmatpush1.bf16.msra.mxu0 0
        %5026 = vmatprep.subr.bf16.mxu0 0
        %5027 = vmatpush1.bf16.msra.mxu0 0
        %5028 = vmatprep.subr.bf16.mxu0 0
        %5029 = vmatpush1.bf16.msra.mxu0 %v511
        %5030 = vmatprep.subr.bf16.mxu0 0
        %5031 = vmatpush2.bf16.msra.mxu0 0
        %5032 = vmatprep.subr.bf16.mxu0 0
        %5033 = vmatpush2.bf16.msra.mxu0 0
        %5034 = vmatprep.subr.bf16.mxu0 0
        %5035 = vmatpush2.bf16.msra.mxu0 0
        %5036 = vmatprep.subr.bf16.mxu0 0
        %5037 = vmatpush2.bf16.msra.mxu0 0
        %5038 = vmatprep.subr.bf16.mxu0 0
        %5039 = vmatpush2.bf16.msra.mxu0 0
        %5040 = vmatprep.subr.bf16.mxu0 0
        %5041 = vmatpush2.bf16.msra.mxu0 0
        %5042 = vmatprep.subr.bf16.mxu0 0
        %5043 = vmatpush2.bf16.msra.mxu0 0
        %5044 = vmatprep.subr.bf16.mxu0 0
        %5045 = vmatpush2.bf16.msra.mxu0 0
        %5046 = vmatprep.mubr.bf16.mxu0 0
        %5047 = vmatmul.mubr.bf16.gmra.mxu0 %v5009
        %v5048 = vpop.f32.mrf.mxu0
        %v5049 = vadd.f32 0.0, %v5048
        %v5050 = vpop.f32.mrf.mxu0
        %v5051 = vpop.f32.mrf.mxu0
        %v5052 = vadd.f32 0.0, %v5051
        %v5053 = vpop.f32.mrf.mxu0
        %5054 = vmatprep.mubr.bf16.mxu0 0
        %5055 = vmatmul.mubr.bf16.gmra.mxu0 %v5012
        %v5056 = vpop.f32.mrf.mxu0
        %v5057 = vadd.f32 0.0, %v5056
        %v5058 = vpop.f32.mrf.mxu0
        %v5059 = vpop.f32.mrf.mxu0
        %v5060 = vadd.f32 0.0, %v5059
        %v5061 = vpop.f32.mrf.mxu0
        %5062 = vdwg.mxu0
        %v5063 = vadd.f32 %v4995, %v5049
        %v5064 = vadd.f32 %v4996, %v5052
        %v5065 = vadd.f32 %v4997, %v5057
        %v5066 = vadd.f32 %v4998, %v5060
        %v5067 = vld [vmem:[%s4565] sm:$0xf]
        %v5068 = vld [vmem:[%s4565 + $0x4] sm:$0xf]
        %v5069 = vld [vmem:[%s4565 + $0x8] sm:$0xf]
        %v5070 = vld [vmem:[%s4565 + $0xc] sm:$0xf]
        %v5075 = vunpack.c.l.b16 %v5067
        %v5076 = vunpack.c.l.b16 %v5068
        %v5077 = vunpack.c.l.b16 %v5069
        %v5078 = vunpack.c.l.b16 %v5070
        %v5079 = vpack.c.b16 %v5076, %v5075
        %v5080 = vpack.c.b16 %v5078, %v5077
        %v5082 = vsel %vm309, %v5079, 0
        %v5085 = vsel %vm309, %v5080, 0
        %5087 = vmatprep.subr.bf16.mxu0 0
        %5088 = vmatpush1.bf16.msra.mxu0 0
        %5089 = vmatprep.subr.bf16.mxu0 0
        %5090 = vmatpush1.bf16.msra.mxu0 0
        %5091 = vmatprep.subr.bf16.mxu0 0
        %5092 = vmatpush1.bf16.msra.mxu0 0
        %5093 = vmatprep.subr.bf16.mxu0 0
        %5094 = vmatpush1.bf16.msra.mxu0 0
        %5095 = vmatprep.subr.bf16.mxu0 0
        %5096 = vmatpush1.bf16.msra.mxu0 0
        %5097 = vmatprep.subr.bf16.mxu0 0
        %5098 = vmatpush1.bf16.msra.mxu0 0
        %5099 = vmatprep.subr.bf16.mxu0 0
        %5100 = vmatpush1.bf16.msra.mxu0 0
        %5101 = vmatprep.subr.bf16.mxu0 0
        %5102 = vmatpush1.bf16.msra.mxu0 %v598
        %5103 = vmatprep.subr.bf16.mxu0 0
        %5104 = vmatpush2.bf16.msra.mxu0 0
        %5105 = vmatprep.subr.bf16.mxu0 0
        %5106 = vmatpush2.bf16.msra.mxu0 0
        %5107 = vmatprep.subr.bf16.mxu0 0
        %5108 = vmatpush2.bf16.msra.mxu0 0
        %5109 = vmatprep.subr.bf16.mxu0 0
        %5110 = vmatpush2.bf16.msra.mxu0 0
        %5111 = vmatprep.subr.bf16.mxu0 0
        %5112 = vmatpush2.bf16.msra.mxu0 0
        %5113 = vmatprep.subr.bf16.mxu0 0
        %5114 = vmatpush2.bf16.msra.mxu0 0
        %5115 = vmatprep.subr.bf16.mxu0 0
        %5116 = vmatpush2.bf16.msra.mxu0 0
        %5117 = vmatprep.subr.bf16.mxu0 0
        %5118 = vmatpush2.bf16.msra.mxu0 0
        %5119 = vmatprep.mubr.bf16.mxu0 0
        %5120 = vmatmul.mubr.bf16.gmra.mxu0 %v5082
        %v5121 = vpop.f32.mrf.mxu0
        %v5122 = vadd.f32 0.0, %v5121
        %v5123 = vpop.f32.mrf.mxu0
        %v5124 = vpop.f32.mrf.mxu0
        %v5125 = vadd.f32 0.0, %v5124
        %v5126 = vpop.f32.mrf.mxu0
        %5127 = vmatprep.mubr.bf16.mxu0 0
        %5128 = vmatmul.mubr.bf16.gmra.mxu0 %v5085
        %v5129 = vpop.f32.mrf.mxu0
        %v5130 = vadd.f32 0.0, %v5129
        %v5131 = vpop.f32.mrf.mxu0
        %v5132 = vpop.f32.mrf.mxu0
        %v5133 = vadd.f32 0.0, %v5132
        %v5134 = vpop.f32.mrf.mxu0
        %5135 = vdwg.mxu0
        %v5136 = vadd.f32 %v5063, %v5122
        %v5137 = vadd.f32 %v5064, %v5125
        %v5138 = vadd.f32 %v5065, %v5130
        %v5139 = vadd.f32 %v5066, %v5133
        %v5140 = vld [vmem:[%s4565] sm:$0xf]
        %v5141 = vld [vmem:[%s4565 + $0x4] sm:$0xf]
        %v5142 = vld [vmem:[%s4565 + $0x8] sm:$0xf]
        %v5143 = vld [vmem:[%s4565 + $0xc] sm:$0xf]
        %v5144 = vld [vmem:[%s4565 + $0x10] sm:$0x1]
        %v5150 = vunpack.c.l.b16 %v5140
        %v5151 = vunpack.c.l.b16 %v5141
        %v5152 = vunpack.c.l.b16 %v5142
        %v5153 = vunpack.c.l.b16 %v5143
        %v5154 = vunpack.c.l.b16 %v5144
        %v5155 = vpack.c.b16 %v5151, %v5150
        %v5156 = vpack.c.b16 %v5153, %v5152
        %v5157 = vpack.c.b16 %v5154, %v5154
        %v5159 = vshrl.u32 %v5155, 16
        %v5161 = vshll.u32 %v5155, 16
        %v5163 = vrot.slane %v5161, 1
        %v5164 = vor.u32 %v5159, %v5163
        %v5166 = vshll.u32 %v5156, 16
        %v5168 = vrot.slane %v5166, 1
        %v5169 = vsel %vm394, %v5164, %v5168
        %v5170 = vshrl.u32 %v5156, 16
        %v5172 = vor.u32 %v5170, %v5168
        %v5174 = vshll.u32 %v5157, 16
        %v5176 = vrot.slane %v5174, 1
        %v5177 = vsel %vm394, %v5172, %v5176
        %v5179 = vsel %vm309, %v5169, 0
        %v5182 = vsel %vm309, %v5177, 0
        %5184 = vmatprep.subr.bf16.mxu0 0
        %5185 = vmatpush1.bf16.msra.mxu0 0
        %5186 = vmatprep.subr.bf16.mxu0 0
        %5187 = vmatpush1.bf16.msra.mxu0 0
        %5188 = vmatprep.subr.bf16.mxu0 0
        %5189 = vmatpush1.bf16.msra.mxu0 0
        %5190 = vmatprep.subr.bf16.mxu0 0
        %5191 = vmatpush1.bf16.msra.mxu0 0
        %5192 = vmatprep.subr.bf16.mxu0 0
        %5193 = vmatpush1.bf16.msra.mxu0 0
        %5194 = vmatprep.subr.bf16.mxu0 0
        %5195 = vmatpush1.bf16.msra.mxu0 0
        %5196 = vmatprep.subr.bf16.mxu0 0
        %5197 = vmatpush1.bf16.msra.mxu0 0
        %5198 = vmatprep.subr.bf16.mxu0 0
        %5199 = vmatpush1.bf16.msra.mxu0 %v702
        %5200 = vmatprep.subr.bf16.mxu0 0
        %5201 = vmatpush2.bf16.msra.mxu0 0
        %5202 = vmatprep.subr.bf16.mxu0 0
        %5203 = vmatpush2.bf16.msra.mxu0 0
        %5204 = vmatprep.subr.bf16.mxu0 0
        %5205 = vmatpush2.bf16.msra.mxu0 0
        %5206 = vmatprep.subr.bf16.mxu0 0
        %5207 = vmatpush2.bf16.msra.mxu0 0
        %5208 = vmatprep.subr.bf16.mxu0 0
        %5209 = vmatpush2.bf16.msra.mxu0 0
        %5210 = vmatprep.subr.bf16.mxu0 0
        %5211 = vmatpush2.bf16.msra.mxu0 0
        %5212 = vmatprep.subr.bf16.mxu0 0
        %5213 = vmatpush2.bf16.msra.mxu0 0
        %5214 = vmatprep.subr.bf16.mxu0 0
        %5215 = vmatpush2.bf16.msra.mxu0 0
        %5216 = vmatprep.mubr.bf16.mxu0 0
        %5217 = vmatmul.mubr.bf16.gmra.mxu0 %v5179
        %v5218 = vpop.f32.mrf.mxu0
        %v5219 = vadd.f32 0.0, %v5218
        %v5220 = vpop.f32.mrf.mxu0
        %v5221 = vpop.f32.mrf.mxu0
        %v5222 = vadd.f32 0.0, %v5221
        %v5223 = vpop.f32.mrf.mxu0
        %5224 = vmatprep.mubr.bf16.mxu0 0
        %5225 = vmatmul.mubr.bf16.gmra.mxu0 %v5182
        %v5226 = vpop.f32.mrf.mxu0
        %v5227 = vadd.f32 0.0, %v5226
        %v5228 = vpop.f32.mrf.mxu0
        %v5229 = vpop.f32.mrf.mxu0
        %v5230 = vadd.f32 0.0, %v5229
        %v5231 = vpop.f32.mrf.mxu0
        %5232 = vdwg.mxu0
        %v5233 = vadd.f32 %v5136, %v5219
        %v5234 = vadd.f32 %v5137, %v5222
        %v5235 = vadd.f32 %v5138, %v5227
        %v5236 = vadd.f32 %v5139, %v5230
        %v5237 = vld [vmem:[%s4565] sm:$0xe]
        %v5239 = vunpack.c.l.b16 %v5237
        %v5240 = vpack.c.b16 %v5151, %v5239
        %v5241 = vrot.slane %v5240, 1
        %v5242 = vrot.slane %v5156, 1
        %v5243 = vsel %vm492, %v5241, %v5242
        %v5244 = vrot.slane %v5157, 1
        %v5245 = vsel %vm492, %v5242, %v5244
        %v5247 = vsel %vm309, %v5243, 0
        %v5250 = vsel %vm309, %v5245, 0
        %5252 = vmatprep.subr.bf16.mxu0 0
        %5253 = vmatpush1.bf16.msra.mxu0 0
        %5254 = vmatprep.subr.bf16.mxu0 0
        %5255 = vmatpush1.bf16.msra.mxu0 0
        %5256 = vmatprep.subr.bf16.mxu0 0
        %5257 = vmatpush1.bf16.msra.mxu0 0
        %5258 = vmatprep.subr.bf16.mxu0 0
        %5259 = vmatpush1.bf16.msra.mxu0 0
        %5260 = vmatprep.subr.bf16.mxu0 0
        %5261 = vmatpush1.bf16.msra.mxu0 0
        %5262 = vmatprep.subr.bf16.mxu0 0
        %5263 = vmatpush1.bf16.msra.mxu0 0
        %5264 = vmatprep.subr.bf16.mxu0 0
        %5265 = vmatpush1.bf16.msra.mxu0 0
        %5266 = vmatprep.subr.bf16.mxu0 0
        %5267 = vmatpush1.bf16.msra.mxu0 %v786
        %5268 = vmatprep.subr.bf16.mxu0 0
        %5269 = vmatpush2.bf16.msra.mxu0 0
        %5270 = vmatprep.subr.bf16.mxu0 0
        %5271 = vmatpush2.bf16.msra.mxu0 0
        %5272 = vmatprep.subr.bf16.mxu0 0
        %5273 = vmatpush2.bf16.msra.mxu0 0
        %5274 = vmatprep.subr.bf16.mxu0 0
        %5275 = vmatpush2.bf16.msra.mxu0 0
        %5276 = vmatprep.subr.bf16.mxu0 0
        %5277 = vmatpush2.bf16.msra.mxu0 0
        %5278 = vmatprep.subr.bf16.mxu0 0
        %5279 = vmatpush2.bf16.msra.mxu0 0
        %5280 = vmatprep.subr.bf16.mxu0 0
        %5281 = vmatpush2.bf16.msra.mxu0 0
        %5282 = vmatprep.subr.bf16.mxu0 0
        %5283 = vmatpush2.bf16.msra.mxu0 0
        %5284 = vmatprep.mubr.bf16.mxu0 0
        %5285 = vmatmul.mubr.bf16.gmra.mxu0 %v5247
        %v5286 = vpop.f32.mrf.mxu0
        %v5287 = vadd.f32 0.0, %v5286
        %v5288 = vpop.f32.mrf.mxu0
        %v5289 = vpop.f32.mrf.mxu0
        %v5290 = vadd.f32 0.0, %v5289
        %v5291 = vpop.f32.mrf.mxu0
        %5292 = vmatprep.mubr.bf16.mxu0 0
        %5293 = vmatmul.mubr.bf16.gmra.mxu0 %v5250
        %v5294 = vpop.f32.mrf.mxu0
        %v5295 = vadd.f32 0.0, %v5294
        %v5296 = vpop.f32.mrf.mxu0
        %v5297 = vpop.f32.mrf.mxu0
        %v5298 = vadd.f32 0.0, %v5297
        %v5299 = vpop.f32.mrf.mxu0
        %5300 = vdwg.mxu0
        %v5301 = vadd.f32 %v5233, %v5287
        %v5302 = vadd.f32 %v5234, %v5290
        %v5303 = vadd.f32 %v5235, %v5295
        %v5304 = vadd.f32 %v5236, %v5298
        %v5305 = vld [vmem:[%s272] sm:$0xf]
        %v5306 = vld [vmem:[%s272 + $0x4] sm:$0xf]
        %v5307 = vld [vmem:[%s272 + $0x8] sm:$0xf]
        %v5308 = vld [vmem:[%s272 + $0xc] sm:$0xf]
        %v5313 = vunpack.c.l.b16 %v5305
        %v5314 = vunpack.c.l.b16 %v5306
        %v5315 = vunpack.c.l.b16 %v5307
        %v5316 = vunpack.c.l.b16 %v5308
        %v5317 = vpack.c.b16 %v5314, %v5313
        %v5318 = vpack.c.b16 %v5316, %v5315
        %v5320 = vsel %vm309, %v5317, 0
        %v5323 = vsel %vm309, %v5318, 0
        %5325 = vmatprep.subr.bf16.mxu0 0
        %5326 = vmatpush1.bf16.msra.mxu0 0
        %5327 = vmatprep.subr.bf16.mxu0 0
        %5328 = vmatpush1.bf16.msra.mxu0 0
        %5329 = vmatprep.subr.bf16.mxu0 0
        %5330 = vmatpush1.bf16.msra.mxu0 0
        %5331 = vmatprep.subr.bf16.mxu0 0
        %5332 = vmatpush1.bf16.msra.mxu0 0
        %5333 = vmatprep.subr.bf16.mxu0 0
        %5334 = vmatpush1.bf16.msra.mxu0 0
        %5335 = vmatprep.subr.bf16.mxu0 0
        %5336 = vmatpush1.bf16.msra.mxu0 0
        %5337 = vmatprep.subr.bf16.mxu0 0
        %5338 = vmatpush1.bf16.msra.mxu0 0
        %5339 = vmatprep.subr.bf16.mxu0 0
        %5340 = vmatpush1.bf16.msra.mxu0 %v867
        %5341 = vmatprep.subr.bf16.mxu0 0
        %5342 = vmatpush2.bf16.msra.mxu0 0
        %5343 = vmatprep.subr.bf16.mxu0 0
        %5344 = vmatpush2.bf16.msra.mxu0 0
        %5345 = vmatprep.subr.bf16.mxu0 0
        %5346 = vmatpush2.bf16.msra.mxu0 0
        %5347 = vmatprep.subr.bf16.mxu0 0
        %5348 = vmatpush2.bf16.msra.mxu0 0
        %5349 = vmatprep.subr.bf16.mxu0 0
        %5350 = vmatpush2.bf16.msra.mxu0 0
        %5351 = vmatprep.subr.bf16.mxu0 0
        %5352 = vmatpush2.bf16.msra.mxu0 0
        %5353 = vmatprep.subr.bf16.mxu0 0
        %5354 = vmatpush2.bf16.msra.mxu0 0
        %5355 = vmatprep.subr.bf16.mxu0 0
        %5356 = vmatpush2.bf16.msra.mxu0 0
        %5357 = vmatprep.mubr.bf16.mxu0 0
        %5358 = vmatmul.mubr.bf16.gmra.mxu0 %v5320
        %v5359 = vpop.f32.mrf.mxu0
        %v5360 = vadd.f32 0.0, %v5359
        %v5361 = vpop.f32.mrf.mxu0
        %v5362 = vpop.f32.mrf.mxu0
        %v5363 = vadd.f32 0.0, %v5362
        %v5364 = vpop.f32.mrf.mxu0
        %5365 = vmatprep.mubr.bf16.mxu0 0
        %5366 = vmatmul.mubr.bf16.gmra.mxu0 %v5323
        %v5367 = vpop.f32.mrf.mxu0
        %v5368 = vadd.f32 0.0, %v5367
        %v5369 = vpop.f32.mrf.mxu0
        %v5370 = vpop.f32.mrf.mxu0
        %v5371 = vadd.f32 0.0, %v5370
        %v5372 = vpop.f32.mrf.mxu0
        %5373 = vdwg.mxu0
        %v5374 = vadd.f32 %v5301, %v5360
        %v5375 = vadd.f32 %v5302, %v5363
        %v5376 = vadd.f32 %v5303, %v5368
        %v5377 = vadd.f32 %v5304, %v5371
        %v5378 = vld [vmem:[%s272] sm:$0xf]
        %v5379 = vld [vmem:[%s272 + $0x4] sm:$0xf]
        %v5380 = vld [vmem:[%s272 + $0x8] sm:$0xf]
        %v5381 = vld [vmem:[%s272 + $0xc] sm:$0xf]
        %v5382 = vld [vmem:[%s272 + $0x10] sm:$0x1]
        %v5388 = vunpack.c.l.b16 %v5378
        %v5389 = vunpack.c.l.b16 %v5379
        %v5390 = vunpack.c.l.b16 %v5380
        %v5391 = vunpack.c.l.b16 %v5381
        %v5392 = vunpack.c.l.b16 %v5382
        %v5393 = vpack.c.b16 %v5389, %v5388
        %v5394 = vpack.c.b16 %v5391, %v5390
        %v5395 = vpack.c.b16 %v5392, %v5392
        %v5397 = vshrl.u32 %v5393, 16
        %v5399 = vshll.u32 %v5393, 16
        %v5401 = vrot.slane %v5399, 1
        %v5402 = vor.u32 %v5397, %v5401
        %v5404 = vshll.u32 %v5394, 16
        %v5406 = vrot.slane %v5404, 1
        %v5407 = vsel %vm394, %v5402, %v5406
        %v5408 = vshrl.u32 %v5394, 16
        %v5410 = vor.u32 %v5408, %v5406
        %v5412 = vshll.u32 %v5395, 16
        %v5414 = vrot.slane %v5412, 1
        %v5415 = vsel %vm394, %v5410, %v5414
        %v5417 = vsel %vm309, %v5407, 0
        %v5420 = vsel %vm309, %v5415, 0
        %5422 = vmatprep.subr.bf16.mxu0 0
        %5423 = vmatpush1.bf16.msra.mxu0 0
        %5424 = vmatprep.subr.bf16.mxu0 0
        %5425 = vmatpush1.bf16.msra.mxu0 0
        %5426 = vmatprep.subr.bf16.mxu0 0
        %5427 = vmatpush1.bf16.msra.mxu0 0
        %5428 = vmatprep.subr.bf16.mxu0 0
        %5429 = vmatpush1.bf16.msra.mxu0 0
        %5430 = vmatprep.subr.bf16.mxu0 0
        %5431 = vmatpush1.bf16.msra.mxu0 0
        %5432 = vmatprep.subr.bf16.mxu0 0
        %5433 = vmatpush1.bf16.msra.mxu0 0
        %5434 = vmatprep.subr.bf16.mxu0 0
        %5435 = vmatpush1.bf16.msra.mxu0 0
        %5436 = vmatprep.subr.bf16.mxu0 0
        %5437 = vmatpush1.bf16.msra.mxu0 %v978
        %5438 = vmatprep.subr.bf16.mxu0 0
        %5439 = vmatpush2.bf16.msra.mxu0 0
        %5440 = vmatprep.subr.bf16.mxu0 0
        %5441 = vmatpush2.bf16.msra.mxu0 0
        %5442 = vmatprep.subr.bf16.mxu0 0
        %5443 = vmatpush2.bf16.msra.mxu0 0
        %5444 = vmatprep.subr.bf16.mxu0 0
        %5445 = vmatpush2.bf16.msra.mxu0 0
        %5446 = vmatprep.subr.bf16.mxu0 0
        %5447 = vmatpush2.bf16.msra.mxu0 0
        %5448 = vmatprep.subr.bf16.mxu0 0
        %5449 = vmatpush2.bf16.msra.mxu0 0
        %5450 = vmatprep.subr.bf16.mxu0 0
        %5451 = vmatpush2.bf16.msra.mxu0 0
        %5452 = vmatprep.subr.bf16.mxu0 0
        %5453 = vmatpush2.bf16.msra.mxu0 0
        %5454 = vmatprep.mubr.bf16.mxu0 0
        %5455 = vmatmul.mubr.bf16.gmra.mxu0 %v5417
        %v5456 = vpop.f32.mrf.mxu0
        %v5457 = vadd.f32 0.0, %v5456
        %v5458 = vpop.f32.mrf.mxu0
        %v5459 = vpop.f32.mrf.mxu0
        %v5460 = vadd.f32 0.0, %v5459
        %v5461 = vpop.f32.mrf.mxu0
        %5462 = vmatprep.mubr.bf16.mxu0 0
        %5463 = vmatmul.mubr.bf16.gmra.mxu0 %v5420
        %v5464 = vpop.f32.mrf.mxu0
        %v5465 = vadd.f32 0.0, %v5464
        %v5466 = vpop.f32.mrf.mxu0
        %v5467 = vpop.f32.mrf.mxu0
        %v5468 = vadd.f32 0.0, %v5467
        %v5469 = vpop.f32.mrf.mxu0
        %5470 = vdwg.mxu0
        %v5471 = vadd.f32 %v5374, %v5457
        %v5472 = vadd.f32 %v5375, %v5460
        %v5473 = vadd.f32 %v5376, %v5465
        %v5474 = vadd.f32 %v5377, %v5468
        %v5475 = vld [vmem:[%s272] sm:$0xe]
        %v5477 = vunpack.c.l.b16 %v5475
        %v5478 = vpack.c.b16 %v5389, %v5477
        %v5479 = vrot.slane %v5478, 1
        %v5480 = vrot.slane %v5394, 1
        %v5481 = vsel %vm492, %v5479, %v5480
        %v5482 = vrot.slane %v5395, 1
        %v5483 = vsel %vm492, %v5480, %v5482
        %v5485 = vsel %vm309, %v5481, 0
        %v5488 = vsel %vm309, %v5483, 0
        %5490 = vmatprep.subr.bf16.mxu0 0
        %5491 = vmatpush1.bf16.msra.mxu0 0
        %5492 = vmatprep.subr.bf16.mxu0 0
        %5493 = vmatpush1.bf16.msra.mxu0 0
        %5494 = vmatprep.subr.bf16.mxu0 0
        %5495 = vmatpush1.bf16.msra.mxu0 0
        %5496 = vmatprep.subr.bf16.mxu0 0
        %5497 = vmatpush1.bf16.msra.mxu0 0
        %5498 = vmatprep.subr.bf16.mxu0 0
        %5499 = vmatpush1.bf16.msra.mxu0 0
        %5500 = vmatprep.subr.bf16.mxu0 0
        %5501 = vmatpush1.bf16.msra.mxu0 0
        %5502 = vmatprep.subr.bf16.mxu0 0
        %5503 = vmatpush1.bf16.msra.mxu0 0
        %5504 = vmatprep.subr.bf16.mxu0 0
        %5505 = vmatpush1.bf16.msra.mxu0 %v1049
        %5506 = vmatprep.subr.bf16.mxu0 0
        %5507 = vmatpush2.bf16.msra.mxu0 0
        %5508 = vmatprep.subr.bf16.mxu0 0
        %5509 = vmatpush2.bf16.msra.mxu0 0
        %5510 = vmatprep.subr.bf16.mxu0 0
        %5511 = vmatpush2.bf16.msra.mxu0 0
        %5512 = vmatprep.subr.bf16.mxu0 0
        %5513 = vmatpush2.bf16.msra.mxu0 0
        %5514 = vmatprep.subr.bf16.mxu0 0
        %5515 = vmatpush2.bf16.msra.mxu0 0
        %5516 = vmatprep.subr.bf16.mxu0 0
        %5517 = vmatpush2.bf16.msra.mxu0 0
        %5518 = vmatprep.subr.bf16.mxu0 0
        %5519 = vmatpush2.bf16.msra.mxu0 0
        %5520 = vmatprep.subr.bf16.mxu0 0
        %5521 = vmatpush2.bf16.msra.mxu0 0
        %5522 = vmatprep.mubr.bf16.mxu0 0
        %5523 = vmatmul.mubr.bf16.gmra.mxu0 %v5485
        %v5524 = vpop.f32.mrf.mxu0
        %v5525 = vadd.f32 0.0, %v5524
        %v5526 = vpop.f32.mrf.mxu0
        %v5527 = vpop.f32.mrf.mxu0
        %v5528 = vadd.f32 0.0, %v5527
        %v5529 = vpop.f32.mrf.mxu0
        %5530 = vmatprep.mubr.bf16.mxu0 0
        %5531 = vmatmul.mubr.bf16.gmra.mxu0 %v5488
        %v5532 = vpop.f32.mrf.mxu0
        %v5533 = vadd.f32 0.0, %v5532
        %v5534 = vpop.f32.mrf.mxu0
        %v5535 = vpop.f32.mrf.mxu0
        %v5536 = vadd.f32 0.0, %v5535
        %v5537 = vpop.f32.mrf.mxu0
        %5538 = vdwg.mxu0
        %v5539 = vadd.f32 %v5471, %v5525
        %v5540 = vadd.f32 %v5472, %v5528
        %v5541 = vadd.f32 %v5473, %v5533
        %v5542 = vadd.f32 %v5474, %v5536
        %v5543 = vmax.f32 %v5539, 0.0
        %v5544 = vmax.f32 %v5540, 0.0
        %v5545 = vmax.f32 %v5541, 0.0
        %v5546 = vmax.f32 %v5542, 0.0
        %v5547 = vpack.c.bf16 %v5544, %v5543
        %v5548 = vpack.c.bf16 %v5546, %v5545
        %v5551 = vunpack.c.l.b16 %v5547
        %v5552 = vunpack.c.h.b16 %v5547
        %v5553 = vunpack.c.l.b16 %v5548
        %v5554 = vunpack.c.h.b16 %v5548
        %v5555 = vpack.c.b16 %v5551, %v5551
        %v5556 = vpack.c.b16 %v5552, %v5552
        %v5557 = vpack.c.b16 %v5553, %v5553
        %v5558 = vpack.c.b16 %v5554, %v5554
        %s5563 = scalar_lea.vmem %s250, 96 [#allocation2]
        %5564 = vst.msk [vmem:[%s5563] sm:$0xf] %vm1124, %v5555
        %5565 = vst.msk [vmem:[%s5563 + $0x4] sm:$0xf] %vm1124, %v5556
        %5566 = vst.msk [vmem:[%s5563 + $0x8] sm:$0xf] %vm1124, %v5557
        %5567 = vst.msk [vmem:[%s5563 + $0xc] sm:$0xf] %vm1124, %v5558
        %v5568 = vld [vmem:[%s4565] sm:$0xf]
        %v5569 = vld [vmem:[%s4565 + $0x4] sm:$0xf]
        %v5570 = vld [vmem:[%s4565 + $0x8] sm:$0xf]
        %v5571 = vld [vmem:[%s4565 + $0xc] sm:$0xf]
        %v5576 = vunpack.c.l.b16 %v5568
        %v5577 = vunpack.c.l.b16 %v5569
        %v5578 = vunpack.c.l.b16 %v5570
        %v5579 = vunpack.c.l.b16 %v5571
        %v5580 = vpack.c.b16 %v5577, %v5576
        %v5581 = vpack.c.b16 %v5579, %v5578
        %v5583 = vsel %vm309, %v5580, 0
        %v5586 = vsel %vm309, %v5581, 0
        %5588 = vmatprep.subr.bf16.mxu0 0
        %5589 = vmatpush1.bf16.msra.mxu0 0
        %5590 = vmatprep.subr.bf16.mxu0 0
        %5591 = vmatpush1.bf16.msra.mxu0 0
        %5592 = vmatprep.subr.bf16.mxu0 0
        %5593 = vmatpush1.bf16.msra.mxu0 0
        %5594 = vmatprep.subr.bf16.mxu0 0
        %5595 = vmatpush1.bf16.msra.mxu0 0
        %5596 = vmatprep.subr.bf16.mxu0 0
        %5597 = vmatpush1.bf16.msra.mxu0 0
        %5598 = vmatprep.subr.bf16.mxu0 0
        %5599 = vmatpush1.bf16.msra.mxu0 0
        %5600 = vmatprep.subr.bf16.mxu0 0
        %5601 = vmatpush1.bf16.msra.mxu0 0
        %5602 = vmatprep.subr.bf16.mxu0 0
        %5603 = vmatpush1.bf16.msra.mxu0 %v321
        %5604 = vmatprep.subr.bf16.mxu0 0
        %5605 = vmatpush2.bf16.msra.mxu0 0
        %5606 = vmatprep.subr.bf16.mxu0 0
        %5607 = vmatpush2.bf16.msra.mxu0 0
        %5608 = vmatprep.subr.bf16.mxu0 0
        %5609 = vmatpush2.bf16.msra.mxu0 0
        %5610 = vmatprep.subr.bf16.mxu0 0
        %5611 = vmatpush2.bf16.msra.mxu0 0
        %5612 = vmatprep.subr.bf16.mxu0 0
        %5613 = vmatpush2.bf16.msra.mxu0 0
        %5614 = vmatprep.subr.bf16.mxu0 0
        %5615 = vmatpush2.bf16.msra.mxu0 0
        %5616 = vmatprep.subr.bf16.mxu0 0
        %5617 = vmatpush2.bf16.msra.mxu0 0
        %5618 = vmatprep.subr.bf16.mxu0 0
        %5619 = vmatpush2.bf16.msra.mxu0 0
        %5620 = vmatprep.mubr.bf16.mxu0 0
        %5621 = vmatmul.mubr.bf16.gmra.mxu0 %v5583
        %v5622 = vpop.f32.mrf.mxu0
        %v5623 = vadd.f32 0.0, %v5622
        %v5624 = vpop.f32.mrf.mxu0
        %v5625 = vpop.f32.mrf.mxu0
        %v5626 = vadd.f32 0.0, %v5625
        %v5627 = vpop.f32.mrf.mxu0
        %5628 = vmatprep.mubr.bf16.mxu0 0
        %5629 = vmatmul.mubr.bf16.gmra.mxu0 %v5586
        %v5630 = vpop.f32.mrf.mxu0
        %v5631 = vadd.f32 0.0, %v5630
        %v5632 = vpop.f32.mrf.mxu0
        %v5633 = vpop.f32.mrf.mxu0
        %v5634 = vadd.f32 0.0, %v5633
        %v5635 = vpop.f32.mrf.mxu0
        %5636 = vdwg.mxu0
        %v5637 = vadd.f32 %v282, %v5623
        %v5638 = vadd.f32 %v282, %v5626
        %v5639 = vadd.f32 %v282, %v5631
        %v5640 = vadd.f32 %v282, %v5634
        %v5641 = vld [vmem:[%s4565] sm:$0xf]
        %v5642 = vld [vmem:[%s4565 + $0x4] sm:$0xf]
        %v5643 = vld [vmem:[%s4565 + $0x8] sm:$0xf]
        %v5644 = vld [vmem:[%s4565 + $0xc] sm:$0xf]
        %v5645 = vld [vmem:[%s4565 + $0x10] sm:$0x1]
        %v5651 = vunpack.c.l.b16 %v5641
        %v5652 = vunpack.c.l.b16 %v5642
        %v5653 = vunpack.c.l.b16 %v5643
        %v5654 = vunpack.c.l.b16 %v5644
        %v5655 = vunpack.c.l.b16 %v5645
        %v5656 = vpack.c.b16 %v5652, %v5651
        %v5657 = vpack.c.b16 %v5654, %v5653
        %v5658 = vpack.c.b16 %v5655, %v5655
        %v5660 = vshrl.u32 %v5656, 16
        %v5662 = vshll.u32 %v5656, 16
        %v5664 = vrot.slane %v5662, 1
        %v5665 = vor.u32 %v5660, %v5664
        %v5667 = vshll.u32 %v5657, 16
        %v5669 = vrot.slane %v5667, 1
        %v5670 = vsel %vm394, %v5665, %v5669
        %v5671 = vshrl.u32 %v5657, 16
        %v5673 = vor.u32 %v5671, %v5669
        %v5675 = vshll.u32 %v5658, 16
        %v5677 = vrot.slane %v5675, 1
        %v5678 = vsel %vm394, %v5673, %v5677
        %v5680 = vsel %vm309, %v5670, 0
        %v5683 = vsel %vm309, %v5678, 0
        %5685 = vmatprep.subr.bf16.mxu0 0
        %5686 = vmatpush1.bf16.msra.mxu0 0
        %5687 = vmatprep.subr.bf16.mxu0 0
        %5688 = vmatpush1.bf16.msra.mxu0 0
        %5689 = vmatprep.subr.bf16.mxu0 0
        %5690 = vmatpush1.bf16.msra.mxu0 0
        %5691 = vmatprep.subr.bf16.mxu0 0
        %5692 = vmatpush1.bf16.msra.mxu0 0
        %5693 = vmatprep.subr.bf16.mxu0 0
        %5694 = vmatpush1.bf16.msra.mxu0 0
        %5695 = vmatprep.subr.bf16.mxu0 0
        %5696 = vmatpush1.bf16.msra.mxu0 0
        %5697 = vmatprep.subr.bf16.mxu0 0
        %5698 = vmatpush1.bf16.msra.mxu0 0
        %5699 = vmatprep.subr.bf16.mxu0 0
        %5700 = vmatpush1.bf16.msra.mxu0 %v433
        %5701 = vmatprep.subr.bf16.mxu0 0
        %5702 = vmatpush2.bf16.msra.mxu0 0
        %5703 = vmatprep.subr.bf16.mxu0 0
        %5704 = vmatpush2.bf16.msra.mxu0 0
        %5705 = vmatprep.subr.bf16.mxu0 0
        %5706 = vmatpush2.bf16.msra.mxu0 0
        %5707 = vmatprep.subr.bf16.mxu0 0
        %5708 = vmatpush2.bf16.msra.mxu0 0
        %5709 = vmatprep.subr.bf16.mxu0 0
        %5710 = vmatpush2.bf16.msra.mxu0 0
        %5711 = vmatprep.subr.bf16.mxu0 0
        %5712 = vmatpush2.bf16.msra.mxu0 0
        %5713 = vmatprep.subr.bf16.mxu0 0
        %5714 = vmatpush2.bf16.msra.mxu0 0
        %5715 = vmatprep.subr.bf16.mxu0 0
        %5716 = vmatpush2.bf16.msra.mxu0 0
        %5717 = vmatprep.mubr.bf16.mxu0 0
        %5718 = vmatmul.mubr.bf16.gmra.mxu0 %v5680
        %v5719 = vpop.f32.mrf.mxu0
        %v5720 = vadd.f32 0.0, %v5719
        %v5721 = vpop.f32.mrf.mxu0
        %v5722 = vpop.f32.mrf.mxu0
        %v5723 = vadd.f32 0.0, %v5722
        %v5724 = vpop.f32.mrf.mxu0
        %5725 = vmatprep.mubr.bf16.mxu0 0
        %5726 = vmatmul.mubr.bf16.gmra.mxu0 %v5683
        %v5727 = vpop.f32.mrf.mxu0
        %v5728 = vadd.f32 0.0, %v5727
        %v5729 = vpop.f32.mrf.mxu0
        %v5730 = vpop.f32.mrf.mxu0
        %v5731 = vadd.f32 0.0, %v5730
        %v5732 = vpop.f32.mrf.mxu0
        %5733 = vdwg.mxu0
        %v5734 = vadd.f32 %v5637, %v5720
        %v5735 = vadd.f32 %v5638, %v5723
        %v5736 = vadd.f32 %v5639, %v5728
        %v5737 = vadd.f32 %v5640, %v5731
        %v5738 = vld [vmem:[%s4565] sm:$0xe]
        %v5740 = vunpack.c.l.b16 %v5738
        %v5741 = vpack.c.b16 %v5652, %v5740
        %v5742 = vrot.slane %v5741, 1
        %v5743 = vrot.slane %v5657, 1
        %v5744 = vsel %vm492, %v5742, %v5743
        %v5745 = vrot.slane %v5658, 1
        %v5746 = vsel %vm492, %v5743, %v5745
        %v5748 = vsel %vm309, %v5744, 0
        %v5751 = vsel %vm309, %v5746, 0
        %5753 = vmatprep.subr.bf16.mxu0 0
        %5754 = vmatpush1.bf16.msra.mxu0 0
        %5755 = vmatprep.subr.bf16.mxu0 0
        %5756 = vmatpush1.bf16.msra.mxu0 0
        %5757 = vmatprep.subr.bf16.mxu0 0
        %5758 = vmatpush1.bf16.msra.mxu0 0
        %5759 = vmatprep.subr.bf16.mxu0 0
        %5760 = vmatpush1.bf16.msra.mxu0 0
        %5761 = vmatprep.subr.bf16.mxu0 0
        %5762 = vmatpush1.bf16.msra.mxu0 0
        %5763 = vmatprep.subr.bf16.mxu0 0
        %5764 = vmatpush1.bf16.msra.mxu0 0
        %5765 = vmatprep.subr.bf16.mxu0 0
        %5766 = vmatpush1.bf16.msra.mxu0 0
        %5767 = vmatprep.subr.bf16.mxu0 0
        %5768 = vmatpush1.bf16.msra.mxu0 %v511
        %5769 = vmatprep.subr.bf16.mxu0 0
        %5770 = vmatpush2.bf16.msra.mxu0 0
        %5771 = vmatprep.subr.bf16.mxu0 0
        %5772 = vmatpush2.bf16.msra.mxu0 0
        %5773 = vmatprep.subr.bf16.mxu0 0
        %5774 = vmatpush2.bf16.msra.mxu0 0
        %5775 = vmatprep.subr.bf16.mxu0 0
        %5776 = vmatpush2.bf16.msra.mxu0 0
        %5777 = vmatprep.subr.bf16.mxu0 0
        %5778 = vmatpush2.bf16.msra.mxu0 0
        %5779 = vmatprep.subr.bf16.mxu0 0
        %5780 = vmatpush2.bf16.msra.mxu0 0
        %5781 = vmatprep.subr.bf16.mxu0 0
        %5782 = vmatpush2.bf16.msra.mxu0 0
        %5783 = vmatprep.subr.bf16.mxu0 0
        %5784 = vmatpush2.bf16.msra.mxu0 0
        %5785 = vmatprep.mubr.bf16.mxu0 0
        %5786 = vmatmul.mubr.bf16.gmra.mxu0 %v5748
        %v5787 = vpop.f32.mrf.mxu0
        %v5788 = vadd.f32 0.0, %v5787
        %v5789 = vpop.f32.mrf.mxu0
        %v5790 = vpop.f32.mrf.mxu0
        %v5791 = vadd.f32 0.0, %v5790
        %v5792 = vpop.f32.mrf.mxu0
        %5793 = vmatprep.mubr.bf16.mxu0 0
        %5794 = vmatmul.mubr.bf16.gmra.mxu0 %v5751
        %v5795 = vpop.f32.mrf.mxu0
        %v5796 = vadd.f32 0.0, %v5795
        %v5797 = vpop.f32.mrf.mxu0
        %v5798 = vpop.f32.mrf.mxu0
        %v5799 = vadd.f32 0.0, %v5798
        %v5800 = vpop.f32.mrf.mxu0
        %5801 = vdwg.mxu0
        %v5802 = vadd.f32 %v5734, %v5788
        %v5803 = vadd.f32 %v5735, %v5791
        %v5804 = vadd.f32 %v5736, %v5796
        %v5805 = vadd.f32 %v5737, %v5799
        %v5806 = vld [vmem:[%s272] sm:$0xf]
        %v5807 = vld [vmem:[%s272 + $0x4] sm:$0xf]
        %v5808 = vld [vmem:[%s272 + $0x8] sm:$0xf]
        %v5809 = vld [vmem:[%s272 + $0xc] sm:$0xf]
        %v5814 = vunpack.c.l.b16 %v5806
        %v5815 = vunpack.c.l.b16 %v5807
        %v5816 = vunpack.c.l.b16 %v5808
        %v5817 = vunpack.c.l.b16 %v5809
        %v5818 = vpack.c.b16 %v5815, %v5814
        %v5819 = vpack.c.b16 %v5817, %v5816
        %v5821 = vsel %vm309, %v5818, 0
        %v5824 = vsel %vm309, %v5819, 0
        %5826 = vmatprep.subr.bf16.mxu0 0
        %5827 = vmatpush1.bf16.msra.mxu0 0
        %5828 = vmatprep.subr.bf16.mxu0 0
        %5829 = vmatpush1.bf16.msra.mxu0 0
        %5830 = vmatprep.subr.bf16.mxu0 0
        %5831 = vmatpush1.bf16.msra.mxu0 0
        %5832 = vmatprep.subr.bf16.mxu0 0
        %5833 = vmatpush1.bf16.msra.mxu0 0
        %5834 = vmatprep.subr.bf16.mxu0 0
        %5835 = vmatpush1.bf16.msra.mxu0 0
        %5836 = vmatprep.subr.bf16.mxu0 0
        %5837 = vmatpush1.bf16.msra.mxu0 0
        %5838 = vmatprep.subr.bf16.mxu0 0
        %5839 = vmatpush1.bf16.msra.mxu0 0
        %5840 = vmatprep.subr.bf16.mxu0 0
        %5841 = vmatpush1.bf16.msra.mxu0 %v598
        %5842 = vmatprep.subr.bf16.mxu0 0
        %5843 = vmatpush2.bf16.msra.mxu0 0
        %5844 = vmatprep.subr.bf16.mxu0 0
        %5845 = vmatpush2.bf16.msra.mxu0 0
        %5846 = vmatprep.subr.bf16.mxu0 0
        %5847 = vmatpush2.bf16.msra.mxu0 0
        %5848 = vmatprep.subr.bf16.mxu0 0
        %5849 = vmatpush2.bf16.msra.mxu0 0
        %5850 = vmatprep.subr.bf16.mxu0 0
        %5851 = vmatpush2.bf16.msra.mxu0 0
        %5852 = vmatprep.subr.bf16.mxu0 0
        %5853 = vmatpush2.bf16.msra.mxu0 0
        %5854 = vmatprep.subr.bf16.mxu0 0
        %5855 = vmatpush2.bf16.msra.mxu0 0
        %5856 = vmatprep.subr.bf16.mxu0 0
        %5857 = vmatpush2.bf16.msra.mxu0 0
        %5858 = vmatprep.mubr.bf16.mxu0 0
        %5859 = vmatmul.mubr.bf16.gmra.mxu0 %v5821
        %v5860 = vpop.f32.mrf.mxu0
        %v5861 = vadd.f32 0.0, %v5860
        %v5862 = vpop.f32.mrf.mxu0
        %v5863 = vpop.f32.mrf.mxu0
        %v5864 = vadd.f32 0.0, %v5863
        %v5865 = vpop.f32.mrf.mxu0
        %5866 = vmatprep.mubr.bf16.mxu0 0
        %5867 = vmatmul.mubr.bf16.gmra.mxu0 %v5824
        %v5868 = vpop.f32.mrf.mxu0
        %v5869 = vadd.f32 0.0, %v5868
        %v5870 = vpop.f32.mrf.mxu0
        %v5871 = vpop.f32.mrf.mxu0
        %v5872 = vadd.f32 0.0, %v5871
        %v5873 = vpop.f32.mrf.mxu0
        %5874 = vdwg.mxu0
        %v5875 = vadd.f32 %v5802, %v5861
        %v5876 = vadd.f32 %v5803, %v5864
        %v5877 = vadd.f32 %v5804, %v5869
        %v5878 = vadd.f32 %v5805, %v5872
        %v5879 = vld [vmem:[%s272] sm:$0xf]
        %v5880 = vld [vmem:[%s272 + $0x4] sm:$0xf]
        %v5881 = vld [vmem:[%s272 + $0x8] sm:$0xf]
        %v5882 = vld [vmem:[%s272 + $0xc] sm:$0xf]
        %v5883 = vld [vmem:[%s272 + $0x10] sm:$0x1]
        %v5889 = vunpack.c.l.b16 %v5879
        %v5890 = vunpack.c.l.b16 %v5880
        %v5891 = vunpack.c.l.b16 %v5881
        %v5892 = vunpack.c.l.b16 %v5882
        %v5893 = vunpack.c.l.b16 %v5883
        %v5894 = vpack.c.b16 %v5890, %v5889
        %v5895 = vpack.c.b16 %v5892, %v5891
        %v5896 = vpack.c.b16 %v5893, %v5893
        %v5898 = vshrl.u32 %v5894, 16
        %v5900 = vshll.u32 %v5894, 16
        %v5902 = vrot.slane %v5900, 1
        %v5903 = vor.u32 %v5898, %v5902
        %v5905 = vshll.u32 %v5895, 16
        %v5907 = vrot.slane %v5905, 1
        %v5908 = vsel %vm394, %v5903, %v5907
        %v5909 = vshrl.u32 %v5895, 16
        %v5911 = vor.u32 %v5909, %v5907
        %v5913 = vshll.u32 %v5896, 16
        %v5915 = vrot.slane %v5913, 1
        %v5916 = vsel %vm394, %v5911, %v5915
        %v5918 = vsel %vm309, %v5908, 0
        %v5921 = vsel %vm309, %v5916, 0
        %5923 = vmatprep.subr.bf16.mxu0 0
        %5924 = vmatpush1.bf16.msra.mxu0 0
        %5925 = vmatprep.subr.bf16.mxu0 0
        %5926 = vmatpush1.bf16.msra.mxu0 0
        %5927 = vmatprep.subr.bf16.mxu0 0
        %5928 = vmatpush1.bf16.msra.mxu0 0
        %5929 = vmatprep.subr.bf16.mxu0 0
        %5930 = vmatpush1.bf16.msra.mxu0 0
        %5931 = vmatprep.subr.bf16.mxu0 0
        %5932 = vmatpush1.bf16.msra.mxu0 0
        %5933 = vmatprep.subr.bf16.mxu0 0
        %5934 = vmatpush1.bf16.msra.mxu0 0
        %5935 = vmatprep.subr.bf16.mxu0 0
        %5936 = vmatpush1.bf16.msra.mxu0 0
        %5937 = vmatprep.subr.bf16.mxu0 0
        %5938 = vmatpush1.bf16.msra.mxu0 %v702
        %5939 = vmatprep.subr.bf16.mxu0 0
        %5940 = vmatpush2.bf16.msra.mxu0 0
        %5941 = vmatprep.subr.bf16.mxu0 0
        %5942 = vmatpush2.bf16.msra.mxu0 0
        %5943 = vmatprep.subr.bf16.mxu0 0
        %5944 = vmatpush2.bf16.msra.mxu0 0
        %5945 = vmatprep.subr.bf16.mxu0 0
        %5946 = vmatpush2.bf16.msra.mxu0 0
        %5947 = vmatprep.subr.bf16.mxu0 0
        %5948 = vmatpush2.bf16.msra.mxu0 0
        %5949 = vmatprep.subr.bf16.mxu0 0
        %5950 = vmatpush2.bf16.msra.mxu0 0
        %5951 = vmatprep.subr.bf16.mxu0 0
        %5952 = vmatpush2.bf16.msra.mxu0 0
        %5953 = vmatprep.subr.bf16.mxu0 0
        %5954 = vmatpush2.bf16.msra.mxu0 0
        %5955 = vmatprep.mubr.bf16.mxu0 0
        %5956 = vmatmul.mubr.bf16.gmra.mxu0 %v5918
        %v5957 = vpop.f32.mrf.mxu0
        %v5958 = vadd.f32 0.0, %v5957
        %v5959 = vpop.f32.mrf.mxu0
        %v5960 = vpop.f32.mrf.mxu0
        %v5961 = vadd.f32 0.0, %v5960
        %v5962 = vpop.f32.mrf.mxu0
        %5963 = vmatprep.mubr.bf16.mxu0 0
        %5964 = vmatmul.mubr.bf16.gmra.mxu0 %v5921
        %v5965 = vpop.f32.mrf.mxu0
        %v5966 = vadd.f32 0.0, %v5965
        %v5967 = vpop.f32.mrf.mxu0
        %v5968 = vpop.f32.mrf.mxu0
        %v5969 = vadd.f32 0.0, %v5968
        %v5970 = vpop.f32.mrf.mxu0
        %5971 = vdwg.mxu0
        %v5972 = vadd.f32 %v5875, %v5958
        %v5973 = vadd.f32 %v5876, %v5961
        %v5974 = vadd.f32 %v5877, %v5966
        %v5975 = vadd.f32 %v5878, %v5969
        %v5976 = vld [vmem:[%s272] sm:$0xe]
        %v5978 = vunpack.c.l.b16 %v5976
        %v5979 = vpack.c.b16 %v5890, %v5978
        %v5980 = vrot.slane %v5979, 1
        %v5981 = vrot.slane %v5895, 1
        %v5982 = vsel %vm492, %v5980, %v5981
        %v5983 = vrot.slane %v5896, 1
        %v5984 = vsel %vm492, %v5981, %v5983
        %v5986 = vsel %vm309, %v5982, 0
        %v5989 = vsel %vm309, %v5984, 0
        %5991 = vmatprep.subr.bf16.mxu0 0
        %5992 = vmatpush1.bf16.msra.mxu0 0
        %5993 = vmatprep.subr.bf16.mxu0 0
        %5994 = vmatpush1.bf16.msra.mxu0 0
        %5995 = vmatprep.subr.bf16.mxu0 0
        %5996 = vmatpush1.bf16.msra.mxu0 0
        %5997 = vmatprep.subr.bf16.mxu0 0
        %5998 = vmatpush1.bf16.msra.mxu0 0
        %5999 = vmatprep.subr.bf16.mxu0 0
        %6000 = vmatpush1.bf16.msra.mxu0 0
        %6001 = vmatprep.subr.bf16.mxu0 0
        %6002 = vmatpush1.bf16.msra.mxu0 0
        %6003 = vmatprep.subr.bf16.mxu0 0
        %6004 = vmatpush1.bf16.msra.mxu0 0
        %6005 = vmatprep.subr.bf16.mxu0 0
        %6006 = vmatpush1.bf16.msra.mxu0 %v786
        %6007 = vmatprep.subr.bf16.mxu0 0
        %6008 = vmatpush2.bf16.msra.mxu0 0
        %6009 = vmatprep.subr.bf16.mxu0 0
        %6010 = vmatpush2.bf16.msra.mxu0 0
        %6011 = vmatprep.subr.bf16.mxu0 0
        %6012 = vmatpush2.bf16.msra.mxu0 0
        %6013 = vmatprep.subr.bf16.mxu0 0
        %6014 = vmatpush2.bf16.msra.mxu0 0
        %6015 = vmatprep.subr.bf16.mxu0 0
        %6016 = vmatpush2.bf16.msra.mxu0 0
        %6017 = vmatprep.subr.bf16.mxu0 0
        %6018 = vmatpush2.bf16.msra.mxu0 0
        %6019 = vmatprep.subr.bf16.mxu0 0
        %6020 = vmatpush2.bf16.msra.mxu0 0
        %6021 = vmatprep.subr.bf16.mxu0 0
        %6022 = vmatpush2.bf16.msra.mxu0 0
        %6023 = vmatprep.mubr.bf16.mxu0 0
        %6024 = vmatmul.mubr.bf16.gmra.mxu0 %v5986
        %v6025 = vpop.f32.mrf.mxu0
        %v6026 = vadd.f32 0.0, %v6025
        %v6027 = vpop.f32.mrf.mxu0
        %v6028 = vpop.f32.mrf.mxu0
        %v6029 = vadd.f32 0.0, %v6028
        %v6030 = vpop.f32.mrf.mxu0
        %6031 = vmatprep.mubr.bf16.mxu0 0
        %6032 = vmatmul.mubr.bf16.gmra.mxu0 %v5989
        %v6033 = vpop.f32.mrf.mxu0
        %v6034 = vadd.f32 0.0, %v6033
        %v6035 = vpop.f32.mrf.mxu0
        %v6036 = vpop.f32.mrf.mxu0
        %v6037 = vadd.f32 0.0, %v6036
        %v6038 = vpop.f32.mrf.mxu0
        %6039 = vdwg.mxu0
        %v6040 = vadd.f32 %v5972, %v6026
        %v6041 = vadd.f32 %v5973, %v6029
        %v6042 = vadd.f32 %v5974, %v6034
        %v6043 = vadd.f32 %v5975, %v6037
        %s6044 = scalar_lea.vmem %s272, 20
        %v6045 = vld [vmem:[%s6044] sm:$0xf]
        %v6046 = vld [vmem:[%s6044 + $0x4] sm:$0xf]
        %v6047 = vld [vmem:[%s6044 + $0x8] sm:$0xf]
        %v6048 = vld [vmem:[%s6044 + $0xc] sm:$0xf]
        %v6053 = vunpack.c.l.b16 %v6045
        %v6054 = vunpack.c.l.b16 %v6046
        %v6055 = vunpack.c.l.b16 %v6047
        %v6056 = vunpack.c.l.b16 %v6048
        %v6057 = vpack.c.b16 %v6054, %v6053
        %v6058 = vpack.c.b16 %v6056, %v6055
        %v6060 = vsel %vm309, %v6057, 0
        %v6063 = vsel %vm309, %v6058, 0
        %6065 = vmatprep.subr.bf16.mxu0 0
        %6066 = vmatpush1.bf16.msra.mxu0 0
        %6067 = vmatprep.subr.bf16.mxu0 0
        %6068 = vmatpush1.bf16.msra.mxu0 0
        %6069 = vmatprep.subr.bf16.mxu0 0
        %6070 = vmatpush1.bf16.msra.mxu0 0
        %6071 = vmatprep.subr.bf16.mxu0 0
        %6072 = vmatpush1.bf16.msra.mxu0 0
        %6073 = vmatprep.subr.bf16.mxu0 0
        %6074 = vmatpush1.bf16.msra.mxu0 0
        %6075 = vmatprep.subr.bf16.mxu0 0
        %6076 = vmatpush1.bf16.msra.mxu0 0
        %6077 = vmatprep.subr.bf16.mxu0 0
        %6078 = vmatpush1.bf16.msra.mxu0 0
        %6079 = vmatprep.subr.bf16.mxu0 0
        %6080 = vmatpush1.bf16.msra.mxu0 %v867
        %6081 = vmatprep.subr.bf16.mxu0 0
        %6082 = vmatpush2.bf16.msra.mxu0 0
        %6083 = vmatprep.subr.bf16.mxu0 0
        %6084 = vmatpush2.bf16.msra.mxu0 0
        %6085 = vmatprep.subr.bf16.mxu0 0
        %6086 = vmatpush2.bf16.msra.mxu0 0
        %6087 = vmatprep.subr.bf16.mxu0 0
        %6088 = vmatpush2.bf16.msra.mxu0 0
        %6089 = vmatprep.subr.bf16.mxu0 0
        %6090 = vmatpush2.bf16.msra.mxu0 0
        %6091 = vmatprep.subr.bf16.mxu0 0
        %6092 = vmatpush2.bf16.msra.mxu0 0
        %6093 = vmatprep.subr.bf16.mxu0 0
        %6094 = vmatpush2.bf16.msra.mxu0 0
        %6095 = vmatprep.subr.bf16.mxu0 0
        %6096 = vmatpush2.bf16.msra.mxu0 0
        %6097 = vmatprep.mubr.bf16.mxu0 0
        %6098 = vmatmul.mubr.bf16.gmra.mxu0 %v6060
        %v6099 = vpop.f32.mrf.mxu0
        %v6100 = vadd.f32 0.0, %v6099
        %v6101 = vpop.f32.mrf.mxu0
        %v6102 = vpop.f32.mrf.mxu0
        %v6103 = vadd.f32 0.0, %v6102
        %v6104 = vpop.f32.mrf.mxu0
        %6105 = vmatprep.mubr.bf16.mxu0 0
        %6106 = vmatmul.mubr.bf16.gmra.mxu0 %v6063
        %v6107 = vpop.f32.mrf.mxu0
        %v6108 = vadd.f32 0.0, %v6107
        %v6109 = vpop.f32.mrf.mxu0
        %v6110 = vpop.f32.mrf.mxu0
        %v6111 = vadd.f32 0.0, %v6110
        %v6112 = vpop.f32.mrf.mxu0
        %6113 = vdwg.mxu0
        %v6114 = vadd.f32 %v6040, %v6100
        %v6115 = vadd.f32 %v6041, %v6103
        %v6116 = vadd.f32 %v6042, %v6108
        %v6117 = vadd.f32 %v6043, %v6111
        %v6118 = vld [vmem:[%s6044] sm:$0xf]
        %v6119 = vld [vmem:[%s6044 + $0x4] sm:$0xf]
        %v6120 = vld [vmem:[%s6044 + $0x8] sm:$0xf]
        %v6121 = vld [vmem:[%s6044 + $0xc] sm:$0xf]
        %v6122 = vld [vmem:[%s6044 + $0x10] sm:$0x1]
        %v6128 = vunpack.c.l.b16 %v6118
        %v6129 = vunpack.c.l.b16 %v6119
        %v6130 = vunpack.c.l.b16 %v6120
        %v6131 = vunpack.c.l.b16 %v6121
        %v6132 = vunpack.c.l.b16 %v6122
        %v6133 = vpack.c.b16 %v6129, %v6128
        %v6134 = vpack.c.b16 %v6131, %v6130
        %v6135 = vpack.c.b16 %v6132, %v6132
        %v6137 = vshrl.u32 %v6133, 16
        %v6139 = vshll.u32 %v6133, 16
        %v6141 = vrot.slane %v6139, 1
        %v6142 = vor.u32 %v6137, %v6141
        %v6144 = vshll.u32 %v6134, 16
        %v6146 = vrot.slane %v6144, 1
        %v6147 = vsel %vm394, %v6142, %v6146
        %v6148 = vshrl.u32 %v6134, 16
        %v6150 = vor.u32 %v6148, %v6146
        %v6152 = vshll.u32 %v6135, 16
        %v6154 = vrot.slane %v6152, 1
        %v6155 = vsel %vm394, %v6150, %v6154
        %v6157 = vsel %vm309, %v6147, 0
        %v6160 = vsel %vm309, %v6155, 0
        %6162 = vmatprep.subr.bf16.mxu0 0
        %6163 = vmatpush1.bf16.msra.mxu0 0
        %6164 = vmatprep.subr.bf16.mxu0 0
        %6165 = vmatpush1.bf16.msra.mxu0 0
        %6166 = vmatprep.subr.bf16.mxu0 0
        %6167 = vmatpush1.bf16.msra.mxu0 0
        %6168 = vmatprep.subr.bf16.mxu0 0
        %6169 = vmatpush1.bf16.msra.mxu0 0
        %6170 = vmatprep.subr.bf16.mxu0 0
        %6171 = vmatpush1.bf16.msra.mxu0 0
        %6172 = vmatprep.subr.bf16.mxu0 0
        %6173 = vmatpush1.bf16.msra.mxu0 0
        %6174 = vmatprep.subr.bf16.mxu0 0
        %6175 = vmatpush1.bf16.msra.mxu0 0
        %6176 = vmatprep.subr.bf16.mxu0 0
        %6177 = vmatpush1.bf16.msra.mxu0 %v978
        %6178 = vmatprep.subr.bf16.mxu0 0
        %6179 = vmatpush2.bf16.msra.mxu0 0
        %6180 = vmatprep.subr.bf16.mxu0 0
        %6181 = vmatpush2.bf16.msra.mxu0 0
        %6182 = vmatprep.subr.bf16.mxu0 0
        %6183 = vmatpush2.bf16.msra.mxu0 0
        %6184 = vmatprep.subr.bf16.mxu0 0
        %6185 = vmatpush2.bf16.msra.mxu0 0
        %6186 = vmatprep.subr.bf16.mxu0 0
        %6187 = vmatpush2.bf16.msra.mxu0 0
        %6188 = vmatprep.subr.bf16.mxu0 0
        %6189 = vmatpush2.bf16.msra.mxu0 0
        %6190 = vmatprep.subr.bf16.mxu0 0
        %6191 = vmatpush2.bf16.msra.mxu0 0
        %6192 = vmatprep.subr.bf16.mxu0 0
        %6193 = vmatpush2.bf16.msra.mxu0 0
        %6194 = vmatprep.mubr.bf16.mxu0 0
        %6195 = vmatmul.mubr.bf16.gmra.mxu0 %v6157
        %v6196 = vpop.f32.mrf.mxu0
        %v6197 = vadd.f32 0.0, %v6196
        %v6198 = vpop.f32.mrf.mxu0
        %v6199 = vpop.f32.mrf.mxu0
        %v6200 = vadd.f32 0.0, %v6199
        %v6201 = vpop.f32.mrf.mxu0
        %6202 = vmatprep.mubr.bf16.mxu0 0
        %6203 = vmatmul.mubr.bf16.gmra.mxu0 %v6160
        %v6204 = vpop.f32.mrf.mxu0
        %v6205 = vadd.f32 0.0, %v6204
        %v6206 = vpop.f32.mrf.mxu0
        %v6207 = vpop.f32.mrf.mxu0
        %v6208 = vadd.f32 0.0, %v6207
        %v6209 = vpop.f32.mrf.mxu0
        %6210 = vdwg.mxu0
        %v6211 = vadd.f32 %v6114, %v6197
        %v6212 = vadd.f32 %v6115, %v6200
        %v6213 = vadd.f32 %v6116, %v6205
        %v6214 = vadd.f32 %v6117, %v6208
        %v6215 = vld [vmem:[%s6044] sm:$0xe]
        %v6217 = vunpack.c.l.b16 %v6215
        %v6218 = vpack.c.b16 %v6129, %v6217
        %v6219 = vrot.slane %v6218, 1
        %v6220 = vrot.slane %v6134, 1
        %v6221 = vsel %vm492, %v6219, %v6220
        %v6222 = vrot.slane %v6135, 1
        %v6223 = vsel %vm492, %v6220, %v6222
        %v6225 = vsel %vm309, %v6221, 0
        %v6228 = vsel %vm309, %v6223, 0
        %6230 = vmatprep.subr.bf16.mxu0 0
        %6231 = vmatpush1.bf16.msra.mxu0 0
        %6232 = vmatprep.subr.bf16.mxu0 0
        %6233 = vmatpush1.bf16.msra.mxu0 0
        %6234 = vmatprep.subr.bf16.mxu0 0
        %6235 = vmatpush1.bf16.msra.mxu0 0
        %6236 = vmatprep.subr.bf16.mxu0 0
        %6237 = vmatpush1.bf16.msra.mxu0 0
        %6238 = vmatprep.subr.bf16.mxu0 0
        %6239 = vmatpush1.bf16.msra.mxu0 0
        %6240 = vmatprep.subr.bf16.mxu0 0
        %6241 = vmatpush1.bf16.msra.mxu0 0
        %6242 = vmatprep.subr.bf16.mxu0 0
        %6243 = vmatpush1.bf16.msra.mxu0 0
        %6244 = vmatprep.subr.bf16.mxu0 0
        %6245 = vmatpush1.bf16.msra.mxu0 %v1049
        %6246 = vmatprep.subr.bf16.mxu0 0
        %6247 = vmatpush2.bf16.msra.mxu0 0
        %6248 = vmatprep.subr.bf16.mxu0 0
        %6249 = vmatpush2.bf16.msra.mxu0 0
        %6250 = vmatprep.subr.bf16.mxu0 0
        %6251 = vmatpush2.bf16.msra.mxu0 0
        %6252 = vmatprep.subr.bf16.mxu0 0
        %6253 = vmatpush2.bf16.msra.mxu0 0
        %6254 = vmatprep.subr.bf16.mxu0 0
        %6255 = vmatpush2.bf16.msra.mxu0 0
        %6256 = vmatprep.subr.bf16.mxu0 0
        %6257 = vmatpush2.bf16.msra.mxu0 0
        %6258 = vmatprep.subr.bf16.mxu0 0
        %6259 = vmatpush2.bf16.msra.mxu0 0
        %6260 = vmatprep.subr.bf16.mxu0 0
        %6261 = vmatpush2.bf16.msra.mxu0 0
        %6262 = vmatprep.mubr.bf16.mxu0 0
        %6263 = vmatmul.mubr.bf16.gmra.mxu0 %v6225
        %v6264 = vpop.f32.mrf.mxu0
        %v6265 = vadd.f32 0.0, %v6264
        %v6266 = vpop.f32.mrf.mxu0
        %v6267 = vpop.f32.mrf.mxu0
        %v6268 = vadd.f32 0.0, %v6267
        %v6269 = vpop.f32.mrf.mxu0
        %6270 = vmatprep.mubr.bf16.mxu0 0
        %6271 = vmatmul.mubr.bf16.gmra.mxu0 %v6228
        %v6272 = vpop.f32.mrf.mxu0
        %v6273 = vadd.f32 0.0, %v6272
        %v6274 = vpop.f32.mrf.mxu0
        %v6275 = vpop.f32.mrf.mxu0
        %v6276 = vadd.f32 0.0, %v6275
        %v6277 = vpop.f32.mrf.mxu0
        %6278 = vdwg.mxu0
        %v6279 = vadd.f32 %v6211, %v6265
        %v6280 = vadd.f32 %v6212, %v6268
        %v6281 = vadd.f32 %v6213, %v6273
        %v6282 = vadd.f32 %v6214, %v6276
        %v6283 = vmax.f32 %v6279, 0.0
        %v6284 = vmax.f32 %v6280, 0.0
        %v6285 = vmax.f32 %v6281, 0.0
        %v6286 = vmax.f32 %v6282, 0.0
        %v6287 = vpack.c.bf16 %v6284, %v6283
        %v6288 = vpack.c.bf16 %v6286, %v6285
        %v6291 = vunpack.c.l.b16 %v6287
        %v6292 = vunpack.c.h.b16 %v6287
        %v6293 = vunpack.c.l.b16 %v6288
        %v6294 = vunpack.c.h.b16 %v6288
        %v6295 = vpack.c.b16 %v6291, %v6291
        %v6296 = vpack.c.b16 %v6292, %v6292
        %v6297 = vpack.c.b16 %v6293, %v6293
        %v6298 = vpack.c.b16 %v6294, %v6294
        %s6303 = scalar_lea.vmem %s250, 112 [#allocation2]
        %6304 = vst.msk [vmem:[%s6303] sm:$0xf] %vm1124, %v6295
        %6305 = vst.msk [vmem:[%s6303 + $0x4] sm:$0xf] %vm1124, %v6296
        %6306 = vst.msk [vmem:[%s6303 + $0x8] sm:$0xf] %vm1124, %v6297
        %6307 = vst.msk [vmem:[%s6303 + $0xc] sm:$0xf] %vm1124, %v6298
        %s6308 = sand.u32 %s140, 1
        %s6309 = scalar_lea.sflag [#allocation3], %s6308
        %s6310 = sand.u32 %s140, 1
        %s6311 = smul.addr %s6310, 128
        %s6312 = scalar_lea.vmem [#allocation2], %s6311
        // Predicated region
        $region37: #{tpu_custom_call.1} parent=35 // pred_check
          %p6313 = pneg %p150
        $region38: #{tpu_custom_call.1} parent=35 // pred_check_branch
          %6315 = sbr.rel (%p6313) target = $region40
        $region39: #{tpu_custom_call.1} parent=35 // pred_region
          %s6316 = smul.u32 8, %s23
          %s6318 = ssub.s32 2048, 2048
          %6319 = vsyncadd %s6309, %s6318
          %s6320 = smul.addr %s6316, 4
          %s6321 = smul.addr %s22, 128
          %s6322 = sadd.s32 %s6320, %s6321
          %s6323 = smul.addr %s6322, 64
          %s6324 = scalar_lea.hbm %s4, %s6323
          %s6325 = sshll.u32 %s6312, 4
          %s6326 = int_to_ptr.vmem [resolvable:$true] %s6325
          %6331 = dma.vmem_to_hbm [thread:$0]  %s6326, 2048, %s6324, %s6309, 64, 64, 4
        $region40: #{tpu_custom_call.1} parent=35 // pred_fallthru
          _
      $region36: #{tpu_custom_call.1} parent=5 // pred_fallthru
        _
      %p6332 = scmp.le.s32.totalorder 2, %s13
      // Predicated region
      $region41: #{tpu_custom_call.1} parent=5 // pred_check
        %p6333 = pneg %p6332
      $region42: #{tpu_custom_call.1} parent=5 // pred_check_branch
        %6335 = sbr.rel (%p6333) target = $region44
      $region43: #{tpu_custom_call.1} parent=5 // pred_region
        %s6336 = ssub.s32 %s13, 2
        // Predicated region
        $region45: #{tpu_custom_call.1} parent=43 // pred_check
          %p6337 = pneg %p156
        $region46: #{tpu_custom_call.1} parent=43 // pred_check_branch
          %6339 = sbr.rel (%p6337) target = $region48
        $region47: #{tpu_custom_call.1} parent=43 // pred_region
          %s6340 = sand.u32 %s141, 1
          %s6341 = scalar_lea.sflag [#allocation3], %s6340
          %s6342 = sand.u32 %s141, 1
          %s6343 = smul.addr %s6342, 128
          %s6344 = scalar_lea.vmem [#allocation2], %s6343
          %6345 = dma.done %s6341, 2048
        $region48: #{tpu_custom_call.1} parent=43 // pred_fallthru
          _
      $region44: #{tpu_custom_call.1} parent=5 // pred_fallthru
        _
    $region6: #{tpu_custom_call.1} parent=1 // loop_footer
      %s17 = sadd.s32 1, %s13
    $region7: #{tpu_custom_call.1} parent=1 // loop_footer_branch
      %12 = sbr.rel target = $region3
    $region8: #{tpu_custom_call.1} parent=1 // loop_exit
      _
    %6346 = vsyncpa [#allocation3], 1
    %s6347 = scalar_lea.sflag [#allocation3], 1
    %6348 = vsyncpa %s6347, 1

</llo_original>
